<compile_context>
chip_gen: v7x
topology: tpu7x:2x2x1
jax: 0.10.0
libtpu: 0.0.40
codegen_flags: <defaults>
</compile_context>

<pallas_src>
import math

import jax
import jax.numpy as jnp
from jax.experimental import pallas as pl
from jax.experimental.pallas import tpu as pltpu

# ------------------------- small synthetic configuration -----------------------
BATCH = 2
IMG_C, IMG_H, IMG_W = 3, 32, 32
PATCH = 8
N_PATCH = (IMG_H // PATCH) * (IMG_W // PATCH)      # 16
PATCH_DIM = IMG_C * PATCH * PATCH                  # 192
SEQ = N_PATCH + 1                                  # 17 (class token)
SEQ_PAD = 24                                       # padded to a multiple of 8
HIDDEN = 64                                        # vit_l_16 uses 1024; shrunk
HEADS = 4
HEAD_DIM = HIDDEN // HEADS
MLP_DIM = 4 * HIDDEN
LAYERS = 2                                         # vit_l_16 has 24; shrunk
META_DIM = 163
NUM_CLASSES = 6
LN_EPS = 1e-6                                      # torchvision ViT LayerNorm eps
BN_EPS = 1e-5                                      # BatchNorm1d eps
LRELU_SLOPE = 0.01                                 # nn.LeakyReLU default
ATTN_SCALE = 1.0 / math.sqrt(HEAD_DIM)
BS = BATCH * SEQ_PAD                               # 48 stacked residual rows


# ----------------------------- in-kernel helpers ---------------------------------
def _ln(x, g, b):
    # f32 LayerNorm (biased variance, rsqrt) — matches torch.
    mean = jnp.mean(x, axis=-1, keepdims=True)
    var = jnp.mean(jnp.square(x - mean), axis=-1, keepdims=True)
    return (x - mean) * jax.lax.rsqrt(var + LN_EPS) * g + b


def _bdot(a, w):
    # bf16 MXU inputs, f32 accumulation.
    return jnp.dot(a.astype(jnp.bfloat16), w.astype(jnp.bfloat16),
                   preferred_element_type=jnp.float32)


def _lrelu(y):
    return jnp.where(y >= 0, y, LRELU_SLOPE * y)


def _gelu_exact(x):
    # exact erf-GELU (torch nn.GELU default), kept in f32; erf runs on the EUP.
    return 0.5 * x * (1.0 + jax.lax.erf(x * (1.0 / math.sqrt(2.0))))


# ------------------------------- fused kernel ------------------------------------
def _vit_mlp_kernel(
    patches_ref, conv_w_ref, posbias_ref, meta_ref,
    ln1_g_ref, ln1_b_ref, qkv_w_ref, qkv_b_ref, out_w_ref, out_b_ref,
    ln2_g_ref, ln2_b_ref, mlp_w1_ref, mlp_b1_ref, mlp_w2_ref, mlp_b2_ref,
    lnf_g_ref, lnf_b_ref,
    hw1_ref, hb1_ref, hw2_ref, hb2_ref,
    mw1_ref, mb1_ref, mw2_ref, mb2_ref,
    w1_ref, b1_ref, w2_ref, b2_ref, w3_ref, b3_ref,
    o_ref,
):
    # --- patch embedding: Conv2d(k=stride=PATCH) == matmul on pre-padded flat
    #     patches; cls token + conv bias + positional embedding live in the
    #     constant posbias (zero pad rows stay exactly zero). ---
    x = _bdot(patches_ref[...], conv_w_ref[...]) + posbias_ref[...]   # (BS, H) f32

    # additive mask for padded key positions, hoisted out of the layer loop
    key_bias = jnp.where(
        jax.lax.broadcasted_iota(jnp.int32, (1, 1, SEQ_PAD), 2) < SEQ,
        0.0, -1e30).astype(jnp.float32)

    for l in range(LAYERS):                     # static unrolled layer loop
        # ---------------- self-attention sub-block ----------------
        y = _ln(x, ln1_g_ref[l], ln1_b_ref[l])
        qkv = _bdot(y, qkv_w_ref[l]) + qkv_b_ref[l]                  # (BS, 3H)
        qkv3 = qkv.reshape(BATCH, SEQ_PAD, 3 * HIDDEN)               # leading split
        ctx = []
        for h in range(HEADS):                  # static head loop, batched over B
            q = qkv3[:, :, h * HEAD_DIM:(h + 1) * HEAD_DIM]
            k = qkv3[:, :, HIDDEN + h * HEAD_DIM:HIDDEN + (h + 1) * HEAD_DIM]
            v = qkv3[:, :, 2 * HIDDEN + h * HEAD_DIM:2 * HIDDEN + (h + 1) * HEAD_DIM]
            s = jnp.einsum('bqd,bkd->bqk',
                           q.astype(jnp.bfloat16), k.astype(jnp.bfloat16),
                           preferred_element_type=jnp.float32)        # (B, S, S)
            s = s * ATTN_SCALE + key_bias                             # mask pad keys
            m = jnp.max(s, axis=-1, keepdims=True)
            e = jnp.exp(s - m)
            a = e / jnp.sum(e, axis=-1, keepdims=True)                # f32 softmax
            ctx.append(jnp.einsum('bqk,bkd->bqd',
                                  a.astype(jnp.bfloat16), v.astype(jnp.bfloat16),
                                  preferred_element_type=jnp.float32))  # (B, S, HD)
        o = jnp.concatenate(ctx, axis=-1).reshape(BS, HIDDEN)        # merge heads
        x = x + _bdot(o, out_w_ref[l]) + out_b_ref[l]

        # ---------------------- MLP sub-block ----------------------
        z = _ln(x, ln2_g_ref[l], ln2_b_ref[l])
        z = _bdot(z, mlp_w1_ref[l]) + mlp_b1_ref[l]                  # (BS, MLP_DIM)
        z = _gelu_exact(z)
        x = x + _bdot(z, mlp_w2_ref[l]) + mlp_b2_ref[l]              # (BS, H)

    # final LayerNorm on the cls rows only (rows b*SEQ_PAD)
    cls = jnp.concatenate(
        [x[b * SEQ_PAD:b * SEQ_PAD + 1, :] for b in range(BATCH)], axis=0)  # (B, H)
    cls = _ln(cls, lnf_g_ref[...], lnf_b_ref[...])

    # replaced vit.heads.head (BN folded, Dropout1d = identity in eval)
    h1 = _lrelu(_bdot(cls, hw1_ref[...]) + hb1_ref[...])             # (B, 256)
    vit_out = _lrelu(_bdot(h1, hw2_ref[...]) + hb2_ref[...])         # (B, 64)
    # metadata_fc
    m1 = _lrelu(_bdot(meta_ref[...], mw1_ref[...]) + mb1_ref[...])   # (B, 256)
    meta_out = _lrelu(_bdot(m1, mw2_ref[...]) + mb2_ref[...])        # (B, 64)
    # concat (metadata_out, vit_out) then mlp_head
    zc = jnp.concatenate([meta_out, vit_out], axis=1)                # (B, 128)
    hh = _lrelu(_bdot(zc, w1_ref[...]) + b1_ref[...])                # (B, 256)
    hh = _lrelu(_bdot(hh, w2_ref[...]) + b2_ref[...])                # (B, 128)
    o_ref[...] = _bdot(hh, w3_ref[...]) + b3_ref[...]                # (B, 6)


# ------------------------------ pallas_call glue ---------------------------------
def _const_spec(a):
    # full-array block, same block every grid step (stays VMEM-resident)
    return pl.BlockSpec(a.shape, lambda i, _nd=a.ndim: (0,) * _nd)


def vit_mlp_forward(params, img, metadata):
    B = img.shape[0]
    assert B == BATCH
    # patchify + pre-pad to SEQ_PAD rows per batch element (pure layout, host side)
    patches = img.reshape(B, IMG_C, IMG_H // PATCH, PATCH, IMG_W // PATCH, PATCH)
    patches = patches.transpose(0, 2, 4, 1, 3, 5).reshape(B, N_PATCH, PATCH_DIM)
    patches_pad = jnp.zeros((B, SEQ_PAD, PATCH_DIM), jnp.float32)
    patches_pad = patches_pad.at[:, 1:SEQ, :].set(patches)
    patches_pad = patches_pad.reshape(B * SEQ_PAD, PATCH_DIM)
    posbias = jnp.tile(params["posbias"], (B, 1))                     # (B*SEQ_PAD, H)

    args = [
        patches_pad, params["conv_w"], posbias, metadata,
        params["ln1_g"], params["ln1_b"], params["qkv_w"], params["qkv_b"],
        params["out_w"], params["out_b"],
        params["ln2_g"], params["ln2_b"],
        params["mlp_w1"], params["mlp_b1"], params["mlp_w2"], params["mlp_b2"],
        params["lnf_g"], params["lnf_b"],
        params["head_w1"], params["head_b1"], params["head_w2"], params["head_b2"],
        params["meta_w1"], params["meta_b1"], params["meta_w2"], params["meta_b2"],
        params["mhead_w1"], params["mhead_b1"], params["mhead_w2"], params["mhead_b2"],
        params["mhead_w3"], params["mhead_b3"],
    ]

    flops = (
        2 * BS * PATCH_DIM * HIDDEN
        + LAYERS * (2 * BS * HIDDEN * 3 * HIDDEN
                    + 4 * BATCH * HEADS * SEQ_PAD * SEQ_PAD * HEAD_DIM
                    + 2 * BS * HIDDEN * HIDDEN
                    + 4 * BS * HIDDEN * MLP_DIM)
        + 2 * BATCH * (HIDDEN * 256 + 256 * 64 + META_DIM * 256 + 256 * 64
                       + 128 * 256 + 256 * 128 + 128 * NUM_CLASSES))
    transcendentals = LAYERS * (BATCH * HEADS * SEQ_PAD * SEQ_PAD + BS * MLP_DIM)
    bytes_accessed = (sum(int(a.size) * a.dtype.itemsize for a in args)
                      + BATCH * NUM_CLASSES * 4)

    # NOTE(scaling): all weights are VMEM-resident here (<1 MiB). For real
    # ViT-L/16 dims add a LAYERS grid axis ("arbitrary") with per-layer weight
    # BlockSpecs so weights stream double-buffered layer by layer.
    return pl.pallas_call(
        _vit_mlp_kernel,
        grid=(1,),
        in_specs=[_const_spec(a) for a in args],
        out_specs=pl.BlockSpec((BATCH, NUM_CLASSES), lambda i: (0, 0)),
        out_shape=jax.ShapeDtypeStruct((BATCH, NUM_CLASSES), jnp.float32),
        compiler_params=pltpu.CompilerParams(
            dimension_semantics=("arbitrary",)),
        cost_estimate=pl.CostEstimate(
            flops=flops, transcendentals=transcendentals,
            bytes_accessed=bytes_accessed),
    )(*args)


# ------------------------------- parameters --------------------------------------
def _bn_fold(w, b):
    # eval-mode BatchNorm1d with default stats (mean=0, var=1, gamma=1, beta=0)
    # folded into the preceding Linear: y_bn = y * 1/sqrt(1+eps).
    scale = 1.0 / math.sqrt(1.0 + BN_EPS)
    return (w * scale).astype(jnp.bfloat16), (b * scale).reshape(1, -1)


def init_params(key):
    def nrm(k, shape, std=0.02):
        return std * jax.random.normal(k, shape, jnp.float32)

    keys = iter(jax.random.split(key, 64))
    p = {}
    # patch-embedding conv (Conv2d(3, HIDDEN, k=PATCH, stride=PATCH)) as a matmul
    conv_w = nrm(next(keys), (HIDDEN, IMG_C, PATCH, PATCH))
    p["conv_w"] = conv_w.reshape(HIDDEN, PATCH_DIM).T.astype(jnp.bfloat16)
    conv_b = nrm(next(keys), (HIDDEN,))
    cls = nrm(next(keys), (1, HIDDEN))
    pos = nrm(next(keys), (SEQ, HIDDEN))
    # fold cls token, conv bias and positional embedding into one constant:
    #   row 0      -> cls + pos[0]
    #   rows 1..16 -> conv_b + pos[i]
    #   rows 17+   -> 0 (padded rows stay exactly zero before the first LN)
    posbias = jnp.zeros((SEQ_PAD, HIDDEN), jnp.float32)
    posbias = posbias.at[0].set(cls[0] + pos[0])
    posbias = posbias.at[1:SEQ].set(pos[1:] + conv_b)
    p["posbias"] = posbias

    # transformer blocks, stacked along a leading LAYERS axis
    p["ln1_g"] = jnp.ones((LAYERS, 1, HIDDEN), jnp.float32)
    p["ln1_b"] = jnp.zeros((LAYERS, 1, HIDDEN), jnp.float32)
    p["ln2_g"] = jnp.ones((LAYERS, 1, HIDDEN), jnp.float32)
    p["ln2_b"] = jnp.zeros((LAYERS, 1, HIDDEN), jnp.float32)
    p["qkv_w"] = jnp.stack([nrm(next(keys), (HIDDEN, 3 * HIDDEN))
                            for _ in range(LAYERS)]).astype(jnp.bfloat16)
    p["qkv_b"] = jnp.stack([nrm(next(keys), (3 * HIDDEN,))
                            for _ in range(LAYERS)]).reshape(LAYERS, 1, 3 * HIDDEN)
    p["out_w"] = jnp.stack([nrm(next(keys), (HIDDEN, HIDDEN))
                            for _ in range(LAYERS)]).astype(jnp.bfloat16)
    p["out_b"] = jnp.stack([nrm(next(keys), (HIDDEN,))
                            for _ in range(LAYERS)]).reshape(LAYERS, 1, HIDDEN)
    p["mlp_w1"] = jnp.stack([nrm(next(keys), (HIDDEN, MLP_DIM))
                             for _ in range(LAYERS)]).astype(jnp.bfloat16)
    p["mlp_b1"] = jnp.stack([nrm(next(keys), (MLP_DIM,))
                             for _ in range(LAYERS)]).reshape(LAYERS, 1, MLP_DIM)
    p["mlp_w2"] = jnp.stack([nrm(next(keys), (MLP_DIM, HIDDEN))
                             for _ in range(LAYERS)]).astype(jnp.bfloat16)
    p["mlp_b2"] = jnp.stack([nrm(next(keys), (HIDDEN,))
                             for _ in range(LAYERS)]).reshape(LAYERS, 1, HIDDEN)
    p["lnf_g"] = jnp.ones((1, HIDDEN), jnp.float32)
    p["lnf_b"] = jnp.zeros((1, HIDDEN), jnp.float32)

    # replaced vit.heads.head: Linear(H,256)+BN+LReLU+Drop+Linear(256,64)+BN+LReLU
    p["head_w1"], p["head_b1"] = _bn_fold(nrm(next(keys), (HIDDEN, 256)),
                                          nrm(next(keys), (256,)))
    p["head_w2"], p["head_b2"] = _bn_fold(nrm(next(keys), (256, 64)),
                                          nrm(next(keys), (64,)))
    # metadata_fc: Linear(163,256)+BN+LReLU+Drop+Linear(256,64)+BN+LReLU
    p["meta_w1"], p["meta_b1"] = _bn_fold(nrm(next(keys), (META_DIM, 256)),
                                          nrm(next(keys), (256,)))
    p["meta_w2"], p["meta_b2"] = _bn_fold(nrm(next(keys), (256, 64)),
                                          nrm(next(keys), (64,)))
    # mlp_head: Linear(128,256)+BN+LReLU+Drop+Linear(256,128)+BN+LReLU+Linear(128,6)
    p["mhead_w1"], p["mhead_b1"] = _bn_fold(nrm(next(keys), (128, 256)),
                                            nrm(next(keys), (256,)))
    p["mhead_w2"], p["mhead_b2"] = _bn_fold(nrm(next(keys), (256, 128)),
                                            nrm(next(keys), (128,)))
    p["mhead_w3"] = nrm(next(keys), (128, NUM_CLASSES)).astype(jnp.bfloat16)
    p["mhead_b3"] = nrm(next(keys), (NUM_CLASSES,)).reshape(1, NUM_CLASSES)
    return p


# ----------------------------------- main -----------------------------------------
if __name__ == "__main__":
    key = jax.random.PRNGKey(0)
    k_params, k_img, k_meta = jax.random.split(key, 3)
    params = init_params(k_params)
    img = jax.random.normal(k_img, (BATCH, IMG_C, IMG_H, IMG_W), jnp.float32)  # NCHW
    metadata = jax.random.normal(k_meta, (BATCH, META_DIM), jnp.float32)

    out = jax.jit(vit_mlp_forward)(params, img, metadata)
    out = jax.block_until_ready(out)
    assert out.shape == (BATCH, NUM_CLASSES) and out.dtype == jnp.float32
    assert bool(jnp.all(jnp.isfinite(out)))
    print("KERNEL_OK")
</pallas_src>

<mosaic_0001>
module attributes {stable_mosaic.version = 11 : i64} {
  func.func @_vit_mlp_kernel(%arg0: i32, %arg1: memref<48x192xf32, #tpu.memory_space<vmem>>, %arg2: memref<192x64xbf16, #tpu.memory_space<vmem>>, %arg3: memref<48x64xf32, #tpu.memory_space<vmem>>, %arg4: memref<2x163xf32, #tpu.memory_space<vmem>>, %arg5: memref<2x1x64xf32, #tpu.memory_space<vmem>>, %arg6: memref<2x1x64xf32, #tpu.memory_space<vmem>>, %arg7: memref<2x64x192xbf16, #tpu.memory_space<vmem>>, %arg8: memref<2x1x192xf32, #tpu.memory_space<vmem>>, %arg9: memref<2x64x64xbf16, #tpu.memory_space<vmem>>, %arg10: memref<2x1x64xf32, #tpu.memory_space<vmem>>, %arg11: memref<2x1x64xf32, #tpu.memory_space<vmem>>, %arg12: memref<2x1x64xf32, #tpu.memory_space<vmem>>, %arg13: memref<2x64x256xbf16, #tpu.memory_space<vmem>>, %arg14: memref<2x1x256xf32, #tpu.memory_space<vmem>>, %arg15: memref<2x256x64xbf16, #tpu.memory_space<vmem>>, %arg16: memref<2x1x64xf32, #tpu.memory_space<vmem>>, %arg17: memref<1x64xf32, #tpu.memory_space<vmem>>, %arg18: memref<1x64xf32, #tpu.memory_space<vmem>>, %arg19: memref<64x256xbf16, #tpu.memory_space<vmem>>, %arg20: memref<1x256xf32, #tpu.memory_space<vmem>>, %arg21: memref<256x64xbf16, #tpu.memory_space<vmem>>, %arg22: memref<1x64xf32, #tpu.memory_space<vmem>>, %arg23: memref<163x256xbf16, #tpu.memory_space<vmem>>, %arg24: memref<1x256xf32, #tpu.memory_space<vmem>>, %arg25: memref<256x64xbf16, #tpu.memory_space<vmem>>, %arg26: memref<1x64xf32, #tpu.memory_space<vmem>>, %arg27: memref<128x256xbf16, #tpu.memory_space<vmem>>, %arg28: memref<1x256xf32, #tpu.memory_space<vmem>>, %arg29: memref<256x128xbf16, #tpu.memory_space<vmem>>, %arg30: memref<1x128xf32, #tpu.memory_space<vmem>>, %arg31: memref<128x6xbf16, #tpu.memory_space<vmem>>, %arg32: memref<1x6xf32, #tpu.memory_space<vmem>>, %arg33: memref<2x6xf32, #tpu.memory_space<vmem>>) attributes {dimension_semantics = [#tpu.dimension_semantics<arbitrary>], iteration_bounds = array<i64: 1>, scalar_prefetch = 0 : i64, scratch_operands = 0 : i64, tpu.core_type = #tpu.core_type<tc>, window_params = [{pipeline_mode = #tpu.pipeline_mode<synchronous>, transform_indices = @transform_0, window_bounds = array<i64: 48, 192>}, {pipeline_mode = #tpu.pipeline_mode<synchronous>, transform_indices = @transform_1, window_bounds = array<i64: 192, 64>}, {pipeline_mode = #tpu.pipeline_mode<synchronous>, transform_indices = @transform_2, window_bounds = array<i64: 48, 64>}, {pipeline_mode = #tpu.pipeline_mode<synchronous>, transform_indices = @transform_3, window_bounds = array<i64: 2, 163>}, {pipeline_mode = #tpu.pipeline_mode<synchronous>, transform_indices = @transform_4, window_bounds = array<i64: 2, 1, 64>}, {pipeline_mode = #tpu.pipeline_mode<synchronous>, transform_indices = @transform_5, window_bounds = array<i64: 2, 1, 64>}, {pipeline_mode = #tpu.pipeline_mode<synchronous>, transform_indices = @transform_6, window_bounds = array<i64: 2, 64, 192>}, {pipeline_mode = #tpu.pipeline_mode<synchronous>, transform_indices = @transform_7, window_bounds = array<i64: 2, 1, 192>}, {pipeline_mode = #tpu.pipeline_mode<synchronous>, transform_indices = @transform_8, window_bounds = array<i64: 2, 64, 64>}, {pipeline_mode = #tpu.pipeline_mode<synchronous>, transform_indices = @transform_9, window_bounds = array<i64: 2, 1, 64>}, {pipeline_mode = #tpu.pipeline_mode<synchronous>, transform_indices = @transform_10, window_bounds = array<i64: 2, 1, 64>}, {pipeline_mode = #tpu.pipeline_mode<synchronous>, transform_indices = @transform_11, window_bounds = array<i64: 2, 1, 64>}, {pipeline_mode = #tpu.pipeline_mode<synchronous>, transform_indices = @transform_12, window_bounds = array<i64: 2, 64, 256>}, {pipeline_mode = #tpu.pipeline_mode<synchronous>, transform_indices = @transform_13, window_bounds = array<i64: 2, 1, 256>}, {pipeline_mode = #tpu.pipeline_mode<synchronous>, transform_indices = @transform_14, window_bounds = array<i64: 2, 256, 64>}, {pipeline_mode = #tpu.pipeline_mode<synchronous>, transform_indices = @transform_15, window_bounds = array<i64: 2, 1, 64>}, {pipeline_mode = #tpu.pipeline_mode<synchronous>, transform_indices = @transform_16, window_bounds = array<i64: 1, 64>}, {pipeline_mode = #tpu.pipeline_mode<synchronous>, transform_indices = @transform_17, window_bounds = array<i64: 1, 64>}, {pipeline_mode = #tpu.pipeline_mode<synchronous>, transform_indices = @transform_18, window_bounds = array<i64: 64, 256>}, {pipeline_mode = #tpu.pipeline_mode<synchronous>, transform_indices = @transform_19, window_bounds = array<i64: 1, 256>}, {pipeline_mode = #tpu.pipeline_mode<synchronous>, transform_indices = @transform_20, window_bounds = array<i64: 256, 64>}, {pipeline_mode = #tpu.pipeline_mode<synchronous>, transform_indices = @transform_21, window_bounds = array<i64: 1, 64>}, {pipeline_mode = #tpu.pipeline_mode<synchronous>, transform_indices = @transform_22, window_bounds = array<i64: 163, 256>}, {pipeline_mode = #tpu.pipeline_mode<synchronous>, transform_indices = @transform_23, window_bounds = array<i64: 1, 256>}, {pipeline_mode = #tpu.pipeline_mode<synchronous>, transform_indices = @transform_24, window_bounds = array<i64: 256, 64>}, {pipeline_mode = #tpu.pipeline_mode<synchronous>, transform_indices = @transform_25, window_bounds = array<i64: 1, 64>}, {pipeline_mode = #tpu.pipeline_mode<synchronous>, transform_indices = @transform_26, window_bounds = array<i64: 128, 256>}, {pipeline_mode = #tpu.pipeline_mode<synchronous>, transform_indices = @transform_27, window_bounds = array<i64: 1, 256>}, {pipeline_mode = #tpu.pipeline_mode<synchronous>, transform_indices = @transform_28, window_bounds = array<i64: 256, 128>}, {pipeline_mode = #tpu.pipeline_mode<synchronous>, transform_indices = @transform_29, window_bounds = array<i64: 1, 128>}, {pipeline_mode = #tpu.pipeline_mode<synchronous>, transform_indices = @transform_30, window_bounds = array<i64: 128, 6>}, {pipeline_mode = #tpu.pipeline_mode<synchronous>, transform_indices = @transform_31, window_bounds = array<i64: 1, 6>}, {pipeline_mode = #tpu.pipeline_mode<synchronous>, transform_indices = @transform_32, window_bounds = array<i64: 2, 6>}]} {
    %c0 = arith.constant 0 : index
    %c0_0 = arith.constant 0 : index
    %0 = vector.load %arg1[%c0, %c0_0] : memref<48x192xf32, #tpu.memory_space<vmem>>, vector<48x192xf32>
    %c0_1 = arith.constant 0 : index
    %c0_2 = arith.constant 0 : index
    %1 = vector.load %arg2[%c0_1, %c0_2] : memref<192x64xbf16, #tpu.memory_space<vmem>>, vector<192x64xbf16>
    %2 = arith.truncf %0 : vector<48x192xf32> to vector<48x192xbf16>
    %cst = arith.constant dense<0.000000e+00> : vector<48x64xf32>
    %3 = tpu.matmul %2, %1, %cst {dimension_numbers = #tpu.dot_dimension_numbers<[1], [0], [0], [1], [0, 0, 1, 1], [], []>} : vector<48x192xbf16>, vector<192x64xbf16>, vector<48x64xf32> -> vector<48x64xf32>
    %c0_3 = arith.constant 0 : index
    %c0_4 = arith.constant 0 : index
    %4 = vector.load %arg3[%c0_3, %c0_4] : memref<48x64xf32, #tpu.memory_space<vmem>>, vector<48x64xf32>
    %5 = arith.addf %3, %4 : vector<48x64xf32>
    %6 = tpu.iota {dimensions = array<i32: 2>} : vector<1x1x24xi32>
    %c17_i32 = arith.constant 17 : i32
    %7 = vector.broadcast %c17_i32 : i32 to vector<1x1x24xi32>
    %8 = arith.cmpi slt, %6, %7 : vector<1x1x24xi32>
    %cst_5 = arith.constant 0.000000e+00 : f32
    %cst_6 = arith.constant -1.000000e+30 : f32
    %9 = vector.broadcast %cst_5 : f32 to vector<1x1x24xf32>
    %10 = vector.broadcast %cst_6 : f32 to vector<1x1x24xf32>
    %11 = arith.select %8, %9, %10 : vector<1x1x24xi1>, vector<1x1x24xf32>
    %c0_7 = arith.constant 0 : index
    %c0_8 = arith.constant 0 : index
    %c0_9 = arith.constant 0 : index
    %12 = vector.load %arg5[%c0_7, %c0_8, %c0_9] : memref<2x1x64xf32, #tpu.memory_space<vmem>>, vector<1x1x64xf32>
    %13 = vector.shape_cast %12 : vector<1x1x64xf32> to vector<1x64xf32>
    %c0_10 = arith.constant 0 : index
    %c0_11 = arith.constant 0 : index
    %c0_12 = arith.constant 0 : index
    %14 = vector.load %arg6[%c0_10, %c0_11, %c0_12] : memref<2x1x64xf32, #tpu.memory_space<vmem>>, vector<1x1x64xf32>
    %15 = vector.shape_cast %14 : vector<1x1x64xf32> to vector<1x64xf32>
    %cst_13 = arith.constant dense<0.000000e+00> : vector<48xf32>
    %16 = vector.multi_reduction <add>, %5, %cst_13 [1] : vector<48x64xf32> to vector<48xf32>
    %17 = vector.shape_cast %16 : vector<48xf32> to vector<48x1xf32>
    %cst_14 = arith.constant 6.400000e+01 : f32
    %18 = vector.broadcast %cst_14 : f32 to vector<48x1xf32>
    %19 = arith.divf %17, %18 : vector<48x1xf32>
    %20 = vector.broadcast %19 : vector<48x1xf32> to vector<48x64xf32>
    %21 = arith.subf %5, %20 : vector<48x64xf32>
    %22 = arith.mulf %21, %21 : vector<48x64xf32>
    %cst_15 = arith.constant dense<0.000000e+00> : vector<48xf32>
    %23 = vector.multi_reduction <add>, %22, %cst_15 [1] : vector<48x64xf32> to vector<48xf32>
    %24 = vector.shape_cast %23 : vector<48xf32> to vector<48x1xf32>
    %cst_16 = arith.constant 6.400000e+01 : f32
    %25 = vector.broadcast %cst_16 : f32 to vector<48x1xf32>
    %26 = arith.divf %24, %25 : vector<48x1xf32>
    %27 = vector.broadcast %19 : vector<48x1xf32> to vector<48x64xf32>
    %28 = arith.subf %5, %27 : vector<48x64xf32>
    %cst_17 = arith.constant 9.99999997E-7 : f32
    %29 = vector.broadcast %cst_17 : f32 to vector<48x1xf32>
    %30 = arith.addf %26, %29 : vector<48x1xf32>
    %31 = math.rsqrt %30 : vector<48x1xf32>
    %32 = vector.broadcast %31 : vector<48x1xf32> to vector<48x64xf32>
    %33 = arith.mulf %28, %32 : vector<48x64xf32>
    %34 = vector.broadcast %13 : vector<1x64xf32> to vector<48x64xf32>
    %35 = arith.mulf %33, %34 : vector<48x64xf32>
    %36 = vector.broadcast %15 : vector<1x64xf32> to vector<48x64xf32>
    %37 = arith.addf %35, %36 : vector<48x64xf32>
    %c0_18 = arith.constant 0 : index
    %c0_19 = arith.constant 0 : index
    %c0_20 = arith.constant 0 : index
    %38 = vector.load %arg7[%c0_18, %c0_19, %c0_20] : memref<2x64x192xbf16, #tpu.memory_space<vmem>>, vector<1x64x192xbf16>
    %39 = vector.shape_cast %38 : vector<1x64x192xbf16> to vector<64x192xbf16>
    %40 = arith.truncf %37 : vector<48x64xf32> to vector<48x64xbf16>
    %cst_21 = arith.constant dense<0.000000e+00> : vector<48x192xf32>
    %41 = tpu.matmul %40, %39, %cst_21 {dimension_numbers = #tpu.dot_dimension_numbers<[1], [0], [0], [1], [0, 0, 1, 1], [], []>} : vector<48x64xbf16>, vector<64x192xbf16>, vector<48x192xf32> -> vector<48x192xf32>
    %c0_22 = arith.constant 0 : index
    %c0_23 = arith.constant 0 : index
    %c0_24 = arith.constant 0 : index
    %42 = vector.load %arg8[%c0_22, %c0_23, %c0_24] : memref<2x1x192xf32, #tpu.memory_space<vmem>>, vector<1x1x192xf32>
    %43 = vector.shape_cast %42 : vector<1x1x192xf32> to vector<1x192xf32>
    %44 = vector.broadcast %43 : vector<1x192xf32> to vector<48x192xf32>
    %45 = arith.addf %41, %44 : vector<48x192xf32>
    %46 = vector.shape_cast %45 : vector<48x192xf32> to vector<2x24x192xf32>
    %47 = vector.extract_strided_slice %46 {offsets = [0, 0, 0], sizes = [2, 24, 16], strides = [1, 1, 1]} : vector<2x24x192xf32> to vector<2x24x16xf32>
    %48 = vector.extract_strided_slice %46 {offsets = [0, 0, 64], sizes = [2, 24, 16], strides = [1, 1, 1]} : vector<2x24x192xf32> to vector<2x24x16xf32>
    %49 = vector.extract_strided_slice %46 {offsets = [0, 0, 128], sizes = [2, 24, 16], strides = [1, 1, 1]} : vector<2x24x192xf32> to vector<2x24x16xf32>
    %50 = arith.truncf %47 : vector<2x24x16xf32> to vector<2x24x16xbf16>
    %51 = arith.truncf %48 : vector<2x24x16xf32> to vector<2x24x16xbf16>
    "tpu.trace_start"() <{level = 10 : i32, message = "bqd,bkd->bqk"}> : () -> ()
    %cst_25 = arith.constant dense<0.000000e+00> : vector<2x24x24xf32>
    %52 = tpu.matmul %50, %51, %cst_25 {dimension_numbers = #tpu.dot_dimension_numbers<[2], [2], [1], [1], [0, 0, 0, 1, 1, 1], [0], [0]>} : vector<2x24x16xbf16>, vector<2x24x16xbf16>, vector<2x24x24xf32> -> vector<2x24x24xf32>
    "tpu.trace_stop"() : () -> ()
    %cst_26 = arith.constant 2.500000e-01 : f32
    %53 = vector.broadcast %cst_26 : f32 to vector<2x24x24xf32>
    %54 = arith.mulf %52, %53 : vector<2x24x24xf32>
    %55 = vector.broadcast %11 : vector<1x1x24xf32> to vector<2x24x24xf32>
    %56 = arith.addf %54, %55 : vector<2x24x24xf32>
    %cst_27 = arith.constant dense<0xFF800000> : vector<2x24xf32>
    %57 = vector.multi_reduction <maximumf>, %56, %cst_27 [2] : vector<2x24x24xf32> to vector<2x24xf32>
    %58 = vector.shape_cast %57 : vector<2x24xf32> to vector<2x24x1xf32>
    %59 = vector.broadcast %58 : vector<2x24x1xf32> to vector<2x24x24xf32>
    %60 = arith.subf %56, %59 : vector<2x24x24xf32>
    %61 = math.exp %60 : vector<2x24x24xf32>
    %cst_28 = arith.constant dense<0.000000e+00> : vector<2x24xf32>
    %62 = vector.multi_reduction <add>, %61, %cst_28 [2] : vector<2x24x24xf32> to vector<2x24xf32>
    %63 = vector.shape_cast %62 : vector<2x24xf32> to vector<2x24x1xf32>
    %64 = vector.broadcast %63 : vector<2x24x1xf32> to vector<2x24x24xf32>
    %65 = arith.divf %61, %64 : vector<2x24x24xf32>
    %66 = arith.truncf %65 : vector<2x24x24xf32> to vector<2x24x24xbf16>
    %67 = arith.truncf %49 : vector<2x24x16xf32> to vector<2x24x16xbf16>
    "tpu.trace_start"() <{level = 10 : i32, message = "bqk,bkd->bqd"}> : () -> ()
    %cst_29 = arith.constant dense<0.000000e+00> : vector<2x24x16xf32>
    %68 = tpu.matmul %66, %67, %cst_29 {dimension_numbers = #tpu.dot_dimension_numbers<[2], [1], [1], [2], [0, 0, 0, 1, 1, 2], [0], [0]>} : vector<2x24x24xbf16>, vector<2x24x16xbf16>, vector<2x24x16xf32> -> vector<2x24x16xf32>
    "tpu.trace_stop"() : () -> ()
    %69 = vector.extract_strided_slice %46 {offsets = [0, 0, 16], sizes = [2, 24, 16], strides = [1, 1, 1]} : vector<2x24x192xf32> to vector<2x24x16xf32>
    %70 = vector.extract_strided_slice %46 {offsets = [0, 0, 80], sizes = [2, 24, 16], strides = [1, 1, 1]} : vector<2x24x192xf32> to vector<2x24x16xf32>
    %71 = vector.extract_strided_slice %46 {offsets = [0, 0, 144], sizes = [2, 24, 16], strides = [1, 1, 1]} : vector<2x24x192xf32> to vector<2x24x16xf32>
    %72 = arith.truncf %69 : vector<2x24x16xf32> to vector<2x24x16xbf16>
    %73 = arith.truncf %70 : vector<2x24x16xf32> to vector<2x24x16xbf16>
    "tpu.trace_start"() <{level = 10 : i32, message = "bqd,bkd->bqk"}> : () -> ()
    %cst_30 = arith.constant dense<0.000000e+00> : vector<2x24x24xf32>
    %74 = tpu.matmul %72, %73, %cst_30 {dimension_numbers = #tpu.dot_dimension_numbers<[2], [2], [1], [1], [0, 0, 0, 1, 1, 1], [0], [0]>} : vector<2x24x16xbf16>, vector<2x24x16xbf16>, vector<2x24x24xf32> -> vector<2x24x24xf32>
    "tpu.trace_stop"() : () -> ()
    %cst_31 = arith.constant 2.500000e-01 : f32
    %75 = vector.broadcast %cst_31 : f32 to vector<2x24x24xf32>
    %76 = arith.mulf %74, %75 : vector<2x24x24xf32>
    %77 = vector.broadcast %11 : vector<1x1x24xf32> to vector<2x24x24xf32>
    %78 = arith.addf %76, %77 : vector<2x24x24xf32>
    %cst_32 = arith.constant dense<0xFF800000> : vector<2x24xf32>
    %79 = vector.multi_reduction <maximumf>, %78, %cst_32 [2] : vector<2x24x24xf32> to vector<2x24xf32>
    %80 = vector.shape_cast %79 : vector<2x24xf32> to vector<2x24x1xf32>
    %81 = vector.broadcast %80 : vector<2x24x1xf32> to vector<2x24x24xf32>
    %82 = arith.subf %78, %81 : vector<2x24x24xf32>
    %83 = math.exp %82 : vector<2x24x24xf32>
    %cst_33 = arith.constant dense<0.000000e+00> : vector<2x24xf32>
    %84 = vector.multi_reduction <add>, %83, %cst_33 [2] : vector<2x24x24xf32> to vector<2x24xf32>
    %85 = vector.shape_cast %84 : vector<2x24xf32> to vector<2x24x1xf32>
    %86 = vector.broadcast %85 : vector<2x24x1xf32> to vector<2x24x24xf32>
    %87 = arith.divf %83, %86 : vector<2x24x24xf32>
    %88 = arith.truncf %87 : vector<2x24x24xf32> to vector<2x24x24xbf16>
    %89 = arith.truncf %71 : vector<2x24x16xf32> to vector<2x24x16xbf16>
    "tpu.trace_start"() <{level = 10 : i32, message = "bqk,bkd->bqd"}> : () -> ()
    %cst_34 = arith.constant dense<0.000000e+00> : vector<2x24x16xf32>
    %90 = tpu.matmul %88, %89, %cst_34 {dimension_numbers = #tpu.dot_dimension_numbers<[2], [1], [1], [2], [0, 0, 0, 1, 1, 2], [0], [0]>} : vector<2x24x24xbf16>, vector<2x24x16xbf16>, vector<2x24x16xf32> -> vector<2x24x16xf32>
    "tpu.trace_stop"() : () -> ()
    %91 = vector.extract_strided_slice %46 {offsets = [0, 0, 32], sizes = [2, 24, 16], strides = [1, 1, 1]} : vector<2x24x192xf32> to vector<2x24x16xf32>
    %92 = vector.extract_strided_slice %46 {offsets = [0, 0, 96], sizes = [2, 24, 16], strides = [1, 1, 1]} : vector<2x24x192xf32> to vector<2x24x16xf32>
    %93 = vector.extract_strided_slice %46 {offsets = [0, 0, 160], sizes = [2, 24, 16], strides = [1, 1, 1]} : vector<2x24x192xf32> to vector<2x24x16xf32>
    %94 = arith.truncf %91 : vector<2x24x16xf32> to vector<2x24x16xbf16>
    %95 = arith.truncf %92 : vector<2x24x16xf32> to vector<2x24x16xbf16>
    "tpu.trace_start"() <{level = 10 : i32, message = "bqd,bkd->bqk"}> : () -> ()
    %cst_35 = arith.constant dense<0.000000e+00> : vector<2x24x24xf32>
    %96 = tpu.matmul %94, %95, %cst_35 {dimension_numbers = #tpu.dot_dimension_numbers<[2], [2], [1], [1], [0, 0, 0, 1, 1, 1], [0], [0]>} : vector<2x24x16xbf16>, vector<2x24x16xbf16>, vector<2x24x24xf32> -> vector<2x24x24xf32>
    "tpu.trace_stop"() : () -> ()
    %cst_36 = arith.constant 2.500000e-01 : f32
    %97 = vector.broadcast %cst_36 : f32 to vector<2x24x24xf32>
    %98 = arith.mulf %96, %97 : vector<2x24x24xf32>
    %99 = vector.broadcast %11 : vector<1x1x24xf32> to vector<2x24x24xf32>
    %100 = arith.addf %98, %99 : vector<2x24x24xf32>
    %cst_37 = arith.constant dense<0xFF800000> : vector<2x24xf32>
    %101 = vector.multi_reduction <maximumf>, %100, %cst_37 [2] : vector<2x24x24xf32> to vector<2x24xf32>
    %102 = vector.shape_cast %101 : vector<2x24xf32> to vector<2x24x1xf32>
    %103 = vector.broadcast %102 : vector<2x24x1xf32> to vector<2x24x24xf32>
    %104 = arith.subf %100, %103 : vector<2x24x24xf32>
    %105 = math.exp %104 : vector<2x24x24xf32>
    %cst_38 = arith.constant dense<0.000000e+00> : vector<2x24xf32>
    %106 = vector.multi_reduction <add>, %105, %cst_38 [2] : vector<2x24x24xf32> to vector<2x24xf32>
    %107 = vector.shape_cast %106 : vector<2x24xf32> to vector<2x24x1xf32>
    %108 = vector.broadcast %107 : vector<2x24x1xf32> to vector<2x24x24xf32>
    %109 = arith.divf %105, %108 : vector<2x24x24xf32>
    %110 = arith.truncf %109 : vector<2x24x24xf32> to vector<2x24x24xbf16>
    %111 = arith.truncf %93 : vector<2x24x16xf32> to vector<2x24x16xbf16>
    "tpu.trace_start"() <{level = 10 : i32, message = "bqk,bkd->bqd"}> : () -> ()
    %cst_39 = arith.constant dense<0.000000e+00> : vector<2x24x16xf32>
    %112 = tpu.matmul %110, %111, %cst_39 {dimension_numbers = #tpu.dot_dimension_numbers<[2], [1], [1], [2], [0, 0, 0, 1, 1, 2], [0], [0]>} : vector<2x24x24xbf16>, vector<2x24x16xbf16>, vector<2x24x16xf32> -> vector<2x24x16xf32>
    "tpu.trace_stop"() : () -> ()
    %113 = vector.extract_strided_slice %46 {offsets = [0, 0, 48], sizes = [2, 24, 16], strides = [1, 1, 1]} : vector<2x24x192xf32> to vector<2x24x16xf32>
    %114 = vector.extract_strided_slice %46 {offsets = [0, 0, 112], sizes = [2, 24, 16], strides = [1, 1, 1]} : vector<2x24x192xf32> to vector<2x24x16xf32>
    %115 = vector.extract_strided_slice %46 {offsets = [0, 0, 176], sizes = [2, 24, 16], strides = [1, 1, 1]} : vector<2x24x192xf32> to vector<2x24x16xf32>
    %116 = arith.truncf %113 : vector<2x24x16xf32> to vector<2x24x16xbf16>
    %117 = arith.truncf %114 : vector<2x24x16xf32> to vector<2x24x16xbf16>
    "tpu.trace_start"() <{level = 10 : i32, message = "bqd,bkd->bqk"}> : () -> ()
    %cst_40 = arith.constant dense<0.000000e+00> : vector<2x24x24xf32>
    %118 = tpu.matmul %116, %117, %cst_40 {dimension_numbers = #tpu.dot_dimension_numbers<[2], [2], [1], [1], [0, 0, 0, 1, 1, 1], [0], [0]>} : vector<2x24x16xbf16>, vector<2x24x16xbf16>, vector<2x24x24xf32> -> vector<2x24x24xf32>
    "tpu.trace_stop"() : () -> ()
    %cst_41 = arith.constant 2.500000e-01 : f32
    %119 = vector.broadcast %cst_41 : f32 to vector<2x24x24xf32>
    %120 = arith.mulf %118, %119 : vector<2x24x24xf32>
    %121 = vector.broadcast %11 : vector<1x1x24xf32> to vector<2x24x24xf32>
    %122 = arith.addf %120, %121 : vector<2x24x24xf32>
    %cst_42 = arith.constant dense<0xFF800000> : vector<2x24xf32>
    %123 = vector.multi_reduction <maximumf>, %122, %cst_42 [2] : vector<2x24x24xf32> to vector<2x24xf32>
    %124 = vector.shape_cast %123 : vector<2x24xf32> to vector<2x24x1xf32>
    %125 = vector.broadcast %124 : vector<2x24x1xf32> to vector<2x24x24xf32>
    %126 = arith.subf %122, %125 : vector<2x24x24xf32>
    %127 = math.exp %126 : vector<2x24x24xf32>
    %cst_43 = arith.constant dense<0.000000e+00> : vector<2x24xf32>
    %128 = vector.multi_reduction <add>, %127, %cst_43 [2] : vector<2x24x24xf32> to vector<2x24xf32>
    %129 = vector.shape_cast %128 : vector<2x24xf32> to vector<2x24x1xf32>
    %130 = vector.broadcast %129 : vector<2x24x1xf32> to vector<2x24x24xf32>
    %131 = arith.divf %127, %130 : vector<2x24x24xf32>
    %132 = arith.truncf %131 : vector<2x24x24xf32> to vector<2x24x24xbf16>
    %133 = arith.truncf %115 : vector<2x24x16xf32> to vector<2x24x16xbf16>
    "tpu.trace_start"() <{level = 10 : i32, message = "bqk,bkd->bqd"}> : () -> ()
    %cst_44 = arith.constant dense<0.000000e+00> : vector<2x24x16xf32>
    %134 = tpu.matmul %132, %133, %cst_44 {dimension_numbers = #tpu.dot_dimension_numbers<[2], [1], [1], [2], [0, 0, 0, 1, 1, 2], [0], [0]>} : vector<2x24x24xbf16>, vector<2x24x16xbf16>, vector<2x24x16xf32> -> vector<2x24x16xf32>
    "tpu.trace_stop"() : () -> ()
    %135 = tpu.concatenate %68, %90, %112, %134 in 2 : vector<2x24x16xf32>, vector<2x24x16xf32>, vector<2x24x16xf32>, vector<2x24x16xf32> -> vector<2x24x64xf32>
    %136 = vector.shape_cast %135 : vector<2x24x64xf32> to vector<48x64xf32>
    %c0_45 = arith.constant 0 : index
    %c0_46 = arith.constant 0 : index
    %c0_47 = arith.constant 0 : index
    %137 = vector.load %arg9[%c0_45, %c0_46, %c0_47] : memref<2x64x64xbf16, #tpu.memory_space<vmem>>, vector<1x64x64xbf16>
    %138 = vector.shape_cast %137 : vector<1x64x64xbf16> to vector<64x64xbf16>
    %139 = arith.truncf %136 : vector<48x64xf32> to vector<48x64xbf16>
    %cst_48 = arith.constant dense<0.000000e+00> : vector<48x64xf32>
    %140 = tpu.matmul %139, %138, %cst_48 {dimension_numbers = #tpu.dot_dimension_numbers<[1], [0], [0], [1], [0, 0, 1, 1], [], []>} : vector<48x64xbf16>, vector<64x64xbf16>, vector<48x64xf32> -> vector<48x64xf32>
    %141 = arith.addf %5, %140 : vector<48x64xf32>
    %c0_49 = arith.constant 0 : index
    %c0_50 = arith.constant 0 : index
    %c0_51 = arith.constant 0 : index
    %142 = vector.load %arg10[%c0_49, %c0_50, %c0_51] : memref<2x1x64xf32, #tpu.memory_space<vmem>>, vector<1x1x64xf32>
    %143 = vector.shape_cast %142 : vector<1x1x64xf32> to vector<1x64xf32>
    %144 = vector.broadcast %143 : vector<1x64xf32> to vector<48x64xf32>
    %145 = arith.addf %141, %144 : vector<48x64xf32>
    %c0_52 = arith.constant 0 : index
    %c0_53 = arith.constant 0 : index
    %c0_54 = arith.constant 0 : index
    %146 = vector.load %arg11[%c0_52, %c0_53, %c0_54] : memref<2x1x64xf32, #tpu.memory_space<vmem>>, vector<1x1x64xf32>
    %147 = vector.shape_cast %146 : vector<1x1x64xf32> to vector<1x64xf32>
    %c0_55 = arith.constant 0 : index
    %c0_56 = arith.constant 0 : index
    %c0_57 = arith.constant 0 : index
    %148 = vector.load %arg12[%c0_55, %c0_56, %c0_57] : memref<2x1x64xf32, #tpu.memory_space<vmem>>, vector<1x1x64xf32>
    %149 = vector.shape_cast %148 : vector<1x1x64xf32> to vector<1x64xf32>
    %cst_58 = arith.constant dense<0.000000e+00> : vector<48xf32>
    %150 = vector.multi_reduction <add>, %145, %cst_58 [1] : vector<48x64xf32> to vector<48xf32>
    %151 = vector.shape_cast %150 : vector<48xf32> to vector<48x1xf32>
    %cst_59 = arith.constant 6.400000e+01 : f32
    %152 = vector.broadcast %cst_59 : f32 to vector<48x1xf32>
    %153 = arith.divf %151, %152 : vector<48x1xf32>
    %154 = vector.broadcast %153 : vector<48x1xf32> to vector<48x64xf32>
    %155 = arith.subf %145, %154 : vector<48x64xf32>
    %156 = arith.mulf %155, %155 : vector<48x64xf32>
    %cst_60 = arith.constant dense<0.000000e+00> : vector<48xf32>
    %157 = vector.multi_reduction <add>, %156, %cst_60 [1] : vector<48x64xf32> to vector<48xf32>
    %158 = vector.shape_cast %157 : vector<48xf32> to vector<48x1xf32>
    %cst_61 = arith.constant 6.400000e+01 : f32
    %159 = vector.broadcast %cst_61 : f32 to vector<48x1xf32>
    %160 = arith.divf %158, %159 : vector<48x1xf32>
    %161 = vector.broadcast %153 : vector<48x1xf32> to vector<48x64xf32>
    %162 = arith.subf %145, %161 : vector<48x64xf32>
    %cst_62 = arith.constant 9.99999997E-7 : f32
    %163 = vector.broadcast %cst_62 : f32 to vector<48x1xf32>
    %164 = arith.addf %160, %163 : vector<48x1xf32>
    %165 = math.rsqrt %164 : vector<48x1xf32>
    %166 = vector.broadcast %165 : vector<48x1xf32> to vector<48x64xf32>
    %167 = arith.mulf %162, %166 : vector<48x64xf32>
    %168 = vector.broadcast %147 : vector<1x64xf32> to vector<48x64xf32>
    %169 = arith.mulf %167, %168 : vector<48x64xf32>
    %170 = vector.broadcast %149 : vector<1x64xf32> to vector<48x64xf32>
    %171 = arith.addf %169, %170 : vector<48x64xf32>
    %c0_63 = arith.constant 0 : index
    %c0_64 = arith.constant 0 : index
    %c0_65 = arith.constant 0 : index
    %172 = vector.load %arg13[%c0_63, %c0_64, %c0_65] : memref<2x64x256xbf16, #tpu.memory_space<vmem>>, vector<1x64x256xbf16>
    %173 = vector.shape_cast %172 : vector<1x64x256xbf16> to vector<64x256xbf16>
    %174 = arith.truncf %171 : vector<48x64xf32> to vector<48x64xbf16>
    %cst_66 = arith.constant dense<0.000000e+00> : vector<48x256xf32>
    %175 = tpu.matmul %174, %173, %cst_66 {dimension_numbers = #tpu.dot_dimension_numbers<[1], [0], [0], [1], [0, 0, 1, 1], [], []>} : vector<48x64xbf16>, vector<64x256xbf16>, vector<48x256xf32> -> vector<48x256xf32>
    %c0_67 = arith.constant 0 : index
    %c0_68 = arith.constant 0 : index
    %c0_69 = arith.constant 0 : index
    %176 = vector.load %arg14[%c0_67, %c0_68, %c0_69] : memref<2x1x256xf32, #tpu.memory_space<vmem>>, vector<1x1x256xf32>
    %177 = vector.shape_cast %176 : vector<1x1x256xf32> to vector<1x256xf32>
    %178 = vector.broadcast %177 : vector<1x256xf32> to vector<48x256xf32>
    %179 = arith.addf %175, %178 : vector<48x256xf32>
    %cst_70 = arith.constant 5.000000e-01 : f32
    %180 = vector.broadcast %cst_70 : f32 to vector<48x256xf32>
    %181 = arith.mulf %180, %179 : vector<48x256xf32>
    %cst_71 = arith.constant 0.707106769 : f32
    %182 = vector.broadcast %cst_71 : f32 to vector<48x256xf32>
    %183 = arith.mulf %179, %182 : vector<48x256xf32>
    %184 = math.erf %183 : vector<48x256xf32>
    %cst_72 = arith.constant 1.000000e+00 : f32
    %185 = vector.broadcast %cst_72 : f32 to vector<48x256xf32>
    %186 = arith.addf %185, %184 : vector<48x256xf32>
    %187 = arith.mulf %181, %186 : vector<48x256xf32>
    %c0_73 = arith.constant 0 : index
    %c0_74 = arith.constant 0 : index
    %c0_75 = arith.constant 0 : index
    %188 = vector.load %arg15[%c0_73, %c0_74, %c0_75] : memref<2x256x64xbf16, #tpu.memory_space<vmem>>, vector<1x256x64xbf16>
    %189 = vector.shape_cast %188 : vector<1x256x64xbf16> to vector<256x64xbf16>
    %190 = arith.truncf %187 : vector<48x256xf32> to vector<48x256xbf16>
    %cst_76 = arith.constant dense<0.000000e+00> : vector<48x64xf32>
    %191 = tpu.matmul %190, %189, %cst_76 {dimension_numbers = #tpu.dot_dimension_numbers<[1], [0], [0], [1], [0, 0, 1, 1], [], []>} : vector<48x256xbf16>, vector<256x64xbf16>, vector<48x64xf32> -> vector<48x64xf32>
    %192 = arith.addf %145, %191 : vector<48x64xf32>
    %c0_77 = arith.constant 0 : index
    %c0_78 = arith.constant 0 : index
    %c0_79 = arith.constant 0 : index
    %193 = vector.load %arg16[%c0_77, %c0_78, %c0_79] : memref<2x1x64xf32, #tpu.memory_space<vmem>>, vector<1x1x64xf32>
    %194 = vector.shape_cast %193 : vector<1x1x64xf32> to vector<1x64xf32>
    %195 = vector.broadcast %194 : vector<1x64xf32> to vector<48x64xf32>
    %196 = arith.addf %192, %195 : vector<48x64xf32>
    %c1 = arith.constant 1 : index
    %c0_80 = arith.constant 0 : index
    %c0_81 = arith.constant 0 : index
    %197 = vector.load %arg5[%c1, %c0_80, %c0_81] : memref<2x1x64xf32, #tpu.memory_space<vmem>>, vector<1x1x64xf32>
    %198 = vector.shape_cast %197 : vector<1x1x64xf32> to vector<1x64xf32>
    %c1_82 = arith.constant 1 : index
    %c0_83 = arith.constant 0 : index
    %c0_84 = arith.constant 0 : index
    %199 = vector.load %arg6[%c1_82, %c0_83, %c0_84] : memref<2x1x64xf32, #tpu.memory_space<vmem>>, vector<1x1x64xf32>
    %200 = vector.shape_cast %199 : vector<1x1x64xf32> to vector<1x64xf32>
    %cst_85 = arith.constant dense<0.000000e+00> : vector<48xf32>
    %201 = vector.multi_reduction <add>, %196, %cst_85 [1] : vector<48x64xf32> to vector<48xf32>
    %202 = vector.shape_cast %201 : vector<48xf32> to vector<48x1xf32>
    %cst_86 = arith.constant 6.400000e+01 : f32
    %203 = vector.broadcast %cst_86 : f32 to vector<48x1xf32>
    %204 = arith.divf %202, %203 : vector<48x1xf32>
    %205 = vector.broadcast %204 : vector<48x1xf32> to vector<48x64xf32>
    %206 = arith.subf %196, %205 : vector<48x64xf32>
    %207 = arith.mulf %206, %206 : vector<48x64xf32>
    %cst_87 = arith.constant dense<0.000000e+00> : vector<48xf32>
    %208 = vector.multi_reduction <add>, %207, %cst_87 [1] : vector<48x64xf32> to vector<48xf32>
    %209 = vector.shape_cast %208 : vector<48xf32> to vector<48x1xf32>
    %cst_88 = arith.constant 6.400000e+01 : f32
    %210 = vector.broadcast %cst_88 : f32 to vector<48x1xf32>
    %211 = arith.divf %209, %210 : vector<48x1xf32>
    %212 = vector.broadcast %204 : vector<48x1xf32> to vector<48x64xf32>
    %213 = arith.subf %196, %212 : vector<48x64xf32>
    %cst_89 = arith.constant 9.99999997E-7 : f32
    %214 = vector.broadcast %cst_89 : f32 to vector<48x1xf32>
    %215 = arith.addf %211, %214 : vector<48x1xf32>
    %216 = math.rsqrt %215 : vector<48x1xf32>
    %217 = vector.broadcast %216 : vector<48x1xf32> to vector<48x64xf32>
    %218 = arith.mulf %213, %217 : vector<48x64xf32>
    %219 = vector.broadcast %198 : vector<1x64xf32> to vector<48x64xf32>
    %220 = arith.mulf %218, %219 : vector<48x64xf32>
    %221 = vector.broadcast %200 : vector<1x64xf32> to vector<48x64xf32>
    %222 = arith.addf %220, %221 : vector<48x64xf32>
    %c1_90 = arith.constant 1 : index
    %c0_91 = arith.constant 0 : index
    %c0_92 = arith.constant 0 : index
    %223 = vector.load %arg7[%c1_90, %c0_91, %c0_92] : memref<2x64x192xbf16, #tpu.memory_space<vmem>>, vector<1x64x192xbf16>
    %224 = vector.shape_cast %223 : vector<1x64x192xbf16> to vector<64x192xbf16>
    %225 = arith.truncf %222 : vector<48x64xf32> to vector<48x64xbf16>
    %cst_93 = arith.constant dense<0.000000e+00> : vector<48x192xf32>
    %226 = tpu.matmul %225, %224, %cst_93 {dimension_numbers = #tpu.dot_dimension_numbers<[1], [0], [0], [1], [0, 0, 1, 1], [], []>} : vector<48x64xbf16>, vector<64x192xbf16>, vector<48x192xf32> -> vector<48x192xf32>
    %c1_94 = arith.constant 1 : index
    %c0_95 = arith.constant 0 : index
    %c0_96 = arith.constant 0 : index
    %227 = vector.load %arg8[%c1_94, %c0_95, %c0_96] : memref<2x1x192xf32, #tpu.memory_space<vmem>>, vector<1x1x192xf32>
    %228 = vector.shape_cast %227 : vector<1x1x192xf32> to vector<1x192xf32>
    %229 = vector.broadcast %228 : vector<1x192xf32> to vector<48x192xf32>
    %230 = arith.addf %226, %229 : vector<48x192xf32>
    %231 = vector.shape_cast %230 : vector<48x192xf32> to vector<2x24x192xf32>
    %232 = vector.extract_strided_slice %231 {offsets = [0, 0, 0], sizes = [2, 24, 16], strides = [1, 1, 1]} : vector<2x24x192xf32> to vector<2x24x16xf32>
    %233 = vector.extract_strided_slice %231 {offsets = [0, 0, 64], sizes = [2, 24, 16], strides = [1, 1, 1]} : vector<2x24x192xf32> to vector<2x24x16xf32>
    %234 = vector.extract_strided_slice %231 {offsets = [0, 0, 128], sizes = [2, 24, 16], strides = [1, 1, 1]} : vector<2x24x192xf32> to vector<2x24x16xf32>
    %235 = arith.truncf %232 : vector<2x24x16xf32> to vector<2x24x16xbf16>
    %236 = arith.truncf %233 : vector<2x24x16xf32> to vector<2x24x16xbf16>
    "tpu.trace_start"() <{level = 10 : i32, message = "bqd,bkd->bqk"}> : () -> ()
    %cst_97 = arith.constant dense<0.000000e+00> : vector<2x24x24xf32>
    %237 = tpu.matmul %235, %236, %cst_97 {dimension_numbers = #tpu.dot_dimension_numbers<[2], [2], [1], [1], [0, 0, 0, 1, 1, 1], [0], [0]>} : vector<2x24x16xbf16>, vector<2x24x16xbf16>, vector<2x24x24xf32> -> vector<2x24x24xf32>
    "tpu.trace_stop"() : () -> ()
    %cst_98 = arith.constant 2.500000e-01 : f32
    %238 = vector.broadcast %cst_98 : f32 to vector<2x24x24xf32>
    %239 = arith.mulf %237, %238 : vector<2x24x24xf32>
    %240 = vector.broadcast %11 : vector<1x1x24xf32> to vector<2x24x24xf32>
    %241 = arith.addf %239, %240 : vector<2x24x24xf32>
    %cst_99 = arith.constant dense<0xFF800000> : vector<2x24xf32>
    %242 = vector.multi_reduction <maximumf>, %241, %cst_99 [2] : vector<2x24x24xf32> to vector<2x24xf32>
    %243 = vector.shape_cast %242 : vector<2x24xf32> to vector<2x24x1xf32>
    %244 = vector.broadcast %243 : vector<2x24x1xf32> to vector<2x24x24xf32>
    %245 = arith.subf %241, %244 : vector<2x24x24xf32>
    %246 = math.exp %245 : vector<2x24x24xf32>
    %cst_100 = arith.constant dense<0.000000e+00> : vector<2x24xf32>
    %247 = vector.multi_reduction <add>, %246, %cst_100 [2] : vector<2x24x24xf32> to vector<2x24xf32>
    %248 = vector.shape_cast %247 : vector<2x24xf32> to vector<2x24x1xf32>
    %249 = vector.broadcast %248 : vector<2x24x1xf32> to vector<2x24x24xf32>
    %250 = arith.divf %246, %249 : vector<2x24x24xf32>
    %251 = arith.truncf %250 : vector<2x24x24xf32> to vector<2x24x24xbf16>
    %252 = arith.truncf %234 : vector<2x24x16xf32> to vector<2x24x16xbf16>
    "tpu.trace_start"() <{level = 10 : i32, message = "bqk,bkd->bqd"}> : () -> ()
    %cst_101 = arith.constant dense<0.000000e+00> : vector<2x24x16xf32>
    %253 = tpu.matmul %251, %252, %cst_101 {dimension_numbers = #tpu.dot_dimension_numbers<[2], [1], [1], [2], [0, 0, 0, 1, 1, 2], [0], [0]>} : vector<2x24x24xbf16>, vector<2x24x16xbf16>, vector<2x24x16xf32> -> vector<2x24x16xf32>
    "tpu.trace_stop"() : () -> ()
    %254 = vector.extract_strided_slice %231 {offsets = [0, 0, 16], sizes = [2, 24, 16], strides = [1, 1, 1]} : vector<2x24x192xf32> to vector<2x24x16xf32>
    %255 = vector.extract_strided_slice %231 {offsets = [0, 0, 80], sizes = [2, 24, 16], strides = [1, 1, 1]} : vector<2x24x192xf32> to vector<2x24x16xf32>
    %256 = vector.extract_strided_slice %231 {offsets = [0, 0, 144], sizes = [2, 24, 16], strides = [1, 1, 1]} : vector<2x24x192xf32> to vector<2x24x16xf32>
    %257 = arith.truncf %254 : vector<2x24x16xf32> to vector<2x24x16xbf16>
    %258 = arith.truncf %255 : vector<2x24x16xf32> to vector<2x24x16xbf16>
    "tpu.trace_start"() <{level = 10 : i32, message = "bqd,bkd->bqk"}> : () -> ()
    %cst_102 = arith.constant dense<0.000000e+00> : vector<2x24x24xf32>
    %259 = tpu.matmul %257, %258, %cst_102 {dimension_numbers = #tpu.dot_dimension_numbers<[2], [2], [1], [1], [0, 0, 0, 1, 1, 1], [0], [0]>} : vector<2x24x16xbf16>, vector<2x24x16xbf16>, vector<2x24x24xf32> -> vector<2x24x24xf32>
    "tpu.trace_stop"() : () -> ()
    %cst_103 = arith.constant 2.500000e-01 : f32
    %260 = vector.broadcast %cst_103 : f32 to vector<2x24x24xf32>
    %261 = arith.mulf %259, %260 : vector<2x24x24xf32>
    %262 = vector.broadcast %11 : vector<1x1x24xf32> to vector<2x24x24xf32>
    %263 = arith.addf %261, %262 : vector<2x24x24xf32>
    %cst_104 = arith.constant dense<0xFF800000> : vector<2x24xf32>
    %264 = vector.multi_reduction <maximumf>, %263, %cst_104 [2] : vector<2x24x24xf32> to vector<2x24xf32>
    %265 = vector.shape_cast %264 : vector<2x24xf32> to vector<2x24x1xf32>
    %266 = vector.broadcast %265 : vector<2x24x1xf32> to vector<2x24x24xf32>
    %267 = arith.subf %263, %266 : vector<2x24x24xf32>
    %268 = math.exp %267 : vector<2x24x24xf32>
    %cst_105 = arith.constant dense<0.000000e+00> : vector<2x24xf32>
    %269 = vector.multi_reduction <add>, %268, %cst_105 [2] : vector<2x24x24xf32> to vector<2x24xf32>
    %270 = vector.shape_cast %269 : vector<2x24xf32> to vector<2x24x1xf32>
    %271 = vector.broadcast %270 : vector<2x24x1xf32> to vector<2x24x24xf32>
    %272 = arith.divf %268, %271 : vector<2x24x24xf32>
    %273 = arith.truncf %272 : vector<2x24x24xf32> to vector<2x24x24xbf16>
    %274 = arith.truncf %256 : vector<2x24x16xf32> to vector<2x24x16xbf16>
    "tpu.trace_start"() <{level = 10 : i32, message = "bqk,bkd->bqd"}> : () -> ()
    %cst_106 = arith.constant dense<0.000000e+00> : vector<2x24x16xf32>
    %275 = tpu.matmul %273, %274, %cst_106 {dimension_numbers = #tpu.dot_dimension_numbers<[2], [1], [1], [2], [0, 0, 0, 1, 1, 2], [0], [0]>} : vector<2x24x24xbf16>, vector<2x24x16xbf16>, vector<2x24x16xf32> -> vector<2x24x16xf32>
    "tpu.trace_stop"() : () -> ()
    %276 = vector.extract_strided_slice %231 {offsets = [0, 0, 32], sizes = [2, 24, 16], strides = [1, 1, 1]} : vector<2x24x192xf32> to vector<2x24x16xf32>
    %277 = vector.extract_strided_slice %231 {offsets = [0, 0, 96], sizes = [2, 24, 16], strides = [1, 1, 1]} : vector<2x24x192xf32> to vector<2x24x16xf32>
    %278 = vector.extract_strided_slice %231 {offsets = [0, 0, 160], sizes = [2, 24, 16], strides = [1, 1, 1]} : vector<2x24x192xf32> to vector<2x24x16xf32>
    %279 = arith.truncf %276 : vector<2x24x16xf32> to vector<2x24x16xbf16>
    %280 = arith.truncf %277 : vector<2x24x16xf32> to vector<2x24x16xbf16>
    "tpu.trace_start"() <{level = 10 : i32, message = "bqd,bkd->bqk"}> : () -> ()
    %cst_107 = arith.constant dense<0.000000e+00> : vector<2x24x24xf32>
    %281 = tpu.matmul %279, %280, %cst_107 {dimension_numbers = #tpu.dot_dimension_numbers<[2], [2], [1], [1], [0, 0, 0, 1, 1, 1], [0], [0]>} : vector<2x24x16xbf16>, vector<2x24x16xbf16>, vector<2x24x24xf32> -> vector<2x24x24xf32>
    "tpu.trace_stop"() : () -> ()
    %cst_108 = arith.constant 2.500000e-01 : f32
    %282 = vector.broadcast %cst_108 : f32 to vector<2x24x24xf32>
    %283 = arith.mulf %281, %282 : vector<2x24x24xf32>
    %284 = vector.broadcast %11 : vector<1x1x24xf32> to vector<2x24x24xf32>
    %285 = arith.addf %283, %284 : vector<2x24x24xf32>
    %cst_109 = arith.constant dense<0xFF800000> : vector<2x24xf32>
    %286 = vector.multi_reduction <maximumf>, %285, %cst_109 [2] : vector<2x24x24xf32> to vector<2x24xf32>
    %287 = vector.shape_cast %286 : vector<2x24xf32> to vector<2x24x1xf32>
    %288 = vector.broadcast %287 : vector<2x24x1xf32> to vector<2x24x24xf32>
    %289 = arith.subf %285, %288 : vector<2x24x24xf32>
    %290 = math.exp %289 : vector<2x24x24xf32>
    %cst_110 = arith.constant dense<0.000000e+00> : vector<2x24xf32>
    %291 = vector.multi_reduction <add>, %290, %cst_110 [2] : vector<2x24x24xf32> to vector<2x24xf32>
    %292 = vector.shape_cast %291 : vector<2x24xf32> to vector<2x24x1xf32>
    %293 = vector.broadcast %292 : vector<2x24x1xf32> to vector<2x24x24xf32>
    %294 = arith.divf %290, %293 : vector<2x24x24xf32>
    %295 = arith.truncf %294 : vector<2x24x24xf32> to vector<2x24x24xbf16>
    %296 = arith.truncf %278 : vector<2x24x16xf32> to vector<2x24x16xbf16>
    "tpu.trace_start"() <{level = 10 : i32, message = "bqk,bkd->bqd"}> : () -> ()
    %cst_111 = arith.constant dense<0.000000e+00> : vector<2x24x16xf32>
    %297 = tpu.matmul %295, %296, %cst_111 {dimension_numbers = #tpu.dot_dimension_numbers<[2], [1], [1], [2], [0, 0, 0, 1, 1, 2], [0], [0]>} : vector<2x24x24xbf16>, vector<2x24x16xbf16>, vector<2x24x16xf32> -> vector<2x24x16xf32>
    "tpu.trace_stop"() : () -> ()
    %298 = vector.extract_strided_slice %231 {offsets = [0, 0, 48], sizes = [2, 24, 16], strides = [1, 1, 1]} : vector<2x24x192xf32> to vector<2x24x16xf32>
    %299 = vector.extract_strided_slice %231 {offsets = [0, 0, 112], sizes = [2, 24, 16], strides = [1, 1, 1]} : vector<2x24x192xf32> to vector<2x24x16xf32>
    %300 = vector.extract_strided_slice %231 {offsets = [0, 0, 176], sizes = [2, 24, 16], strides = [1, 1, 1]} : vector<2x24x192xf32> to vector<2x24x16xf32>
    %301 = arith.truncf %298 : vector<2x24x16xf32> to vector<2x24x16xbf16>
    %302 = arith.truncf %299 : vector<2x24x16xf32> to vector<2x24x16xbf16>
    "tpu.trace_start"() <{level = 10 : i32, message = "bqd,bkd->bqk"}> : () -> ()
    %cst_112 = arith.constant dense<0.000000e+00> : vector<2x24x24xf32>
    %303 = tpu.matmul %301, %302, %cst_112 {dimension_numbers = #tpu.dot_dimension_numbers<[2], [2], [1], [1], [0, 0, 0, 1, 1, 1], [0], [0]>} : vector<2x24x16xbf16>, vector<2x24x16xbf16>, vector<2x24x24xf32> -> vector<2x24x24xf32>
    "tpu.trace_stop"() : () -> ()
    %cst_113 = arith.constant 2.500000e-01 : f32
    %304 = vector.broadcast %cst_113 : f32 to vector<2x24x24xf32>
    %305 = arith.mulf %303, %304 : vector<2x24x24xf32>
    %306 = vector.broadcast %11 : vector<1x1x24xf32> to vector<2x24x24xf32>
    %307 = arith.addf %305, %306 : vector<2x24x24xf32>
    %cst_114 = arith.constant dense<0xFF800000> : vector<2x24xf32>
    %308 = vector.multi_reduction <maximumf>, %307, %cst_114 [2] : vector<2x24x24xf32> to vector<2x24xf32>
    %309 = vector.shape_cast %308 : vector<2x24xf32> to vector<2x24x1xf32>
    %310 = vector.broadcast %309 : vector<2x24x1xf32> to vector<2x24x24xf32>
    %311 = arith.subf %307, %310 : vector<2x24x24xf32>
    %312 = math.exp %311 : vector<2x24x24xf32>
    %cst_115 = arith.constant dense<0.000000e+00> : vector<2x24xf32>
    %313 = vector.multi_reduction <add>, %312, %cst_115 [2] : vector<2x24x24xf32> to vector<2x24xf32>
    %314 = vector.shape_cast %313 : vector<2x24xf32> to vector<2x24x1xf32>
    %315 = vector.broadcast %314 : vector<2x24x1xf32> to vector<2x24x24xf32>
    %316 = arith.divf %312, %315 : vector<2x24x24xf32>
    %317 = arith.truncf %316 : vector<2x24x24xf32> to vector<2x24x24xbf16>
    %318 = arith.truncf %300 : vector<2x24x16xf32> to vector<2x24x16xbf16>
    "tpu.trace_start"() <{level = 10 : i32, message = "bqk,bkd->bqd"}> : () -> ()
    %cst_116 = arith.constant dense<0.000000e+00> : vector<2x24x16xf32>
    %319 = tpu.matmul %317, %318, %cst_116 {dimension_numbers = #tpu.dot_dimension_numbers<[2], [1], [1], [2], [0, 0, 0, 1, 1, 2], [0], [0]>} : vector<2x24x24xbf16>, vector<2x24x16xbf16>, vector<2x24x16xf32> -> vector<2x24x16xf32>
    "tpu.trace_stop"() : () -> ()
    %320 = tpu.concatenate %253, %275, %297, %319 in 2 : vector<2x24x16xf32>, vector<2x24x16xf32>, vector<2x24x16xf32>, vector<2x24x16xf32> -> vector<2x24x64xf32>
    %321 = vector.shape_cast %320 : vector<2x24x64xf32> to vector<48x64xf32>
    %c1_117 = arith.constant 1 : index
    %c0_118 = arith.constant 0 : index
    %c0_119 = arith.constant 0 : index
    %322 = vector.load %arg9[%c1_117, %c0_118, %c0_119] : memref<2x64x64xbf16, #tpu.memory_space<vmem>>, vector<1x64x64xbf16>
    %323 = vector.shape_cast %322 : vector<1x64x64xbf16> to vector<64x64xbf16>
    %324 = arith.truncf %321 : vector<48x64xf32> to vector<48x64xbf16>
    %cst_120 = arith.constant dense<0.000000e+00> : vector<48x64xf32>
    %325 = tpu.matmul %324, %323, %cst_120 {dimension_numbers = #tpu.dot_dimension_numbers<[1], [0], [0], [1], [0, 0, 1, 1], [], []>} : vector<48x64xbf16>, vector<64x64xbf16>, vector<48x64xf32> -> vector<48x64xf32>
    %326 = arith.addf %196, %325 : vector<48x64xf32>
    %c1_121 = arith.constant 1 : index
    %c0_122 = arith.constant 0 : index
    %c0_123 = arith.constant 0 : index
    %327 = vector.load %arg10[%c1_121, %c0_122, %c0_123] : memref<2x1x64xf32, #tpu.memory_space<vmem>>, vector<1x1x64xf32>
    %328 = vector.shape_cast %327 : vector<1x1x64xf32> to vector<1x64xf32>
    %329 = vector.broadcast %328 : vector<1x64xf32> to vector<48x64xf32>
    %330 = arith.addf %326, %329 : vector<48x64xf32>
    %c1_124 = arith.constant 1 : index
    %c0_125 = arith.constant 0 : index
    %c0_126 = arith.constant 0 : index
    %331 = vector.load %arg11[%c1_124, %c0_125, %c0_126] : memref<2x1x64xf32, #tpu.memory_space<vmem>>, vector<1x1x64xf32>
    %332 = vector.shape_cast %331 : vector<1x1x64xf32> to vector<1x64xf32>
    %c1_127 = arith.constant 1 : index
    %c0_128 = arith.constant 0 : index
    %c0_129 = arith.constant 0 : index
    %333 = vector.load %arg12[%c1_127, %c0_128, %c0_129] : memref<2x1x64xf32, #tpu.memory_space<vmem>>, vector<1x1x64xf32>
    %334 = vector.shape_cast %333 : vector<1x1x64xf32> to vector<1x64xf32>
    %cst_130 = arith.constant dense<0.000000e+00> : vector<48xf32>
    %335 = vector.multi_reduction <add>, %330, %cst_130 [1] : vector<48x64xf32> to vector<48xf32>
    %336 = vector.shape_cast %335 : vector<48xf32> to vector<48x1xf32>
    %cst_131 = arith.constant 6.400000e+01 : f32
    %337 = vector.broadcast %cst_131 : f32 to vector<48x1xf32>
    %338 = arith.divf %336, %337 : vector<48x1xf32>
    %339 = vector.broadcast %338 : vector<48x1xf32> to vector<48x64xf32>
    %340 = arith.subf %330, %339 : vector<48x64xf32>
    %341 = arith.mulf %340, %340 : vector<48x64xf32>
    %cst_132 = arith.constant dense<0.000000e+00> : vector<48xf32>
    %342 = vector.multi_reduction <add>, %341, %cst_132 [1] : vector<48x64xf32> to vector<48xf32>
    %343 = vector.shape_cast %342 : vector<48xf32> to vector<48x1xf32>
    %cst_133 = arith.constant 6.400000e+01 : f32
    %344 = vector.broadcast %cst_133 : f32 to vector<48x1xf32>
    %345 = arith.divf %343, %344 : vector<48x1xf32>
    %346 = vector.broadcast %338 : vector<48x1xf32> to vector<48x64xf32>
    %347 = arith.subf %330, %346 : vector<48x64xf32>
    %cst_134 = arith.constant 9.99999997E-7 : f32
    %348 = vector.broadcast %cst_134 : f32 to vector<48x1xf32>
    %349 = arith.addf %345, %348 : vector<48x1xf32>
    %350 = math.rsqrt %349 : vector<48x1xf32>
    %351 = vector.broadcast %350 : vector<48x1xf32> to vector<48x64xf32>
    %352 = arith.mulf %347, %351 : vector<48x64xf32>
    %353 = vector.broadcast %332 : vector<1x64xf32> to vector<48x64xf32>
    %354 = arith.mulf %352, %353 : vector<48x64xf32>
    %355 = vector.broadcast %334 : vector<1x64xf32> to vector<48x64xf32>
    %356 = arith.addf %354, %355 : vector<48x64xf32>
    %c1_135 = arith.constant 1 : index
    %c0_136 = arith.constant 0 : index
    %c0_137 = arith.constant 0 : index
    %357 = vector.load %arg13[%c1_135, %c0_136, %c0_137] : memref<2x64x256xbf16, #tpu.memory_space<vmem>>, vector<1x64x256xbf16>
    %358 = vector.shape_cast %357 : vector<1x64x256xbf16> to vector<64x256xbf16>
    %359 = arith.truncf %356 : vector<48x64xf32> to vector<48x64xbf16>
    %cst_138 = arith.constant dense<0.000000e+00> : vector<48x256xf32>
    %360 = tpu.matmul %359, %358, %cst_138 {dimension_numbers = #tpu.dot_dimension_numbers<[1], [0], [0], [1], [0, 0, 1, 1], [], []>} : vector<48x64xbf16>, vector<64x256xbf16>, vector<48x256xf32> -> vector<48x256xf32>
    %c1_139 = arith.constant 1 : index
    %c0_140 = arith.constant 0 : index
    %c0_141 = arith.constant 0 : index
    %361 = vector.load %arg14[%c1_139, %c0_140, %c0_141] : memref<2x1x256xf32, #tpu.memory_space<vmem>>, vector<1x1x256xf32>
    %362 = vector.shape_cast %361 : vector<1x1x256xf32> to vector<1x256xf32>
    %363 = vector.broadcast %362 : vector<1x256xf32> to vector<48x256xf32>
    %364 = arith.addf %360, %363 : vector<48x256xf32>
    %cst_142 = arith.constant 5.000000e-01 : f32
    %365 = vector.broadcast %cst_142 : f32 to vector<48x256xf32>
    %366 = arith.mulf %365, %364 : vector<48x256xf32>
    %cst_143 = arith.constant 0.707106769 : f32
    %367 = vector.broadcast %cst_143 : f32 to vector<48x256xf32>
    %368 = arith.mulf %364, %367 : vector<48x256xf32>
    %369 = math.erf %368 : vector<48x256xf32>
    %cst_144 = arith.constant 1.000000e+00 : f32
    %370 = vector.broadcast %cst_144 : f32 to vector<48x256xf32>
    %371 = arith.addf %370, %369 : vector<48x256xf32>
    %372 = arith.mulf %366, %371 : vector<48x256xf32>
    %c1_145 = arith.constant 1 : index
    %c0_146 = arith.constant 0 : index
    %c0_147 = arith.constant 0 : index
    %373 = vector.load %arg15[%c1_145, %c0_146, %c0_147] : memref<2x256x64xbf16, #tpu.memory_space<vmem>>, vector<1x256x64xbf16>
    %374 = vector.shape_cast %373 : vector<1x256x64xbf16> to vector<256x64xbf16>
    %375 = arith.truncf %372 : vector<48x256xf32> to vector<48x256xbf16>
    %cst_148 = arith.constant dense<0.000000e+00> : vector<48x64xf32>
    %376 = tpu.matmul %375, %374, %cst_148 {dimension_numbers = #tpu.dot_dimension_numbers<[1], [0], [0], [1], [0, 0, 1, 1], [], []>} : vector<48x256xbf16>, vector<256x64xbf16>, vector<48x64xf32> -> vector<48x64xf32>
    %377 = arith.addf %330, %376 : vector<48x64xf32>
    %c1_149 = arith.constant 1 : index
    %c0_150 = arith.constant 0 : index
    %c0_151 = arith.constant 0 : index
    %378 = vector.load %arg16[%c1_149, %c0_150, %c0_151] : memref<2x1x64xf32, #tpu.memory_space<vmem>>, vector<1x1x64xf32>
    %379 = vector.shape_cast %378 : vector<1x1x64xf32> to vector<1x64xf32>
    %380 = vector.broadcast %379 : vector<1x64xf32> to vector<48x64xf32>
    %381 = arith.addf %377, %380 : vector<48x64xf32>
    %382 = vector.extract_strided_slice %381 {offsets = [0, 0], sizes = [1, 64], strides = [1, 1]} : vector<48x64xf32> to vector<1x64xf32>
    %383 = vector.extract_strided_slice %381 {offsets = [24, 0], sizes = [1, 64], strides = [1, 1]} : vector<48x64xf32> to vector<1x64xf32>
    %384 = tpu.concatenate %382, %383 in 0 : vector<1x64xf32>, vector<1x64xf32> -> vector<2x64xf32>
    %c0_152 = arith.constant 0 : index
    %c0_153 = arith.constant 0 : index
    %385 = vector.load %arg17[%c0_152, %c0_153] : memref<1x64xf32, #tpu.memory_space<vmem>>, vector<1x64xf32>
    %c0_154 = arith.constant 0 : index
    %c0_155 = arith.constant 0 : index
    %386 = vector.load %arg18[%c0_154, %c0_155] : memref<1x64xf32, #tpu.memory_space<vmem>>, vector<1x64xf32>
    %cst_156 = arith.constant dense<0.000000e+00> : vector<2xf32>
    %387 = vector.multi_reduction <add>, %384, %cst_156 [1] : vector<2x64xf32> to vector<2xf32>
    %388 = vector.shape_cast %387 : vector<2xf32> to vector<2x1xf32>
    %cst_157 = arith.constant 6.400000e+01 : f32
    %389 = vector.broadcast %cst_157 : f32 to vector<2x1xf32>
    %390 = arith.divf %388, %389 : vector<2x1xf32>
    %391 = vector.broadcast %390 : vector<2x1xf32> to vector<2x64xf32>
    %392 = arith.subf %384, %391 : vector<2x64xf32>
    %393 = arith.mulf %392, %392 : vector<2x64xf32>
    %cst_158 = arith.constant dense<0.000000e+00> : vector<2xf32>
    %394 = vector.multi_reduction <add>, %393, %cst_158 [1] : vector<2x64xf32> to vector<2xf32>
    %395 = vector.shape_cast %394 : vector<2xf32> to vector<2x1xf32>
    %cst_159 = arith.constant 6.400000e+01 : f32
    %396 = vector.broadcast %cst_159 : f32 to vector<2x1xf32>
    %397 = arith.divf %395, %396 : vector<2x1xf32>
    %398 = vector.broadcast %390 : vector<2x1xf32> to vector<2x64xf32>
    %399 = arith.subf %384, %398 : vector<2x64xf32>
    %cst_160 = arith.constant 9.99999997E-7 : f32
    %400 = vector.broadcast %cst_160 : f32 to vector<2x1xf32>
    %401 = arith.addf %397, %400 : vector<2x1xf32>
    %402 = math.rsqrt %401 : vector<2x1xf32>
    %403 = vector.broadcast %402 : vector<2x1xf32> to vector<2x64xf32>
    %404 = arith.mulf %399, %403 : vector<2x64xf32>
    %405 = vector.broadcast %385 : vector<1x64xf32> to vector<2x64xf32>
    %406 = arith.mulf %404, %405 : vector<2x64xf32>
    %407 = vector.broadcast %386 : vector<1x64xf32> to vector<2x64xf32>
    %408 = arith.addf %406, %407 : vector<2x64xf32>
    %c0_161 = arith.constant 0 : index
    %c0_162 = arith.constant 0 : index
    %409 = vector.load %arg19[%c0_161, %c0_162] : memref<64x256xbf16, #tpu.memory_space<vmem>>, vector<64x256xbf16>
    %410 = arith.truncf %408 : vector<2x64xf32> to vector<2x64xbf16>
    %cst_163 = arith.constant dense<0.000000e+00> : vector<2x256xf32>
    %411 = tpu.matmul %410, %409, %cst_163 {dimension_numbers = #tpu.dot_dimension_numbers<[1], [0], [0], [1], [0, 0, 1, 1], [], []>} : vector<2x64xbf16>, vector<64x256xbf16>, vector<2x256xf32> -> vector<2x256xf32>
    %c0_164 = arith.constant 0 : index
    %c0_165 = arith.constant 0 : index
    %412 = vector.load %arg20[%c0_164, %c0_165] : memref<1x256xf32, #tpu.memory_space<vmem>>, vector<1x256xf32>
    %413 = vector.broadcast %412 : vector<1x256xf32> to vector<2x256xf32>
    %414 = arith.addf %411, %413 : vector<2x256xf32>
    %cst_166 = arith.constant 0.000000e+00 : f32
    %415 = vector.broadcast %cst_166 : f32 to vector<2x256xf32>
    %416 = arith.cmpf oge, %414, %415 : vector<2x256xf32>
    %cst_167 = arith.constant 0.00999999977 : f32
    %417 = vector.broadcast %cst_167 : f32 to vector<2x256xf32>
    %418 = arith.mulf %417, %414 : vector<2x256xf32>
    %419 = arith.select %416, %414, %418 : vector<2x256xi1>, vector<2x256xf32>
    %c0_168 = arith.constant 0 : index
    %c0_169 = arith.constant 0 : index
    %420 = vector.load %arg21[%c0_168, %c0_169] : memref<256x64xbf16, #tpu.memory_space<vmem>>, vector<256x64xbf16>
    %421 = arith.truncf %419 : vector<2x256xf32> to vector<2x256xbf16>
    %cst_170 = arith.constant dense<0.000000e+00> : vector<2x64xf32>
    %422 = tpu.matmul %421, %420, %cst_170 {dimension_numbers = #tpu.dot_dimension_numbers<[1], [0], [0], [1], [0, 0, 1, 1], [], []>} : vector<2x256xbf16>, vector<256x64xbf16>, vector<2x64xf32> -> vector<2x64xf32>
    %c0_171 = arith.constant 0 : index
    %c0_172 = arith.constant 0 : index
    %423 = vector.load %arg22[%c0_171, %c0_172] : memref<1x64xf32, #tpu.memory_space<vmem>>, vector<1x64xf32>
    %424 = vector.broadcast %423 : vector<1x64xf32> to vector<2x64xf32>
    %425 = arith.addf %422, %424 : vector<2x64xf32>
    %cst_173 = arith.constant 0.000000e+00 : f32
    %426 = vector.broadcast %cst_173 : f32 to vector<2x64xf32>
    %427 = arith.cmpf oge, %425, %426 : vector<2x64xf32>
    %cst_174 = arith.constant 0.00999999977 : f32
    %428 = vector.broadcast %cst_174 : f32 to vector<2x64xf32>
    %429 = arith.mulf %428, %425 : vector<2x64xf32>
    %430 = arith.select %427, %425, %429 : vector<2x64xi1>, vector<2x64xf32>
    %c0_175 = arith.constant 0 : index
    %c0_176 = arith.constant 0 : index
    %431 = vector.load %arg4[%c0_175, %c0_176] : memref<2x163xf32, #tpu.memory_space<vmem>>, vector<2x163xf32>
    %c0_177 = arith.constant 0 : index
    %c0_178 = arith.constant 0 : index
    %432 = vector.load %arg23[%c0_177, %c0_178] : memref<163x256xbf16, #tpu.memory_space<vmem>>, vector<163x256xbf16>
    %433 = arith.truncf %431 : vector<2x163xf32> to vector<2x163xbf16>
    %cst_179 = arith.constant dense<0.000000e+00> : vector<2x256xf32>
    %434 = tpu.matmul %433, %432, %cst_179 {dimension_numbers = #tpu.dot_dimension_numbers<[1], [0], [0], [1], [0, 0, 1, 1], [], []>} : vector<2x163xbf16>, vector<163x256xbf16>, vector<2x256xf32> -> vector<2x256xf32>
    %c0_180 = arith.constant 0 : index
    %c0_181 = arith.constant 0 : index
    %435 = vector.load %arg24[%c0_180, %c0_181] : memref<1x256xf32, #tpu.memory_space<vmem>>, vector<1x256xf32>
    %436 = vector.broadcast %435 : vector<1x256xf32> to vector<2x256xf32>
    %437 = arith.addf %434, %436 : vector<2x256xf32>
    %cst_182 = arith.constant 0.000000e+00 : f32
    %438 = vector.broadcast %cst_182 : f32 to vector<2x256xf32>
    %439 = arith.cmpf oge, %437, %438 : vector<2x256xf32>
    %cst_183 = arith.constant 0.00999999977 : f32
    %440 = vector.broadcast %cst_183 : f32 to vector<2x256xf32>
    %441 = arith.mulf %440, %437 : vector<2x256xf32>
    %442 = arith.select %439, %437, %441 : vector<2x256xi1>, vector<2x256xf32>
    %c0_184 = arith.constant 0 : index
    %c0_185 = arith.constant 0 : index
    %443 = vector.load %arg25[%c0_184, %c0_185] : memref<256x64xbf16, #tpu.memory_space<vmem>>, vector<256x64xbf16>
    %444 = arith.truncf %442 : vector<2x256xf32> to vector<2x256xbf16>
    %cst_186 = arith.constant dense<0.000000e+00> : vector<2x64xf32>
    %445 = tpu.matmul %444, %443, %cst_186 {dimension_numbers = #tpu.dot_dimension_numbers<[1], [0], [0], [1], [0, 0, 1, 1], [], []>} : vector<2x256xbf16>, vector<256x64xbf16>, vector<2x64xf32> -> vector<2x64xf32>
    %c0_187 = arith.constant 0 : index
    %c0_188 = arith.constant 0 : index
    %446 = vector.load %arg26[%c0_187, %c0_188] : memref<1x64xf32, #tpu.memory_space<vmem>>, vector<1x64xf32>
    %447 = vector.broadcast %446 : vector<1x64xf32> to vector<2x64xf32>
    %448 = arith.addf %445, %447 : vector<2x64xf32>
    %cst_189 = arith.constant 0.000000e+00 : f32
    %449 = vector.broadcast %cst_189 : f32 to vector<2x64xf32>
    %450 = arith.cmpf oge, %448, %449 : vector<2x64xf32>
    %cst_190 = arith.constant 0.00999999977 : f32
    %451 = vector.broadcast %cst_190 : f32 to vector<2x64xf32>
    %452 = arith.mulf %451, %448 : vector<2x64xf32>
    %453 = arith.select %450, %448, %452 : vector<2x64xi1>, vector<2x64xf32>
    %454 = tpu.concatenate %453, %430 in 1 : vector<2x64xf32>, vector<2x64xf32> -> vector<2x128xf32>
    %c0_191 = arith.constant 0 : index
    %c0_192 = arith.constant 0 : index
    %455 = vector.load %arg27[%c0_191, %c0_192] : memref<128x256xbf16, #tpu.memory_space<vmem>>, vector<128x256xbf16>
    %456 = arith.truncf %454 : vector<2x128xf32> to vector<2x128xbf16>
    %cst_193 = arith.constant dense<0.000000e+00> : vector<2x256xf32>
    %457 = tpu.matmul %456, %455, %cst_193 {dimension_numbers = #tpu.dot_dimension_numbers<[1], [0], [0], [1], [0, 0, 1, 1], [], []>} : vector<2x128xbf16>, vector<128x256xbf16>, vector<2x256xf32> -> vector<2x256xf32>
    %c0_194 = arith.constant 0 : index
    %c0_195 = arith.constant 0 : index
    %458 = vector.load %arg28[%c0_194, %c0_195] : memref<1x256xf32, #tpu.memory_space<vmem>>, vector<1x256xf32>
    %459 = vector.broadcast %458 : vector<1x256xf32> to vector<2x256xf32>
    %460 = arith.addf %457, %459 : vector<2x256xf32>
    %cst_196 = arith.constant 0.000000e+00 : f32
    %461 = vector.broadcast %cst_196 : f32 to vector<2x256xf32>
    %462 = arith.cmpf oge, %460, %461 : vector<2x256xf32>
    %cst_197 = arith.constant 0.00999999977 : f32
    %463 = vector.broadcast %cst_197 : f32 to vector<2x256xf32>
    %464 = arith.mulf %463, %460 : vector<2x256xf32>
    %465 = arith.select %462, %460, %464 : vector<2x256xi1>, vector<2x256xf32>
    %c0_198 = arith.constant 0 : index
    %c0_199 = arith.constant 0 : index
    %466 = vector.load %arg29[%c0_198, %c0_199] : memref<256x128xbf16, #tpu.memory_space<vmem>>, vector<256x128xbf16>
    %467 = arith.truncf %465 : vector<2x256xf32> to vector<2x256xbf16>
    %cst_200 = arith.constant dense<0.000000e+00> : vector<2x128xf32>
    %468 = tpu.matmul %467, %466, %cst_200 {dimension_numbers = #tpu.dot_dimension_numbers<[1], [0], [0], [1], [0, 0, 1, 1], [], []>} : vector<2x256xbf16>, vector<256x128xbf16>, vector<2x128xf32> -> vector<2x128xf32>
    %c0_201 = arith.constant 0 : index
    %c0_202 = arith.constant 0 : index
    %469 = vector.load %arg30[%c0_201, %c0_202] : memref<1x128xf32, #tpu.memory_space<vmem>>, vector<1x128xf32>
    %470 = vector.broadcast %469 : vector<1x128xf32> to vector<2x128xf32>
    %471 = arith.addf %468, %470 : vector<2x128xf32>
    %cst_203 = arith.constant 0.000000e+00 : f32
    %472 = vector.broadcast %cst_203 : f32 to vector<2x128xf32>
    %473 = arith.cmpf oge, %471, %472 : vector<2x128xf32>
    %cst_204 = arith.constant 0.00999999977 : f32
    %474 = vector.broadcast %cst_204 : f32 to vector<2x128xf32>
    %475 = arith.mulf %474, %471 : vector<2x128xf32>
    %476 = arith.select %473, %471, %475 : vector<2x128xi1>, vector<2x128xf32>
    %c0_205 = arith.constant 0 : index
    %c0_206 = arith.constant 0 : index
    %477 = vector.load %arg31[%c0_205, %c0_206] : memref<128x6xbf16, #tpu.memory_space<vmem>>, vector<128x6xbf16>
    %478 = arith.truncf %476 : vector<2x128xf32> to vector<2x128xbf16>
    %cst_207 = arith.constant dense<0.000000e+00> : vector<2x6xf32>
    %479 = tpu.matmul %478, %477, %cst_207 {dimension_numbers = #tpu.dot_dimension_numbers<[1], [0], [0], [1], [0, 0, 1, 1], [], []>} : vector<2x128xbf16>, vector<128x6xbf16>, vector<2x6xf32> -> vector<2x6xf32>
    %c0_208 = arith.constant 0 : index
    %c0_209 = arith.constant 0 : index
    %480 = vector.load %arg32[%c0_208, %c0_209] : memref<1x6xf32, #tpu.memory_space<vmem>>, vector<1x6xf32>
    %481 = vector.broadcast %480 : vector<1x6xf32> to vector<2x6xf32>
    %482 = arith.addf %479, %481 : vector<2x6xf32>
    %c0_210 = arith.constant 0 : index
    %c0_211 = arith.constant 0 : index
    %483 = vector.load %arg33[%c0_210, %c0_211] : memref<2x6xf32, #tpu.memory_space<vmem>>, vector<2x6xf32>
    tpu.vector_store %arg33[%c0_210, %c0_211], %482 {strides = array<i32>} : memref<2x6xf32, #tpu.memory_space<vmem>>, vector<2x6xf32>,
    return
  }
  func.func @transform_0(%arg0: i32) -> (i32, i32) {
    %c0_i32 = arith.constant 0 : i32
    %c0_i32_0 = arith.constant 0 : i32
    %c0_i32_1 = arith.constant 0 : i32
    return %c0_i32, %c0_i32_0 : i32, i32
  }
  func.func @transform_1(%arg0: i32) -> (i32, i32) {
    %c0_i32 = arith.constant 0 : i32
    %c0_i32_0 = arith.constant 0 : i32
    %c0_i32_1 = arith.constant 0 : i32
    return %c0_i32, %c0_i32_0 : i32, i32
  }
  func.func @transform_2(%arg0: i32) -> (i32, i32) {
    %c0_i32 = arith.constant 0 : i32
    %c0_i32_0 = arith.constant 0 : i32
    %c0_i32_1 = arith.constant 0 : i32
    return %c0_i32, %c0_i32_0 : i32, i32
  }
  func.func @transform_3(%arg0: i32) -> (i32, i32) {
    %c0_i32 = arith.constant 0 : i32
    %c0_i32_0 = arith.constant 0 : i32
    %c0_i32_1 = arith.constant 0 : i32
    return %c0_i32, %c0_i32_0 : i32, i32
  }
  func.func @transform_4(%arg0: i32) -> (i32, i32, i32) {
    %c0_i32 = arith.constant 0 : i32
    %c0_i32_0 = arith.constant 0 : i32
    %c0_i32_1 = arith.constant 0 : i32
    %c0_i32_2 = arith.constant 0 : i32
    return %c0_i32, %c0_i32_0, %c0_i32_1 : i32, i32, i32
  }
  func.func @transform_5(%arg0: i32) -> (i32, i32, i32) {
    %c0_i32 = arith.constant 0 : i32
    %c0_i32_0 = arith.constant 0 : i32
    %c0_i32_1 = arith.constant 0 : i32
    %c0_i32_2 = arith.constant 0 : i32
    return %c0_i32, %c0_i32_0, %c0_i32_1 : i32, i32, i32
  }
  func.func @transform_6(%arg0: i32) -> (i32, i32, i32) {
    %c0_i32 = arith.constant 0 : i32
    %c0_i32_0 = arith.constant 0 : i32
    %c0_i32_1 = arith.constant 0 : i32
    %c0_i32_2 = arith.constant 0 : i32
    return %c0_i32, %c0_i32_0, %c0_i32_1 : i32, i32, i32
  }
  func.func @transform_7(%arg0: i32) -> (i32, i32, i32) {
    %c0_i32 = arith.constant 0 : i32
    %c0_i32_0 = arith.constant 0 : i32
    %c0_i32_1 = arith.constant 0 : i32
    %c0_i32_2 = arith.constant 0 : i32
    return %c0_i32, %c0_i32_0, %c0_i32_1 : i32, i32, i32
  }
  func.func @transform_8(%arg0: i32) -> (i32, i32, i32) {
    %c0_i32 = arith.constant 0 : i32
    %c0_i32_0 = arith.constant 0 : i32
    %c0_i32_1 = arith.constant 0 : i32
    %c0_i32_2 = arith.constant 0 : i32
    return %c0_i32, %c0_i32_0, %c0_i32_1 : i32, i32, i32
  }
  func.func @transform_9(%arg0: i32) -> (i32, i32, i32) {
    %c0_i32 = arith.constant 0 : i32
    %c0_i32_0 = arith.constant 0 : i32
    %c0_i32_1 = arith.constant 0 : i32
    %c0_i32_2 = arith.constant 0 : i32
    return %c0_i32, %c0_i32_0, %c0_i32_1 : i32, i32, i32
  }
  func.func @transform_10(%arg0: i32) -> (i32, i32, i32) {
    %c0_i32 = arith.constant 0 : i32
    %c0_i32_0 = arith.constant 0 : i32
    %c0_i32_1 = arith.constant 0 : i32
    %c0_i32_2 = arith.constant 0 : i32
    return %c0_i32, %c0_i32_0, %c0_i32_1 : i32, i32, i32
  }
  func.func @transform_11(%arg0: i32) -> (i32, i32, i32) {
    %c0_i32 = arith.constant 0 : i32
    %c0_i32_0 = arith.constant 0 : i32
    %c0_i32_1 = arith.constant 0 : i32
    %c0_i32_2 = arith.constant 0 : i32
    return %c0_i32, %c0_i32_0, %c0_i32_1 : i32, i32, i32
  }
  func.func @transform_12(%arg0: i32) -> (i32, i32, i32) {
    %c0_i32 = arith.constant 0 : i32
    %c0_i32_0 = arith.constant 0 : i32
    %c0_i32_1 = arith.constant 0 : i32
    %c0_i32_2 = arith.constant 0 : i32
    return %c0_i32, %c0_i32_0, %c0_i32_1 : i32, i32, i32
  }
  func.func @transform_13(%arg0: i32) -> (i32, i32, i32) {
    %c0_i32 = arith.constant 0 : i32
    %c0_i32_0 = arith.constant 0 : i32
    %c0_i32_1 = arith.constant 0 : i32
    %c0_i32_2 = arith.constant 0 : i32
    return %c0_i32, %c0_i32_0, %c0_i32_1 : i32, i32, i32
  }
  func.func @transform_14(%arg0: i32) -> (i32, i32, i32) {
    %c0_i32 = arith.constant 0 : i32
    %c0_i32_0 = arith.constant 0 : i32
    %c0_i32_1 = arith.constant 0 : i32
    %c0_i32_2 = arith.constant 0 : i32
    return %c0_i32, %c0_i32_0, %c0_i32_1 : i32, i32, i32
  }
  func.func @transform_15(%arg0: i32) -> (i32, i32, i32) {
    %c0_i32 = arith.constant 0 : i32
    %c0_i32_0 = arith.constant 0 : i32
    %c0_i32_1 = arith.constant 0 : i32
    %c0_i32_2 = arith.constant 0 : i32
    return %c0_i32, %c0_i32_0, %c0_i32_1 : i32, i32, i32
  }
  func.func @transform_16(%arg0: i32) -> (i32, i32) {
    %c0_i32 = arith.constant 0 : i32
    %c0_i32_0 = arith.constant 0 : i32
    %c0_i32_1 = arith.constant 0 : i32
    return %c0_i32, %c0_i32_0 : i32, i32
  }
  func.func @transform_17(%arg0: i32) -> (i32, i32) {
    %c0_i32 = arith.constant 0 : i32
    %c0_i32_0 = arith.constant 0 : i32
    %c0_i32_1 = arith.constant 0 : i32
    return %c0_i32, %c0_i32_0 : i32, i32
  }
  func.func @transform_18(%arg0: i32) -> (i32, i32) {
    %c0_i32 = arith.constant 0 : i32
    %c0_i32_0 = arith.constant 0 : i32
    %c0_i32_1 = arith.constant 0 : i32
    return %c0_i32, %c0_i32_0 : i32, i32
  }
  func.func @transform_19(%arg0: i32) -> (i32, i32) {
    %c0_i32 = arith.constant 0 : i32
    %c0_i32_0 = arith.constant 0 : i32
    %c0_i32_1 = arith.constant 0 : i32
    return %c0_i32, %c0_i32_0 : i32, i32
  }
  func.func @transform_20(%arg0: i32) -> (i32, i32) {
    %c0_i32 = arith.constant 0 : i32
    %c0_i32_0 = arith.constant 0 : i32
    %c0_i32_1 = arith.constant 0 : i32
    return %c0_i32, %c0_i32_0 : i32, i32
  }
  func.func @transform_21(%arg0: i32) -> (i32, i32) {
    %c0_i32 = arith.constant 0 : i32
    %c0_i32_0 = arith.constant 0 : i32
    %c0_i32_1 = arith.constant 0 : i32
    return %c0_i32, %c0_i32_0 : i32, i32
  }
  func.func @transform_22(%arg0: i32) -> (i32, i32) {
    %c0_i32 = arith.constant 0 : i32
    %c0_i32_0 = arith.constant 0 : i32
    %c0_i32_1 = arith.constant 0 : i32
    return %c0_i32, %c0_i32_0 : i32, i32
  }
  func.func @transform_23(%arg0: i32) -> (i32, i32) {
    %c0_i32 = arith.constant 0 : i32
    %c0_i32_0 = arith.constant 0 : i32
    %c0_i32_1 = arith.constant 0 : i32
    return %c0_i32, %c0_i32_0 : i32, i32
  }
  func.func @transform_24(%arg0: i32) -> (i32, i32) {
    %c0_i32 = arith.constant 0 : i32
    %c0_i32_0 = arith.constant 0 : i32
    %c0_i32_1 = arith.constant 0 : i32
    return %c0_i32, %c0_i32_0 : i32, i32
  }
  func.func @transform_25(%arg0: i32) -> (i32, i32) {
    %c0_i32 = arith.constant 0 : i32
    %c0_i32_0 = arith.constant 0 : i32
    %c0_i32_1 = arith.constant 0 : i32
    return %c0_i32, %c0_i32_0 : i32, i32
  }
  func.func @transform_26(%arg0: i32) -> (i32, i32) {
    %c0_i32 = arith.constant 0 : i32
    %c0_i32_0 = arith.constant 0 : i32
    %c0_i32_1 = arith.constant 0 : i32
    return %c0_i32, %c0_i32_0 : i32, i32
  }
  func.func @transform_27(%arg0: i32) -> (i32, i32) {
    %c0_i32 = arith.constant 0 : i32
    %c0_i32_0 = arith.constant 0 : i32
    %c0_i32_1 = arith.constant 0 : i32
    return %c0_i32, %c0_i32_0 : i32, i32
  }
  func.func @transform_28(%arg0: i32) -> (i32, i32) {
    %c0_i32 = arith.constant 0 : i32
    %c0_i32_0 = arith.constant 0 : i32
    %c0_i32_1 = arith.constant 0 : i32
    return %c0_i32, %c0_i32_0 : i32, i32
  }
  func.func @transform_29(%arg0: i32) -> (i32, i32) {
    %c0_i32 = arith.constant 0 : i32
    %c0_i32_0 = arith.constant 0 : i32
    %c0_i32_1 = arith.constant 0 : i32
    return %c0_i32, %c0_i32_0 : i32, i32
  }
  func.func @transform_30(%arg0: i32) -> (i32, i32) {
    %c0_i32 = arith.constant 0 : i32
    %c0_i32_0 = arith.constant 0 : i32
    %c0_i32_1 = arith.constant 0 : i32
    return %c0_i32, %c0_i32_0 : i32, i32
  }
  func.func @transform_31(%arg0: i32) -> (i32, i32) {
    %c0_i32 = arith.constant 0 : i32
    %c0_i32_0 = arith.constant 0 : i32
    %c0_i32_1 = arith.constant 0 : i32
    return %c0_i32, %c0_i32_0 : i32, i32
  }
  func.func @transform_32(%arg0: i32) -> (i32, i32) {
    %c0_i32 = arith.constant 0 : i32
    %c0_i32_0 = arith.constant 0 : i32
    %c0_i32_1 = arith.constant 0 : i32
    return %c0_i32, %c0_i32_0 : i32, i32
  }
}

</mosaic_0001>

<llo_original>
// kernel: vit_mlp_forward.1
$region0: #{vit_mlp_forward.1}
  #allocation0 [shape = 'u32[]', space=smem, size = 0x4, offset = 0x4, fixed_abs, tag = 'smem constant byte address 0x4 - core index']
  #allocation1 [shape = 'u32[144,128]{1,0:T(1,128)}', space=vmem, size = 0x12000, scoped, tag = 'internal scratch']
  %s0 = inlined_call_operand.smem [shape: u32[33], index: -1, kind: input, shape index: {}]
  %s1 = sld [smem:[%s0]]
  %s2 = scalar_lea.smem %s0, 1
  %s3 = sld [smem:[%s2]]
  %s4 = scalar_lea.smem %s0, 2
  %s5 = sld [smem:[%s4]]
  %s6 = scalar_lea.smem %s0, 3
  %s7 = sld [smem:[%s6]]
  %s8 = scalar_lea.smem %s0, 4
  %s9 = sld [smem:[%s8]]
  %s10 = scalar_lea.smem %s0, 5
  %s11 = sld [smem:[%s10]]
  %s12 = scalar_lea.smem %s0, 6
  %s13 = sld [smem:[%s12]]
  %s14 = scalar_lea.smem %s0, 7
  %s15 = sld [smem:[%s14]]
  %s16 = scalar_lea.smem %s0, 8
  %s17 = sld [smem:[%s16]]
  %s18 = scalar_lea.smem %s0, 9
  %s19 = sld [smem:[%s18]]
  %s20 = scalar_lea.smem %s0, 10
  %s21 = sld [smem:[%s20]]
  %s22 = scalar_lea.smem %s0, 11
  %s23 = sld [smem:[%s22]]
  %s24 = scalar_lea.smem %s0, 12
  %s25 = sld [smem:[%s24]]
  %s26 = scalar_lea.smem %s0, 13
  %s27 = sld [smem:[%s26]]
  %s28 = scalar_lea.smem %s0, 14
  %s29 = sld [smem:[%s28]]
  %s30 = scalar_lea.smem %s0, 15
  %s31 = sld [smem:[%s30]]
  %s32 = scalar_lea.smem %s0, 16
  %s33 = sld [smem:[%s32]]
  %s34 = scalar_lea.smem %s0, 17
  %s35 = sld [smem:[%s34]]
  %s36 = scalar_lea.smem %s0, 18
  %s37 = sld [smem:[%s36]]
  %s38 = scalar_lea.smem %s0, 19
  %s39 = sld [smem:[%s38]]
  %s40 = scalar_lea.smem %s0, 20
  %s41 = sld [smem:[%s40]]
  %s42 = scalar_lea.smem %s0, 21
  %s43 = sld [smem:[%s42]]
  %s44 = scalar_lea.smem %s0, 22
  %s45 = sld [smem:[%s44]]
  %s46 = scalar_lea.smem %s0, 23
  %s47 = sld [smem:[%s46]]
  %s48 = scalar_lea.smem %s0, 24
  %s49 = sld [smem:[%s48]]
  %s50 = scalar_lea.smem %s0, 25
  %s51 = sld [smem:[%s50]]
  %s52 = scalar_lea.smem %s0, 26
  %s53 = sld [smem:[%s52]]
  %s54 = scalar_lea.smem %s0, 27
  %s55 = sld [smem:[%s54]]
  %s56 = scalar_lea.smem %s0, 28
  %s57 = sld [smem:[%s56]]
  %s58 = scalar_lea.smem %s0, 29
  %s59 = sld [smem:[%s58]]
  %s60 = scalar_lea.smem %s0, 30
  %s61 = sld [smem:[%s60]]
  %s62 = scalar_lea.smem %s0, 31
  %s63 = sld [smem:[%s62]]
  %s64 = scalar_lea.smem %s0, 32
  %s65 = sld [smem:[%s64]]
  %s66 = sld [smem:[#allocation0]]
  $region138: #{vit_mlp_forward.1} parent=0
    _
  %s68 = ssub.s32 1, %s66
  %s69 = scalar_select 0, %s68, %s66
  $region1: #{vit_mlp_forward.1} parent=0
    #allocation2 [shape = 'u8[1024]{0}', space=vmem, size = 0x400, scoped, tag = 'output window, operand 0, single buffered']
    #allocation3 [shape = 's32[1]{0}', space=sflag, size = 0x4, scoped, tag = 'scoped memory for vit_mlp_forward.1']
    %70 = vsyncpa [#allocation3], 0
    // Predicated region
    $region2: #{vit_mlp_forward.1} parent=1 // pred_check
      _
    $region3: #{vit_mlp_forward.1} parent=1 // pred_check_branch
      %72 = sbr.rel (0) target = $region5
    $region4: #{vit_mlp_forward.1} parent=1 // pred_region
      _
    $region5: #{vit_mlp_forward.1} parent=1 // pred_fallthru
      _
    // Predicated region
    $region6: #{vit_mlp_forward.1} parent=1 // pred_check
      _
    $region7: #{vit_mlp_forward.1} parent=1 // pred_check_branch
      %74 = sbr.rel (0) target = $region9
    $region8: #{vit_mlp_forward.1} parent=1 // pred_region
      _
    $region9: #{vit_mlp_forward.1} parent=1 // pred_fallthru
      _
    // Predicated region
    $region10: #{vit_mlp_forward.1} parent=1 // pred_check
      _
    $region11: #{vit_mlp_forward.1} parent=1 // pred_check_branch
      %76 = sbr.rel (0) target = $region13
    $region12: #{vit_mlp_forward.1} parent=1 // pred_region
      _
    $region13: #{vit_mlp_forward.1} parent=1 // pred_fallthru
      _
    // Predicated region
    $region14: #{vit_mlp_forward.1} parent=1 // pred_check
      _
    $region15: #{vit_mlp_forward.1} parent=1 // pred_check_branch
      %78 = sbr.rel (0) target = $region17
    $region16: #{vit_mlp_forward.1} parent=1 // pred_region
      _
    $region17: #{vit_mlp_forward.1} parent=1 // pred_fallthru
      _
    // Predicated region
    $region18: #{vit_mlp_forward.1} parent=1 // pred_check
      _
    $region19: #{vit_mlp_forward.1} parent=1 // pred_check_branch
      %80 = sbr.rel (0) target = $region21
    $region20: #{vit_mlp_forward.1} parent=1 // pred_region
      _
    $region21: #{vit_mlp_forward.1} parent=1 // pred_fallthru
      _
    // Predicated region
    $region22: #{vit_mlp_forward.1} parent=1 // pred_check
      _
    $region23: #{vit_mlp_forward.1} parent=1 // pred_check_branch
      %82 = sbr.rel (0) target = $region25
    $region24: #{vit_mlp_forward.1} parent=1 // pred_region
      _
    $region25: #{vit_mlp_forward.1} parent=1 // pred_fallthru
      _
    // Predicated region
    $region26: #{vit_mlp_forward.1} parent=1 // pred_check
      _
    $region27: #{vit_mlp_forward.1} parent=1 // pred_check_branch
      %84 = sbr.rel (0) target = $region29
    $region28: #{vit_mlp_forward.1} parent=1 // pred_region
      _
    $region29: #{vit_mlp_forward.1} parent=1 // pred_fallthru
      _
    // Predicated region
    $region30: #{vit_mlp_forward.1} parent=1 // pred_check
      _
    $region31: #{vit_mlp_forward.1} parent=1 // pred_check_branch
      %86 = sbr.rel (0) target = $region33
    $region32: #{vit_mlp_forward.1} parent=1 // pred_region
      _
    $region33: #{vit_mlp_forward.1} parent=1 // pred_fallthru
      _
    // Predicated region
    $region34: #{vit_mlp_forward.1} parent=1 // pred_check
      _
    $region35: #{vit_mlp_forward.1} parent=1 // pred_check_branch
      %88 = sbr.rel (0) target = $region37
    $region36: #{vit_mlp_forward.1} parent=1 // pred_region
      _
    $region37: #{vit_mlp_forward.1} parent=1 // pred_fallthru
      _
    // Predicated region
    $region38: #{vit_mlp_forward.1} parent=1 // pred_check
      _
    $region39: #{vit_mlp_forward.1} parent=1 // pred_check_branch
      %90 = sbr.rel (0) target = $region41
    $region40: #{vit_mlp_forward.1} parent=1 // pred_region
      _
    $region41: #{vit_mlp_forward.1} parent=1 // pred_fallthru
      _
    // Predicated region
    $region42: #{vit_mlp_forward.1} parent=1 // pred_check
      _
    $region43: #{vit_mlp_forward.1} parent=1 // pred_check_branch
      %92 = sbr.rel (0) target = $region45
    $region44: #{vit_mlp_forward.1} parent=1 // pred_region
      _
    $region45: #{vit_mlp_forward.1} parent=1 // pred_fallthru
      _
    // Predicated region
    $region46: #{vit_mlp_forward.1} parent=1 // pred_check
      _
    $region47: #{vit_mlp_forward.1} parent=1 // pred_check_branch
      %94 = sbr.rel (0) target = $region49
    $region48: #{vit_mlp_forward.1} parent=1 // pred_region
      _
    $region49: #{vit_mlp_forward.1} parent=1 // pred_fallthru
      _
    // Predicated region
    $region50: #{vit_mlp_forward.1} parent=1 // pred_check
      _
    $region51: #{vit_mlp_forward.1} parent=1 // pred_check_branch
      %96 = sbr.rel (0) target = $region53
    $region52: #{vit_mlp_forward.1} parent=1 // pred_region
      _
    $region53: #{vit_mlp_forward.1} parent=1 // pred_fallthru
      _
    // Predicated region
    $region54: #{vit_mlp_forward.1} parent=1 // pred_check
      _
    $region55: #{vit_mlp_forward.1} parent=1 // pred_check_branch
      %98 = sbr.rel (0) target = $region57
    $region56: #{vit_mlp_forward.1} parent=1 // pred_region
      _
    $region57: #{vit_mlp_forward.1} parent=1 // pred_fallthru
      _
    // Predicated region
    $region58: #{vit_mlp_forward.1} parent=1 // pred_check
      _
    $region59: #{vit_mlp_forward.1} parent=1 // pred_check_branch
      %100 = sbr.rel (0) target = $region61
    $region60: #{vit_mlp_forward.1} parent=1 // pred_region
      _
    $region61: #{vit_mlp_forward.1} parent=1 // pred_fallthru
      _
    // Predicated region
    $region62: #{vit_mlp_forward.1} parent=1 // pred_check
      _
    $region63: #{vit_mlp_forward.1} parent=1 // pred_check_branch
      %102 = sbr.rel (0) target = $region65
    $region64: #{vit_mlp_forward.1} parent=1 // pred_region
      _
    $region65: #{vit_mlp_forward.1} parent=1 // pred_fallthru
      _
    // Predicated region
    $region66: #{vit_mlp_forward.1} parent=1 // pred_check
      _
    $region67: #{vit_mlp_forward.1} parent=1 // pred_check_branch
      %104 = sbr.rel (0) target = $region69
    $region68: #{vit_mlp_forward.1} parent=1 // pred_region
      _
    $region69: #{vit_mlp_forward.1} parent=1 // pred_fallthru
      _
    // Predicated region
    $region70: #{vit_mlp_forward.1} parent=1 // pred_check
      _
    $region71: #{vit_mlp_forward.1} parent=1 // pred_check_branch
      %106 = sbr.rel (0) target = $region73
    $region72: #{vit_mlp_forward.1} parent=1 // pred_region
      _
    $region73: #{vit_mlp_forward.1} parent=1 // pred_fallthru
      _
    // Predicated region
    $region74: #{vit_mlp_forward.1} parent=1 // pred_check
      _
    $region75: #{vit_mlp_forward.1} parent=1 // pred_check_branch
      %108 = sbr.rel (0) target = $region77
    $region76: #{vit_mlp_forward.1} parent=1 // pred_region
      _
    $region77: #{vit_mlp_forward.1} parent=1 // pred_fallthru
      _
    // Predicated region
    $region78: #{vit_mlp_forward.1} parent=1 // pred_check
      _
    $region79: #{vit_mlp_forward.1} parent=1 // pred_check_branch
      %110 = sbr.rel (0) target = $region81
    $region80: #{vit_mlp_forward.1} parent=1 // pred_region
      _
    $region81: #{vit_mlp_forward.1} parent=1 // pred_fallthru
      _
    // Predicated region
    $region82: #{vit_mlp_forward.1} parent=1 // pred_check
      _
    $region83: #{vit_mlp_forward.1} parent=1 // pred_check_branch
      %112 = sbr.rel (0) target = $region85
    $region84: #{vit_mlp_forward.1} parent=1 // pred_region
      _
    $region85: #{vit_mlp_forward.1} parent=1 // pred_fallthru
      _
    // Predicated region
    $region86: #{vit_mlp_forward.1} parent=1 // pred_check
      _
    $region87: #{vit_mlp_forward.1} parent=1 // pred_check_branch
      %114 = sbr.rel (0) target = $region89
    $region88: #{vit_mlp_forward.1} parent=1 // pred_region
      _
    $region89: #{vit_mlp_forward.1} parent=1 // pred_fallthru
      _
    // Predicated region
    $region90: #{vit_mlp_forward.1} parent=1 // pred_check
      _
    $region91: #{vit_mlp_forward.1} parent=1 // pred_check_branch
      %116 = sbr.rel (0) target = $region93
    $region92: #{vit_mlp_forward.1} parent=1 // pred_region
      _
    $region93: #{vit_mlp_forward.1} parent=1 // pred_fallthru
      _
    // Predicated region
    $region94: #{vit_mlp_forward.1} parent=1 // pred_check
      _
    $region95: #{vit_mlp_forward.1} parent=1 // pred_check_branch
      %118 = sbr.rel (0) target = $region97
    $region96: #{vit_mlp_forward.1} parent=1 // pred_region
      _
    $region97: #{vit_mlp_forward.1} parent=1 // pred_fallthru
      _
    // Predicated region
    $region98: #{vit_mlp_forward.1} parent=1 // pred_check
      _
    $region99: #{vit_mlp_forward.1} parent=1 // pred_check_branch
      %120 = sbr.rel (0) target = $region101
    $region100: #{vit_mlp_forward.1} parent=1 // pred_region
      _
    $region101: #{vit_mlp_forward.1} parent=1 // pred_fallthru
      _
    // Predicated region
    $region102: #{vit_mlp_forward.1} parent=1 // pred_check
      _
    $region103: #{vit_mlp_forward.1} parent=1 // pred_check_branch
      %122 = sbr.rel (0) target = $region105
    $region104: #{vit_mlp_forward.1} parent=1 // pred_region
      _
    $region105: #{vit_mlp_forward.1} parent=1 // pred_fallthru
      _
    // Predicated region
    $region106: #{vit_mlp_forward.1} parent=1 // pred_check
      _
    $region107: #{vit_mlp_forward.1} parent=1 // pred_check_branch
      %124 = sbr.rel (0) target = $region109
    $region108: #{vit_mlp_forward.1} parent=1 // pred_region
      _
    $region109: #{vit_mlp_forward.1} parent=1 // pred_fallthru
      _
    // Predicated region
    $region110: #{vit_mlp_forward.1} parent=1 // pred_check
      _
    $region111: #{vit_mlp_forward.1} parent=1 // pred_check_branch
      %126 = sbr.rel (0) target = $region113
    $region112: #{vit_mlp_forward.1} parent=1 // pred_region
      _
    $region113: #{vit_mlp_forward.1} parent=1 // pred_fallthru
      _
    // Predicated region
    $region114: #{vit_mlp_forward.1} parent=1 // pred_check
      _
    $region115: #{vit_mlp_forward.1} parent=1 // pred_check_branch
      %128 = sbr.rel (0) target = $region117
    $region116: #{vit_mlp_forward.1} parent=1 // pred_region
      _
    $region117: #{vit_mlp_forward.1} parent=1 // pred_fallthru
      _
    // Predicated region
    $region118: #{vit_mlp_forward.1} parent=1 // pred_check
      _
    $region119: #{vit_mlp_forward.1} parent=1 // pred_check_branch
      %130 = sbr.rel (0) target = $region121
    $region120: #{vit_mlp_forward.1} parent=1 // pred_region
      _
    $region121: #{vit_mlp_forward.1} parent=1 // pred_fallthru
      _
    // Predicated region
    $region122: #{vit_mlp_forward.1} parent=1 // pred_check
      _
    $region123: #{vit_mlp_forward.1} parent=1 // pred_check_branch
      %132 = sbr.rel (0) target = $region125
    $region124: #{vit_mlp_forward.1} parent=1 // pred_region
      _
    $region125: #{vit_mlp_forward.1} parent=1 // pred_fallthru
      _
    // Predicated region
    $region126: #{vit_mlp_forward.1} parent=1 // pred_check
      _
    $region127: #{vit_mlp_forward.1} parent=1 // pred_check_branch
      %134 = sbr.rel (0) target = $region129
    $region128: #{vit_mlp_forward.1} parent=1 // pred_region
      _
    $region129: #{vit_mlp_forward.1} parent=1 // pred_fallthru
      _
    %v136 = vld [vmem:[%s1] sm:$0xff]
    %v137 = vld [vmem:[%s1 + $0x8] sm:$0xff]
    %v138 = vld [vmem:[%s1 + $0x10] sm:$0xff]
    %v139 = vld [vmem:[%s1 + $0x18] sm:$0xff]
    %v140 = vld [vmem:[%s1 + $0x20] sm:$0xff]
    %v141 = vld [vmem:[%s1 + $0x28] sm:$0xff]
    %v142 = vld [vmem:[%s1 + $0x30] sm:$0xff]
    %v143 = vld [vmem:[%s1 + $0x38] sm:$0xff]
    %v144 = vld [vmem:[%s1 + $0x40] sm:$0xff]
    %v145 = vld [vmem:[%s1 + $0x48] sm:$0xff]
    %v146 = vld [vmem:[%s1 + $0x50] sm:$0xff]
    %v147 = vld [vmem:[%s1 + $0x58] sm:$0xff]
    %v148 = vld [vmem:[%s3] sm:$0xf]
    %v149 = vld [vmem:[%s3 + $0x4] sm:$0xf]
    %v150 = vld [vmem:[%s3 + $0x8] sm:$0xf]
    %v151 = vld [vmem:[%s3 + $0xc] sm:$0xf]
    %v152 = vld [vmem:[%s3 + $0x10] sm:$0xf]
    %v153 = vld [vmem:[%s3 + $0x14] sm:$0xf]
    %v154 = vld [vmem:[%s3 + $0x18] sm:$0xf]
    %v155 = vld [vmem:[%s3 + $0x1c] sm:$0xf]
    %v156 = vld [vmem:[%s3 + $0x20] sm:$0xf]
    %v157 = vld [vmem:[%s3 + $0x24] sm:$0xf]
    %v158 = vld [vmem:[%s3 + $0x28] sm:$0xf]
    %v159 = vld [vmem:[%s3 + $0x2c] sm:$0xf]
    %v160 = vld [vmem:[%s3 + $0x30] sm:$0xf]
    %v161 = vld [vmem:[%s3 + $0x34] sm:$0xf]
    %v162 = vld [vmem:[%s3 + $0x38] sm:$0xf]
    %v163 = vld [vmem:[%s3 + $0x3c] sm:$0xf]
    %v164 = vld [vmem:[%s3 + $0x40] sm:$0xf]
    %v165 = vld [vmem:[%s3 + $0x44] sm:$0xf]
    %v166 = vld [vmem:[%s3 + $0x48] sm:$0xf]
    %v167 = vld [vmem:[%s3 + $0x4c] sm:$0xf]
    %v168 = vld [vmem:[%s3 + $0x50] sm:$0xf]
    %v169 = vld [vmem:[%s3 + $0x54] sm:$0xf]
    %v170 = vld [vmem:[%s3 + $0x58] sm:$0xf]
    %v171 = vld [vmem:[%s3 + $0x5c] sm:$0xf]
    %v172 = vpack.c.bf16 %v138, %v136
    %v173 = vpack.c.bf16 %v139, %v137
    %v174 = vpack.c.bf16 %v142, %v140
    %v175 = vpack.c.bf16 %v143, %v141
    %v176 = vpack.c.bf16 %v146, %v144
    %v177 = vpack.c.bf16 %v147, %v145
    %v178 = vld [vmem:[%s5] sm:$0xff]
    %v179 = vld [vmem:[%s5 + $0x8] sm:$0xff]
    %v180 = vld [vmem:[%s5 + $0x10] sm:$0xff]
    %v181 = vld [vmem:[%s5 + $0x18] sm:$0xff]
    %v182 = vld [vmem:[%s5 + $0x20] sm:$0xff]
    %v183 = vld [vmem:[%s5 + $0x28] sm:$0xff]
    %v208 = vunpack.c.l.b16 %v148
    %v209 = vunpack.c.l.b16 %v149
    %v210 = vunpack.c.l.b16 %v150
    %v211 = vunpack.c.l.b16 %v151
    %v212 = vunpack.c.l.b16 %v152
    %v213 = vunpack.c.l.b16 %v153
    %v214 = vunpack.c.l.b16 %v154
    %v215 = vunpack.c.l.b16 %v155
    %v216 = vunpack.c.l.b16 %v156
    %v217 = vunpack.c.l.b16 %v157
    %v218 = vunpack.c.l.b16 %v158
    %v219 = vunpack.c.l.b16 %v159
    %v220 = vunpack.c.l.b16 %v160
    %v221 = vunpack.c.l.b16 %v161
    %v222 = vunpack.c.l.b16 %v162
    %v223 = vunpack.c.l.b16 %v163
    %v224 = vunpack.c.l.b16 %v164
    %v225 = vunpack.c.l.b16 %v165
    %v226 = vunpack.c.l.b16 %v166
    %v227 = vunpack.c.l.b16 %v167
    %v228 = vunpack.c.l.b16 %v168
    %v229 = vunpack.c.l.b16 %v169
    %v230 = vunpack.c.l.b16 %v170
    %v231 = vunpack.c.l.b16 %v171
    %v232 = vpack.c.b16 %v209, %v208
    %v233 = vpack.c.b16 %v211, %v210
    %v234 = vpack.c.b16 %v213, %v212
    %v235 = vpack.c.b16 %v215, %v214
    %v236 = vpack.c.b16 %v217, %v216
    %v237 = vpack.c.b16 %v219, %v218
    %v238 = vpack.c.b16 %v221, %v220
    %v239 = vpack.c.b16 %v223, %v222
    %v240 = vpack.c.b16 %v225, %v224
    %v241 = vpack.c.b16 %v227, %v226
    %v242 = vpack.c.b16 %v229, %v228
    %v243 = vpack.c.b16 %v231, %v230
    %vm256 = vcmask 523264
    %v258 = vsel %vm256, %v173, 0
    %v261 = vsel %vm256, %v175, 0
    %v264 = vsel %vm256, %v177, 0
    %266 = vmatprep.subr.bf16.mxu0 0
    %267 = vmatpush1.bf16.msra.mxu0 %v232
    %268 = vmatprep.subr.bf16.mxu0 0
    %269 = vmatpush1.bf16.msra.mxu0 %v233
    %270 = vmatprep.subr.bf16.mxu0 0
    %271 = vmatpush1.bf16.msra.mxu0 %v234
    %272 = vmatprep.subr.bf16.mxu0 0
    %273 = vmatpush1.bf16.msra.mxu0 %v235
    %274 = vmatprep.subr.bf16.mxu0 0
    %275 = vmatpush1.bf16.msra.mxu0 %v236
    %276 = vmatprep.subr.bf16.mxu0 0
    %277 = vmatpush1.bf16.msra.mxu0 %v237
    %278 = vmatprep.subr.bf16.mxu0 0
    %279 = vmatpush1.bf16.msra.mxu0 %v238
    %280 = vmatprep.subr.bf16.mxu0 0
    %281 = vmatpush1.bf16.msra.mxu0 %v239
    %282 = vmatprep.subr.bf16.mxu0 0
    %283 = vmatpush1.bf16.msra.mxu0 %v240
    %284 = vmatprep.subr.bf16.mxu0 0
    %285 = vmatpush1.bf16.msra.mxu0 %v241
    %286 = vmatprep.subr.bf16.mxu0 0
    %287 = vmatpush1.bf16.msra.mxu0 %v242
    %288 = vmatprep.subr.bf16.mxu0 0
    %289 = vmatpush1.bf16.msra.mxu0 %v243
    %290 = vmatprep.subr.bf16.mxu0 0
    %291 = vmatpush1.bf16.msra.mxu0 0
    %292 = vmatprep.subr.bf16.mxu0 0
    %293 = vmatpush1.bf16.msra.mxu0 0
    %294 = vmatprep.subr.bf16.mxu0 0
    %295 = vmatpush1.bf16.msra.mxu0 0
    %296 = vmatprep.subr.bf16.mxu0 0
    %297 = vmatpush1.bf16.msra.mxu0 0
    %298 = vmatprep.mubr.bf16.mxu0 %v258
    %299 = vmatmul.mubr.bf16.gmra.mrb[0].mxu0 %v172
    %v300 = vpop.f32.mrb[0].mxu0
    %v301 = vadd.f32 %v178, %v300
    %v302 = vpop.f32.mrb[0].mxu0
    %v303 = vpop.f32.mrb[0].mxu0
    %v304 = vadd.f32 %v179, %v303
    %v305 = vpop.f32.mrb[0].mxu0
    %306 = vmatprep.mubr.bf16.mxu0 %v261
    %307 = vmatmul.mubr.bf16.gmra.mrb[0].mxu0 %v174
    %v308 = vpop.f32.mrb[0].mxu0
    %v309 = vadd.f32 %v180, %v308
    %v310 = vpop.f32.mrb[0].mxu0
    %v311 = vpop.f32.mrb[0].mxu0
    %v312 = vadd.f32 %v181, %v311
    %v313 = vpop.f32.mrb[0].mxu0
    %314 = vmatprep.mubr.bf16.mxu0 %v264
    %315 = vmatmul.mubr.bf16.gmra.mrb[0].mxu0 %v176
    %v316 = vpop.f32.mrb[0].mxu0
    %v317 = vadd.f32 %v182, %v316
    %v318 = vpop.f32.mrb[0].mxu0
    %v319 = vpop.f32.mrb[0].mxu0
    %v320 = vadd.f32 %v183, %v319
    %v321 = vpop.f32.mrb[0].mxu0
    %322 = vdwg.mxu0
    %v323 = vlaneseq
    %v324 = vand.u32 %v323, 127
    %vm325 = vcmp.lt.s32.totalorder %v324, 17
    %v326 = vsel %vm325, 0.0, -1e+30
    %v327 = vld [vmem:[%s9] sm:$0x1]
    %v328 = vld [vmem:[%s11] sm:$0x1]
    %v329 = vsel %vm256, %v301, 0.0
    %330 = vadd.xlane.f32.xlu0 %v329
    %v331 = vpop.xlane.xlu0 %330
    %v332 = vsel %vm256, %v304, 0.0
    %333 = vadd.xlane.f32.xlu0 %v332
    %v334 = vpop.xlane.xlu0 %333
    %v335 = vsel %vm256, %v309, 0.0
    %336 = vadd.xlane.f32.xlu0 %v335
    %v337 = vpop.xlane.xlu0 %336
    %v338 = vsel %vm256, %v312, 0.0
    %339 = vadd.xlane.f32.xlu0 %v338
    %v340 = vpop.xlane.xlu0 %339
    %v341 = vsel %vm256, %v317, 0.0
    %342 = vadd.xlane.f32.xlu0 %v341
    %v343 = vpop.xlane.xlu0 %342
    %v344 = vsel %vm256, %v320, 0.0
    %345 = vadd.xlane.f32.xlu0 %v344
    %v346 = vpop.xlane.xlu0 %345
    %v347 = vrcp.pop 64.0
    %v348 = vmul.f32 %v331, %v347
    %v349 = vmul.f32 %v334, %v347
    %v350 = vmul.f32 %v337, %v347
    %v351 = vmul.f32 %v340, %v347
    %v352 = vmul.f32 %v343, %v347
    %v353 = vmul.f32 %v346, %v347
    %v354 = vsub.f32 %v301, %v348
    %v355 = vsub.f32 %v304, %v349
    %v356 = vsub.f32 %v309, %v350
    %v357 = vsub.f32 %v312, %v351
    %v358 = vsub.f32 %v317, %v352
    %v359 = vsub.f32 %v320, %v353
    %v360 = vmul.f32 %v354, %v354
    %v361 = vmul.f32 %v355, %v355
    %v362 = vmul.f32 %v356, %v356
    %v363 = vmul.f32 %v357, %v357
    %v364 = vmul.f32 %v358, %v358
    %v365 = vmul.f32 %v359, %v359
    %v366 = vsel %vm256, %v360, 0.0
    %367 = vadd.xlane.f32.xlu0 %v366
    %v368 = vpop.xlane.xlu0 %367
    %v369 = vsel %vm256, %v361, 0.0
    %370 = vadd.xlane.f32.xlu0 %v369
    %v371 = vpop.xlane.xlu0 %370
    %v372 = vsel %vm256, %v362, 0.0
    %373 = vadd.xlane.f32.xlu0 %v372
    %v374 = vpop.xlane.xlu0 %373
    %v375 = vsel %vm256, %v363, 0.0
    %376 = vadd.xlane.f32.xlu0 %v375
    %v377 = vpop.xlane.xlu0 %376
    %v378 = vsel %vm256, %v364, 0.0
    %379 = vadd.xlane.f32.xlu0 %v378
    %v380 = vpop.xlane.xlu0 %379
    %v381 = vsel %vm256, %v365, 0.0
    %382 = vadd.xlane.f32.xlu0 %v381
    %v383 = vpop.xlane.xlu0 %382
    %v384 = vmul.f32 %v368, %v347
    %v385 = vmul.f32 %v371, %v347
    %v386 = vmul.f32 %v374, %v347
    %v387 = vmul.f32 %v377, %v347
    %v388 = vmul.f32 %v380, %v347
    %v389 = vmul.f32 %v383, %v347
    %v390 = vadd.f32 %v384, 1e-06
    %v391 = vadd.f32 %v385, 1e-06
    %v392 = vadd.f32 %v386, 1e-06
    %v393 = vadd.f32 %v387, 1e-06
    %v394 = vadd.f32 %v388, 1e-06
    %v395 = vadd.f32 %v389, 1e-06
    %v396 = vrsqrt.pop %v390
    %v397 = vrsqrt.pop %v391
    %v398 = vrsqrt.pop %v392
    %v399 = vrsqrt.pop %v393
    %v400 = vrsqrt.pop %v394
    %v401 = vrsqrt.pop %v395
    %v402 = vmul.f32 %v354, %v396
    %v403 = vmul.f32 %v355, %v397
    %v404 = vmul.f32 %v356, %v398
    %v405 = vmul.f32 %v357, %v399
    %v406 = vmul.f32 %v358, %v400
    %v407 = vmul.f32 %v359, %v401
    %v409 = vlaneseq
    %v410 = vshrl.u32 %v409, 7
    %v411 = vsub.s32 0, %v410
    %v412 = vrot.slane %v327, %v411
    %v414 = vmul.f32 %v402, %v412
    %v415 = vmul.f32 %v403, %v412
    %v416 = vmul.f32 %v404, %v412
    %v417 = vmul.f32 %v405, %v412
    %v418 = vmul.f32 %v406, %v412
    %v419 = vmul.f32 %v407, %v412
    %v421 = vlaneseq
    %v422 = vshrl.u32 %v421, 7
    %v423 = vsub.s32 0, %v422
    %v424 = vrot.slane %v328, %v423
    %v426 = vadd.f32 %v414, %v424
    %v427 = vadd.f32 %v415, %v424
    %v428 = vadd.f32 %v416, %v424
    %v429 = vadd.f32 %v417, %v424
    %v430 = vadd.f32 %v418, %v424
    %v431 = vadd.f32 %v419, %v424
    %v432 = vld [vmem:[%s13] sm:$0xff]
    %v433 = vld [vmem:[%s13 + $0x8] sm:$0xff]
    %v434 = vld [vmem:[%s13 + $0x10] sm:$0xff]
    %v435 = vld [vmem:[%s13 + $0x18] sm:$0xff]
    %v436 = vld [vmem:[%s13 + $0x20] sm:$0xff]
    %v437 = vld [vmem:[%s13 + $0x28] sm:$0xff]
    %v438 = vld [vmem:[%s13 + $0x30] sm:$0xff]
    %v439 = vld [vmem:[%s13 + $0x38] sm:$0xff]
    %v440 = vpack.c.bf16 %v427, %v426
    %v441 = vpack.c.bf16 %v429, %v428
    %v442 = vpack.c.bf16 %v431, %v430
    %v443 = vld [vmem:[%s15] sm:$0x3]
    %v445 = vlaneseq
    %v446 = vshrl.u32 %v445, 7
    %v447 = vsub.s32 0, %v446
    %v448 = vrot.slane %v443, %v447
    %v449 = vlaneseq
    %v450 = vshrl.u32 %v449, 7
    %v451 = vsub.s32 1, %v450
    %v452 = vrot.slane %v443, %v451
    %v463 = vunpack.c.l.b16 %v432
    %v464 = vunpack.c.h.b16 %v432
    %v465 = vunpack.c.l.b16 %v433
    %v466 = vunpack.c.h.b16 %v433
    %v467 = vunpack.c.l.b16 %v434
    %v468 = vunpack.c.h.b16 %v434
    %v469 = vunpack.c.l.b16 %v435
    %v470 = vunpack.c.h.b16 %v435
    %v471 = vunpack.c.l.b16 %v436
    %v472 = vunpack.c.h.b16 %v436
    %v473 = vunpack.c.l.b16 %v437
    %v474 = vunpack.c.h.b16 %v437
    %v475 = vunpack.c.l.b16 %v438
    %v476 = vunpack.c.h.b16 %v438
    %v477 = vunpack.c.l.b16 %v439
    %v478 = vunpack.c.h.b16 %v439
    %v479 = vpack.c.b16 %v465, %v463
    %v480 = vpack.c.b16 %v466, %v464
    %v481 = vpack.c.b16 %v469, %v467
    %v482 = vpack.c.b16 %v470, %v468
    %v483 = vpack.c.b16 %v473, %v471
    %v484 = vpack.c.b16 %v474, %v472
    %v485 = vpack.c.b16 %v477, %v475
    %v486 = vpack.c.b16 %v478, %v476
    %v496 = vsel %vm256, %v440, 0
    %v499 = vsel %vm256, %v441, 0
    %v502 = vsel %vm256, %v442, 0
    %504 = vmatprep.subr.bf16.mxu0 %v480
    %505 = vmatpush1.bf16.msra.mxu0 %v479
    %506 = vmatprep.subr.bf16.mxu0 %v482
    %507 = vmatpush1.bf16.msra.mxu0 %v481
    %508 = vmatprep.subr.bf16.mxu0 %v484
    %509 = vmatpush1.bf16.msra.mxu0 %v483
    %510 = vmatprep.subr.bf16.mxu0 %v486
    %511 = vmatpush1.bf16.msra.mxu0 %v485
    %512 = vmatprep.subr.bf16.mxu0 0
    %513 = vmatpush1.bf16.msra.mxu0 0
    %514 = vmatprep.subr.bf16.mxu0 0
    %515 = vmatpush1.bf16.msra.mxu0 0
    %516 = vmatprep.subr.bf16.mxu0 0
    %517 = vmatpush1.bf16.msra.mxu0 0
    %518 = vmatprep.subr.bf16.mxu0 0
    %519 = vmatpush1.bf16.msra.mxu0 0
    %520 = vmatprep.subr.bf16.mxu0 0
    %521 = vmatpush1.bf16.msra.mxu0 0
    %522 = vmatprep.subr.bf16.mxu0 0
    %523 = vmatpush1.bf16.msra.mxu0 0
    %524 = vmatprep.subr.bf16.mxu0 0
    %525 = vmatpush1.bf16.msra.mxu0 0
    %526 = vmatprep.subr.bf16.mxu0 0
    %527 = vmatpush1.bf16.msra.mxu0 0
    %528 = vmatprep.subr.bf16.mxu0 0
    %529 = vmatpush1.bf16.msra.mxu0 0
    %530 = vmatprep.subr.bf16.mxu0 0
    %531 = vmatpush1.bf16.msra.mxu0 0
    %532 = vmatprep.subr.bf16.mxu0 0
    %533 = vmatpush1.bf16.msra.mxu0 0
    %534 = vmatprep.subr.bf16.mxu0 0
    %535 = vmatpush1.bf16.msra.mxu0 0
    %536 = vmatprep.mubr.bf16.mxu0 0
    %537 = vmatmul.mubr.bf16.gmra.mrb[0].mxu0 %v496
    %v538 = vpop.f32.mrb[0].mxu0
    %v539 = vadd.f32 %v448, %v538
    %v540 = vpop.f32.mrb[0].mxu0
    %v541 = vadd.f32 %v452, %v540
    %v542 = vpop.f32.mrb[0].mxu0
    %v543 = vadd.f32 %v448, %v542
    %v544 = vpop.f32.mrb[0].mxu0
    %v545 = vadd.f32 %v452, %v544
    %546 = vmatprep.mubr.bf16.mxu0 0
    %547 = vmatmul.mubr.bf16.gmra.mrb[0].mxu0 %v499
    %v548 = vpop.f32.mrb[0].mxu0
    %v549 = vadd.f32 %v448, %v548
    %v550 = vpop.f32.mrb[0].mxu0
    %v551 = vadd.f32 %v452, %v550
    %v552 = vpop.f32.mrb[0].mxu0
    %v553 = vadd.f32 %v448, %v552
    %v554 = vpop.f32.mrb[0].mxu0
    %v555 = vadd.f32 %v452, %v554
    %556 = vmatprep.mubr.bf16.mxu0 0
    %557 = vmatmul.mubr.bf16.gmra.mrb[0].mxu0 %v502
    %v558 = vpop.f32.mrb[0].mxu0
    %v559 = vadd.f32 %v448, %v558
    %v560 = vpop.f32.mrb[0].mxu0
    %v561 = vadd.f32 %v452, %v560
    %v562 = vpop.f32.mrb[0].mxu0
    %v563 = vadd.f32 %v448, %v562
    %v564 = vpop.f32.mrb[0].mxu0
    %v565 = vadd.f32 %v452, %v564
    %566 = vdwg.mxu0
    %v567 = vpack.c.bf16 %v543, %v539
    %v568 = vpack.c.bf16 %v549, %v549
    %v569 = vpack.c.bf16 %v559, %v553
    %v570 = vpack.c.bf16 %v563, %v563
    %573 = vrot.lane.b32.xlu0 %v567, 64
    %v574 = vpop.permute.xlu0 %573
    %575 = vrot.lane.b32.xlu0 %v568, 64
    %v576 = vpop.permute.xlu0 %575
    %vm577 = vcmask 130048
    %v579 = vsel %vm577, %v567, 0
    %v582 = vsel %vm577, %v568, 0
    %v585 = vsel %vm577, %v574, 0
    %v588 = vsel %vm577, %v576, 0
    %590 = vmatprep.subr.bf16.mxu0 0
    %591 = vmatpush1.bf16.xpose.msra.mxu0 %v585
    %592 = vmatprep.subr.bf16.mxu0 0
    %593 = vmatpush1.bf16.xpose.msra.mxu0 %v588
    %594 = vmatprep.subr.bf16.mxu0 0
    %595 = vmatpush1.bf16.xpose.msra.mxu0 0
    %596 = vmatprep.subr.bf16.mxu0 0
    %597 = vmatpush1.bf16.xpose.msra.mxu0 0
    %598 = vmatprep.subr.bf16.mxu0 0
    %599 = vmatpush1.bf16.xpose.msra.mxu0 0
    %600 = vmatprep.subr.bf16.mxu0 0
    %601 = vmatpush1.bf16.xpose.msra.mxu0 0
    %602 = vmatprep.subr.bf16.mxu0 0
    %603 = vmatpush1.bf16.xpose.msra.mxu0 0
    %604 = vmatprep.subr.bf16.mxu0 0
    %605 = vmatpush1.bf16.xpose.msra.mxu0 0
    %606 = vmatprep.subr.bf16.mxu0 0
    %607 = vmatpush1.bf16.xpose.msra.mxu0 0
    %608 = vmatprep.subr.bf16.mxu0 0
    %609 = vmatpush1.bf16.xpose.msra.mxu0 0
    %610 = vmatprep.subr.bf16.mxu0 0
    %611 = vmatpush1.bf16.xpose.msra.mxu0 0
    %612 = vmatprep.subr.bf16.mxu0 0
    %613 = vmatpush1.bf16.xpose.msra.mxu0 0
    %614 = vmatprep.subr.bf16.mxu0 0
    %615 = vmatpush1.bf16.xpose.msra.mxu0 0
    %616 = vmatprep.subr.bf16.mxu0 0
    %617 = vmatpush1.bf16.xpose.msra.mxu0 0
    %618 = vmatprep.subr.bf16.mxu0 0
    %619 = vmatpush1.bf16.xpose.msra.mxu0 0
    %620 = vmatprep.subr.bf16.mxu0 0
    %621 = vmatpush1.bf16.xpose.msra.mxu0 0
    %622 = vmatprep.mubr.bf16.mxu0 0
    %623 = vmatmul.mubr.bf16.gmra.mrb[0].mxu0 %v579
    %v624 = vpop.f32.mrb[0].mxu0
    %v625 = vadd.f32 0.0, %v624
    %v626 = vpop.f32.mrb[0].mxu0
    %v627 = vpop.f32.mrb[0].mxu0
    %v628 = vadd.f32 0.0, %v627
    %v629 = vpop.f32.mrb[0].mxu0
    %630 = vmatprep.mubr.bf16.mxu0 0
    %631 = vmatmul.mubr.bf16.gmra.mrb[0].mxu0 %v582
    %v632 = vpop.f32.mrb[0].mxu0
    %v633 = vadd.f32 0.0, %v632
    %v634 = vpop.f32.mrb[0].mxu0
    %v635 = vpop.f32.mrb[0].mxu0
    %v636 = vpop.f32.mrb[0].mxu0
    %637 = vdwg.mxu0
    %640 = vrot.lane.b32.xlu0 %v569, 64
    %v641 = vpop.permute.xlu0 %640
    %642 = vrot.lane.b32.xlu0 %v570, 64
    %v643 = vpop.permute.xlu0 %642
    %v645 = vsel %vm577, %v569, 0
    %v648 = vsel %vm577, %v570, 0
    %v651 = vsel %vm577, %v641, 0
    %v654 = vsel %vm577, %v643, 0
    %656 = vmatprep.subr.bf16.mxu0 0
    %657 = vmatpush1.bf16.xpose.msra.mxu0 %v651
    %658 = vmatprep.subr.bf16.mxu0 0
    %659 = vmatpush1.bf16.xpose.msra.mxu0 %v654
    %660 = vmatprep.subr.bf16.mxu0 0
    %661 = vmatpush1.bf16.xpose.msra.mxu0 0
    %662 = vmatprep.subr.bf16.mxu0 0
    %663 = vmatpush1.bf16.xpose.msra.mxu0 0
    %664 = vmatprep.subr.bf16.mxu0 0
    %665 = vmatpush1.bf16.xpose.msra.mxu0 0
    %666 = vmatprep.subr.bf16.mxu0 0
    %667 = vmatpush1.bf16.xpose.msra.mxu0 0
    %668 = vmatprep.subr.bf16.mxu0 0
    %669 = vmatpush1.bf16.xpose.msra.mxu0 0
    %670 = vmatprep.subr.bf16.mxu0 0
    %671 = vmatpush1.bf16.xpose.msra.mxu0 0
    %672 = vmatprep.subr.bf16.mxu0 0
    %673 = vmatpush1.bf16.xpose.msra.mxu0 0
    %674 = vmatprep.subr.bf16.mxu0 0
    %675 = vmatpush1.bf16.xpose.msra.mxu0 0
    %676 = vmatprep.subr.bf16.mxu0 0
    %677 = vmatpush1.bf16.xpose.msra.mxu0 0
    %678 = vmatprep.subr.bf16.mxu0 0
    %679 = vmatpush1.bf16.xpose.msra.mxu0 0
    %680 = vmatprep.subr.bf16.mxu0 0
    %681 = vmatpush1.bf16.xpose.msra.mxu0 0
    %682 = vmatprep.subr.bf16.mxu0 0
    %683 = vmatpush1.bf16.xpose.msra.mxu0 0
    %684 = vmatprep.subr.bf16.mxu0 0
    %685 = vmatpush1.bf16.xpose.msra.mxu0 0
    %686 = vmatprep.subr.bf16.mxu0 0
    %687 = vmatpush1.bf16.xpose.msra.mxu0 0
    %688 = vmatprep.mubr.bf16.mxu0 0
    %689 = vmatmul.mubr.bf16.gmra.mrb[0].mxu0 %v645
    %v690 = vpop.f32.mrb[0].mxu0
    %v691 = vadd.f32 0.0, %v690
    %v692 = vpop.f32.mrb[0].mxu0
    %v693 = vpop.f32.mrb[0].mxu0
    %v694 = vadd.f32 0.0, %v693
    %v695 = vpop.f32.mrb[0].mxu0
    %696 = vmatprep.mubr.bf16.mxu0 0
    %697 = vmatmul.mubr.bf16.gmra.mrb[0].mxu0 %v648
    %v698 = vpop.f32.mrb[0].mxu0
    %v699 = vadd.f32 0.0, %v698
    %v700 = vpop.f32.mrb[0].mxu0
    %v701 = vpop.f32.mrb[0].mxu0
    %v702 = vpop.f32.mrb[0].mxu0
    %703 = vdwg.mxu0
    %v704 = vmul.f32 %v625, 0.25
    %v705 = vmul.f32 %v628, 0.25
    %v706 = vmul.f32 %v633, 0.25
    %v707 = vmul.f32 %v691, 0.25
    %v708 = vmul.f32 %v694, 0.25
    %v709 = vmul.f32 %v699, 0.25
    %v710 = vadd.f32 %v704, %v326
    %v711 = vadd.f32 %v705, %v326
    %v712 = vadd.f32 %v706, %v326
    %v713 = vadd.f32 %v707, %v326
    %v714 = vadd.f32 %v708, %v326
    %v715 = vadd.f32 %v709, %v326
    %vm716 = vcmask 195584
    %v717 = vsel %vm716, %v710, -inf
    %718 = vmax.xlane.f32.xlu0 %v717
    %v719 = vpop.xlane.xlu0 %718
    %v720 = vsel %vm716, %v711, -inf
    %721 = vmax.xlane.f32.xlu0 %v720
    %v722 = vpop.xlane.xlu0 %721
    %v723 = vsel %vm716, %v712, -inf
    %724 = vmax.xlane.f32.xlu0 %v723
    %v725 = vpop.xlane.xlu0 %724
    %v726 = vsel %vm716, %v713, -inf
    %727 = vmax.xlane.f32.xlu0 %v726
    %v728 = vpop.xlane.xlu0 %727
    %v729 = vsel %vm716, %v714, -inf
    %730 = vmax.xlane.f32.xlu0 %v729
    %v731 = vpop.xlane.xlu0 %730
    %v732 = vsel %vm716, %v715, -inf
    %733 = vmax.xlane.f32.xlu0 %v732
    %v734 = vpop.xlane.xlu0 %733
    %v735 = vsub.f32 %v710, %v719
    %v736 = vsub.f32 %v711, %v722
    %v737 = vsub.f32 %v712, %v725
    %v738 = vsub.f32 %v713, %v728
    %v739 = vsub.f32 %v714, %v731
    %v740 = vsub.f32 %v715, %v734
    %v741 = vmul.f32 %v735, 1.442695
    %v742 = vpow.pop %v741
    %v743 = vmul.f32 %v736, 1.442695
    %v744 = vpow.pop %v743
    %v745 = vmul.f32 %v737, 1.442695
    %v746 = vpow.pop %v745
    %v747 = vmul.f32 %v738, 1.442695
    %v748 = vpow.pop %v747
    %v749 = vmul.f32 %v739, 1.442695
    %v750 = vpow.pop %v749
    %v751 = vmul.f32 %v740, 1.442695
    %v752 = vpow.pop %v751
    %v753 = vsel %vm716, %v742, 0.0
    %754 = vadd.xlane.f32.xlu0 %v753
    %v755 = vpop.xlane.xlu0 %754
    %v756 = vsel %vm716, %v744, 0.0
    %757 = vadd.xlane.f32.xlu0 %v756
    %v758 = vpop.xlane.xlu0 %757
    %v759 = vsel %vm716, %v746, 0.0
    %760 = vadd.xlane.f32.xlu0 %v759
    %v761 = vpop.xlane.xlu0 %760
    %v762 = vsel %vm716, %v748, 0.0
    %763 = vadd.xlane.f32.xlu0 %v762
    %v764 = vpop.xlane.xlu0 %763
    %v765 = vsel %vm716, %v750, 0.0
    %766 = vadd.xlane.f32.xlu0 %v765
    %v767 = vpop.xlane.xlu0 %766
    %v768 = vsel %vm716, %v752, 0.0
    %769 = vadd.xlane.f32.xlu0 %v768
    %v770 = vpop.xlane.xlu0 %769
    %v771 = vrcp.pop %v755
    %v772 = vmul.f32 %v742, %v771
    %v773 = vrcp.pop %v758
    %v774 = vmul.f32 %v744, %v773
    %v775 = vrcp.pop %v761
    %v776 = vmul.f32 %v746, %v775
    %v777 = vrcp.pop %v764
    %v778 = vmul.f32 %v748, %v777
    %v779 = vrcp.pop %v767
    %v780 = vmul.f32 %v750, %v779
    %v781 = vrcp.pop %v770
    %v782 = vmul.f32 %v752, %v781
    %v783 = vpack.c.bf16 %v774, %v772
    %v784 = vpack.c.bf16 %v776, %v776
    %v785 = vpack.c.bf16 %v780, %v778
    %v786 = vpack.c.bf16 %v782, %v782
    %v787 = vpack.c.bf16 %v545, %v541
    %v788 = vpack.c.bf16 %v551, %v551
    %v789 = vpack.c.bf16 %v561, %v555
    %v790 = vpack.c.bf16 %v565, %v565
    %v792 = vsel %vm716, %v783, 0
    %v795 = vsel %vm716, %v784, 0
    %vm797 = vcmask 1043456
    %v799 = vsel %vm797, %v788, 0
    %801 = vmatprep.subr.bf16.mxu0 0
    %802 = vmatpush1.bf16.msra.mxu0 %v787
    %803 = vmatprep.subr.bf16.mxu0 0
    %804 = vmatpush1.bf16.msra.mxu0 %v799
    %805 = vmatprep.subr.bf16.mxu0 0
    %806 = vmatpush1.bf16.msra.mxu0 0
    %807 = vmatprep.subr.bf16.mxu0 0
    %808 = vmatpush1.bf16.msra.mxu0 0
    %809 = vmatprep.subr.bf16.mxu0 0
    %810 = vmatpush1.bf16.msra.mxu0 0
    %811 = vmatprep.subr.bf16.mxu0 0
    %812 = vmatpush1.bf16.msra.mxu0 0
    %813 = vmatprep.subr.bf16.mxu0 0
    %814 = vmatpush1.bf16.msra.mxu0 0
    %815 = vmatprep.subr.bf16.mxu0 0
    %816 = vmatpush1.bf16.msra.mxu0 0
    %817 = vmatprep.subr.bf16.mxu0 0
    %818 = vmatpush1.bf16.msra.mxu0 0
    %819 = vmatprep.subr.bf16.mxu0 0
    %820 = vmatpush1.bf16.msra.mxu0 0
    %821 = vmatprep.subr.bf16.mxu0 0
    %822 = vmatpush1.bf16.msra.mxu0 0
    %823 = vmatprep.subr.bf16.mxu0 0
    %824 = vmatpush1.bf16.msra.mxu0 0
    %825 = vmatprep.subr.bf16.mxu0 0
    %826 = vmatpush1.bf16.msra.mxu0 0
    %827 = vmatprep.subr.bf16.mxu0 0
    %828 = vmatpush1.bf16.msra.mxu0 0
    %829 = vmatprep.subr.bf16.mxu0 0
    %830 = vmatpush1.bf16.msra.mxu0 0
    %831 = vmatprep.subr.bf16.mxu0 0
    %832 = vmatpush1.bf16.msra.mxu0 0
    %833 = vmatprep.mubr.bf16.mxu0 0
    %834 = vmatmul.mubr.bf16.gmra.mrb[0].mxu0 %v792
    %v835 = vpop.f32.mrb[0].mxu0
    %v836 = vadd.f32 0.0, %v835
    %v837 = vpop.f32.mrb[0].mxu0
    %v838 = vpop.f32.mrb[0].mxu0
    %v839 = vadd.f32 0.0, %v838
    %v840 = vpop.f32.mrb[0].mxu0
    %841 = vmatprep.mubr.bf16.mxu0 0
    %842 = vmatmul.mubr.bf16.gmra.mrb[0].mxu0 %v795
    %v843 = vpop.f32.mrb[0].mxu0
    %v844 = vadd.f32 0.0, %v843
    %v845 = vpop.f32.mrb[0].mxu0
    %v846 = vpop.f32.mrb[0].mxu0
    %v847 = vpop.f32.mrb[0].mxu0
    %848 = vdwg.mxu0
    %v850 = vsel %vm716, %v785, 0
    %v853 = vsel %vm716, %v786, 0
    %v856 = vsel %vm797, %v790, 0
    %858 = vmatprep.subr.bf16.mxu0 0
    %859 = vmatpush1.bf16.msra.mxu0 %v789
    %860 = vmatprep.subr.bf16.mxu0 0
    %861 = vmatpush1.bf16.msra.mxu0 %v856
    %862 = vmatprep.subr.bf16.mxu0 0
    %863 = vmatpush1.bf16.msra.mxu0 0
    %864 = vmatprep.subr.bf16.mxu0 0
    %865 = vmatpush1.bf16.msra.mxu0 0
    %866 = vmatprep.subr.bf16.mxu0 0
    %867 = vmatpush1.bf16.msra.mxu0 0
    %868 = vmatprep.subr.bf16.mxu0 0
    %869 = vmatpush1.bf16.msra.mxu0 0
    %870 = vmatprep.subr.bf16.mxu0 0
    %871 = vmatpush1.bf16.msra.mxu0 0
    %872 = vmatprep.subr.bf16.mxu0 0
    %873 = vmatpush1.bf16.msra.mxu0 0
    %874 = vmatprep.subr.bf16.mxu0 0
    %875 = vmatpush1.bf16.msra.mxu0 0
    %876 = vmatprep.subr.bf16.mxu0 0
    %877 = vmatpush1.bf16.msra.mxu0 0
    %878 = vmatprep.subr.bf16.mxu0 0
    %879 = vmatpush1.bf16.msra.mxu0 0
    %880 = vmatprep.subr.bf16.mxu0 0
    %881 = vmatpush1.bf16.msra.mxu0 0
    %882 = vmatprep.subr.bf16.mxu0 0
    %883 = vmatpush1.bf16.msra.mxu0 0
    %884 = vmatprep.subr.bf16.mxu0 0
    %885 = vmatpush1.bf16.msra.mxu0 0
    %886 = vmatprep.subr.bf16.mxu0 0
    %887 = vmatpush1.bf16.msra.mxu0 0
    %888 = vmatprep.subr.bf16.mxu0 0
    %889 = vmatpush1.bf16.msra.mxu0 0
    %890 = vmatprep.mubr.bf16.mxu0 0
    %891 = vmatmul.mubr.bf16.gmra.mrb[0].mxu0 %v850
    %v892 = vpop.f32.mrb[0].mxu0
    %v893 = vadd.f32 0.0, %v892
    %v894 = vpop.f32.mrb[0].mxu0
    %v895 = vpop.f32.mrb[0].mxu0
    %v896 = vadd.f32 0.0, %v895
    %v897 = vpop.f32.mrb[0].mxu0
    %898 = vmatprep.mubr.bf16.mxu0 0
    %899 = vmatmul.mubr.bf16.gmra.mrb[0].mxu0 %v853
    %v900 = vpop.f32.mrb[0].mxu0
    %v901 = vadd.f32 0.0, %v900
    %v902 = vpop.f32.mrb[0].mxu0
    %v903 = vpop.f32.mrb[0].mxu0
    %v904 = vpop.f32.mrb[0].mxu0
    %905 = vdwg.mxu0
    %906 = vrot.lane.b32.xlu0 %v567, 112
    %v907 = vpop.permute.xlu0 %906
    %908 = vrot.lane.b32.xlu0 %v568, 112
    %v909 = vpop.permute.xlu0 %908
    %910 = vrot.lane.b32.xlu0 %v567, 48
    %v911 = vpop.permute.xlu0 %910
    %912 = vrot.lane.b32.xlu0 %v568, 48
    %v913 = vpop.permute.xlu0 %912
    %v915 = vsel %vm577, %v907, 0
    %v918 = vsel %vm577, %v909, 0
    %v921 = vsel %vm577, %v911, 0
    %v924 = vsel %vm577, %v913, 0
    %926 = vmatprep.subr.bf16.mxu0 0
    %927 = vmatpush1.bf16.xpose.msra.mxu0 %v921
    %928 = vmatprep.subr.bf16.mxu0 0
    %929 = vmatpush1.bf16.xpose.msra.mxu0 %v924
    %930 = vmatprep.subr.bf16.mxu0 0
    %931 = vmatpush1.bf16.xpose.msra.mxu0 0
    %932 = vmatprep.subr.bf16.mxu0 0
    %933 = vmatpush1.bf16.xpose.msra.mxu0 0
    %934 = vmatprep.subr.bf16.mxu0 0
    %935 = vmatpush1.bf16.xpose.msra.mxu0 0
    %936 = vmatprep.subr.bf16.mxu0 0
    %937 = vmatpush1.bf16.xpose.msra.mxu0 0
    %938 = vmatprep.subr.bf16.mxu0 0
    %939 = vmatpush1.bf16.xpose.msra.mxu0 0
    %940 = vmatprep.subr.bf16.mxu0 0
    %941 = vmatpush1.bf16.xpose.msra.mxu0 0
    %942 = vmatprep.subr.bf16.mxu0 0
    %943 = vmatpush1.bf16.xpose.msra.mxu0 0
    %944 = vmatprep.subr.bf16.mxu0 0
    %945 = vmatpush1.bf16.xpose.msra.mxu0 0
    %946 = vmatprep.subr.bf16.mxu0 0
    %947 = vmatpush1.bf16.xpose.msra.mxu0 0
    %948 = vmatprep.subr.bf16.mxu0 0
    %949 = vmatpush1.bf16.xpose.msra.mxu0 0
    %950 = vmatprep.subr.bf16.mxu0 0
    %951 = vmatpush1.bf16.xpose.msra.mxu0 0
    %952 = vmatprep.subr.bf16.mxu0 0
    %953 = vmatpush1.bf16.xpose.msra.mxu0 0
    %954 = vmatprep.subr.bf16.mxu0 0
    %955 = vmatpush1.bf16.xpose.msra.mxu0 0
    %956 = vmatprep.subr.bf16.mxu0 0
    %957 = vmatpush1.bf16.xpose.msra.mxu0 0
    %958 = vmatprep.mubr.bf16.mxu0 0
    %959 = vmatmul.mubr.bf16.gmra.mrb[0].mxu0 %v915
    %v960 = vpop.f32.mrb[0].mxu0
    %v961 = vadd.f32 0.0, %v960
    %v962 = vpop.f32.mrb[0].mxu0
    %v963 = vpop.f32.mrb[0].mxu0
    %v964 = vadd.f32 0.0, %v963
    %v965 = vpop.f32.mrb[0].mxu0
    %966 = vmatprep.mubr.bf16.mxu0 0
    %967 = vmatmul.mubr.bf16.gmra.mrb[0].mxu0 %v918
    %v968 = vpop.f32.mrb[0].mxu0
    %v969 = vadd.f32 0.0, %v968
    %v970 = vpop.f32.mrb[0].mxu0
    %v971 = vpop.f32.mrb[0].mxu0
    %v972 = vpop.f32.mrb[0].mxu0
    %973 = vdwg.mxu0
    %974 = vrot.lane.b32.xlu0 %v569, 112
    %v975 = vpop.permute.xlu0 %974
    %976 = vrot.lane.b32.xlu0 %v570, 112
    %v977 = vpop.permute.xlu0 %976
    %978 = vrot.lane.b32.xlu0 %v569, 48
    %v979 = vpop.permute.xlu0 %978
    %980 = vrot.lane.b32.xlu0 %v570, 48
    %v981 = vpop.permute.xlu0 %980
    %v983 = vsel %vm577, %v975, 0
    %v986 = vsel %vm577, %v977, 0
    %v989 = vsel %vm577, %v979, 0
    %v992 = vsel %vm577, %v981, 0
    %994 = vmatprep.subr.bf16.mxu0 0
    %995 = vmatpush1.bf16.xpose.msra.mxu0 %v989
    %996 = vmatprep.subr.bf16.mxu0 0
    %997 = vmatpush1.bf16.xpose.msra.mxu0 %v992
    %998 = vmatprep.subr.bf16.mxu0 0
    %999 = vmatpush1.bf16.xpose.msra.mxu0 0
    %1000 = vmatprep.subr.bf16.mxu0 0
    %1001 = vmatpush1.bf16.xpose.msra.mxu0 0
    %1002 = vmatprep.subr.bf16.mxu0 0
    %1003 = vmatpush1.bf16.xpose.msra.mxu0 0
    %1004 = vmatprep.subr.bf16.mxu0 0
    %1005 = vmatpush1.bf16.xpose.msra.mxu0 0
    %1006 = vmatprep.subr.bf16.mxu0 0
    %1007 = vmatpush1.bf16.xpose.msra.mxu0 0
    %1008 = vmatprep.subr.bf16.mxu0 0
    %1009 = vmatpush1.bf16.xpose.msra.mxu0 0
    %1010 = vmatprep.subr.bf16.mxu0 0
    %1011 = vmatpush1.bf16.xpose.msra.mxu0 0
    %1012 = vmatprep.subr.bf16.mxu0 0
    %1013 = vmatpush1.bf16.xpose.msra.mxu0 0
    %1014 = vmatprep.subr.bf16.mxu0 0
    %1015 = vmatpush1.bf16.xpose.msra.mxu0 0
    %1016 = vmatprep.subr.bf16.mxu0 0
    %1017 = vmatpush1.bf16.xpose.msra.mxu0 0
    %1018 = vmatprep.subr.bf16.mxu0 0
    %1019 = vmatpush1.bf16.xpose.msra.mxu0 0
    %1020 = vmatprep.subr.bf16.mxu0 0
    %1021 = vmatpush1.bf16.xpose.msra.mxu0 0
    %1022 = vmatprep.subr.bf16.mxu0 0
    %1023 = vmatpush1.bf16.xpose.msra.mxu0 0
    %1024 = vmatprep.subr.bf16.mxu0 0
    %1025 = vmatpush1.bf16.xpose.msra.mxu0 0
    %1026 = vmatprep.mubr.bf16.mxu0 0
    %1027 = vmatmul.mubr.bf16.gmra.mrb[0].mxu0 %v983
    %v1028 = vpop.f32.mrb[0].mxu0
    %v1029 = vadd.f32 0.0, %v1028
    %v1030 = vpop.f32.mrb[0].mxu0
    %v1031 = vpop.f32.mrb[0].mxu0
    %v1032 = vadd.f32 0.0, %v1031
    %v1033 = vpop.f32.mrb[0].mxu0
    %1034 = vmatprep.mubr.bf16.mxu0 0
    %1035 = vmatmul.mubr.bf16.gmra.mrb[0].mxu0 %v986
    %v1036 = vpop.f32.mrb[0].mxu0
    %v1037 = vadd.f32 0.0, %v1036
    %v1038 = vpop.f32.mrb[0].mxu0
    %v1039 = vpop.f32.mrb[0].mxu0
    %v1040 = vpop.f32.mrb[0].mxu0
    %1041 = vdwg.mxu0
    %v1042 = vmul.f32 %v961, 0.25
    %v1043 = vmul.f32 %v964, 0.25
    %v1044 = vmul.f32 %v969, 0.25
    %v1045 = vmul.f32 %v1029, 0.25
    %v1046 = vmul.f32 %v1032, 0.25
    %v1047 = vmul.f32 %v1037, 0.25
    %v1048 = vadd.f32 %v1042, %v326
    %v1049 = vadd.f32 %v1043, %v326
    %v1050 = vadd.f32 %v1044, %v326
    %v1051 = vadd.f32 %v1045, %v326
    %v1052 = vadd.f32 %v1046, %v326
    %v1053 = vadd.f32 %v1047, %v326
    %v1054 = vsel %vm716, %v1048, -inf
    %1055 = vmax.xlane.f32.xlu0 %v1054
    %v1056 = vpop.xlane.xlu0 %1055
    %v1057 = vsel %vm716, %v1049, -inf
    %1058 = vmax.xlane.f32.xlu0 %v1057
    %v1059 = vpop.xlane.xlu0 %1058
    %v1060 = vsel %vm716, %v1050, -inf
    %1061 = vmax.xlane.f32.xlu0 %v1060
    %v1062 = vpop.xlane.xlu0 %1061
    %v1063 = vsel %vm716, %v1051, -inf
    %1064 = vmax.xlane.f32.xlu0 %v1063
    %v1065 = vpop.xlane.xlu0 %1064
    %v1066 = vsel %vm716, %v1052, -inf
    %1067 = vmax.xlane.f32.xlu0 %v1066
    %v1068 = vpop.xlane.xlu0 %1067
    %v1069 = vsel %vm716, %v1053, -inf
    %1070 = vmax.xlane.f32.xlu0 %v1069
    %v1071 = vpop.xlane.xlu0 %1070
    %v1072 = vsub.f32 %v1048, %v1056
    %v1073 = vsub.f32 %v1049, %v1059
    %v1074 = vsub.f32 %v1050, %v1062
    %v1075 = vsub.f32 %v1051, %v1065
    %v1076 = vsub.f32 %v1052, %v1068
    %v1077 = vsub.f32 %v1053, %v1071
    %v1078 = vmul.f32 %v1072, 1.442695
    %v1079 = vpow.pop %v1078
    %v1080 = vmul.f32 %v1073, 1.442695
    %v1081 = vpow.pop %v1080
    %v1082 = vmul.f32 %v1074, 1.442695
    %v1083 = vpow.pop %v1082
    %v1084 = vmul.f32 %v1075, 1.442695
    %v1085 = vpow.pop %v1084
    %v1086 = vmul.f32 %v1076, 1.442695
    %v1087 = vpow.pop %v1086
    %v1088 = vmul.f32 %v1077, 1.442695
    %v1089 = vpow.pop %v1088
    %v1090 = vsel %vm716, %v1079, 0.0
    %1091 = vadd.xlane.f32.xlu0 %v1090
    %v1092 = vpop.xlane.xlu0 %1091
    %v1093 = vsel %vm716, %v1081, 0.0
    %1094 = vadd.xlane.f32.xlu0 %v1093
    %v1095 = vpop.xlane.xlu0 %1094
    %v1096 = vsel %vm716, %v1083, 0.0
    %1097 = vadd.xlane.f32.xlu0 %v1096
    %v1098 = vpop.xlane.xlu0 %1097
    %v1099 = vsel %vm716, %v1085, 0.0
    %1100 = vadd.xlane.f32.xlu0 %v1099
    %v1101 = vpop.xlane.xlu0 %1100
    %v1102 = vsel %vm716, %v1087, 0.0
    %1103 = vadd.xlane.f32.xlu0 %v1102
    %v1104 = vpop.xlane.xlu0 %1103
    %v1105 = vsel %vm716, %v1089, 0.0
    %1106 = vadd.xlane.f32.xlu0 %v1105
    %v1107 = vpop.xlane.xlu0 %1106
    %v1108 = vrcp.pop %v1092
    %v1109 = vmul.f32 %v1079, %v1108
    %v1110 = vrcp.pop %v1095
    %v1111 = vmul.f32 %v1081, %v1110
    %v1112 = vrcp.pop %v1098
    %v1113 = vmul.f32 %v1083, %v1112
    %v1114 = vrcp.pop %v1101
    %v1115 = vmul.f32 %v1085, %v1114
    %v1116 = vrcp.pop %v1104
    %v1117 = vmul.f32 %v1087, %v1116
    %v1118 = vrcp.pop %v1107
    %v1119 = vmul.f32 %v1089, %v1118
    %v1120 = vpack.c.bf16 %v1111, %v1109
    %v1121 = vpack.c.bf16 %v1113, %v1113
    %v1122 = vpack.c.bf16 %v1117, %v1115
    %v1123 = vpack.c.bf16 %v1119, %v1119
    %1126 = vrot.lane.b32.xlu0 %v787, 112
    %v1127 = vpop.permute.xlu0 %1126
    %1128 = vrot.lane.b32.xlu0 %v788, 112
    %v1129 = vpop.permute.xlu0 %1128
    %v1132 = vsel %vm716, %v1120, 0
    %v1135 = vsel %vm716, %v1121, 0
    %v1138 = vsel %vm797, %v1129, 0
    %1140 = vmatprep.subr.bf16.mxu0 0
    %1141 = vmatpush1.bf16.msra.mxu0 %v1127
    %1142 = vmatprep.subr.bf16.mxu0 0
    %1143 = vmatpush1.bf16.msra.mxu0 %v1138
    %1144 = vmatprep.subr.bf16.mxu0 0
    %1145 = vmatpush1.bf16.msra.mxu0 0
    %1146 = vmatprep.subr.bf16.mxu0 0
    %1147 = vmatpush1.bf16.msra.mxu0 0
    %1148 = vmatprep.subr.bf16.mxu0 0
    %1149 = vmatpush1.bf16.msra.mxu0 0
    %1150 = vmatprep.subr.bf16.mxu0 0
    %1151 = vmatpush1.bf16.msra.mxu0 0
    %1152 = vmatprep.subr.bf16.mxu0 0
    %1153 = vmatpush1.bf16.msra.mxu0 0
    %1154 = vmatprep.subr.bf16.mxu0 0
    %1155 = vmatpush1.bf16.msra.mxu0 0
    %1156 = vmatprep.subr.bf16.mxu0 0
    %1157 = vmatpush1.bf16.msra.mxu0 0
    %1158 = vmatprep.subr.bf16.mxu0 0
    %1159 = vmatpush1.bf16.msra.mxu0 0
    %1160 = vmatprep.subr.bf16.mxu0 0
    %1161 = vmatpush1.bf16.msra.mxu0 0
    %1162 = vmatprep.subr.bf16.mxu0 0
    %1163 = vmatpush1.bf16.msra.mxu0 0
    %1164 = vmatprep.subr.bf16.mxu0 0
    %1165 = vmatpush1.bf16.msra.mxu0 0
    %1166 = vmatprep.subr.bf16.mxu0 0
    %1167 = vmatpush1.bf16.msra.mxu0 0
    %1168 = vmatprep.subr.bf16.mxu0 0
    %1169 = vmatpush1.bf16.msra.mxu0 0
    %1170 = vmatprep.subr.bf16.mxu0 0
    %1171 = vmatpush1.bf16.msra.mxu0 0
    %1172 = vmatprep.mubr.bf16.mxu0 0
    %1173 = vmatmul.mubr.bf16.gmra.mrb[0].mxu0 %v1132
    %v1174 = vpop.f32.mrb[0].mxu0
    %v1175 = vadd.f32 0.0, %v1174
    %v1176 = vpop.f32.mrb[0].mxu0
    %v1177 = vpop.f32.mrb[0].mxu0
    %v1178 = vadd.f32 0.0, %v1177
    %v1179 = vpop.f32.mrb[0].mxu0
    %1180 = vmatprep.mubr.bf16.mxu0 0
    %1181 = vmatmul.mubr.bf16.gmra.mrb[0].mxu0 %v1135
    %v1182 = vpop.f32.mrb[0].mxu0
    %v1183 = vadd.f32 0.0, %v1182
    %v1184 = vpop.f32.mrb[0].mxu0
    %v1185 = vpop.f32.mrb[0].mxu0
    %v1186 = vpop.f32.mrb[0].mxu0
    %1187 = vdwg.mxu0
    %1190 = vrot.lane.b32.xlu0 %v789, 112
    %v1191 = vpop.permute.xlu0 %1190
    %1192 = vrot.lane.b32.xlu0 %v790, 112
    %v1193 = vpop.permute.xlu0 %1192
    %v1196 = vsel %vm716, %v1122, 0
    %v1199 = vsel %vm716, %v1123, 0
    %v1202 = vsel %vm797, %v1193, 0
    %1204 = vmatprep.subr.bf16.mxu0 0
    %1205 = vmatpush1.bf16.msra.mxu0 %v1191
    %1206 = vmatprep.subr.bf16.mxu0 0
    %1207 = vmatpush1.bf16.msra.mxu0 %v1202
    %1208 = vmatprep.subr.bf16.mxu0 0
    %1209 = vmatpush1.bf16.msra.mxu0 0
    %1210 = vmatprep.subr.bf16.mxu0 0
    %1211 = vmatpush1.bf16.msra.mxu0 0
    %1212 = vmatprep.subr.bf16.mxu0 0
    %1213 = vmatpush1.bf16.msra.mxu0 0
    %1214 = vmatprep.subr.bf16.mxu0 0
    %1215 = vmatpush1.bf16.msra.mxu0 0
    %1216 = vmatprep.subr.bf16.mxu0 0
    %1217 = vmatpush1.bf16.msra.mxu0 0
    %1218 = vmatprep.subr.bf16.mxu0 0
    %1219 = vmatpush1.bf16.msra.mxu0 0
    %1220 = vmatprep.subr.bf16.mxu0 0
    %1221 = vmatpush1.bf16.msra.mxu0 0
    %1222 = vmatprep.subr.bf16.mxu0 0
    %1223 = vmatpush1.bf16.msra.mxu0 0
    %1224 = vmatprep.subr.bf16.mxu0 0
    %1225 = vmatpush1.bf16.msra.mxu0 0
    %1226 = vmatprep.subr.bf16.mxu0 0
    %1227 = vmatpush1.bf16.msra.mxu0 0
    %1228 = vmatprep.subr.bf16.mxu0 0
    %1229 = vmatpush1.bf16.msra.mxu0 0
    %1230 = vmatprep.subr.bf16.mxu0 0
    %1231 = vmatpush1.bf16.msra.mxu0 0
    %1232 = vmatprep.subr.bf16.mxu0 0
    %1233 = vmatpush1.bf16.msra.mxu0 0
    %1234 = vmatprep.subr.bf16.mxu0 0
    %1235 = vmatpush1.bf16.msra.mxu0 0
    %1236 = vmatprep.mubr.bf16.mxu0 0
    %1237 = vmatmul.mubr.bf16.gmra.mrb[0].mxu0 %v1196
    %v1238 = vpop.f32.mrb[0].mxu0
    %v1239 = vadd.f32 0.0, %v1238
    %v1240 = vpop.f32.mrb[0].mxu0
    %v1241 = vpop.f32.mrb[0].mxu0
    %v1242 = vadd.f32 0.0, %v1241
    %v1243 = vpop.f32.mrb[0].mxu0
    %1244 = vmatprep.mubr.bf16.mxu0 0
    %1245 = vmatmul.mubr.bf16.gmra.mrb[0].mxu0 %v1199
    %v1246 = vpop.f32.mrb[0].mxu0
    %v1247 = vadd.f32 0.0, %v1246
    %v1248 = vpop.f32.mrb[0].mxu0
    %v1249 = vpop.f32.mrb[0].mxu0
    %v1250 = vpop.f32.mrb[0].mxu0
    %1251 = vdwg.mxu0
    %1252 = vrot.lane.b32.xlu0 %v567, 96
    %v1253 = vpop.permute.xlu0 %1252
    %1254 = vrot.lane.b32.xlu0 %v568, 96
    %v1255 = vpop.permute.xlu0 %1254
    %1256 = vrot.lane.b32.xlu0 %v567, 32
    %v1257 = vpop.permute.xlu0 %1256
    %1258 = vrot.lane.b32.xlu0 %v568, 32
    %v1259 = vpop.permute.xlu0 %1258
    %v1261 = vsel %vm577, %v1253, 0
    %v1264 = vsel %vm577, %v1255, 0
    %v1267 = vsel %vm577, %v1257, 0
    %v1270 = vsel %vm577, %v1259, 0
    %1272 = vmatprep.subr.bf16.mxu0 0
    %1273 = vmatpush1.bf16.xpose.msra.mxu0 %v1267
    %1274 = vmatprep.subr.bf16.mxu0 0
    %1275 = vmatpush1.bf16.xpose.msra.mxu0 %v1270
    %1276 = vmatprep.subr.bf16.mxu0 0
    %1277 = vmatpush1.bf16.xpose.msra.mxu0 0
    %1278 = vmatprep.subr.bf16.mxu0 0
    %1279 = vmatpush1.bf16.xpose.msra.mxu0 0
    %1280 = vmatprep.subr.bf16.mxu0 0
    %1281 = vmatpush1.bf16.xpose.msra.mxu0 0
    %1282 = vmatprep.subr.bf16.mxu0 0
    %1283 = vmatpush1.bf16.xpose.msra.mxu0 0
    %1284 = vmatprep.subr.bf16.mxu0 0
    %1285 = vmatpush1.bf16.xpose.msra.mxu0 0
    %1286 = vmatprep.subr.bf16.mxu0 0
    %1287 = vmatpush1.bf16.xpose.msra.mxu0 0
    %1288 = vmatprep.subr.bf16.mxu0 0
    %1289 = vmatpush1.bf16.xpose.msra.mxu0 0
    %1290 = vmatprep.subr.bf16.mxu0 0
    %1291 = vmatpush1.bf16.xpose.msra.mxu0 0
    %1292 = vmatprep.subr.bf16.mxu0 0
    %1293 = vmatpush1.bf16.xpose.msra.mxu0 0
    %1294 = vmatprep.subr.bf16.mxu0 0
    %1295 = vmatpush1.bf16.xpose.msra.mxu0 0
    %1296 = vmatprep.subr.bf16.mxu0 0
    %1297 = vmatpush1.bf16.xpose.msra.mxu0 0
    %1298 = vmatprep.subr.bf16.mxu0 0
    %1299 = vmatpush1.bf16.xpose.msra.mxu0 0
    %1300 = vmatprep.subr.bf16.mxu0 0
    %1301 = vmatpush1.bf16.xpose.msra.mxu0 0
    %1302 = vmatprep.subr.bf16.mxu0 0
    %1303 = vmatpush1.bf16.xpose.msra.mxu0 0
    %1304 = vmatprep.mubr.bf16.mxu0 0
    %1305 = vmatmul.mubr.bf16.gmra.mrb[0].mxu0 %v1261
    %v1306 = vpop.f32.mrb[0].mxu0
    %v1307 = vadd.f32 0.0, %v1306
    %v1308 = vpop.f32.mrb[0].mxu0
    %v1309 = vpop.f32.mrb[0].mxu0
    %v1310 = vadd.f32 0.0, %v1309
    %v1311 = vpop.f32.mrb[0].mxu0
    %1312 = vmatprep.mubr.bf16.mxu0 0
    %1313 = vmatmul.mubr.bf16.gmra.mrb[0].mxu0 %v1264
    %v1314 = vpop.f32.mrb[0].mxu0
    %v1315 = vadd.f32 0.0, %v1314
    %v1316 = vpop.f32.mrb[0].mxu0
    %v1317 = vpop.f32.mrb[0].mxu0
    %v1318 = vpop.f32.mrb[0].mxu0
    %1319 = vdwg.mxu0
    %1320 = vrot.lane.b32.xlu0 %v569, 96
    %v1321 = vpop.permute.xlu0 %1320
    %1322 = vrot.lane.b32.xlu0 %v570, 96
    %v1323 = vpop.permute.xlu0 %1322
    %1324 = vrot.lane.b32.xlu0 %v569, 32
    %v1325 = vpop.permute.xlu0 %1324
    %1326 = vrot.lane.b32.xlu0 %v570, 32
    %v1327 = vpop.permute.xlu0 %1326
    %v1329 = vsel %vm577, %v1321, 0
    %v1332 = vsel %vm577, %v1323, 0
    %v1335 = vsel %vm577, %v1325, 0
    %v1338 = vsel %vm577, %v1327, 0
    %1340 = vmatprep.subr.bf16.mxu0 0
    %1341 = vmatpush1.bf16.xpose.msra.mxu0 %v1335
    %1342 = vmatprep.subr.bf16.mxu0 0
    %1343 = vmatpush1.bf16.xpose.msra.mxu0 %v1338
    %1344 = vmatprep.subr.bf16.mxu0 0
    %1345 = vmatpush1.bf16.xpose.msra.mxu0 0
    %1346 = vmatprep.subr.bf16.mxu0 0
    %1347 = vmatpush1.bf16.xpose.msra.mxu0 0
    %1348 = vmatprep.subr.bf16.mxu0 0
    %1349 = vmatpush1.bf16.xpose.msra.mxu0 0
    %1350 = vmatprep.subr.bf16.mxu0 0
    %1351 = vmatpush1.bf16.xpose.msra.mxu0 0
    %1352 = vmatprep.subr.bf16.mxu0 0
    %1353 = vmatpush1.bf16.xpose.msra.mxu0 0
    %1354 = vmatprep.subr.bf16.mxu0 0
    %1355 = vmatpush1.bf16.xpose.msra.mxu0 0
    %1356 = vmatprep.subr.bf16.mxu0 0
    %1357 = vmatpush1.bf16.xpose.msra.mxu0 0
    %1358 = vmatprep.subr.bf16.mxu0 0
    %1359 = vmatpush1.bf16.xpose.msra.mxu0 0
    %1360 = vmatprep.subr.bf16.mxu0 0
    %1361 = vmatpush1.bf16.xpose.msra.mxu0 0
    %1362 = vmatprep.subr.bf16.mxu0 0
    %1363 = vmatpush1.bf16.xpose.msra.mxu0 0
    %1364 = vmatprep.subr.bf16.mxu0 0
    %1365 = vmatpush1.bf16.xpose.msra.mxu0 0
    %1366 = vmatprep.subr.bf16.mxu0 0
    %1367 = vmatpush1.bf16.xpose.msra.mxu0 0
    %1368 = vmatprep.subr.bf16.mxu0 0
    %1369 = vmatpush1.bf16.xpose.msra.mxu0 0
    %1370 = vmatprep.subr.bf16.mxu0 0
    %1371 = vmatpush1.bf16.xpose.msra.mxu0 0
    %1372 = vmatprep.mubr.bf16.mxu0 0
    %1373 = vmatmul.mubr.bf16.gmra.mrb[0].mxu0 %v1329
    %v1374 = vpop.f32.mrb[0].mxu0
    %v1375 = vadd.f32 0.0, %v1374
    %v1376 = vpop.f32.mrb[0].mxu0
    %v1377 = vpop.f32.mrb[0].mxu0
    %v1378 = vadd.f32 0.0, %v1377
    %v1379 = vpop.f32.mrb[0].mxu0
    %1380 = vmatprep.mubr.bf16.mxu0 0
    %1381 = vmatmul.mubr.bf16.gmra.mrb[0].mxu0 %v1332
    %v1382 = vpop.f32.mrb[0].mxu0
    %v1383 = vadd.f32 0.0, %v1382
    %v1384 = vpop.f32.mrb[0].mxu0
    %v1385 = vpop.f32.mrb[0].mxu0
    %v1386 = vpop.f32.mrb[0].mxu0
    %1387 = vdwg.mxu0
    %v1388 = vmul.f32 %v1307, 0.25
    %v1389 = vmul.f32 %v1310, 0.25
    %v1390 = vmul.f32 %v1315, 0.25
    %v1391 = vmul.f32 %v1375, 0.25
    %v1392 = vmul.f32 %v1378, 0.25
    %v1393 = vmul.f32 %v1383, 0.25
    %v1394 = vadd.f32 %v1388, %v326
    %v1395 = vadd.f32 %v1389, %v326
    %v1396 = vadd.f32 %v1390, %v326
    %v1397 = vadd.f32 %v1391, %v326
    %v1398 = vadd.f32 %v1392, %v326
    %v1399 = vadd.f32 %v1393, %v326
    %v1400 = vsel %vm716, %v1394, -inf
    %1401 = vmax.xlane.f32.xlu0 %v1400
    %v1402 = vpop.xlane.xlu0 %1401
    %v1403 = vsel %vm716, %v1395, -inf
    %1404 = vmax.xlane.f32.xlu0 %v1403
    %v1405 = vpop.xlane.xlu0 %1404
    %v1406 = vsel %vm716, %v1396, -inf
    %1407 = vmax.xlane.f32.xlu0 %v1406
    %v1408 = vpop.xlane.xlu0 %1407
    %v1409 = vsel %vm716, %v1397, -inf
    %1410 = vmax.xlane.f32.xlu0 %v1409
    %v1411 = vpop.xlane.xlu0 %1410
    %v1412 = vsel %vm716, %v1398, -inf
    %1413 = vmax.xlane.f32.xlu0 %v1412
    %v1414 = vpop.xlane.xlu0 %1413
    %v1415 = vsel %vm716, %v1399, -inf
    %1416 = vmax.xlane.f32.xlu0 %v1415
    %v1417 = vpop.xlane.xlu0 %1416
    %v1418 = vsub.f32 %v1394, %v1402
    %v1419 = vsub.f32 %v1395, %v1405
    %v1420 = vsub.f32 %v1396, %v1408
    %v1421 = vsub.f32 %v1397, %v1411
    %v1422 = vsub.f32 %v1398, %v1414
    %v1423 = vsub.f32 %v1399, %v1417
    %v1424 = vmul.f32 %v1418, 1.442695
    %v1425 = vpow.pop %v1424
    %v1426 = vmul.f32 %v1419, 1.442695
    %v1427 = vpow.pop %v1426
    %v1428 = vmul.f32 %v1420, 1.442695
    %v1429 = vpow.pop %v1428
    %v1430 = vmul.f32 %v1421, 1.442695
    %v1431 = vpow.pop %v1430
    %v1432 = vmul.f32 %v1422, 1.442695
    %v1433 = vpow.pop %v1432
    %v1434 = vmul.f32 %v1423, 1.442695
    %v1435 = vpow.pop %v1434
    %v1436 = vsel %vm716, %v1425, 0.0
    %1437 = vadd.xlane.f32.xlu0 %v1436
    %v1438 = vpop.xlane.xlu0 %1437
    %v1439 = vsel %vm716, %v1427, 0.0
    %1440 = vadd.xlane.f32.xlu0 %v1439
    %v1441 = vpop.xlane.xlu0 %1440
    %v1442 = vsel %vm716, %v1429, 0.0
    %1443 = vadd.xlane.f32.xlu0 %v1442
    %v1444 = vpop.xlane.xlu0 %1443
    %v1445 = vsel %vm716, %v1431, 0.0
    %1446 = vadd.xlane.f32.xlu0 %v1445
    %v1447 = vpop.xlane.xlu0 %1446
    %v1448 = vsel %vm716, %v1433, 0.0
    %1449 = vadd.xlane.f32.xlu0 %v1448
    %v1450 = vpop.xlane.xlu0 %1449
    %v1451 = vsel %vm716, %v1435, 0.0
    %1452 = vadd.xlane.f32.xlu0 %v1451
    %v1453 = vpop.xlane.xlu0 %1452
    %v1454 = vrcp.pop %v1438
    %v1455 = vmul.f32 %v1425, %v1454
    %v1456 = vrcp.pop %v1441
    %v1457 = vmul.f32 %v1427, %v1456
    %v1458 = vrcp.pop %v1444
    %v1459 = vmul.f32 %v1429, %v1458
    %v1460 = vrcp.pop %v1447
    %v1461 = vmul.f32 %v1431, %v1460
    %v1462 = vrcp.pop %v1450
    %v1463 = vmul.f32 %v1433, %v1462
    %v1464 = vrcp.pop %v1453
    %v1465 = vmul.f32 %v1435, %v1464
    %v1466 = vpack.c.bf16 %v1457, %v1455
    %v1467 = vpack.c.bf16 %v1459, %v1459
    %v1468 = vpack.c.bf16 %v1463, %v1461
    %v1469 = vpack.c.bf16 %v1465, %v1465
    %1470 = vrot.lane.b32.xlu0 %v787, 96
    %v1471 = vpop.permute.xlu0 %1470
    %1472 = vrot.lane.b32.xlu0 %v788, 96
    %v1473 = vpop.permute.xlu0 %1472
    %v1476 = vsel %vm716, %v1466, 0
    %v1479 = vsel %vm716, %v1467, 0
    %v1482 = vsel %vm797, %v1473, 0
    %1484 = vmatprep.subr.bf16.mxu0 0
    %1485 = vmatpush1.bf16.msra.mxu0 %v1471
    %1486 = vmatprep.subr.bf16.mxu0 0
    %1487 = vmatpush1.bf16.msra.mxu0 %v1482
    %1488 = vmatprep.subr.bf16.mxu0 0
    %1489 = vmatpush1.bf16.msra.mxu0 0
    %1490 = vmatprep.subr.bf16.mxu0 0
    %1491 = vmatpush1.bf16.msra.mxu0 0
    %1492 = vmatprep.subr.bf16.mxu0 0
    %1493 = vmatpush1.bf16.msra.mxu0 0
    %1494 = vmatprep.subr.bf16.mxu0 0
    %1495 = vmatpush1.bf16.msra.mxu0 0
    %1496 = vmatprep.subr.bf16.mxu0 0
    %1497 = vmatpush1.bf16.msra.mxu0 0
    %1498 = vmatprep.subr.bf16.mxu0 0
    %1499 = vmatpush1.bf16.msra.mxu0 0
    %1500 = vmatprep.subr.bf16.mxu0 0
    %1501 = vmatpush1.bf16.msra.mxu0 0
    %1502 = vmatprep.subr.bf16.mxu0 0
    %1503 = vmatpush1.bf16.msra.mxu0 0
    %1504 = vmatprep.subr.bf16.mxu0 0
    %1505 = vmatpush1.bf16.msra.mxu0 0
    %1506 = vmatprep.subr.bf16.mxu0 0
    %1507 = vmatpush1.bf16.msra.mxu0 0
    %1508 = vmatprep.subr.bf16.mxu0 0
    %1509 = vmatpush1.bf16.msra.mxu0 0
    %1510 = vmatprep.subr.bf16.mxu0 0
    %1511 = vmatpush1.bf16.msra.mxu0 0
    %1512 = vmatprep.subr.bf16.mxu0 0
    %1513 = vmatpush1.bf16.msra.mxu0 0
    %1514 = vmatprep.subr.bf16.mxu0 0
    %1515 = vmatpush1.bf16.msra.mxu0 0
    %1516 = vmatprep.mubr.bf16.mxu0 0
    %1517 = vmatmul.mubr.bf16.gmra.mrb[0].mxu0 %v1476
    %v1518 = vpop.f32.mrb[0].mxu0
    %v1519 = vadd.f32 0.0, %v1518
    %v1520 = vpop.f32.mrb[0].mxu0
    %v1521 = vpop.f32.mrb[0].mxu0
    %v1522 = vadd.f32 0.0, %v1521
    %v1523 = vpop.f32.mrb[0].mxu0
    %1524 = vmatprep.mubr.bf16.mxu0 0
    %1525 = vmatmul.mubr.bf16.gmra.mrb[0].mxu0 %v1479
    %v1526 = vpop.f32.mrb[0].mxu0
    %v1527 = vadd.f32 0.0, %v1526
    %v1528 = vpop.f32.mrb[0].mxu0
    %v1529 = vpop.f32.mrb[0].mxu0
    %v1530 = vpop.f32.mrb[0].mxu0
    %1531 = vdwg.mxu0
    %1532 = vrot.lane.b32.xlu0 %v789, 96
    %v1533 = vpop.permute.xlu0 %1532
    %1534 = vrot.lane.b32.xlu0 %v790, 96
    %v1535 = vpop.permute.xlu0 %1534
    %v1538 = vsel %vm716, %v1468, 0
    %v1541 = vsel %vm716, %v1469, 0
    %v1544 = vsel %vm797, %v1535, 0
    %1546 = vmatprep.subr.bf16.mxu0 0
    %1547 = vmatpush1.bf16.msra.mxu0 %v1533
    %1548 = vmatprep.subr.bf16.mxu0 0
    %1549 = vmatpush1.bf16.msra.mxu0 %v1544
    %1550 = vmatprep.subr.bf16.mxu0 0
    %1551 = vmatpush1.bf16.msra.mxu0 0
    %1552 = vmatprep.subr.bf16.mxu0 0
    %1553 = vmatpush1.bf16.msra.mxu0 0
    %1554 = vmatprep.subr.bf16.mxu0 0
    %1555 = vmatpush1.bf16.msra.mxu0 0
    %1556 = vmatprep.subr.bf16.mxu0 0
    %1557 = vmatpush1.bf16.msra.mxu0 0
    %1558 = vmatprep.subr.bf16.mxu0 0
    %1559 = vmatpush1.bf16.msra.mxu0 0
    %1560 = vmatprep.subr.bf16.mxu0 0
    %1561 = vmatpush1.bf16.msra.mxu0 0
    %1562 = vmatprep.subr.bf16.mxu0 0
    %1563 = vmatpush1.bf16.msra.mxu0 0
    %1564 = vmatprep.subr.bf16.mxu0 0
    %1565 = vmatpush1.bf16.msra.mxu0 0
    %1566 = vmatprep.subr.bf16.mxu0 0
    %1567 = vmatpush1.bf16.msra.mxu0 0
    %1568 = vmatprep.subr.bf16.mxu0 0
    %1569 = vmatpush1.bf16.msra.mxu0 0
    %1570 = vmatprep.subr.bf16.mxu0 0
    %1571 = vmatpush1.bf16.msra.mxu0 0
    %1572 = vmatprep.subr.bf16.mxu0 0
    %1573 = vmatpush1.bf16.msra.mxu0 0
    %1574 = vmatprep.subr.bf16.mxu0 0
    %1575 = vmatpush1.bf16.msra.mxu0 0
    %1576 = vmatprep.subr.bf16.mxu0 0
    %1577 = vmatpush1.bf16.msra.mxu0 0
    %1578 = vmatprep.mubr.bf16.mxu0 0
    %1579 = vmatmul.mubr.bf16.gmra.mrb[0].mxu0 %v1538
    %v1580 = vpop.f32.mrb[0].mxu0
    %v1581 = vadd.f32 0.0, %v1580
    %v1582 = vpop.f32.mrb[0].mxu0
    %v1583 = vpop.f32.mrb[0].mxu0
    %v1584 = vadd.f32 0.0, %v1583
    %v1585 = vpop.f32.mrb[0].mxu0
    %1586 = vmatprep.mubr.bf16.mxu0 0
    %1587 = vmatmul.mubr.bf16.gmra.mrb[0].mxu0 %v1541
    %v1588 = vpop.f32.mrb[0].mxu0
    %v1589 = vadd.f32 0.0, %v1588
    %v1590 = vpop.f32.mrb[0].mxu0
    %v1591 = vpop.f32.mrb[0].mxu0
    %v1592 = vpop.f32.mrb[0].mxu0
    %1593 = vdwg.mxu0
    %1594 = vrot.lane.b32.xlu0 %v567, 80
    %v1595 = vpop.permute.xlu0 %1594
    %1596 = vrot.lane.b32.xlu0 %v568, 80
    %v1597 = vpop.permute.xlu0 %1596
    %1598 = vrot.lane.b32.xlu0 %v567, 16
    %v1599 = vpop.permute.xlu0 %1598
    %1600 = vrot.lane.b32.xlu0 %v568, 16
    %v1601 = vpop.permute.xlu0 %1600
    %v1603 = vsel %vm577, %v1595, 0
    %v1606 = vsel %vm577, %v1597, 0
    %v1609 = vsel %vm577, %v1599, 0
    %v1612 = vsel %vm577, %v1601, 0
    %1614 = vmatprep.subr.bf16.mxu0 0
    %1615 = vmatpush1.bf16.xpose.msra.mxu0 %v1609
    %1616 = vmatprep.subr.bf16.mxu0 0
    %1617 = vmatpush1.bf16.xpose.msra.mxu0 %v1612
    %1618 = vmatprep.subr.bf16.mxu0 0
    %1619 = vmatpush1.bf16.xpose.msra.mxu0 0
    %1620 = vmatprep.subr.bf16.mxu0 0
    %1621 = vmatpush1.bf16.xpose.msra.mxu0 0
    %1622 = vmatprep.subr.bf16.mxu0 0
    %1623 = vmatpush1.bf16.xpose.msra.mxu0 0
    %1624 = vmatprep.subr.bf16.mxu0 0
    %1625 = vmatpush1.bf16.xpose.msra.mxu0 0
    %1626 = vmatprep.subr.bf16.mxu0 0
    %1627 = vmatpush1.bf16.xpose.msra.mxu0 0
    %1628 = vmatprep.subr.bf16.mxu0 0
    %1629 = vmatpush1.bf16.xpose.msra.mxu0 0
    %1630 = vmatprep.subr.bf16.mxu0 0
    %1631 = vmatpush1.bf16.xpose.msra.mxu0 0
    %1632 = vmatprep.subr.bf16.mxu0 0
    %1633 = vmatpush1.bf16.xpose.msra.mxu0 0
    %1634 = vmatprep.subr.bf16.mxu0 0
    %1635 = vmatpush1.bf16.xpose.msra.mxu0 0
    %1636 = vmatprep.subr.bf16.mxu0 0
    %1637 = vmatpush1.bf16.xpose.msra.mxu0 0
    %1638 = vmatprep.subr.bf16.mxu0 0
    %1639 = vmatpush1.bf16.xpose.msra.mxu0 0
    %1640 = vmatprep.subr.bf16.mxu0 0
    %1641 = vmatpush1.bf16.xpose.msra.mxu0 0
    %1642 = vmatprep.subr.bf16.mxu0 0
    %1643 = vmatpush1.bf16.xpose.msra.mxu0 0
    %1644 = vmatprep.subr.bf16.mxu0 0
    %1645 = vmatpush1.bf16.xpose.msra.mxu0 0
    %1646 = vmatprep.mubr.bf16.mxu0 0
    %1647 = vmatmul.mubr.bf16.gmra.mrb[0].mxu0 %v1603
    %v1648 = vpop.f32.mrb[0].mxu0
    %v1649 = vadd.f32 0.0, %v1648
    %v1650 = vpop.f32.mrb[0].mxu0
    %v1651 = vpop.f32.mrb[0].mxu0
    %v1652 = vadd.f32 0.0, %v1651
    %v1653 = vpop.f32.mrb[0].mxu0
    %1654 = vmatprep.mubr.bf16.mxu0 0
    %1655 = vmatmul.mubr.bf16.gmra.mrb[0].mxu0 %v1606
    %v1656 = vpop.f32.mrb[0].mxu0
    %v1657 = vadd.f32 0.0, %v1656
    %v1658 = vpop.f32.mrb[0].mxu0
    %v1659 = vpop.f32.mrb[0].mxu0
    %v1660 = vpop.f32.mrb[0].mxu0
    %1661 = vdwg.mxu0
    %1662 = vrot.lane.b32.xlu0 %v569, 80
    %v1663 = vpop.permute.xlu0 %1662
    %1664 = vrot.lane.b32.xlu0 %v570, 80
    %v1665 = vpop.permute.xlu0 %1664
    %1666 = vrot.lane.b32.xlu0 %v569, 16
    %v1667 = vpop.permute.xlu0 %1666
    %1668 = vrot.lane.b32.xlu0 %v570, 16
    %v1669 = vpop.permute.xlu0 %1668
    %v1671 = vsel %vm577, %v1663, 0
    %v1674 = vsel %vm577, %v1665, 0
    %v1677 = vsel %vm577, %v1667, 0
    %v1680 = vsel %vm577, %v1669, 0
    %1682 = vmatprep.subr.bf16.mxu0 0
    %1683 = vmatpush1.bf16.xpose.msra.mxu0 %v1677
    %1684 = vmatprep.subr.bf16.mxu0 0
    %1685 = vmatpush1.bf16.xpose.msra.mxu0 %v1680
    %1686 = vmatprep.subr.bf16.mxu0 0
    %1687 = vmatpush1.bf16.xpose.msra.mxu0 0
    %1688 = vmatprep.subr.bf16.mxu0 0
    %1689 = vmatpush1.bf16.xpose.msra.mxu0 0
    %1690 = vmatprep.subr.bf16.mxu0 0
    %1691 = vmatpush1.bf16.xpose.msra.mxu0 0
    %1692 = vmatprep.subr.bf16.mxu0 0
    %1693 = vmatpush1.bf16.xpose.msra.mxu0 0
    %1694 = vmatprep.subr.bf16.mxu0 0
    %1695 = vmatpush1.bf16.xpose.msra.mxu0 0
    %1696 = vmatprep.subr.bf16.mxu0 0
    %1697 = vmatpush1.bf16.xpose.msra.mxu0 0
    %1698 = vmatprep.subr.bf16.mxu0 0
    %1699 = vmatpush1.bf16.xpose.msra.mxu0 0
    %1700 = vmatprep.subr.bf16.mxu0 0
    %1701 = vmatpush1.bf16.xpose.msra.mxu0 0
    %1702 = vmatprep.subr.bf16.mxu0 0
    %1703 = vmatpush1.bf16.xpose.msra.mxu0 0
    %1704 = vmatprep.subr.bf16.mxu0 0
    %1705 = vmatpush1.bf16.xpose.msra.mxu0 0
    %1706 = vmatprep.subr.bf16.mxu0 0
    %1707 = vmatpush1.bf16.xpose.msra.mxu0 0
    %1708 = vmatprep.subr.bf16.mxu0 0
    %1709 = vmatpush1.bf16.xpose.msra.mxu0 0
    %1710 = vmatprep.subr.bf16.mxu0 0
    %1711 = vmatpush1.bf16.xpose.msra.mxu0 0
    %1712 = vmatprep.subr.bf16.mxu0 0
    %1713 = vmatpush1.bf16.xpose.msra.mxu0 0
    %1714 = vmatprep.mubr.bf16.mxu0 0
    %1715 = vmatmul.mubr.bf16.gmra.mrb[0].mxu0 %v1671
    %v1716 = vpop.f32.mrb[0].mxu0
    %v1717 = vadd.f32 0.0, %v1716
    %v1718 = vpop.f32.mrb[0].mxu0
    %v1719 = vpop.f32.mrb[0].mxu0
    %v1720 = vadd.f32 0.0, %v1719
    %v1721 = vpop.f32.mrb[0].mxu0
    %1722 = vmatprep.mubr.bf16.mxu0 0
    %1723 = vmatmul.mubr.bf16.gmra.mrb[0].mxu0 %v1674
    %v1724 = vpop.f32.mrb[0].mxu0
    %v1725 = vadd.f32 0.0, %v1724
    %v1726 = vpop.f32.mrb[0].mxu0
    %v1727 = vpop.f32.mrb[0].mxu0
    %v1728 = vpop.f32.mrb[0].mxu0
    %1729 = vdwg.mxu0
    %v1730 = vmul.f32 %v1649, 0.25
    %v1731 = vmul.f32 %v1652, 0.25
    %v1732 = vmul.f32 %v1657, 0.25
    %v1733 = vmul.f32 %v1717, 0.25
    %v1734 = vmul.f32 %v1720, 0.25
    %v1735 = vmul.f32 %v1725, 0.25
    %v1736 = vadd.f32 %v1730, %v326
    %v1737 = vadd.f32 %v1731, %v326
    %v1738 = vadd.f32 %v1732, %v326
    %v1739 = vadd.f32 %v1733, %v326
    %v1740 = vadd.f32 %v1734, %v326
    %v1741 = vadd.f32 %v1735, %v326
    %v1742 = vsel %vm716, %v1736, -inf
    %1743 = vmax.xlane.f32.xlu0 %v1742
    %v1744 = vpop.xlane.xlu0 %1743
    %v1745 = vsel %vm716, %v1737, -inf
    %1746 = vmax.xlane.f32.xlu0 %v1745
    %v1747 = vpop.xlane.xlu0 %1746
    %v1748 = vsel %vm716, %v1738, -inf
    %1749 = vmax.xlane.f32.xlu0 %v1748
    %v1750 = vpop.xlane.xlu0 %1749
    %v1751 = vsel %vm716, %v1739, -inf
    %1752 = vmax.xlane.f32.xlu0 %v1751
    %v1753 = vpop.xlane.xlu0 %1752
    %v1754 = vsel %vm716, %v1740, -inf
    %1755 = vmax.xlane.f32.xlu0 %v1754
    %v1756 = vpop.xlane.xlu0 %1755
    %v1757 = vsel %vm716, %v1741, -inf
    %1758 = vmax.xlane.f32.xlu0 %v1757
    %v1759 = vpop.xlane.xlu0 %1758
    %v1760 = vsub.f32 %v1736, %v1744
    %v1761 = vsub.f32 %v1737, %v1747
    %v1762 = vsub.f32 %v1738, %v1750
    %v1763 = vsub.f32 %v1739, %v1753
    %v1764 = vsub.f32 %v1740, %v1756
    %v1765 = vsub.f32 %v1741, %v1759
    %v1766 = vmul.f32 %v1760, 1.442695
    %v1767 = vpow.pop %v1766
    %v1768 = vmul.f32 %v1761, 1.442695
    %v1769 = vpow.pop %v1768
    %v1770 = vmul.f32 %v1762, 1.442695
    %v1771 = vpow.pop %v1770
    %v1772 = vmul.f32 %v1763, 1.442695
    %v1773 = vpow.pop %v1772
    %v1774 = vmul.f32 %v1764, 1.442695
    %v1775 = vpow.pop %v1774
    %v1776 = vmul.f32 %v1765, 1.442695
    %v1777 = vpow.pop %v1776
    %v1778 = vsel %vm716, %v1767, 0.0
    %1779 = vadd.xlane.f32.xlu0 %v1778
    %v1780 = vpop.xlane.xlu0 %1779
    %v1781 = vsel %vm716, %v1769, 0.0
    %1782 = vadd.xlane.f32.xlu0 %v1781
    %v1783 = vpop.xlane.xlu0 %1782
    %v1784 = vsel %vm716, %v1771, 0.0
    %1785 = vadd.xlane.f32.xlu0 %v1784
    %v1786 = vpop.xlane.xlu0 %1785
    %v1787 = vsel %vm716, %v1773, 0.0
    %1788 = vadd.xlane.f32.xlu0 %v1787
    %v1789 = vpop.xlane.xlu0 %1788
    %v1790 = vsel %vm716, %v1775, 0.0
    %1791 = vadd.xlane.f32.xlu0 %v1790
    %v1792 = vpop.xlane.xlu0 %1791
    %v1793 = vsel %vm716, %v1777, 0.0
    %1794 = vadd.xlane.f32.xlu0 %v1793
    %v1795 = vpop.xlane.xlu0 %1794
    %v1796 = vrcp.pop %v1780
    %v1797 = vmul.f32 %v1767, %v1796
    %v1798 = vrcp.pop %v1783
    %v1799 = vmul.f32 %v1769, %v1798
    %v1800 = vrcp.pop %v1786
    %v1801 = vmul.f32 %v1771, %v1800
    %v1802 = vrcp.pop %v1789
    %v1803 = vmul.f32 %v1773, %v1802
    %v1804 = vrcp.pop %v1792
    %v1805 = vmul.f32 %v1775, %v1804
    %v1806 = vrcp.pop %v1795
    %v1807 = vmul.f32 %v1777, %v1806
    %v1808 = vpack.c.bf16 %v1799, %v1797
    %v1809 = vpack.c.bf16 %v1801, %v1801
    %v1810 = vpack.c.bf16 %v1805, %v1803
    %v1811 = vpack.c.bf16 %v1807, %v1807
    %1812 = vrot.lane.b32.xlu0 %v787, 80
    %v1813 = vpop.permute.xlu0 %1812
    %1814 = vrot.lane.b32.xlu0 %v788, 80
    %v1815 = vpop.permute.xlu0 %1814
    %v1818 = vsel %vm716, %v1808, 0
    %v1821 = vsel %vm716, %v1809, 0
    %v1824 = vsel %vm797, %v1815, 0
    %1826 = vmatprep.subr.bf16.mxu0 0
    %1827 = vmatpush1.bf16.msra.mxu0 %v1813
    %1828 = vmatprep.subr.bf16.mxu0 0
    %1829 = vmatpush1.bf16.msra.mxu0 %v1824
    %1830 = vmatprep.subr.bf16.mxu0 0
    %1831 = vmatpush1.bf16.msra.mxu0 0
    %1832 = vmatprep.subr.bf16.mxu0 0
    %1833 = vmatpush1.bf16.msra.mxu0 0
    %1834 = vmatprep.subr.bf16.mxu0 0
    %1835 = vmatpush1.bf16.msra.mxu0 0
    %1836 = vmatprep.subr.bf16.mxu0 0
    %1837 = vmatpush1.bf16.msra.mxu0 0
    %1838 = vmatprep.subr.bf16.mxu0 0
    %1839 = vmatpush1.bf16.msra.mxu0 0
    %1840 = vmatprep.subr.bf16.mxu0 0
    %1841 = vmatpush1.bf16.msra.mxu0 0
    %1842 = vmatprep.subr.bf16.mxu0 0
    %1843 = vmatpush1.bf16.msra.mxu0 0
    %1844 = vmatprep.subr.bf16.mxu0 0
    %1845 = vmatpush1.bf16.msra.mxu0 0
    %1846 = vmatprep.subr.bf16.mxu0 0
    %1847 = vmatpush1.bf16.msra.mxu0 0
    %1848 = vmatprep.subr.bf16.mxu0 0
    %1849 = vmatpush1.bf16.msra.mxu0 0
    %1850 = vmatprep.subr.bf16.mxu0 0
    %1851 = vmatpush1.bf16.msra.mxu0 0
    %1852 = vmatprep.subr.bf16.mxu0 0
    %1853 = vmatpush1.bf16.msra.mxu0 0
    %1854 = vmatprep.subr.bf16.mxu0 0
    %1855 = vmatpush1.bf16.msra.mxu0 0
    %1856 = vmatprep.subr.bf16.mxu0 0
    %1857 = vmatpush1.bf16.msra.mxu0 0
    %1858 = vmatprep.mubr.bf16.mxu0 0
    %1859 = vmatmul.mubr.bf16.gmra.mrb[0].mxu0 %v1818
    %v1860 = vpop.f32.mrb[0].mxu0
    %v1861 = vadd.f32 0.0, %v1860
    %v1862 = vpop.f32.mrb[0].mxu0
    %v1863 = vpop.f32.mrb[0].mxu0
    %v1864 = vadd.f32 0.0, %v1863
    %v1865 = vpop.f32.mrb[0].mxu0
    %1866 = vmatprep.mubr.bf16.mxu0 0
    %1867 = vmatmul.mubr.bf16.gmra.mrb[0].mxu0 %v1821
    %v1868 = vpop.f32.mrb[0].mxu0
    %v1869 = vadd.f32 0.0, %v1868
    %v1870 = vpop.f32.mrb[0].mxu0
    %v1871 = vpop.f32.mrb[0].mxu0
    %v1872 = vpop.f32.mrb[0].mxu0
    %1873 = vdwg.mxu0
    %1874 = vrot.lane.b32.xlu0 %v789, 80
    %v1875 = vpop.permute.xlu0 %1874
    %1876 = vrot.lane.b32.xlu0 %v790, 80
    %v1877 = vpop.permute.xlu0 %1876
    %v1880 = vsel %vm716, %v1810, 0
    %v1883 = vsel %vm716, %v1811, 0
    %v1886 = vsel %vm797, %v1877, 0
    %1888 = vmatprep.subr.bf16.mxu0 0
    %1889 = vmatpush1.bf16.msra.mxu0 %v1875
    %1890 = vmatprep.subr.bf16.mxu0 0
    %1891 = vmatpush1.bf16.msra.mxu0 %v1886
    %1892 = vmatprep.subr.bf16.mxu0 0
    %1893 = vmatpush1.bf16.msra.mxu0 0
    %1894 = vmatprep.subr.bf16.mxu0 0
    %1895 = vmatpush1.bf16.msra.mxu0 0
    %1896 = vmatprep.subr.bf16.mxu0 0
    %1897 = vmatpush1.bf16.msra.mxu0 0
    %1898 = vmatprep.subr.bf16.mxu0 0
    %1899 = vmatpush1.bf16.msra.mxu0 0
    %1900 = vmatprep.subr.bf16.mxu0 0
    %1901 = vmatpush1.bf16.msra.mxu0 0
    %1902 = vmatprep.subr.bf16.mxu0 0
    %1903 = vmatpush1.bf16.msra.mxu0 0
    %1904 = vmatprep.subr.bf16.mxu0 0
    %1905 = vmatpush1.bf16.msra.mxu0 0
    %1906 = vmatprep.subr.bf16.mxu0 0
    %1907 = vmatpush1.bf16.msra.mxu0 0
    %1908 = vmatprep.subr.bf16.mxu0 0
    %1909 = vmatpush1.bf16.msra.mxu0 0
    %1910 = vmatprep.subr.bf16.mxu0 0
    %1911 = vmatpush1.bf16.msra.mxu0 0
    %1912 = vmatprep.subr.bf16.mxu0 0
    %1913 = vmatpush1.bf16.msra.mxu0 0
    %1914 = vmatprep.subr.bf16.mxu0 0
    %1915 = vmatpush1.bf16.msra.mxu0 0
    %1916 = vmatprep.subr.bf16.mxu0 0
    %1917 = vmatpush1.bf16.msra.mxu0 0
    %1918 = vmatprep.subr.bf16.mxu0 0
    %1919 = vmatpush1.bf16.msra.mxu0 0
    %1920 = vmatprep.mubr.bf16.mxu0 0
    %1921 = vmatmul.mubr.bf16.gmra.mrb[0].mxu0 %v1880
    %v1922 = vpop.f32.mrb[0].mxu0
    %v1923 = vadd.f32 0.0, %v1922
    %v1924 = vpop.f32.mrb[0].mxu0
    %v1925 = vpop.f32.mrb[0].mxu0
    %v1926 = vadd.f32 0.0, %v1925
    %v1927 = vpop.f32.mrb[0].mxu0
    %1928 = vmatprep.mubr.bf16.mxu0 0
    %1929 = vmatmul.mubr.bf16.gmra.mrb[0].mxu0 %v1883
    %v1930 = vpop.f32.mrb[0].mxu0
    %v1931 = vadd.f32 0.0, %v1930
    %v1932 = vpop.f32.mrb[0].mxu0
    %v1933 = vpop.f32.mrb[0].mxu0
    %v1934 = vpop.f32.mrb[0].mxu0
    %1935 = vdwg.mxu0
    %1942 = vrot.lane.b32.xlu0 %v1175, 16
    %v1943 = vpop.permute.xlu0 %1942
    %1944 = vrot.lane.b32.xlu0 %v1178, 16
    %v1945 = vpop.permute.xlu0 %1944
    %1946 = vrot.lane.b32.xlu0 %v1183, 16
    %v1947 = vpop.permute.xlu0 %1946
    %1948 = vrot.lane.b32.xlu0 %v1239, 16
    %v1949 = vpop.permute.xlu0 %1948
    %1950 = vrot.lane.b32.xlu0 %v1242, 16
    %v1951 = vpop.permute.xlu0 %1950
    %1952 = vrot.lane.b32.xlu0 %v1247, 16
    %v1953 = vpop.permute.xlu0 %1952
    %1966 = vrot.lane.b32.xlu0 %v1519, 32
    %v1967 = vpop.permute.xlu0 %1966
    %1968 = vrot.lane.b32.xlu0 %v1522, 32
    %v1969 = vpop.permute.xlu0 %1968
    %1970 = vrot.lane.b32.xlu0 %v1527, 32
    %v1971 = vpop.permute.xlu0 %1970
    %1972 = vrot.lane.b32.xlu0 %v1581, 32
    %v1973 = vpop.permute.xlu0 %1972
    %1974 = vrot.lane.b32.xlu0 %v1584, 32
    %v1975 = vpop.permute.xlu0 %1974
    %1976 = vrot.lane.b32.xlu0 %v1589, 32
    %v1977 = vpop.permute.xlu0 %1976
    %1990 = vrot.lane.b32.xlu0 %v1861, 48
    %v1991 = vpop.permute.xlu0 %1990
    %1992 = vrot.lane.b32.xlu0 %v1864, 48
    %v1993 = vpop.permute.xlu0 %1992
    %1994 = vrot.lane.b32.xlu0 %v1869, 48
    %v1995 = vpop.permute.xlu0 %1994
    %1996 = vrot.lane.b32.xlu0 %v1923, 48
    %v1997 = vpop.permute.xlu0 %1996
    %1998 = vrot.lane.b32.xlu0 %v1926, 48
    %v1999 = vpop.permute.xlu0 %1998
    %2000 = vrot.lane.b32.xlu0 %v1931, 48
    %v2001 = vpop.permute.xlu0 %2000
    %v2008 = vsel %vm577, %v836, %v1943
    %v2009 = vsel %vm577, %v839, %v1945
    %v2010 = vsel %vm577, %v844, %v1947
    %v2011 = vsel %vm577, %v893, %v1949
    %v2012 = vsel %vm577, %v896, %v1951
    %v2013 = vsel %vm577, %v901, %v1953
    %vm2014 = vcmask 261120
    %v2015 = vsel %vm2014, %v2008, %v1967
    %v2016 = vsel %vm2014, %v2009, %v1969
    %v2017 = vsel %vm2014, %v2010, %v1971
    %v2018 = vsel %vm2014, %v2011, %v1973
    %v2019 = vsel %vm2014, %v2012, %v1975
    %v2020 = vsel %vm2014, %v2013, %v1977
    %vm2021 = vcmask 392192
    %v2022 = vsel %vm2021, %v2015, %v1991
    %v2023 = vsel %vm2021, %v2016, %v1993
    %v2024 = vsel %vm2021, %v2017, %v1995
    %v2025 = vsel %vm2021, %v2018, %v1997
    %v2026 = vsel %vm2021, %v2019, %v1999
    %v2027 = vsel %vm2021, %v2020, %v2001
    %v2028 = vld [vmem:[%s17] sm:$0xf]
    %v2029 = vld [vmem:[%s17 + $0x4] sm:$0xf]
    %v2030 = vld [vmem:[%s17 + $0x8] sm:$0xf]
    %v2031 = vld [vmem:[%s17 + $0xc] sm:$0xf]
    %v2032 = vld [vmem:[%s17 + $0x10] sm:$0xf]
    %v2033 = vld [vmem:[%s17 + $0x14] sm:$0xf]
    %v2034 = vld [vmem:[%s17 + $0x18] sm:$0xf]
    %v2035 = vld [vmem:[%s17 + $0x1c] sm:$0xf]
    %v2036 = vpack.c.bf16 %v2023, %v2022
    %v2037 = vpack.c.bf16 %v2025, %v2024
    %v2038 = vpack.c.bf16 %v2027, %v2026
    %v2047 = vunpack.c.l.b16 %v2028
    %v2048 = vunpack.c.l.b16 %v2029
    %v2049 = vunpack.c.l.b16 %v2030
    %v2050 = vunpack.c.l.b16 %v2031
    %v2051 = vunpack.c.l.b16 %v2032
    %v2052 = vunpack.c.l.b16 %v2033
    %v2053 = vunpack.c.l.b16 %v2034
    %v2054 = vunpack.c.l.b16 %v2035
    %v2055 = vpack.c.b16 %v2048, %v2047
    %v2056 = vpack.c.b16 %v2050, %v2049
    %v2057 = vpack.c.b16 %v2052, %v2051
    %v2058 = vpack.c.b16 %v2054, %v2053
    %v2064 = vsel %vm256, %v2036, 0
    %v2067 = vsel %vm256, %v2037, 0
    %v2070 = vsel %vm256, %v2038, 0
    %2072 = vmatprep.subr.bf16.mxu0 0
    %2073 = vmatpush1.bf16.msra.mxu0 %v2055
    %2074 = vmatprep.subr.bf16.mxu0 0
    %2075 = vmatpush1.bf16.msra.mxu0 %v2056
    %2076 = vmatprep.subr.bf16.mxu0 0
    %2077 = vmatpush1.bf16.msra.mxu0 %v2057
    %2078 = vmatprep.subr.bf16.mxu0 0
    %2079 = vmatpush1.bf16.msra.mxu0 %v2058
    %2080 = vmatprep.subr.bf16.mxu0 0
    %2081 = vmatpush1.bf16.msra.mxu0 0
    %2082 = vmatprep.subr.bf16.mxu0 0
    %2083 = vmatpush1.bf16.msra.mxu0 0
    %2084 = vmatprep.subr.bf16.mxu0 0
    %2085 = vmatpush1.bf16.msra.mxu0 0
    %2086 = vmatprep.subr.bf16.mxu0 0
    %2087 = vmatpush1.bf16.msra.mxu0 0
    %2088 = vmatprep.subr.bf16.mxu0 0
    %2089 = vmatpush1.bf16.msra.mxu0 0
    %2090 = vmatprep.subr.bf16.mxu0 0
    %2091 = vmatpush1.bf16.msra.mxu0 0
    %2092 = vmatprep.subr.bf16.mxu0 0
    %2093 = vmatpush1.bf16.msra.mxu0 0
    %2094 = vmatprep.subr.bf16.mxu0 0
    %2095 = vmatpush1.bf16.msra.mxu0 0
    %2096 = vmatprep.subr.bf16.mxu0 0
    %2097 = vmatpush1.bf16.msra.mxu0 0
    %2098 = vmatprep.subr.bf16.mxu0 0
    %2099 = vmatpush1.bf16.msra.mxu0 0
    %2100 = vmatprep.subr.bf16.mxu0 0
    %2101 = vmatpush1.bf16.msra.mxu0 0
    %2102 = vmatprep.subr.bf16.mxu0 0
    %2103 = vmatpush1.bf16.msra.mxu0 0
    %2104 = vmatprep.mubr.bf16.mxu0 0
    %2105 = vmatmul.mubr.bf16.gmra.mrb[0].mxu0 %v2064
    %v2106 = vpop.f32.mrb[0].mxu0
    %v2107 = vadd.f32 0.0, %v2106
    %v2108 = vpop.f32.mrb[0].mxu0
    %v2109 = vpop.f32.mrb[0].mxu0
    %v2110 = vadd.f32 0.0, %v2109
    %v2111 = vpop.f32.mrb[0].mxu0
    %2112 = vmatprep.mubr.bf16.mxu0 0
    %2113 = vmatmul.mubr.bf16.gmra.mrb[0].mxu0 %v2067
    %v2114 = vpop.f32.mrb[0].mxu0
    %v2115 = vadd.f32 0.0, %v2114
    %v2116 = vpop.f32.mrb[0].mxu0
    %v2117 = vpop.f32.mrb[0].mxu0
    %v2118 = vadd.f32 0.0, %v2117
    %v2119 = vpop.f32.mrb[0].mxu0
    %2120 = vmatprep.mubr.bf16.mxu0 0
    %2121 = vmatmul.mubr.bf16.gmra.mrb[0].mxu0 %v2070
    %v2122 = vpop.f32.mrb[0].mxu0
    %v2123 = vadd.f32 0.0, %v2122
    %v2124 = vpop.f32.mrb[0].mxu0
    %v2125 = vpop.f32.mrb[0].mxu0
    %v2126 = vadd.f32 0.0, %v2125
    %v2127 = vpop.f32.mrb[0].mxu0
    %2128 = vdwg.mxu0
    %v2129 = vadd.f32 %v301, %v2107
    %v2130 = vadd.f32 %v304, %v2110
    %v2131 = vadd.f32 %v309, %v2115
    %v2132 = vadd.f32 %v312, %v2118
    %v2133 = vadd.f32 %v317, %v2123
    %v2134 = vadd.f32 %v320, %v2126
    %v2135 = vld [vmem:[%s19] sm:$0x1]
    %v2137 = vlaneseq
    %v2138 = vshrl.u32 %v2137, 7
    %v2139 = vsub.s32 0, %v2138
    %v2140 = vrot.slane %v2135, %v2139
    %v2142 = vadd.f32 %v2129, %v2140
    %v2143 = vadd.f32 %v2130, %v2140
    %v2144 = vadd.f32 %v2131, %v2140
    %v2145 = vadd.f32 %v2132, %v2140
    %v2146 = vadd.f32 %v2133, %v2140
    %v2147 = vadd.f32 %v2134, %v2140
    %v2148 = vld [vmem:[%s21] sm:$0x1]
    %v2149 = vld [vmem:[%s23] sm:$0x1]
    %v2150 = vsel %vm256, %v2142, 0.0
    %2151 = vadd.xlane.f32.xlu0 %v2150
    %v2152 = vpop.xlane.xlu0 %2151
    %v2153 = vsel %vm256, %v2143, 0.0
    %2154 = vadd.xlane.f32.xlu0 %v2153
    %v2155 = vpop.xlane.xlu0 %2154
    %v2156 = vsel %vm256, %v2144, 0.0
    %2157 = vadd.xlane.f32.xlu0 %v2156
    %v2158 = vpop.xlane.xlu0 %2157
    %v2159 = vsel %vm256, %v2145, 0.0
    %2160 = vadd.xlane.f32.xlu0 %v2159
    %v2161 = vpop.xlane.xlu0 %2160
    %v2162 = vsel %vm256, %v2146, 0.0
    %2163 = vadd.xlane.f32.xlu0 %v2162
    %v2164 = vpop.xlane.xlu0 %2163
    %v2165 = vsel %vm256, %v2147, 0.0
    %2166 = vadd.xlane.f32.xlu0 %v2165
    %v2167 = vpop.xlane.xlu0 %2166
    %v2168 = vmul.f32 %v2152, %v347
    %v2169 = vmul.f32 %v2155, %v347
    %v2170 = vmul.f32 %v2158, %v347
    %v2171 = vmul.f32 %v2161, %v347
    %v2172 = vmul.f32 %v2164, %v347
    %v2173 = vmul.f32 %v2167, %v347
    %v2174 = vsub.f32 %v2142, %v2168
    %v2175 = vsub.f32 %v2143, %v2169
    %v2176 = vsub.f32 %v2144, %v2170
    %v2177 = vsub.f32 %v2145, %v2171
    %v2178 = vsub.f32 %v2146, %v2172
    %v2179 = vsub.f32 %v2147, %v2173
    %v2180 = vmul.f32 %v2174, %v2174
    %v2181 = vmul.f32 %v2175, %v2175
    %v2182 = vmul.f32 %v2176, %v2176
    %v2183 = vmul.f32 %v2177, %v2177
    %v2184 = vmul.f32 %v2178, %v2178
    %v2185 = vmul.f32 %v2179, %v2179
    %v2186 = vsel %vm256, %v2180, 0.0
    %2187 = vadd.xlane.f32.xlu0 %v2186
    %v2188 = vpop.xlane.xlu0 %2187
    %v2189 = vsel %vm256, %v2181, 0.0
    %2190 = vadd.xlane.f32.xlu0 %v2189
    %v2191 = vpop.xlane.xlu0 %2190
    %v2192 = vsel %vm256, %v2182, 0.0
    %2193 = vadd.xlane.f32.xlu0 %v2192
    %v2194 = vpop.xlane.xlu0 %2193
    %v2195 = vsel %vm256, %v2183, 0.0
    %2196 = vadd.xlane.f32.xlu0 %v2195
    %v2197 = vpop.xlane.xlu0 %2196
    %v2198 = vsel %vm256, %v2184, 0.0
    %2199 = vadd.xlane.f32.xlu0 %v2198
    %v2200 = vpop.xlane.xlu0 %2199
    %v2201 = vsel %vm256, %v2185, 0.0
    %2202 = vadd.xlane.f32.xlu0 %v2201
    %v2203 = vpop.xlane.xlu0 %2202
    %v2204 = vmul.f32 %v2188, %v347
    %v2205 = vmul.f32 %v2191, %v347
    %v2206 = vmul.f32 %v2194, %v347
    %v2207 = vmul.f32 %v2197, %v347
    %v2208 = vmul.f32 %v2200, %v347
    %v2209 = vmul.f32 %v2203, %v347
    %v2210 = vadd.f32 %v2204, 1e-06
    %v2211 = vadd.f32 %v2205, 1e-06
    %v2212 = vadd.f32 %v2206, 1e-06
    %v2213 = vadd.f32 %v2207, 1e-06
    %v2214 = vadd.f32 %v2208, 1e-06
    %v2215 = vadd.f32 %v2209, 1e-06
    %v2216 = vrsqrt.pop %v2210
    %v2217 = vrsqrt.pop %v2211
    %v2218 = vrsqrt.pop %v2212
    %v2219 = vrsqrt.pop %v2213
    %v2220 = vrsqrt.pop %v2214
    %v2221 = vrsqrt.pop %v2215
    %v2222 = vmul.f32 %v2174, %v2216
    %v2223 = vmul.f32 %v2175, %v2217
    %v2224 = vmul.f32 %v2176, %v2218
    %v2225 = vmul.f32 %v2177, %v2219
    %v2226 = vmul.f32 %v2178, %v2220
    %v2227 = vmul.f32 %v2179, %v2221
    %v2229 = vlaneseq
    %v2230 = vshrl.u32 %v2229, 7
    %v2231 = vsub.s32 0, %v2230
    %v2232 = vrot.slane %v2148, %v2231
    %v2234 = vmul.f32 %v2222, %v2232
    %v2235 = vmul.f32 %v2223, %v2232
    %v2236 = vmul.f32 %v2224, %v2232
    %v2237 = vmul.f32 %v2225, %v2232
    %v2238 = vmul.f32 %v2226, %v2232
    %v2239 = vmul.f32 %v2227, %v2232
    %v2241 = vlaneseq
    %v2242 = vshrl.u32 %v2241, 7
    %v2243 = vsub.s32 0, %v2242
    %v2244 = vrot.slane %v2149, %v2243
    %v2246 = vadd.f32 %v2234, %v2244
    %v2247 = vadd.f32 %v2235, %v2244
    %v2248 = vadd.f32 %v2236, %v2244
    %v2249 = vadd.f32 %v2237, %v2244
    %v2250 = vadd.f32 %v2238, %v2244
    %v2251 = vadd.f32 %v2239, %v2244
    %v2252 = vld [vmem:[%s25] sm:$0xff]
    %v2253 = vld [vmem:[%s25 + $0x8] sm:$0xff]
    %v2254 = vld [vmem:[%s25 + $0x10] sm:$0xff]
    %v2255 = vld [vmem:[%s25 + $0x18] sm:$0xff]
    %v2256 = vld [vmem:[%s25 + $0x20] sm:$0xff]
    %v2257 = vld [vmem:[%s25 + $0x28] sm:$0xff]
    %v2258 = vld [vmem:[%s25 + $0x30] sm:$0xff]
    %v2259 = vld [vmem:[%s25 + $0x38] sm:$0xff]
    %v2260 = vpack.c.bf16 %v2247, %v2246
    %v2261 = vpack.c.bf16 %v2249, %v2248
    %v2262 = vpack.c.bf16 %v2251, %v2250
    %v2263 = vld [vmem:[%s27] sm:$0x3]
    %v2265 = vlaneseq
    %v2266 = vshrl.u32 %v2265, 7
    %v2267 = vsub.s32 0, %v2266
    %v2268 = vrot.slane %v2263, %v2267
    %v2269 = vlaneseq
    %v2270 = vshrl.u32 %v2269, 7
    %v2271 = vsub.s32 1, %v2270
    %v2272 = vrot.slane %v2263, %v2271
    %v2283 = vunpack.c.l.b16 %v2252
    %v2284 = vunpack.c.h.b16 %v2252
    %v2285 = vunpack.c.l.b16 %v2253
    %v2286 = vunpack.c.h.b16 %v2253
    %v2287 = vunpack.c.l.b16 %v2254
    %v2288 = vunpack.c.h.b16 %v2254
    %v2289 = vunpack.c.l.b16 %v2255
    %v2290 = vunpack.c.h.b16 %v2255
    %v2291 = vunpack.c.l.b16 %v2256
    %v2292 = vunpack.c.h.b16 %v2256
    %v2293 = vunpack.c.l.b16 %v2257
    %v2294 = vunpack.c.h.b16 %v2257
    %v2295 = vunpack.c.l.b16 %v2258
    %v2296 = vunpack.c.h.b16 %v2258
    %v2297 = vunpack.c.l.b16 %v2259
    %v2298 = vunpack.c.h.b16 %v2259
    %v2299 = vpack.c.b16 %v2285, %v2283
    %v2300 = vpack.c.b16 %v2286, %v2284
    %v2301 = vpack.c.b16 %v2289, %v2287
    %v2302 = vpack.c.b16 %v2290, %v2288
    %v2303 = vpack.c.b16 %v2293, %v2291
    %v2304 = vpack.c.b16 %v2294, %v2292
    %v2305 = vpack.c.b16 %v2297, %v2295
    %v2306 = vpack.c.b16 %v2298, %v2296
    %v2316 = vsel %vm256, %v2260, 0
    %v2319 = vsel %vm256, %v2261, 0
    %v2322 = vsel %vm256, %v2262, 0
    %2324 = vmatprep.subr.bf16.mxu0 %v2300
    %2325 = vmatpush1.bf16.msra.mxu0 %v2299
    %2326 = vmatprep.subr.bf16.mxu0 %v2302
    %2327 = vmatpush1.bf16.msra.mxu0 %v2301
    %2328 = vmatprep.subr.bf16.mxu0 %v2304
    %2329 = vmatpush1.bf16.msra.mxu0 %v2303
    %2330 = vmatprep.subr.bf16.mxu0 %v2306
    %2331 = vmatpush1.bf16.msra.mxu0 %v2305
    %2332 = vmatprep.subr.bf16.mxu0 0
    %2333 = vmatpush1.bf16.msra.mxu0 0
    %2334 = vmatprep.subr.bf16.mxu0 0
    %2335 = vmatpush1.bf16.msra.mxu0 0
    %2336 = vmatprep.subr.bf16.mxu0 0
    %2337 = vmatpush1.bf16.msra.mxu0 0
    %2338 = vmatprep.subr.bf16.mxu0 0
    %2339 = vmatpush1.bf16.msra.mxu0 0
    %2340 = vmatprep.subr.bf16.mxu0 0
    %2341 = vmatpush1.bf16.msra.mxu0 0
    %2342 = vmatprep.subr.bf16.mxu0 0
    %2343 = vmatpush1.bf16.msra.mxu0 0
    %2344 = vmatprep.subr.bf16.mxu0 0
    %2345 = vmatpush1.bf16.msra.mxu0 0
    %2346 = vmatprep.subr.bf16.mxu0 0
    %2347 = vmatpush1.bf16.msra.mxu0 0
    %2348 = vmatprep.subr.bf16.mxu0 0
    %2349 = vmatpush1.bf16.msra.mxu0 0
    %2350 = vmatprep.subr.bf16.mxu0 0
    %2351 = vmatpush1.bf16.msra.mxu0 0
    %2352 = vmatprep.subr.bf16.mxu0 0
    %2353 = vmatpush1.bf16.msra.mxu0 0
    %2354 = vmatprep.subr.bf16.mxu0 0
    %2355 = vmatpush1.bf16.msra.mxu0 0
    %2356 = vmatprep.mubr.bf16.mxu0 0
    %2357 = vmatmul.mubr.bf16.gmra.mrb[0].mxu0 %v2316
    %v2358 = vpop.f32.mrb[0].mxu0
    %v2359 = vadd.f32 %v2268, %v2358
    %v2360 = vpop.f32.mrb[0].mxu0
    %v2361 = vadd.f32 %v2272, %v2360
    %v2362 = vpop.f32.mrb[0].mxu0
    %v2363 = vadd.f32 %v2268, %v2362
    %v2364 = vpop.f32.mrb[0].mxu0
    %v2365 = vadd.f32 %v2272, %v2364
    %2366 = vmatprep.mubr.bf16.mxu0 0
    %2367 = vmatmul.mubr.bf16.gmra.mrb[0].mxu0 %v2319
    %v2368 = vpop.f32.mrb[0].mxu0
    %v2369 = vadd.f32 %v2268, %v2368
    %v2370 = vpop.f32.mrb[0].mxu0
    %v2371 = vadd.f32 %v2272, %v2370
    %v2372 = vpop.f32.mrb[0].mxu0
    %v2373 = vadd.f32 %v2268, %v2372
    %v2374 = vpop.f32.mrb[0].mxu0
    %v2375 = vadd.f32 %v2272, %v2374
    %2376 = vmatprep.mubr.bf16.mxu0 0
    %2377 = vmatmul.mubr.bf16.gmra.mrb[0].mxu0 %v2322
    %v2378 = vpop.f32.mrb[0].mxu0
    %v2379 = vadd.f32 %v2268, %v2378
    %v2380 = vpop.f32.mrb[0].mxu0
    %v2381 = vadd.f32 %v2272, %v2380
    %v2382 = vpop.f32.mrb[0].mxu0
    %v2383 = vadd.f32 %v2268, %v2382
    %v2384 = vpop.f32.mrb[0].mxu0
    %v2385 = vadd.f32 %v2272, %v2384
    %2386 = vdwg.mxu0
    %v2387 = vmul.f32 %v2359, 0.5
    %v2388 = vmul.f32 %v2361, 0.5
    %v2389 = vmul.f32 %v2363, 0.5
    %v2390 = vmul.f32 %v2365, 0.5
    %v2391 = vmul.f32 %v2369, 0.5
    %v2392 = vmul.f32 %v2371, 0.5
    %v2393 = vmul.f32 %v2373, 0.5
    %v2394 = vmul.f32 %v2375, 0.5
    %v2395 = vmul.f32 %v2379, 0.5
    %v2396 = vmul.f32 %v2381, 0.5
    %v2397 = vmul.f32 %v2383, 0.5
    %v2398 = vmul.f32 %v2385, 0.5
    %v2399 = vmul.f32 %v2359, 0.70710677
    %v2400 = vmul.f32 %v2361, 0.70710677
    %v2401 = vmul.f32 %v2363, 0.70710677
    %v2402 = vmul.f32 %v2365, 0.70710677
    %v2403 = vmul.f32 %v2369, 0.70710677
    %v2404 = vmul.f32 %v2371, 0.70710677
    %v2405 = vmul.f32 %v2373, 0.70710677
    %v2406 = vmul.f32 %v2375, 0.70710677
    %v2407 = vmul.f32 %v2379, 0.70710677
    %v2408 = vmul.f32 %v2381, 0.70710677
    %v2409 = vmul.f32 %v2383, 0.70710677
    %v2410 = vmul.f32 %v2385, 0.70710677
    %v2411 = verf.f32.pop %v2399
    %v2412 = verf.f32.pop %v2400
    %v2413 = verf.f32.pop %v2401
    %v2414 = verf.f32.pop %v2402
    %v2415 = verf.f32.pop %v2403
    %v2416 = verf.f32.pop %v2404
    %v2417 = verf.f32.pop %v2405
    %v2418 = verf.f32.pop %v2406
    %v2419 = verf.f32.pop %v2407
    %v2420 = verf.f32.pop %v2408
    %v2421 = verf.f32.pop %v2409
    %v2422 = verf.f32.pop %v2410
    %v2423 = vadd.f32 %v2411, 1.0
    %v2424 = vadd.f32 %v2412, 1.0
    %v2425 = vadd.f32 %v2413, 1.0
    %v2426 = vadd.f32 %v2414, 1.0
    %v2427 = vadd.f32 %v2415, 1.0
    %v2428 = vadd.f32 %v2416, 1.0
    %v2429 = vadd.f32 %v2417, 1.0
    %v2430 = vadd.f32 %v2418, 1.0
    %v2431 = vadd.f32 %v2419, 1.0
    %v2432 = vadd.f32 %v2420, 1.0
    %v2433 = vadd.f32 %v2421, 1.0
    %v2434 = vadd.f32 %v2422, 1.0
    %v2435 = vmul.f32 %v2387, %v2423
    %v2436 = vmul.f32 %v2388, %v2424
    %v2437 = vmul.f32 %v2389, %v2425
    %v2438 = vmul.f32 %v2390, %v2426
    %v2439 = vmul.f32 %v2391, %v2427
    %v2440 = vmul.f32 %v2392, %v2428
    %v2441 = vmul.f32 %v2393, %v2429
    %v2442 = vmul.f32 %v2394, %v2430
    %v2443 = vmul.f32 %v2395, %v2431
    %v2444 = vmul.f32 %v2396, %v2432
    %v2445 = vmul.f32 %v2397, %v2433
    %v2446 = vmul.f32 %v2398, %v2434
    %v2447 = vld [vmem:[%s29] sm:$0xf]
    %v2448 = vld [vmem:[%s29 + $0x4] sm:$0xf]
    %v2449 = vld [vmem:[%s29 + $0x8] sm:$0xf]
    %v2450 = vld [vmem:[%s29 + $0xc] sm:$0xf]
    %v2451 = vld [vmem:[%s29 + $0x10] sm:$0xf]
    %v2452 = vld [vmem:[%s29 + $0x14] sm:$0xf]
    %v2453 = vld [vmem:[%s29 + $0x18] sm:$0xf]
    %v2454 = vld [vmem:[%s29 + $0x1c] sm:$0xf]
    %v2455 = vld [vmem:[%s29 + $0x20] sm:$0xf]
    %v2456 = vld [vmem:[%s29 + $0x24] sm:$0xf]
    %v2457 = vld [vmem:[%s29 + $0x28] sm:$0xf]
    %v2458 = vld [vmem:[%s29 + $0x2c] sm:$0xf]
    %v2459 = vld [vmem:[%s29 + $0x30] sm:$0xf]
    %v2460 = vld [vmem:[%s29 + $0x34] sm:$0xf]
    %v2461 = vld [vmem:[%s29 + $0x38] sm:$0xf]
    %v2462 = vld [vmem:[%s29 + $0x3c] sm:$0xf]
    %v2463 = vld [vmem:[%s29 + $0x40] sm:$0xf]
    %v2464 = vld [vmem:[%s29 + $0x44] sm:$0xf]
    %v2465 = vld [vmem:[%s29 + $0x48] sm:$0xf]
    %v2466 = vld [vmem:[%s29 + $0x4c] sm:$0xf]
    %v2467 = vld [vmem:[%s29 + $0x50] sm:$0xf]
    %v2468 = vld [vmem:[%s29 + $0x54] sm:$0xf]
    %v2469 = vld [vmem:[%s29 + $0x58] sm:$0xf]
    %v2470 = vld [vmem:[%s29 + $0x5c] sm:$0xf]
    %v2471 = vld [vmem:[%s29 + $0x60] sm:$0xf]
    %v2472 = vld [vmem:[%s29 + $0x64] sm:$0xf]
    %v2473 = vld [vmem:[%s29 + $0x68] sm:$0xf]
    %v2474 = vld [vmem:[%s29 + $0x6c] sm:$0xf]
    %v2475 = vld [vmem:[%s29 + $0x70] sm:$0xf]
    %v2476 = vld [vmem:[%s29 + $0x74] sm:$0xf]
    %v2477 = vld [vmem:[%s29 + $0x78] sm:$0xf]
    %v2478 = vld [vmem:[%s29 + $0x7c] sm:$0xf]
    %v2479 = vpack.c.bf16 %v2437, %v2435
    %v2480 = vpack.c.bf16 %v2438, %v2436
    %v2481 = vpack.c.bf16 %v2441, %v2439
    %v2482 = vpack.c.bf16 %v2442, %v2440
    %v2483 = vpack.c.bf16 %v2445, %v2443
    %v2484 = vpack.c.bf16 %v2446, %v2444
    %v2517 = vunpack.c.l.b16 %v2447
    %v2518 = vunpack.c.l.b16 %v2448
    %v2519 = vunpack.c.l.b16 %v2449
    %v2520 = vunpack.c.l.b16 %v2450
    %v2521 = vunpack.c.l.b16 %v2451
    %v2522 = vunpack.c.l.b16 %v2452
    %v2523 = vunpack.c.l.b16 %v2453
    %v2524 = vunpack.c.l.b16 %v2454
    %v2525 = vunpack.c.l.b16 %v2455
    %v2526 = vunpack.c.l.b16 %v2456
    %v2527 = vunpack.c.l.b16 %v2457
    %v2528 = vunpack.c.l.b16 %v2458
    %v2529 = vunpack.c.l.b16 %v2459
    %v2530 = vunpack.c.l.b16 %v2460
    %v2531 = vunpack.c.l.b16 %v2461
    %v2532 = vunpack.c.l.b16 %v2462
    %v2533 = vunpack.c.l.b16 %v2463
    %v2534 = vunpack.c.l.b16 %v2464
    %v2535 = vunpack.c.l.b16 %v2465
    %v2536 = vunpack.c.l.b16 %v2466
    %v2537 = vunpack.c.l.b16 %v2467
    %v2538 = vunpack.c.l.b16 %v2468
    %v2539 = vunpack.c.l.b16 %v2469
    %v2540 = vunpack.c.l.b16 %v2470
    %v2541 = vunpack.c.l.b16 %v2471
    %v2542 = vunpack.c.l.b16 %v2472
    %v2543 = vunpack.c.l.b16 %v2473
    %v2544 = vunpack.c.l.b16 %v2474
    %v2545 = vunpack.c.l.b16 %v2475
    %v2546 = vunpack.c.l.b16 %v2476
    %v2547 = vunpack.c.l.b16 %v2477
    %v2548 = vunpack.c.l.b16 %v2478
    %v2549 = vpack.c.b16 %v2518, %v2517
    %v2550 = vpack.c.b16 %v2520, %v2519
    %v2551 = vpack.c.b16 %v2522, %v2521
    %v2552 = vpack.c.b16 %v2524, %v2523
    %v2553 = vpack.c.b16 %v2526, %v2525
    %v2554 = vpack.c.b16 %v2528, %v2527
    %v2555 = vpack.c.b16 %v2530, %v2529
    %v2556 = vpack.c.b16 %v2532, %v2531
    %v2557 = vpack.c.b16 %v2534, %v2533
    %v2558 = vpack.c.b16 %v2536, %v2535
    %v2559 = vpack.c.b16 %v2538, %v2537
    %v2560 = vpack.c.b16 %v2540, %v2539
    %v2561 = vpack.c.b16 %v2542, %v2541
    %v2562 = vpack.c.b16 %v2544, %v2543
    %v2563 = vpack.c.b16 %v2546, %v2545
    %v2564 = vpack.c.b16 %v2548, %v2547
    %2581 = vmatprep.subr.bf16.mxu0 0
    %2582 = vmatpush1.bf16.msra.mxu0 %v2549
    %2583 = vmatprep.subr.bf16.mxu0 0
    %2584 = vmatpush1.bf16.msra.mxu0 %v2550
    %2585 = vmatprep.subr.bf16.mxu0 0
    %2586 = vmatpush1.bf16.msra.mxu0 %v2551
    %2587 = vmatprep.subr.bf16.mxu0 0
    %2588 = vmatpush1.bf16.msra.mxu0 %v2552
    %2589 = vmatprep.subr.bf16.mxu0 0
    %2590 = vmatpush1.bf16.msra.mxu0 %v2553
    %2591 = vmatprep.subr.bf16.mxu0 0
    %2592 = vmatpush1.bf16.msra.mxu0 %v2554
    %2593 = vmatprep.subr.bf16.mxu0 0
    %2594 = vmatpush1.bf16.msra.mxu0 %v2555
    %2595 = vmatprep.subr.bf16.mxu0 0
    %2596 = vmatpush1.bf16.msra.mxu0 %v2556
    %2597 = vmatprep.subr.bf16.mxu0 0
    %2598 = vmatpush1.bf16.msra.mxu0 %v2557
    %2599 = vmatprep.subr.bf16.mxu0 0
    %2600 = vmatpush1.bf16.msra.mxu0 %v2558
    %2601 = vmatprep.subr.bf16.mxu0 0
    %2602 = vmatpush1.bf16.msra.mxu0 %v2559
    %2603 = vmatprep.subr.bf16.mxu0 0
    %2604 = vmatpush1.bf16.msra.mxu0 %v2560
    %2605 = vmatprep.subr.bf16.mxu0 0
    %2606 = vmatpush1.bf16.msra.mxu0 %v2561
    %2607 = vmatprep.subr.bf16.mxu0 0
    %2608 = vmatpush1.bf16.msra.mxu0 %v2562
    %2609 = vmatprep.subr.bf16.mxu0 0
    %2610 = vmatpush1.bf16.msra.mxu0 %v2563
    %2611 = vmatprep.subr.bf16.mxu0 0
    %2612 = vmatpush1.bf16.msra.mxu0 %v2564
    %2613 = vmatprep.mubr.bf16.mxu0 %v2480
    %2614 = vmatmul.mubr.bf16.gmra.mrb[0].mxu0 %v2479
    %v2615 = vpop.f32.mrb[0].mxu0
    %v2616 = vadd.f32 0.0, %v2615
    %v2617 = vpop.f32.mrb[0].mxu0
    %v2618 = vpop.f32.mrb[0].mxu0
    %v2619 = vadd.f32 0.0, %v2618
    %v2620 = vpop.f32.mrb[0].mxu0
    %2621 = vmatprep.mubr.bf16.mxu0 %v2482
    %2622 = vmatmul.mubr.bf16.gmra.mrb[0].mxu0 %v2481
    %v2623 = vpop.f32.mrb[0].mxu0
    %v2624 = vadd.f32 0.0, %v2623
    %v2625 = vpop.f32.mrb[0].mxu0
    %v2626 = vpop.f32.mrb[0].mxu0
    %v2627 = vadd.f32 0.0, %v2626
    %v2628 = vpop.f32.mrb[0].mxu0
    %2629 = vmatprep.mubr.bf16.mxu0 %v2484
    %2630 = vmatmul.mubr.bf16.gmra.mrb[0].mxu0 %v2483
    %v2631 = vpop.f32.mrb[0].mxu0
    %v2632 = vadd.f32 0.0, %v2631
    %v2633 = vpop.f32.mrb[0].mxu0
    %v2634 = vpop.f32.mrb[0].mxu0
    %v2635 = vadd.f32 0.0, %v2634
    %v2636 = vpop.f32.mrb[0].mxu0
    %2637 = vdwg.mxu0
    %v2638 = vadd.f32 %v2142, %v2616
    %v2639 = vadd.f32 %v2143, %v2619
    %v2640 = vadd.f32 %v2144, %v2624
    %v2641 = vadd.f32 %v2145, %v2627
    %v2642 = vadd.f32 %v2146, %v2632
    %v2643 = vadd.f32 %v2147, %v2635
    %v2644 = vld [vmem:[%s31] sm:$0x1]
    %v2646 = vlaneseq
    %v2647 = vshrl.u32 %v2646, 7
    %v2648 = vsub.s32 0, %v2647
    %v2649 = vrot.slane %v2644, %v2648
    %v2651 = vadd.f32 %v2638, %v2649
    %v2652 = vadd.f32 %v2639, %v2649
    %v2653 = vadd.f32 %v2640, %v2649
    %v2654 = vadd.f32 %v2641, %v2649
    %v2655 = vadd.f32 %v2642, %v2649
    %v2656 = vadd.f32 %v2643, %v2649
    %s2657 = scalar_lea.vmem %s9, 1
    %v2658 = vld [vmem:[%s2657] sm:$0x1]
    %s2659 = scalar_lea.vmem %s11, 1
    %v2660 = vld [vmem:[%s2659] sm:$0x1]
    %v2661 = vsel %vm256, %v2651, 0.0
    %2662 = vadd.xlane.f32.xlu0 %v2661
    %v2663 = vpop.xlane.xlu0 %2662
    %v2664 = vsel %vm256, %v2652, 0.0
    %2665 = vadd.xlane.f32.xlu0 %v2664
    %v2666 = vpop.xlane.xlu0 %2665
    %v2667 = vsel %vm256, %v2653, 0.0
    %2668 = vadd.xlane.f32.xlu0 %v2667
    %v2669 = vpop.xlane.xlu0 %2668
    %v2670 = vsel %vm256, %v2654, 0.0
    %2671 = vadd.xlane.f32.xlu0 %v2670
    %v2672 = vpop.xlane.xlu0 %2671
    %v2673 = vsel %vm256, %v2655, 0.0
    %2674 = vadd.xlane.f32.xlu0 %v2673
    %v2675 = vpop.xlane.xlu0 %2674
    %v2676 = vsel %vm256, %v2656, 0.0
    %2677 = vadd.xlane.f32.xlu0 %v2676
    %v2678 = vpop.xlane.xlu0 %2677
    %v2679 = vmul.f32 %v2663, %v347
    %v2680 = vmul.f32 %v2666, %v347
    %v2681 = vmul.f32 %v2669, %v347
    %v2682 = vmul.f32 %v2672, %v347
    %v2683 = vmul.f32 %v2675, %v347
    %v2684 = vmul.f32 %v2678, %v347
    %v2685 = vsub.f32 %v2651, %v2679
    %v2686 = vsub.f32 %v2652, %v2680
    %v2687 = vsub.f32 %v2653, %v2681
    %v2688 = vsub.f32 %v2654, %v2682
    %v2689 = vsub.f32 %v2655, %v2683
    %v2690 = vsub.f32 %v2656, %v2684
    %v2691 = vmul.f32 %v2685, %v2685
    %v2692 = vmul.f32 %v2686, %v2686
    %v2693 = vmul.f32 %v2687, %v2687
    %v2694 = vmul.f32 %v2688, %v2688
    %v2695 = vmul.f32 %v2689, %v2689
    %v2696 = vmul.f32 %v2690, %v2690
    %v2697 = vsel %vm256, %v2691, 0.0
    %2698 = vadd.xlane.f32.xlu0 %v2697
    %v2699 = vpop.xlane.xlu0 %2698
    %v2700 = vsel %vm256, %v2692, 0.0
    %2701 = vadd.xlane.f32.xlu0 %v2700
    %v2702 = vpop.xlane.xlu0 %2701
    %v2703 = vsel %vm256, %v2693, 0.0
    %2704 = vadd.xlane.f32.xlu0 %v2703
    %v2705 = vpop.xlane.xlu0 %2704
    %v2706 = vsel %vm256, %v2694, 0.0
    %2707 = vadd.xlane.f32.xlu0 %v2706
    %v2708 = vpop.xlane.xlu0 %2707
    %v2709 = vsel %vm256, %v2695, 0.0
    %2710 = vadd.xlane.f32.xlu0 %v2709
    %v2711 = vpop.xlane.xlu0 %2710
    %v2712 = vsel %vm256, %v2696, 0.0
    %2713 = vadd.xlane.f32.xlu0 %v2712
    %v2714 = vpop.xlane.xlu0 %2713
    %v2715 = vmul.f32 %v2699, %v347
    %v2716 = vmul.f32 %v2702, %v347
    %v2717 = vmul.f32 %v2705, %v347
    %v2718 = vmul.f32 %v2708, %v347
    %v2719 = vmul.f32 %v2711, %v347
    %v2720 = vmul.f32 %v2714, %v347
    %v2721 = vadd.f32 %v2715, 1e-06
    %v2722 = vadd.f32 %v2716, 1e-06
    %v2723 = vadd.f32 %v2717, 1e-06
    %v2724 = vadd.f32 %v2718, 1e-06
    %v2725 = vadd.f32 %v2719, 1e-06
    %v2726 = vadd.f32 %v2720, 1e-06
    %v2727 = vrsqrt.pop %v2721
    %v2728 = vrsqrt.pop %v2722
    %v2729 = vrsqrt.pop %v2723
    %v2730 = vrsqrt.pop %v2724
    %v2731 = vrsqrt.pop %v2725
    %v2732 = vrsqrt.pop %v2726
    %v2733 = vmul.f32 %v2685, %v2727
    %v2734 = vmul.f32 %v2686, %v2728
    %v2735 = vmul.f32 %v2687, %v2729
    %v2736 = vmul.f32 %v2688, %v2730
    %v2737 = vmul.f32 %v2689, %v2731
    %v2738 = vmul.f32 %v2690, %v2732
    %v2740 = vlaneseq
    %v2741 = vshrl.u32 %v2740, 7
    %v2742 = vsub.s32 0, %v2741
    %v2743 = vrot.slane %v2658, %v2742
    %v2745 = vmul.f32 %v2733, %v2743
    %v2746 = vmul.f32 %v2734, %v2743
    %v2747 = vmul.f32 %v2735, %v2743
    %v2748 = vmul.f32 %v2736, %v2743
    %v2749 = vmul.f32 %v2737, %v2743
    %v2750 = vmul.f32 %v2738, %v2743
    %v2752 = vlaneseq
    %v2753 = vshrl.u32 %v2752, 7
    %v2754 = vsub.s32 0, %v2753
    %v2755 = vrot.slane %v2660, %v2754
    %v2757 = vadd.f32 %v2745, %v2755
    %v2758 = vadd.f32 %v2746, %v2755
    %v2759 = vadd.f32 %v2747, %v2755
    %v2760 = vadd.f32 %v2748, %v2755
    %v2761 = vadd.f32 %v2749, %v2755
    %v2762 = vadd.f32 %v2750, %v2755
    %s2763 = scalar_lea.vmem %s13, 64
    %v2764 = vld [vmem:[%s2763] sm:$0xff]
    %v2765 = vld [vmem:[%s2763 + $0x8] sm:$0xff]
    %v2766 = vld [vmem:[%s2763 + $0x10] sm:$0xff]
    %v2767 = vld [vmem:[%s2763 + $0x18] sm:$0xff]
    %v2768 = vld [vmem:[%s2763 + $0x20] sm:$0xff]
    %v2769 = vld [vmem:[%s2763 + $0x28] sm:$0xff]
    %v2770 = vld [vmem:[%s2763 + $0x30] sm:$0xff]
    %v2771 = vld [vmem:[%s2763 + $0x38] sm:$0xff]
    %v2772 = vpack.c.bf16 %v2758, %v2757
    %v2773 = vpack.c.bf16 %v2760, %v2759
    %v2774 = vpack.c.bf16 %v2762, %v2761
    %s2775 = scalar_lea.vmem %s15, 2
    %v2776 = vld [vmem:[%s2775] sm:$0x3]
    %v2778 = vlaneseq
    %v2779 = vshrl.u32 %v2778, 7
    %v2780 = vsub.s32 0, %v2779
    %v2781 = vrot.slane %v2776, %v2780
    %v2782 = vlaneseq
    %v2783 = vshrl.u32 %v2782, 7
    %v2784 = vsub.s32 1, %v2783
    %v2785 = vrot.slane %v2776, %v2784
    %v2796 = vunpack.c.l.b16 %v2764
    %v2797 = vunpack.c.h.b16 %v2764
    %v2798 = vunpack.c.l.b16 %v2765
    %v2799 = vunpack.c.h.b16 %v2765
    %v2800 = vunpack.c.l.b16 %v2766
    %v2801 = vunpack.c.h.b16 %v2766
    %v2802 = vunpack.c.l.b16 %v2767
    %v2803 = vunpack.c.h.b16 %v2767
    %v2804 = vunpack.c.l.b16 %v2768
    %v2805 = vunpack.c.h.b16 %v2768
    %v2806 = vunpack.c.l.b16 %v2769
    %v2807 = vunpack.c.h.b16 %v2769
    %v2808 = vunpack.c.l.b16 %v2770
    %v2809 = vunpack.c.h.b16 %v2770
    %v2810 = vunpack.c.l.b16 %v2771
    %v2811 = vunpack.c.h.b16 %v2771
    %v2812 = vpack.c.b16 %v2798, %v2796
    %v2813 = vpack.c.b16 %v2799, %v2797
    %v2814 = vpack.c.b16 %v2802, %v2800
    %v2815 = vpack.c.b16 %v2803, %v2801
    %v2816 = vpack.c.b16 %v2806, %v2804
    %v2817 = vpack.c.b16 %v2807, %v2805
    %v2818 = vpack.c.b16 %v2810, %v2808
    %v2819 = vpack.c.b16 %v2811, %v2809
    %v2829 = vsel %vm256, %v2772, 0
    %v2832 = vsel %vm256, %v2773, 0
    %v2835 = vsel %vm256, %v2774, 0
    %2837 = vmatprep.subr.bf16.mxu0 %v2813
    %2838 = vmatpush1.bf16.msra.mxu0 %v2812
    %2839 = vmatprep.subr.bf16.mxu0 %v2815
    %2840 = vmatpush1.bf16.msra.mxu0 %v2814
    %2841 = vmatprep.subr.bf16.mxu0 %v2817
    %2842 = vmatpush1.bf16.msra.mxu0 %v2816
    %2843 = vmatprep.subr.bf16.mxu0 %v2819
    %2844 = vmatpush1.bf16.msra.mxu0 %v2818
    %2845 = vmatprep.subr.bf16.mxu0 0
    %2846 = vmatpush1.bf16.msra.mxu0 0
    %2847 = vmatprep.subr.bf16.mxu0 0
    %2848 = vmatpush1.bf16.msra.mxu0 0
    %2849 = vmatprep.subr.bf16.mxu0 0
    %2850 = vmatpush1.bf16.msra.mxu0 0
    %2851 = vmatprep.subr.bf16.mxu0 0
    %2852 = vmatpush1.bf16.msra.mxu0 0
    %2853 = vmatprep.subr.bf16.mxu0 0
    %2854 = vmatpush1.bf16.msra.mxu0 0
    %2855 = vmatprep.subr.bf16.mxu0 0
    %2856 = vmatpush1.bf16.msra.mxu0 0
    %2857 = vmatprep.subr.bf16.mxu0 0
    %2858 = vmatpush1.bf16.msra.mxu0 0
    %2859 = vmatprep.subr.bf16.mxu0 0
    %2860 = vmatpush1.bf16.msra.mxu0 0
    %2861 = vmatprep.subr.bf16.mxu0 0
    %2862 = vmatpush1.bf16.msra.mxu0 0
    %2863 = vmatprep.subr.bf16.mxu0 0
    %2864 = vmatpush1.bf16.msra.mxu0 0
    %2865 = vmatprep.subr.bf16.mxu0 0
    %2866 = vmatpush1.bf16.msra.mxu0 0
    %2867 = vmatprep.subr.bf16.mxu0 0
    %2868 = vmatpush1.bf16.msra.mxu0 0
    %2869 = vmatprep.mubr.bf16.mxu0 0
    %2870 = vmatmul.mubr.bf16.gmra.mrb[0].mxu0 %v2829
    %v2871 = vpop.f32.mrb[0].mxu0
    %v2872 = vadd.f32 %v2781, %v2871
    %v2873 = vpop.f32.mrb[0].mxu0
    %v2874 = vadd.f32 %v2785, %v2873
    %v2875 = vpop.f32.mrb[0].mxu0
    %v2876 = vadd.f32 %v2781, %v2875
    %v2877 = vpop.f32.mrb[0].mxu0
    %v2878 = vadd.f32 %v2785, %v2877
    %2879 = vmatprep.mubr.bf16.mxu0 0
    %2880 = vmatmul.mubr.bf16.gmra.mrb[0].mxu0 %v2832
    %v2881 = vpop.f32.mrb[0].mxu0
    %v2882 = vadd.f32 %v2781, %v2881
    %v2883 = vpop.f32.mrb[0].mxu0
    %v2884 = vadd.f32 %v2785, %v2883
    %v2885 = vpop.f32.mrb[0].mxu0
    %v2886 = vadd.f32 %v2781, %v2885
    %v2887 = vpop.f32.mrb[0].mxu0
    %v2888 = vadd.f32 %v2785, %v2887
    %2889 = vmatprep.mubr.bf16.mxu0 0
    %2890 = vmatmul.mubr.bf16.gmra.mrb[0].mxu0 %v2835
    %v2891 = vpop.f32.mrb[0].mxu0
    %v2892 = vadd.f32 %v2781, %v2891
    %v2893 = vpop.f32.mrb[0].mxu0
    %v2894 = vadd.f32 %v2785, %v2893
    %v2895 = vpop.f32.mrb[0].mxu0
    %v2896 = vadd.f32 %v2781, %v2895
    %v2897 = vpop.f32.mrb[0].mxu0
    %v2898 = vadd.f32 %v2785, %v2897
    %2899 = vdwg.mxu0
    %v2900 = vpack.c.bf16 %v2876, %v2872
    %v2901 = vpack.c.bf16 %v2882, %v2882
    %v2902 = vpack.c.bf16 %v2892, %v2886
    %v2903 = vpack.c.bf16 %v2896, %v2896
    %2906 = vrot.lane.b32.xlu0 %v2900, 64
    %v2907 = vpop.permute.xlu0 %2906
    %2908 = vrot.lane.b32.xlu0 %v2901, 64
    %v2909 = vpop.permute.xlu0 %2908
    %v2911 = vsel %vm577, %v2900, 0
    %v2914 = vsel %vm577, %v2901, 0
    %v2917 = vsel %vm577, %v2907, 0
    %v2920 = vsel %vm577, %v2909, 0
    %2922 = vmatprep.subr.bf16.mxu0 0
    %2923 = vmatpush1.bf16.xpose.msra.mxu0 %v2917
    %2924 = vmatprep.subr.bf16.mxu0 0
    %2925 = vmatpush1.bf16.xpose.msra.mxu0 %v2920
    %2926 = vmatprep.subr.bf16.mxu0 0
    %2927 = vmatpush1.bf16.xpose.msra.mxu0 0
    %2928 = vmatprep.subr.bf16.mxu0 0
    %2929 = vmatpush1.bf16.xpose.msra.mxu0 0
    %2930 = vmatprep.subr.bf16.mxu0 0
    %2931 = vmatpush1.bf16.xpose.msra.mxu0 0
    %2932 = vmatprep.subr.bf16.mxu0 0
    %2933 = vmatpush1.bf16.xpose.msra.mxu0 0
    %2934 = vmatprep.subr.bf16.mxu0 0
    %2935 = vmatpush1.bf16.xpose.msra.mxu0 0
    %2936 = vmatprep.subr.bf16.mxu0 0
    %2937 = vmatpush1.bf16.xpose.msra.mxu0 0
    %2938 = vmatprep.subr.bf16.mxu0 0
    %2939 = vmatpush1.bf16.xpose.msra.mxu0 0
    %2940 = vmatprep.subr.bf16.mxu0 0
    %2941 = vmatpush1.bf16.xpose.msra.mxu0 0
    %2942 = vmatprep.subr.bf16.mxu0 0
    %2943 = vmatpush1.bf16.xpose.msra.mxu0 0
    %2944 = vmatprep.subr.bf16.mxu0 0
    %2945 = vmatpush1.bf16.xpose.msra.mxu0 0
    %2946 = vmatprep.subr.bf16.mxu0 0
    %2947 = vmatpush1.bf16.xpose.msra.mxu0 0
    %2948 = vmatprep.subr.bf16.mxu0 0
    %2949 = vmatpush1.bf16.xpose.msra.mxu0 0
    %2950 = vmatprep.subr.bf16.mxu0 0
    %2951 = vmatpush1.bf16.xpose.msra.mxu0 0
    %2952 = vmatprep.subr.bf16.mxu0 0
    %2953 = vmatpush1.bf16.xpose.msra.mxu0 0
    %2954 = vmatprep.mubr.bf16.mxu0 0
    %2955 = vmatmul.mubr.bf16.gmra.mrb[0].mxu0 %v2911
    %v2956 = vpop.f32.mrb[0].mxu0
    %v2957 = vadd.f32 0.0, %v2956
    %v2958 = vpop.f32.mrb[0].mxu0
    %v2959 = vpop.f32.mrb[0].mxu0
    %v2960 = vadd.f32 0.0, %v2959
    %v2961 = vpop.f32.mrb[0].mxu0
    %2962 = vmatprep.mubr.bf16.mxu0 0
    %2963 = vmatmul.mubr.bf16.gmra.mrb[0].mxu0 %v2914
    %v2964 = vpop.f32.mrb[0].mxu0
    %v2965 = vadd.f32 0.0, %v2964
    %v2966 = vpop.f32.mrb[0].mxu0
    %v2967 = vpop.f32.mrb[0].mxu0
    %v2968 = vpop.f32.mrb[0].mxu0
    %2969 = vdwg.mxu0
    %2972 = vrot.lane.b32.xlu0 %v2902, 64
    %v2973 = vpop.permute.xlu0 %2972
    %2974 = vrot.lane.b32.xlu0 %v2903, 64
    %v2975 = vpop.permute.xlu0 %2974
    %v2977 = vsel %vm577, %v2902, 0
    %v2980 = vsel %vm577, %v2903, 0
    %v2983 = vsel %vm577, %v2973, 0
    %v2986 = vsel %vm577, %v2975, 0
    %2988 = vmatprep.subr.bf16.mxu0 0
    %2989 = vmatpush1.bf16.xpose.msra.mxu0 %v2983
    %2990 = vmatprep.subr.bf16.mxu0 0
    %2991 = vmatpush1.bf16.xpose.msra.mxu0 %v2986
    %2992 = vmatprep.subr.bf16.mxu0 0
    %2993 = vmatpush1.bf16.xpose.msra.mxu0 0
    %2994 = vmatprep.subr.bf16.mxu0 0
    %2995 = vmatpush1.bf16.xpose.msra.mxu0 0
    %2996 = vmatprep.subr.bf16.mxu0 0
    %2997 = vmatpush1.bf16.xpose.msra.mxu0 0
    %2998 = vmatprep.subr.bf16.mxu0 0
    %2999 = vmatpush1.bf16.xpose.msra.mxu0 0
    %3000 = vmatprep.subr.bf16.mxu0 0
    %3001 = vmatpush1.bf16.xpose.msra.mxu0 0
    %3002 = vmatprep.subr.bf16.mxu0 0
    %3003 = vmatpush1.bf16.xpose.msra.mxu0 0
    %3004 = vmatprep.subr.bf16.mxu0 0
    %3005 = vmatpush1.bf16.xpose.msra.mxu0 0
    %3006 = vmatprep.subr.bf16.mxu0 0
    %3007 = vmatpush1.bf16.xpose.msra.mxu0 0
    %3008 = vmatprep.subr.bf16.mxu0 0
    %3009 = vmatpush1.bf16.xpose.msra.mxu0 0
    %3010 = vmatprep.subr.bf16.mxu0 0
    %3011 = vmatpush1.bf16.xpose.msra.mxu0 0
    %3012 = vmatprep.subr.bf16.mxu0 0
    %3013 = vmatpush1.bf16.xpose.msra.mxu0 0
    %3014 = vmatprep.subr.bf16.mxu0 0
    %3015 = vmatpush1.bf16.xpose.msra.mxu0 0
    %3016 = vmatprep.subr.bf16.mxu0 0
    %3017 = vmatpush1.bf16.xpose.msra.mxu0 0
    %3018 = vmatprep.subr.bf16.mxu0 0
    %3019 = vmatpush1.bf16.xpose.msra.mxu0 0
    %3020 = vmatprep.mubr.bf16.mxu0 0
    %3021 = vmatmul.mubr.bf16.gmra.mrb[0].mxu0 %v2977
    %v3022 = vpop.f32.mrb[0].mxu0
    %v3023 = vadd.f32 0.0, %v3022
    %v3024 = vpop.f32.mrb[0].mxu0
    %v3025 = vpop.f32.mrb[0].mxu0
    %v3026 = vadd.f32 0.0, %v3025
    %v3027 = vpop.f32.mrb[0].mxu0
    %3028 = vmatprep.mubr.bf16.mxu0 0
    %3029 = vmatmul.mubr.bf16.gmra.mrb[0].mxu0 %v2980
    %v3030 = vpop.f32.mrb[0].mxu0
    %v3031 = vadd.f32 0.0, %v3030
    %v3032 = vpop.f32.mrb[0].mxu0
    %v3033 = vpop.f32.mrb[0].mxu0
    %v3034 = vpop.f32.mrb[0].mxu0
    %3035 = vdwg.mxu0
    %v3036 = vmul.f32 %v2957, 0.25
    %v3037 = vmul.f32 %v2960, 0.25
    %v3038 = vmul.f32 %v2965, 0.25
    %v3039 = vmul.f32 %v3023, 0.25
    %v3040 = vmul.f32 %v3026, 0.25
    %v3041 = vmul.f32 %v3031, 0.25
    %v3042 = vadd.f32 %v3036, %v326
    %v3043 = vadd.f32 %v3037, %v326
    %v3044 = vadd.f32 %v3038, %v326
    %v3045 = vadd.f32 %v3039, %v326
    %v3046 = vadd.f32 %v3040, %v326
    %v3047 = vadd.f32 %v3041, %v326
    %v3048 = vsel %vm716, %v3042, -inf
    %3049 = vmax.xlane.f32.xlu0 %v3048
    %v3050 = vpop.xlane.xlu0 %3049
    %v3051 = vsel %vm716, %v3043, -inf
    %3052 = vmax.xlane.f32.xlu0 %v3051
    %v3053 = vpop.xlane.xlu0 %3052
    %v3054 = vsel %vm716, %v3044, -inf
    %3055 = vmax.xlane.f32.xlu0 %v3054
    %v3056 = vpop.xlane.xlu0 %3055
    %v3057 = vsel %vm716, %v3045, -inf
    %3058 = vmax.xlane.f32.xlu0 %v3057
    %v3059 = vpop.xlane.xlu0 %3058
    %v3060 = vsel %vm716, %v3046, -inf
    %3061 = vmax.xlane.f32.xlu0 %v3060
    %v3062 = vpop.xlane.xlu0 %3061
    %v3063 = vsel %vm716, %v3047, -inf
    %3064 = vmax.xlane.f32.xlu0 %v3063
    %v3065 = vpop.xlane.xlu0 %3064
    %v3066 = vsub.f32 %v3042, %v3050
    %v3067 = vsub.f32 %v3043, %v3053
    %v3068 = vsub.f32 %v3044, %v3056
    %v3069 = vsub.f32 %v3045, %v3059
    %v3070 = vsub.f32 %v3046, %v3062
    %v3071 = vsub.f32 %v3047, %v3065
    %v3072 = vmul.f32 %v3066, 1.442695
    %v3073 = vpow.pop %v3072
    %v3074 = vmul.f32 %v3067, 1.442695
    %v3075 = vpow.pop %v3074
    %v3076 = vmul.f32 %v3068, 1.442695
    %v3077 = vpow.pop %v3076
    %v3078 = vmul.f32 %v3069, 1.442695
    %v3079 = vpow.pop %v3078
    %v3080 = vmul.f32 %v3070, 1.442695
    %v3081 = vpow.pop %v3080
    %v3082 = vmul.f32 %v3071, 1.442695
    %v3083 = vpow.pop %v3082
    %v3084 = vsel %vm716, %v3073, 0.0
    %3085 = vadd.xlane.f32.xlu0 %v3084
    %v3086 = vpop.xlane.xlu0 %3085
    %v3087 = vsel %vm716, %v3075, 0.0
    %3088 = vadd.xlane.f32.xlu0 %v3087
    %v3089 = vpop.xlane.xlu0 %3088
    %v3090 = vsel %vm716, %v3077, 0.0
    %3091 = vadd.xlane.f32.xlu0 %v3090
    %v3092 = vpop.xlane.xlu0 %3091
    %v3093 = vsel %vm716, %v3079, 0.0
    %3094 = vadd.xlane.f32.xlu0 %v3093
    %v3095 = vpop.xlane.xlu0 %3094
    %v3096 = vsel %vm716, %v3081, 0.0
    %3097 = vadd.xlane.f32.xlu0 %v3096
    %v3098 = vpop.xlane.xlu0 %3097
    %v3099 = vsel %vm716, %v3083, 0.0
    %3100 = vadd.xlane.f32.xlu0 %v3099
    %v3101 = vpop.xlane.xlu0 %3100
    %v3102 = vrcp.pop %v3086
    %v3103 = vmul.f32 %v3073, %v3102
    %v3104 = vrcp.pop %v3089
    %v3105 = vmul.f32 %v3075, %v3104
    %v3106 = vrcp.pop %v3092
    %v3107 = vmul.f32 %v3077, %v3106
    %v3108 = vrcp.pop %v3095
    %v3109 = vmul.f32 %v3079, %v3108
    %v3110 = vrcp.pop %v3098
    %v3111 = vmul.f32 %v3081, %v3110
    %v3112 = vrcp.pop %v3101
    %v3113 = vmul.f32 %v3083, %v3112
    %v3114 = vpack.c.bf16 %v3105, %v3103
    %v3115 = vpack.c.bf16 %v3107, %v3107
    %v3116 = vpack.c.bf16 %v3111, %v3109
    %v3117 = vpack.c.bf16 %v3113, %v3113
    %v3118 = vpack.c.bf16 %v2878, %v2874
    %v3119 = vpack.c.bf16 %v2884, %v2884
    %v3120 = vpack.c.bf16 %v2894, %v2888
    %v3121 = vpack.c.bf16 %v2898, %v2898
    %v3123 = vsel %vm716, %v3114, 0
    %v3126 = vsel %vm716, %v3115, 0
    %v3129 = vsel %vm797, %v3119, 0
    %3131 = vmatprep.subr.bf16.mxu0 0
    %3132 = vmatpush1.bf16.msra.mxu0 %v3118
    %3133 = vmatprep.subr.bf16.mxu0 0
    %3134 = vmatpush1.bf16.msra.mxu0 %v3129
    %3135 = vmatprep.subr.bf16.mxu0 0
    %3136 = vmatpush1.bf16.msra.mxu0 0
    %3137 = vmatprep.subr.bf16.mxu0 0
    %3138 = vmatpush1.bf16.msra.mxu0 0
    %3139 = vmatprep.subr.bf16.mxu0 0
    %3140 = vmatpush1.bf16.msra.mxu0 0
    %3141 = vmatprep.subr.bf16.mxu0 0
    %3142 = vmatpush1.bf16.msra.mxu0 0
    %3143 = vmatprep.subr.bf16.mxu0 0
    %3144 = vmatpush1.bf16.msra.mxu0 0
    %3145 = vmatprep.subr.bf16.mxu0 0
    %3146 = vmatpush1.bf16.msra.mxu0 0
    %3147 = vmatprep.subr.bf16.mxu0 0
    %3148 = vmatpush1.bf16.msra.mxu0 0
    %3149 = vmatprep.subr.bf16.mxu0 0
    %3150 = vmatpush1.bf16.msra.mxu0 0
    %3151 = vmatprep.subr.bf16.mxu0 0
    %3152 = vmatpush1.bf16.msra.mxu0 0
    %3153 = vmatprep.subr.bf16.mxu0 0
    %3154 = vmatpush1.bf16.msra.mxu0 0
    %3155 = vmatprep.subr.bf16.mxu0 0
    %3156 = vmatpush1.bf16.msra.mxu0 0
    %3157 = vmatprep.subr.bf16.mxu0 0
    %3158 = vmatpush1.bf16.msra.mxu0 0
    %3159 = vmatprep.subr.bf16.mxu0 0
    %3160 = vmatpush1.bf16.msra.mxu0 0
    %3161 = vmatprep.subr.bf16.mxu0 0
    %3162 = vmatpush1.bf16.msra.mxu0 0
    %3163 = vmatprep.mubr.bf16.mxu0 0
    %3164 = vmatmul.mubr.bf16.gmra.mrb[0].mxu0 %v3123
    %v3165 = vpop.f32.mrb[0].mxu0
    %v3166 = vadd.f32 0.0, %v3165
    %v3167 = vpop.f32.mrb[0].mxu0
    %v3168 = vpop.f32.mrb[0].mxu0
    %v3169 = vadd.f32 0.0, %v3168
    %v3170 = vpop.f32.mrb[0].mxu0
    %3171 = vmatprep.mubr.bf16.mxu0 0
    %3172 = vmatmul.mubr.bf16.gmra.mrb[0].mxu0 %v3126
    %v3173 = vpop.f32.mrb[0].mxu0
    %v3174 = vadd.f32 0.0, %v3173
    %v3175 = vpop.f32.mrb[0].mxu0
    %v3176 = vpop.f32.mrb[0].mxu0
    %v3177 = vpop.f32.mrb[0].mxu0
    %3178 = vdwg.mxu0
    %v3180 = vsel %vm716, %v3116, 0
    %v3183 = vsel %vm716, %v3117, 0
    %v3186 = vsel %vm797, %v3121, 0
    %3188 = vmatprep.subr.bf16.mxu0 0
    %3189 = vmatpush1.bf16.msra.mxu0 %v3120
    %3190 = vmatprep.subr.bf16.mxu0 0
    %3191 = vmatpush1.bf16.msra.mxu0 %v3186
    %3192 = vmatprep.subr.bf16.mxu0 0
    %3193 = vmatpush1.bf16.msra.mxu0 0
    %3194 = vmatprep.subr.bf16.mxu0 0
    %3195 = vmatpush1.bf16.msra.mxu0 0
    %3196 = vmatprep.subr.bf16.mxu0 0
    %3197 = vmatpush1.bf16.msra.mxu0 0
    %3198 = vmatprep.subr.bf16.mxu0 0
    %3199 = vmatpush1.bf16.msra.mxu0 0
    %3200 = vmatprep.subr.bf16.mxu0 0
    %3201 = vmatpush1.bf16.msra.mxu0 0
    %3202 = vmatprep.subr.bf16.mxu0 0
    %3203 = vmatpush1.bf16.msra.mxu0 0
    %3204 = vmatprep.subr.bf16.mxu0 0
    %3205 = vmatpush1.bf16.msra.mxu0 0
    %3206 = vmatprep.subr.bf16.mxu0 0
    %3207 = vmatpush1.bf16.msra.mxu0 0
    %3208 = vmatprep.subr.bf16.mxu0 0
    %3209 = vmatpush1.bf16.msra.mxu0 0
    %3210 = vmatprep.subr.bf16.mxu0 0
    %3211 = vmatpush1.bf16.msra.mxu0 0
    %3212 = vmatprep.subr.bf16.mxu0 0
    %3213 = vmatpush1.bf16.msra.mxu0 0
    %3214 = vmatprep.subr.bf16.mxu0 0
    %3215 = vmatpush1.bf16.msra.mxu0 0
    %3216 = vmatprep.subr.bf16.mxu0 0
    %3217 = vmatpush1.bf16.msra.mxu0 0
    %3218 = vmatprep.subr.bf16.mxu0 0
    %3219 = vmatpush1.bf16.msra.mxu0 0
    %3220 = vmatprep.mubr.bf16.mxu0 0
    %3221 = vmatmul.mubr.bf16.gmra.mrb[0].mxu0 %v3180
    %v3222 = vpop.f32.mrb[0].mxu0
    %v3223 = vadd.f32 0.0, %v3222
    %v3224 = vpop.f32.mrb[0].mxu0
    %v3225 = vpop.f32.mrb[0].mxu0
    %v3226 = vadd.f32 0.0, %v3225
    %v3227 = vpop.f32.mrb[0].mxu0
    %3228 = vmatprep.mubr.bf16.mxu0 0
    %3229 = vmatmul.mubr.bf16.gmra.mrb[0].mxu0 %v3183
    %v3230 = vpop.f32.mrb[0].mxu0
    %v3231 = vadd.f32 0.0, %v3230
    %v3232 = vpop.f32.mrb[0].mxu0
    %v3233 = vpop.f32.mrb[0].mxu0
    %v3234 = vpop.f32.mrb[0].mxu0
    %3235 = vdwg.mxu0
    %3236 = vrot.lane.b32.xlu0 %v2900, 112
    %v3237 = vpop.permute.xlu0 %3236
    %3238 = vrot.lane.b32.xlu0 %v2901, 112
    %v3239 = vpop.permute.xlu0 %3238
    %3240 = vrot.lane.b32.xlu0 %v2900, 48
    %v3241 = vpop.permute.xlu0 %3240
    %3242 = vrot.lane.b32.xlu0 %v2901, 48
    %v3243 = vpop.permute.xlu0 %3242
    %v3245 = vsel %vm577, %v3237, 0
    %v3248 = vsel %vm577, %v3239, 0
    %v3251 = vsel %vm577, %v3241, 0
    %v3254 = vsel %vm577, %v3243, 0
    %3256 = vmatprep.subr.bf16.mxu0 0
    %3257 = vmatpush1.bf16.xpose.msra.mxu0 %v3251
    %3258 = vmatprep.subr.bf16.mxu0 0
    %3259 = vmatpush1.bf16.xpose.msra.mxu0 %v3254
    %3260 = vmatprep.subr.bf16.mxu0 0
    %3261 = vmatpush1.bf16.xpose.msra.mxu0 0
    %3262 = vmatprep.subr.bf16.mxu0 0
    %3263 = vmatpush1.bf16.xpose.msra.mxu0 0
    %3264 = vmatprep.subr.bf16.mxu0 0
    %3265 = vmatpush1.bf16.xpose.msra.mxu0 0
    %3266 = vmatprep.subr.bf16.mxu0 0
    %3267 = vmatpush1.bf16.xpose.msra.mxu0 0
    %3268 = vmatprep.subr.bf16.mxu0 0
    %3269 = vmatpush1.bf16.xpose.msra.mxu0 0
    %3270 = vmatprep.subr.bf16.mxu0 0
    %3271 = vmatpush1.bf16.xpose.msra.mxu0 0
    %3272 = vmatprep.subr.bf16.mxu0 0
    %3273 = vmatpush1.bf16.xpose.msra.mxu0 0
    %3274 = vmatprep.subr.bf16.mxu0 0
    %3275 = vmatpush1.bf16.xpose.msra.mxu0 0
    %3276 = vmatprep.subr.bf16.mxu0 0
    %3277 = vmatpush1.bf16.xpose.msra.mxu0 0
    %3278 = vmatprep.subr.bf16.mxu0 0
    %3279 = vmatpush1.bf16.xpose.msra.mxu0 0
    %3280 = vmatprep.subr.bf16.mxu0 0
    %3281 = vmatpush1.bf16.xpose.msra.mxu0 0
    %3282 = vmatprep.subr.bf16.mxu0 0
    %3283 = vmatpush1.bf16.xpose.msra.mxu0 0
    %3284 = vmatprep.subr.bf16.mxu0 0
    %3285 = vmatpush1.bf16.xpose.msra.mxu0 0
    %3286 = vmatprep.subr.bf16.mxu0 0
    %3287 = vmatpush1.bf16.xpose.msra.mxu0 0
    %3288 = vmatprep.mubr.bf16.mxu0 0
    %3289 = vmatmul.mubr.bf16.gmra.mrb[0].mxu0 %v3245
    %v3290 = vpop.f32.mrb[0].mxu0
    %v3291 = vadd.f32 0.0, %v3290
    %v3292 = vpop.f32.mrb[0].mxu0
    %v3293 = vpop.f32.mrb[0].mxu0
    %v3294 = vadd.f32 0.0, %v3293
    %v3295 = vpop.f32.mrb[0].mxu0
    %3296 = vmatprep.mubr.bf16.mxu0 0
    %3297 = vmatmul.mubr.bf16.gmra.mrb[0].mxu0 %v3248
    %v3298 = vpop.f32.mrb[0].mxu0
    %v3299 = vadd.f32 0.0, %v3298
    %v3300 = vpop.f32.mrb[0].mxu0
    %v3301 = vpop.f32.mrb[0].mxu0
    %v3302 = vpop.f32.mrb[0].mxu0
    %3303 = vdwg.mxu0
    %3304 = vrot.lane.b32.xlu0 %v2902, 112
    %v3305 = vpop.permute.xlu0 %3304
    %3306 = vrot.lane.b32.xlu0 %v2903, 112
    %v3307 = vpop.permute.xlu0 %3306
    %3308 = vrot.lane.b32.xlu0 %v2902, 48
    %v3309 = vpop.permute.xlu0 %3308
    %3310 = vrot.lane.b32.xlu0 %v2903, 48
    %v3311 = vpop.permute.xlu0 %3310
    %v3313 = vsel %vm577, %v3305, 0
    %v3316 = vsel %vm577, %v3307, 0
    %v3319 = vsel %vm577, %v3309, 0
    %v3322 = vsel %vm577, %v3311, 0
    %3324 = vmatprep.subr.bf16.mxu0 0
    %3325 = vmatpush1.bf16.xpose.msra.mxu0 %v3319
    %3326 = vmatprep.subr.bf16.mxu0 0
    %3327 = vmatpush1.bf16.xpose.msra.mxu0 %v3322
    %3328 = vmatprep.subr.bf16.mxu0 0
    %3329 = vmatpush1.bf16.xpose.msra.mxu0 0
    %3330 = vmatprep.subr.bf16.mxu0 0
    %3331 = vmatpush1.bf16.xpose.msra.mxu0 0
    %3332 = vmatprep.subr.bf16.mxu0 0
    %3333 = vmatpush1.bf16.xpose.msra.mxu0 0
    %3334 = vmatprep.subr.bf16.mxu0 0
    %3335 = vmatpush1.bf16.xpose.msra.mxu0 0
    %3336 = vmatprep.subr.bf16.mxu0 0
    %3337 = vmatpush1.bf16.xpose.msra.mxu0 0
    %3338 = vmatprep.subr.bf16.mxu0 0
    %3339 = vmatpush1.bf16.xpose.msra.mxu0 0
    %3340 = vmatprep.subr.bf16.mxu0 0
    %3341 = vmatpush1.bf16.xpose.msra.mxu0 0
    %3342 = vmatprep.subr.bf16.mxu0 0
    %3343 = vmatpush1.bf16.xpose.msra.mxu0 0
    %3344 = vmatprep.subr.bf16.mxu0 0
    %3345 = vmatpush1.bf16.xpose.msra.mxu0 0
    %3346 = vmatprep.subr.bf16.mxu0 0
    %3347 = vmatpush1.bf16.xpose.msra.mxu0 0
    %3348 = vmatprep.subr.bf16.mxu0 0
    %3349 = vmatpush1.bf16.xpose.msra.mxu0 0
    %3350 = vmatprep.subr.bf16.mxu0 0
    %3351 = vmatpush1.bf16.xpose.msra.mxu0 0
    %3352 = vmatprep.subr.bf16.mxu0 0
    %3353 = vmatpush1.bf16.xpose.msra.mxu0 0
    %3354 = vmatprep.subr.bf16.mxu0 0
    %3355 = vmatpush1.bf16.xpose.msra.mxu0 0
    %3356 = vmatprep.mubr.bf16.mxu0 0
    %3357 = vmatmul.mubr.bf16.gmra.mrb[0].mxu0 %v3313
    %v3358 = vpop.f32.mrb[0].mxu0
    %v3359 = vadd.f32 0.0, %v3358
    %v3360 = vpop.f32.mrb[0].mxu0
    %v3361 = vpop.f32.mrb[0].mxu0
    %v3362 = vadd.f32 0.0, %v3361
    %v3363 = vpop.f32.mrb[0].mxu0
    %3364 = vmatprep.mubr.bf16.mxu0 0
    %3365 = vmatmul.mubr.bf16.gmra.mrb[0].mxu0 %v3316
    %v3366 = vpop.f32.mrb[0].mxu0
    %v3367 = vadd.f32 0.0, %v3366
    %v3368 = vpop.f32.mrb[0].mxu0
    %v3369 = vpop.f32.mrb[0].mxu0
    %v3370 = vpop.f32.mrb[0].mxu0
    %3371 = vdwg.mxu0
    %v3372 = vmul.f32 %v3291, 0.25
    %v3373 = vmul.f32 %v3294, 0.25
    %v3374 = vmul.f32 %v3299, 0.25
    %v3375 = vmul.f32 %v3359, 0.25
    %v3376 = vmul.f32 %v3362, 0.25
    %v3377 = vmul.f32 %v3367, 0.25
    %v3378 = vadd.f32 %v3372, %v326
    %v3379 = vadd.f32 %v3373, %v326
    %v3380 = vadd.f32 %v3374, %v326
    %v3381 = vadd.f32 %v3375, %v326
    %v3382 = vadd.f32 %v3376, %v326
    %v3383 = vadd.f32 %v3377, %v326
    %v3384 = vsel %vm716, %v3378, -inf
    %3385 = vmax.xlane.f32.xlu0 %v3384
    %v3386 = vpop.xlane.xlu0 %3385
    %v3387 = vsel %vm716, %v3379, -inf
    %3388 = vmax.xlane.f32.xlu0 %v3387
    %v3389 = vpop.xlane.xlu0 %3388
    %v3390 = vsel %vm716, %v3380, -inf
    %3391 = vmax.xlane.f32.xlu0 %v3390
    %v3392 = vpop.xlane.xlu0 %3391
    %v3393 = vsel %vm716, %v3381, -inf
    %3394 = vmax.xlane.f32.xlu0 %v3393
    %v3395 = vpop.xlane.xlu0 %3394
    %v3396 = vsel %vm716, %v3382, -inf
    %3397 = vmax.xlane.f32.xlu0 %v3396
    %v3398 = vpop.xlane.xlu0 %3397
    %v3399 = vsel %vm716, %v3383, -inf
    %3400 = vmax.xlane.f32.xlu0 %v3399
    %v3401 = vpop.xlane.xlu0 %3400
    %v3402 = vsub.f32 %v3378, %v3386
    %v3403 = vsub.f32 %v3379, %v3389
    %v3404 = vsub.f32 %v3380, %v3392
    %v3405 = vsub.f32 %v3381, %v3395
    %v3406 = vsub.f32 %v3382, %v3398
    %v3407 = vsub.f32 %v3383, %v3401
    %v3408 = vmul.f32 %v3402, 1.442695
    %v3409 = vpow.pop %v3408
    %v3410 = vmul.f32 %v3403, 1.442695
    %v3411 = vpow.pop %v3410
    %v3412 = vmul.f32 %v3404, 1.442695
    %v3413 = vpow.pop %v3412
    %v3414 = vmul.f32 %v3405, 1.442695
    %v3415 = vpow.pop %v3414
    %v3416 = vmul.f32 %v3406, 1.442695
    %v3417 = vpow.pop %v3416
    %v3418 = vmul.f32 %v3407, 1.442695
    %v3419 = vpow.pop %v3418
    %v3420 = vsel %vm716, %v3409, 0.0
    %3421 = vadd.xlane.f32.xlu0 %v3420
    %v3422 = vpop.xlane.xlu0 %3421
    %v3423 = vsel %vm716, %v3411, 0.0
    %3424 = vadd.xlane.f32.xlu0 %v3423
    %v3425 = vpop.xlane.xlu0 %3424
    %v3426 = vsel %vm716, %v3413, 0.0
    %3427 = vadd.xlane.f32.xlu0 %v3426
    %v3428 = vpop.xlane.xlu0 %3427
    %v3429 = vsel %vm716, %v3415, 0.0
    %3430 = vadd.xlane.f32.xlu0 %v3429
    %v3431 = vpop.xlane.xlu0 %3430
    %v3432 = vsel %vm716, %v3417, 0.0
    %3433 = vadd.xlane.f32.xlu0 %v3432
    %v3434 = vpop.xlane.xlu0 %3433
    %v3435 = vsel %vm716, %v3419, 0.0
    %3436 = vadd.xlane.f32.xlu0 %v3435
    %v3437 = vpop.xlane.xlu0 %3436
    %v3438 = vrcp.pop %v3422
    %v3439 = vmul.f32 %v3409, %v3438
    %v3440 = vrcp.pop %v3425
    %v3441 = vmul.f32 %v3411, %v3440
    %v3442 = vrcp.pop %v3428
    %v3443 = vmul.f32 %v3413, %v3442
    %v3444 = vrcp.pop %v3431
    %v3445 = vmul.f32 %v3415, %v3444
    %v3446 = vrcp.pop %v3434
    %v3447 = vmul.f32 %v3417, %v3446
    %v3448 = vrcp.pop %v3437
    %v3449 = vmul.f32 %v3419, %v3448
    %v3450 = vpack.c.bf16 %v3441, %v3439
    %v3451 = vpack.c.bf16 %v3443, %v3443
    %v3452 = vpack.c.bf16 %v3447, %v3445
    %v3453 = vpack.c.bf16 %v3449, %v3449
    %3456 = vrot.lane.b32.xlu0 %v3118, 112
    %v3457 = vpop.permute.xlu0 %3456
    %3458 = vrot.lane.b32.xlu0 %v3119, 112
    %v3459 = vpop.permute.xlu0 %3458
    %v3462 = vsel %vm716, %v3450, 0
    %v3465 = vsel %vm716, %v3451, 0
    %v3468 = vsel %vm797, %v3459, 0
    %3470 = vmatprep.subr.bf16.mxu0 0
    %3471 = vmatpush1.bf16.msra.mxu0 %v3457
    %3472 = vmatprep.subr.bf16.mxu0 0
    %3473 = vmatpush1.bf16.msra.mxu0 %v3468
    %3474 = vmatprep.subr.bf16.mxu0 0
    %3475 = vmatpush1.bf16.msra.mxu0 0
    %3476 = vmatprep.subr.bf16.mxu0 0
    %3477 = vmatpush1.bf16.msra.mxu0 0
    %3478 = vmatprep.subr.bf16.mxu0 0
    %3479 = vmatpush1.bf16.msra.mxu0 0
    %3480 = vmatprep.subr.bf16.mxu0 0
    %3481 = vmatpush1.bf16.msra.mxu0 0
    %3482 = vmatprep.subr.bf16.mxu0 0
    %3483 = vmatpush1.bf16.msra.mxu0 0
    %3484 = vmatprep.subr.bf16.mxu0 0
    %3485 = vmatpush1.bf16.msra.mxu0 0
    %3486 = vmatprep.subr.bf16.mxu0 0
    %3487 = vmatpush1.bf16.msra.mxu0 0
    %3488 = vmatprep.subr.bf16.mxu0 0
    %3489 = vmatpush1.bf16.msra.mxu0 0
    %3490 = vmatprep.subr.bf16.mxu0 0
    %3491 = vmatpush1.bf16.msra.mxu0 0
    %3492 = vmatprep.subr.bf16.mxu0 0
    %3493 = vmatpush1.bf16.msra.mxu0 0
    %3494 = vmatprep.subr.bf16.mxu0 0
    %3495 = vmatpush1.bf16.msra.mxu0 0
    %3496 = vmatprep.subr.bf16.mxu0 0
    %3497 = vmatpush1.bf16.msra.mxu0 0
    %3498 = vmatprep.subr.bf16.mxu0 0
    %3499 = vmatpush1.bf16.msra.mxu0 0
    %3500 = vmatprep.subr.bf16.mxu0 0
    %3501 = vmatpush1.bf16.msra.mxu0 0
    %3502 = vmatprep.mubr.bf16.mxu0 0
    %3503 = vmatmul.mubr.bf16.gmra.mrb[0].mxu0 %v3462
    %v3504 = vpop.f32.mrb[0].mxu0
    %v3505 = vadd.f32 0.0, %v3504
    %v3506 = vpop.f32.mrb[0].mxu0
    %v3507 = vpop.f32.mrb[0].mxu0
    %v3508 = vadd.f32 0.0, %v3507
    %v3509 = vpop.f32.mrb[0].mxu0
    %3510 = vmatprep.mubr.bf16.mxu0 0
    %3511 = vmatmul.mubr.bf16.gmra.mrb[0].mxu0 %v3465
    %v3512 = vpop.f32.mrb[0].mxu0
    %v3513 = vadd.f32 0.0, %v3512
    %v3514 = vpop.f32.mrb[0].mxu0
    %v3515 = vpop.f32.mrb[0].mxu0
    %v3516 = vpop.f32.mrb[0].mxu0
    %3517 = vdwg.mxu0
    %3520 = vrot.lane.b32.xlu0 %v3120, 112
    %v3521 = vpop.permute.xlu0 %3520
    %3522 = vrot.lane.b32.xlu0 %v3121, 112
    %v3523 = vpop.permute.xlu0 %3522
    %v3526 = vsel %vm716, %v3452, 0
    %v3529 = vsel %vm716, %v3453, 0
    %v3532 = vsel %vm797, %v3523, 0
    %3534 = vmatprep.subr.bf16.mxu0 0
    %3535 = vmatpush1.bf16.msra.mxu0 %v3521
    %3536 = vmatprep.subr.bf16.mxu0 0
    %3537 = vmatpush1.bf16.msra.mxu0 %v3532
    %3538 = vmatprep.subr.bf16.mxu0 0
    %3539 = vmatpush1.bf16.msra.mxu0 0
    %3540 = vmatprep.subr.bf16.mxu0 0
    %3541 = vmatpush1.bf16.msra.mxu0 0
    %3542 = vmatprep.subr.bf16.mxu0 0
    %3543 = vmatpush1.bf16.msra.mxu0 0
    %3544 = vmatprep.subr.bf16.mxu0 0
    %3545 = vmatpush1.bf16.msra.mxu0 0
    %3546 = vmatprep.subr.bf16.mxu0 0
    %3547 = vmatpush1.bf16.msra.mxu0 0
    %3548 = vmatprep.subr.bf16.mxu0 0
    %3549 = vmatpush1.bf16.msra.mxu0 0
    %3550 = vmatprep.subr.bf16.mxu0 0
    %3551 = vmatpush1.bf16.msra.mxu0 0
    %3552 = vmatprep.subr.bf16.mxu0 0
    %3553 = vmatpush1.bf16.msra.mxu0 0
    %3554 = vmatprep.subr.bf16.mxu0 0
    %3555 = vmatpush1.bf16.msra.mxu0 0
    %3556 = vmatprep.subr.bf16.mxu0 0
    %3557 = vmatpush1.bf16.msra.mxu0 0
    %3558 = vmatprep.subr.bf16.mxu0 0
    %3559 = vmatpush1.bf16.msra.mxu0 0
    %3560 = vmatprep.subr.bf16.mxu0 0
    %3561 = vmatpush1.bf16.msra.mxu0 0
    %3562 = vmatprep.subr.bf16.mxu0 0
    %3563 = vmatpush1.bf16.msra.mxu0 0
    %3564 = vmatprep.subr.bf16.mxu0 0
    %3565 = vmatpush1.bf16.msra.mxu0 0
    %3566 = vmatprep.mubr.bf16.mxu0 0
    %3567 = vmatmul.mubr.bf16.gmra.mrb[0].mxu0 %v3526
    %v3568 = vpop.f32.mrb[0].mxu0
    %v3569 = vadd.f32 0.0, %v3568
    %v3570 = vpop.f32.mrb[0].mxu0
    %v3571 = vpop.f32.mrb[0].mxu0
    %v3572 = vadd.f32 0.0, %v3571
    %v3573 = vpop.f32.mrb[0].mxu0
    %3574 = vmatprep.mubr.bf16.mxu0 0
    %3575 = vmatmul.mubr.bf16.gmra.mrb[0].mxu0 %v3529
    %v3576 = vpop.f32.mrb[0].mxu0
    %v3577 = vadd.f32 0.0, %v3576
    %v3578 = vpop.f32.mrb[0].mxu0
    %v3579 = vpop.f32.mrb[0].mxu0
    %v3580 = vpop.f32.mrb[0].mxu0
    %3581 = vdwg.mxu0
    %3582 = vrot.lane.b32.xlu0 %v2900, 96
    %v3583 = vpop.permute.xlu0 %3582
    %3584 = vrot.lane.b32.xlu0 %v2901, 96
    %v3585 = vpop.permute.xlu0 %3584
    %3586 = vrot.lane.b32.xlu0 %v2900, 32
    %v3587 = vpop.permute.xlu0 %3586
    %3588 = vrot.lane.b32.xlu0 %v2901, 32
    %v3589 = vpop.permute.xlu0 %3588
    %v3591 = vsel %vm577, %v3583, 0
    %v3594 = vsel %vm577, %v3585, 0
    %v3597 = vsel %vm577, %v3587, 0
    %v3600 = vsel %vm577, %v3589, 0
    %3602 = vmatprep.subr.bf16.mxu0 0
    %3603 = vmatpush1.bf16.xpose.msra.mxu0 %v3597
    %3604 = vmatprep.subr.bf16.mxu0 0
    %3605 = vmatpush1.bf16.xpose.msra.mxu0 %v3600
    %3606 = vmatprep.subr.bf16.mxu0 0
    %3607 = vmatpush1.bf16.xpose.msra.mxu0 0
    %3608 = vmatprep.subr.bf16.mxu0 0
    %3609 = vmatpush1.bf16.xpose.msra.mxu0 0
    %3610 = vmatprep.subr.bf16.mxu0 0
    %3611 = vmatpush1.bf16.xpose.msra.mxu0 0
    %3612 = vmatprep.subr.bf16.mxu0 0
    %3613 = vmatpush1.bf16.xpose.msra.mxu0 0
    %3614 = vmatprep.subr.bf16.mxu0 0
    %3615 = vmatpush1.bf16.xpose.msra.mxu0 0
    %3616 = vmatprep.subr.bf16.mxu0 0
    %3617 = vmatpush1.bf16.xpose.msra.mxu0 0
    %3618 = vmatprep.subr.bf16.mxu0 0
    %3619 = vmatpush1.bf16.xpose.msra.mxu0 0
    %3620 = vmatprep.subr.bf16.mxu0 0
    %3621 = vmatpush1.bf16.xpose.msra.mxu0 0
    %3622 = vmatprep.subr.bf16.mxu0 0
    %3623 = vmatpush1.bf16.xpose.msra.mxu0 0
    %3624 = vmatprep.subr.bf16.mxu0 0
    %3625 = vmatpush1.bf16.xpose.msra.mxu0 0
    %3626 = vmatprep.subr.bf16.mxu0 0
    %3627 = vmatpush1.bf16.xpose.msra.mxu0 0
    %3628 = vmatprep.subr.bf16.mxu0 0
    %3629 = vmatpush1.bf16.xpose.msra.mxu0 0
    %3630 = vmatprep.subr.bf16.mxu0 0
    %3631 = vmatpush1.bf16.xpose.msra.mxu0 0
    %3632 = vmatprep.subr.bf16.mxu0 0
    %3633 = vmatpush1.bf16.xpose.msra.mxu0 0
    %3634 = vmatprep.mubr.bf16.mxu0 0
    %3635 = vmatmul.mubr.bf16.gmra.mrb[0].mxu0 %v3591
    %v3636 = vpop.f32.mrb[0].mxu0
    %v3637 = vadd.f32 0.0, %v3636
    %v3638 = vpop.f32.mrb[0].mxu0
    %v3639 = vpop.f32.mrb[0].mxu0
    %v3640 = vadd.f32 0.0, %v3639
    %v3641 = vpop.f32.mrb[0].mxu0
    %3642 = vmatprep.mubr.bf16.mxu0 0
    %3643 = vmatmul.mubr.bf16.gmra.mrb[0].mxu0 %v3594
    %v3644 = vpop.f32.mrb[0].mxu0
    %v3645 = vadd.f32 0.0, %v3644
    %v3646 = vpop.f32.mrb[0].mxu0
    %v3647 = vpop.f32.mrb[0].mxu0
    %v3648 = vpop.f32.mrb[0].mxu0
    %3649 = vdwg.mxu0
    %3650 = vrot.lane.b32.xlu0 %v2902, 96
    %v3651 = vpop.permute.xlu0 %3650
    %3652 = vrot.lane.b32.xlu0 %v2903, 96
    %v3653 = vpop.permute.xlu0 %3652
    %3654 = vrot.lane.b32.xlu0 %v2902, 32
    %v3655 = vpop.permute.xlu0 %3654
    %3656 = vrot.lane.b32.xlu0 %v2903, 32
    %v3657 = vpop.permute.xlu0 %3656
    %v3659 = vsel %vm577, %v3651, 0
    %v3662 = vsel %vm577, %v3653, 0
    %v3665 = vsel %vm577, %v3655, 0
    %v3668 = vsel %vm577, %v3657, 0
    %3670 = vmatprep.subr.bf16.mxu0 0
    %3671 = vmatpush1.bf16.xpose.msra.mxu0 %v3665
    %3672 = vmatprep.subr.bf16.mxu0 0
    %3673 = vmatpush1.bf16.xpose.msra.mxu0 %v3668
    %3674 = vmatprep.subr.bf16.mxu0 0
    %3675 = vmatpush1.bf16.xpose.msra.mxu0 0
    %3676 = vmatprep.subr.bf16.mxu0 0
    %3677 = vmatpush1.bf16.xpose.msra.mxu0 0
    %3678 = vmatprep.subr.bf16.mxu0 0
    %3679 = vmatpush1.bf16.xpose.msra.mxu0 0
    %3680 = vmatprep.subr.bf16.mxu0 0
    %3681 = vmatpush1.bf16.xpose.msra.mxu0 0
    %3682 = vmatprep.subr.bf16.mxu0 0
    %3683 = vmatpush1.bf16.xpose.msra.mxu0 0
    %3684 = vmatprep.subr.bf16.mxu0 0
    %3685 = vmatpush1.bf16.xpose.msra.mxu0 0
    %3686 = vmatprep.subr.bf16.mxu0 0
    %3687 = vmatpush1.bf16.xpose.msra.mxu0 0
    %3688 = vmatprep.subr.bf16.mxu0 0
    %3689 = vmatpush1.bf16.xpose.msra.mxu0 0
    %3690 = vmatprep.subr.bf16.mxu0 0
    %3691 = vmatpush1.bf16.xpose.msra.mxu0 0
    %3692 = vmatprep.subr.bf16.mxu0 0
    %3693 = vmatpush1.bf16.xpose.msra.mxu0 0
    %3694 = vmatprep.subr.bf16.mxu0 0
    %3695 = vmatpush1.bf16.xpose.msra.mxu0 0
    %3696 = vmatprep.subr.bf16.mxu0 0
    %3697 = vmatpush1.bf16.xpose.msra.mxu0 0
    %3698 = vmatprep.subr.bf16.mxu0 0
    %3699 = vmatpush1.bf16.xpose.msra.mxu0 0
    %3700 = vmatprep.subr.bf16.mxu0 0
    %3701 = vmatpush1.bf16.xpose.msra.mxu0 0
    %3702 = vmatprep.mubr.bf16.mxu0 0
    %3703 = vmatmul.mubr.bf16.gmra.mrb[0].mxu0 %v3659
    %v3704 = vpop.f32.mrb[0].mxu0
    %v3705 = vadd.f32 0.0, %v3704
    %v3706 = vpop.f32.mrb[0].mxu0
    %v3707 = vpop.f32.mrb[0].mxu0
    %v3708 = vadd.f32 0.0, %v3707
    %v3709 = vpop.f32.mrb[0].mxu0
    %3710 = vmatprep.mubr.bf16.mxu0 0
    %3711 = vmatmul.mubr.bf16.gmra.mrb[0].mxu0 %v3662
    %v3712 = vpop.f32.mrb[0].mxu0
    %v3713 = vadd.f32 0.0, %v3712
    %v3714 = vpop.f32.mrb[0].mxu0
    %v3715 = vpop.f32.mrb[0].mxu0
    %v3716 = vpop.f32.mrb[0].mxu0
    %3717 = vdwg.mxu0
    %v3718 = vmul.f32 %v3637, 0.25
    %v3719 = vmul.f32 %v3640, 0.25
    %v3720 = vmul.f32 %v3645, 0.25
    %v3721 = vmul.f32 %v3705, 0.25
    %v3722 = vmul.f32 %v3708, 0.25
    %v3723 = vmul.f32 %v3713, 0.25
    %v3724 = vadd.f32 %v3718, %v326
    %v3725 = vadd.f32 %v3719, %v326
    %v3726 = vadd.f32 %v3720, %v326
    %v3727 = vadd.f32 %v3721, %v326
    %v3728 = vadd.f32 %v3722, %v326
    %v3729 = vadd.f32 %v3723, %v326
    %v3730 = vsel %vm716, %v3724, -inf
    %3731 = vmax.xlane.f32.xlu0 %v3730
    %v3732 = vpop.xlane.xlu0 %3731
    %v3733 = vsel %vm716, %v3725, -inf
    %3734 = vmax.xlane.f32.xlu0 %v3733
    %v3735 = vpop.xlane.xlu0 %3734
    %v3736 = vsel %vm716, %v3726, -inf
    %3737 = vmax.xlane.f32.xlu0 %v3736
    %v3738 = vpop.xlane.xlu0 %3737
    %v3739 = vsel %vm716, %v3727, -inf
    %3740 = vmax.xlane.f32.xlu0 %v3739
    %v3741 = vpop.xlane.xlu0 %3740
    %v3742 = vsel %vm716, %v3728, -inf
    %3743 = vmax.xlane.f32.xlu0 %v3742
    %v3744 = vpop.xlane.xlu0 %3743
    %v3745 = vsel %vm716, %v3729, -inf
    %3746 = vmax.xlane.f32.xlu0 %v3745
    %v3747 = vpop.xlane.xlu0 %3746
    %v3748 = vsub.f32 %v3724, %v3732
    %v3749 = vsub.f32 %v3725, %v3735
    %v3750 = vsub.f32 %v3726, %v3738
    %v3751 = vsub.f32 %v3727, %v3741
    %v3752 = vsub.f32 %v3728, %v3744
    %v3753 = vsub.f32 %v3729, %v3747
    %v3754 = vmul.f32 %v3748, 1.442695
    %v3755 = vpow.pop %v3754
    %v3756 = vmul.f32 %v3749, 1.442695
    %v3757 = vpow.pop %v3756
    %v3758 = vmul.f32 %v3750, 1.442695
    %v3759 = vpow.pop %v3758
    %v3760 = vmul.f32 %v3751, 1.442695
    %v3761 = vpow.pop %v3760
    %v3762 = vmul.f32 %v3752, 1.442695
    %v3763 = vpow.pop %v3762
    %v3764 = vmul.f32 %v3753, 1.442695
    %v3765 = vpow.pop %v3764
    %v3766 = vsel %vm716, %v3755, 0.0
    %3767 = vadd.xlane.f32.xlu0 %v3766
    %v3768 = vpop.xlane.xlu0 %3767
    %v3769 = vsel %vm716, %v3757, 0.0
    %3770 = vadd.xlane.f32.xlu0 %v3769
    %v3771 = vpop.xlane.xlu0 %3770
    %v3772 = vsel %vm716, %v3759, 0.0
    %3773 = vadd.xlane.f32.xlu0 %v3772
    %v3774 = vpop.xlane.xlu0 %3773
    %v3775 = vsel %vm716, %v3761, 0.0
    %3776 = vadd.xlane.f32.xlu0 %v3775
    %v3777 = vpop.xlane.xlu0 %3776
    %v3778 = vsel %vm716, %v3763, 0.0
    %3779 = vadd.xlane.f32.xlu0 %v3778
    %v3780 = vpop.xlane.xlu0 %3779
    %v3781 = vsel %vm716, %v3765, 0.0
    %3782 = vadd.xlane.f32.xlu0 %v3781
    %v3783 = vpop.xlane.xlu0 %3782
    %v3784 = vrcp.pop %v3768
    %v3785 = vmul.f32 %v3755, %v3784
    %v3786 = vrcp.pop %v3771
    %v3787 = vmul.f32 %v3757, %v3786
    %v3788 = vrcp.pop %v3774
    %v3789 = vmul.f32 %v3759, %v3788
    %v3790 = vrcp.pop %v3777
    %v3791 = vmul.f32 %v3761, %v3790
    %v3792 = vrcp.pop %v3780
    %v3793 = vmul.f32 %v3763, %v3792
    %v3794 = vrcp.pop %v3783
    %v3795 = vmul.f32 %v3765, %v3794
    %v3796 = vpack.c.bf16 %v3787, %v3785
    %v3797 = vpack.c.bf16 %v3789, %v3789
    %v3798 = vpack.c.bf16 %v3793, %v3791
    %v3799 = vpack.c.bf16 %v3795, %v3795
    %3800 = vrot.lane.b32.xlu0 %v3118, 96
    %v3801 = vpop.permute.xlu0 %3800
    %3802 = vrot.lane.b32.xlu0 %v3119, 96
    %v3803 = vpop.permute.xlu0 %3802
    %v3806 = vsel %vm716, %v3796, 0
    %v3809 = vsel %vm716, %v3797, 0
    %v3812 = vsel %vm797, %v3803, 0
    %3814 = vmatprep.subr.bf16.mxu0 0
    %3815 = vmatpush1.bf16.msra.mxu0 %v3801
    %3816 = vmatprep.subr.bf16.mxu0 0
    %3817 = vmatpush1.bf16.msra.mxu0 %v3812
    %3818 = vmatprep.subr.bf16.mxu0 0
    %3819 = vmatpush1.bf16.msra.mxu0 0
    %3820 = vmatprep.subr.bf16.mxu0 0
    %3821 = vmatpush1.bf16.msra.mxu0 0
    %3822 = vmatprep.subr.bf16.mxu0 0
    %3823 = vmatpush1.bf16.msra.mxu0 0
    %3824 = vmatprep.subr.bf16.mxu0 0
    %3825 = vmatpush1.bf16.msra.mxu0 0
    %3826 = vmatprep.subr.bf16.mxu0 0
    %3827 = vmatpush1.bf16.msra.mxu0 0
    %3828 = vmatprep.subr.bf16.mxu0 0
    %3829 = vmatpush1.bf16.msra.mxu0 0
    %3830 = vmatprep.subr.bf16.mxu0 0
    %3831 = vmatpush1.bf16.msra.mxu0 0
    %3832 = vmatprep.subr.bf16.mxu0 0
    %3833 = vmatpush1.bf16.msra.mxu0 0
    %3834 = vmatprep.subr.bf16.mxu0 0
    %3835 = vmatpush1.bf16.msra.mxu0 0
    %3836 = vmatprep.subr.bf16.mxu0 0
    %3837 = vmatpush1.bf16.msra.mxu0 0
    %3838 = vmatprep.subr.bf16.mxu0 0
    %3839 = vmatpush1.bf16.msra.mxu0 0
    %3840 = vmatprep.subr.bf16.mxu0 0
    %3841 = vmatpush1.bf16.msra.mxu0 0
    %3842 = vmatprep.subr.bf16.mxu0 0
    %3843 = vmatpush1.bf16.msra.mxu0 0
    %3844 = vmatprep.subr.bf16.mxu0 0
    %3845 = vmatpush1.bf16.msra.mxu0 0
    %3846 = vmatprep.mubr.bf16.mxu0 0
    %3847 = vmatmul.mubr.bf16.gmra.mrb[0].mxu0 %v3806
    %v3848 = vpop.f32.mrb[0].mxu0
    %v3849 = vadd.f32 0.0, %v3848
    %v3850 = vpop.f32.mrb[0].mxu0
    %v3851 = vpop.f32.mrb[0].mxu0
    %v3852 = vadd.f32 0.0, %v3851
    %v3853 = vpop.f32.mrb[0].mxu0
    %3854 = vmatprep.mubr.bf16.mxu0 0
    %3855 = vmatmul.mubr.bf16.gmra.mrb[0].mxu0 %v3809
    %v3856 = vpop.f32.mrb[0].mxu0
    %v3857 = vadd.f32 0.0, %v3856
    %v3858 = vpop.f32.mrb[0].mxu0
    %v3859 = vpop.f32.mrb[0].mxu0
    %v3860 = vpop.f32.mrb[0].mxu0
    %3861 = vdwg.mxu0
    %3862 = vrot.lane.b32.xlu0 %v3120, 96
    %v3863 = vpop.permute.xlu0 %3862
    %3864 = vrot.lane.b32.xlu0 %v3121, 96
    %v3865 = vpop.permute.xlu0 %3864
    %v3868 = vsel %vm716, %v3798, 0
    %v3871 = vsel %vm716, %v3799, 0
    %v3874 = vsel %vm797, %v3865, 0
    %3876 = vmatprep.subr.bf16.mxu0 0
    %3877 = vmatpush1.bf16.msra.mxu0 %v3863
    %3878 = vmatprep.subr.bf16.mxu0 0
    %3879 = vmatpush1.bf16.msra.mxu0 %v3874
    %3880 = vmatprep.subr.bf16.mxu0 0
    %3881 = vmatpush1.bf16.msra.mxu0 0
    %3882 = vmatprep.subr.bf16.mxu0 0
    %3883 = vmatpush1.bf16.msra.mxu0 0
    %3884 = vmatprep.subr.bf16.mxu0 0
    %3885 = vmatpush1.bf16.msra.mxu0 0
    %3886 = vmatprep.subr.bf16.mxu0 0
    %3887 = vmatpush1.bf16.msra.mxu0 0
    %3888 = vmatprep.subr.bf16.mxu0 0
    %3889 = vmatpush1.bf16.msra.mxu0 0
    %3890 = vmatprep.subr.bf16.mxu0 0
    %3891 = vmatpush1.bf16.msra.mxu0 0
    %3892 = vmatprep.subr.bf16.mxu0 0
    %3893 = vmatpush1.bf16.msra.mxu0 0
    %3894 = vmatprep.subr.bf16.mxu0 0
    %3895 = vmatpush1.bf16.msra.mxu0 0
    %3896 = vmatprep.subr.bf16.mxu0 0
    %3897 = vmatpush1.bf16.msra.mxu0 0
    %3898 = vmatprep.subr.bf16.mxu0 0
    %3899 = vmatpush1.bf16.msra.mxu0 0
    %3900 = vmatprep.subr.bf16.mxu0 0
    %3901 = vmatpush1.bf16.msra.mxu0 0
    %3902 = vmatprep.subr.bf16.mxu0 0
    %3903 = vmatpush1.bf16.msra.mxu0 0
    %3904 = vmatprep.subr.bf16.mxu0 0
    %3905 = vmatpush1.bf16.msra.mxu0 0
    %3906 = vmatprep.subr.bf16.mxu0 0
    %3907 = vmatpush1.bf16.msra.mxu0 0
    %3908 = vmatprep.mubr.bf16.mxu0 0
    %3909 = vmatmul.mubr.bf16.gmra.mrb[0].mxu0 %v3868
    %v3910 = vpop.f32.mrb[0].mxu0
    %v3911 = vadd.f32 0.0, %v3910
    %v3912 = vpop.f32.mrb[0].mxu0
    %v3913 = vpop.f32.mrb[0].mxu0
    %v3914 = vadd.f32 0.0, %v3913
    %v3915 = vpop.f32.mrb[0].mxu0
    %3916 = vmatprep.mubr.bf16.mxu0 0
    %3917 = vmatmul.mubr.bf16.gmra.mrb[0].mxu0 %v3871
    %v3918 = vpop.f32.mrb[0].mxu0
    %v3919 = vadd.f32 0.0, %v3918
    %v3920 = vpop.f32.mrb[0].mxu0
    %v3921 = vpop.f32.mrb[0].mxu0
    %v3922 = vpop.f32.mrb[0].mxu0
    %3923 = vdwg.mxu0
    %3924 = vrot.lane.b32.xlu0 %v2900, 80
    %v3925 = vpop.permute.xlu0 %3924
    %3926 = vrot.lane.b32.xlu0 %v2901, 80
    %v3927 = vpop.permute.xlu0 %3926
    %3928 = vrot.lane.b32.xlu0 %v2900, 16
    %v3929 = vpop.permute.xlu0 %3928
    %3930 = vrot.lane.b32.xlu0 %v2901, 16
    %v3931 = vpop.permute.xlu0 %3930
    %v3933 = vsel %vm577, %v3925, 0
    %v3936 = vsel %vm577, %v3927, 0
    %v3939 = vsel %vm577, %v3929, 0
    %v3942 = vsel %vm577, %v3931, 0
    %3944 = vmatprep.subr.bf16.mxu0 0
    %3945 = vmatpush1.bf16.xpose.msra.mxu0 %v3939
    %3946 = vmatprep.subr.bf16.mxu0 0
    %3947 = vmatpush1.bf16.xpose.msra.mxu0 %v3942
    %3948 = vmatprep.subr.bf16.mxu0 0
    %3949 = vmatpush1.bf16.xpose.msra.mxu0 0
    %3950 = vmatprep.subr.bf16.mxu0 0
    %3951 = vmatpush1.bf16.xpose.msra.mxu0 0
    %3952 = vmatprep.subr.bf16.mxu0 0
    %3953 = vmatpush1.bf16.xpose.msra.mxu0 0
    %3954 = vmatprep.subr.bf16.mxu0 0
    %3955 = vmatpush1.bf16.xpose.msra.mxu0 0
    %3956 = vmatprep.subr.bf16.mxu0 0
    %3957 = vmatpush1.bf16.xpose.msra.mxu0 0
    %3958 = vmatprep.subr.bf16.mxu0 0
    %3959 = vmatpush1.bf16.xpose.msra.mxu0 0
    %3960 = vmatprep.subr.bf16.mxu0 0
    %3961 = vmatpush1.bf16.xpose.msra.mxu0 0
    %3962 = vmatprep.subr.bf16.mxu0 0
    %3963 = vmatpush1.bf16.xpose.msra.mxu0 0
    %3964 = vmatprep.subr.bf16.mxu0 0
    %3965 = vmatpush1.bf16.xpose.msra.mxu0 0
    %3966 = vmatprep.subr.bf16.mxu0 0
    %3967 = vmatpush1.bf16.xpose.msra.mxu0 0
    %3968 = vmatprep.subr.bf16.mxu0 0
    %3969 = vmatpush1.bf16.xpose.msra.mxu0 0
    %3970 = vmatprep.subr.bf16.mxu0 0
    %3971 = vmatpush1.bf16.xpose.msra.mxu0 0
    %3972 = vmatprep.subr.bf16.mxu0 0
    %3973 = vmatpush1.bf16.xpose.msra.mxu0 0
    %3974 = vmatprep.subr.bf16.mxu0 0
    %3975 = vmatpush1.bf16.xpose.msra.mxu0 0
    %3976 = vmatprep.mubr.bf16.mxu0 0
    %3977 = vmatmul.mubr.bf16.gmra.mrb[0].mxu0 %v3933
    %v3978 = vpop.f32.mrb[0].mxu0
    %v3979 = vadd.f32 0.0, %v3978
    %v3980 = vpop.f32.mrb[0].mxu0
    %v3981 = vpop.f32.mrb[0].mxu0
    %v3982 = vadd.f32 0.0, %v3981
    %v3983 = vpop.f32.mrb[0].mxu0
    %3984 = vmatprep.mubr.bf16.mxu0 0
    %3985 = vmatmul.mubr.bf16.gmra.mrb[0].mxu0 %v3936
    %v3986 = vpop.f32.mrb[0].mxu0
    %v3987 = vadd.f32 0.0, %v3986
    %v3988 = vpop.f32.mrb[0].mxu0
    %v3989 = vpop.f32.mrb[0].mxu0
    %v3990 = vpop.f32.mrb[0].mxu0
    %3991 = vdwg.mxu0
    %3992 = vrot.lane.b32.xlu0 %v2902, 80
    %v3993 = vpop.permute.xlu0 %3992
    %3994 = vrot.lane.b32.xlu0 %v2903, 80
    %v3995 = vpop.permute.xlu0 %3994
    %3996 = vrot.lane.b32.xlu0 %v2902, 16
    %v3997 = vpop.permute.xlu0 %3996
    %3998 = vrot.lane.b32.xlu0 %v2903, 16
    %v3999 = vpop.permute.xlu0 %3998
    %v4001 = vsel %vm577, %v3993, 0
    %v4004 = vsel %vm577, %v3995, 0
    %v4007 = vsel %vm577, %v3997, 0
    %v4010 = vsel %vm577, %v3999, 0
    %4012 = vmatprep.subr.bf16.mxu0 0
    %4013 = vmatpush1.bf16.xpose.msra.mxu0 %v4007
    %4014 = vmatprep.subr.bf16.mxu0 0
    %4015 = vmatpush1.bf16.xpose.msra.mxu0 %v4010
    %4016 = vmatprep.subr.bf16.mxu0 0
    %4017 = vmatpush1.bf16.xpose.msra.mxu0 0
    %4018 = vmatprep.subr.bf16.mxu0 0
    %4019 = vmatpush1.bf16.xpose.msra.mxu0 0
    %4020 = vmatprep.subr.bf16.mxu0 0
    %4021 = vmatpush1.bf16.xpose.msra.mxu0 0
    %4022 = vmatprep.subr.bf16.mxu0 0
    %4023 = vmatpush1.bf16.xpose.msra.mxu0 0
    %4024 = vmatprep.subr.bf16.mxu0 0
    %4025 = vmatpush1.bf16.xpose.msra.mxu0 0
    %4026 = vmatprep.subr.bf16.mxu0 0
    %4027 = vmatpush1.bf16.xpose.msra.mxu0 0
    %4028 = vmatprep.subr.bf16.mxu0 0
    %4029 = vmatpush1.bf16.xpose.msra.mxu0 0
    %4030 = vmatprep.subr.bf16.mxu0 0
    %4031 = vmatpush1.bf16.xpose.msra.mxu0 0
    %4032 = vmatprep.subr.bf16.mxu0 0
    %4033 = vmatpush1.bf16.xpose.msra.mxu0 0
    %4034 = vmatprep.subr.bf16.mxu0 0
    %4035 = vmatpush1.bf16.xpose.msra.mxu0 0
    %4036 = vmatprep.subr.bf16.mxu0 0
    %4037 = vmatpush1.bf16.xpose.msra.mxu0 0
    %4038 = vmatprep.subr.bf16.mxu0 0
    %4039 = vmatpush1.bf16.xpose.msra.mxu0 0
    %4040 = vmatprep.subr.bf16.mxu0 0
    %4041 = vmatpush1.bf16.xpose.msra.mxu0 0
    %4042 = vmatprep.subr.bf16.mxu0 0
    %4043 = vmatpush1.bf16.xpose.msra.mxu0 0
    %4044 = vmatprep.mubr.bf16.mxu0 0
    %4045 = vmatmul.mubr.bf16.gmra.mrb[0].mxu0 %v4001
    %v4046 = vpop.f32.mrb[0].mxu0
    %v4047 = vadd.f32 0.0, %v4046
    %v4048 = vpop.f32.mrb[0].mxu0
    %v4049 = vpop.f32.mrb[0].mxu0
    %v4050 = vadd.f32 0.0, %v4049
    %v4051 = vpop.f32.mrb[0].mxu0
    %4052 = vmatprep.mubr.bf16.mxu0 0
    %4053 = vmatmul.mubr.bf16.gmra.mrb[0].mxu0 %v4004
    %v4054 = vpop.f32.mrb[0].mxu0
    %v4055 = vadd.f32 0.0, %v4054
    %v4056 = vpop.f32.mrb[0].mxu0
    %v4057 = vpop.f32.mrb[0].mxu0
    %v4058 = vpop.f32.mrb[0].mxu0
    %4059 = vdwg.mxu0
    %v4060 = vmul.f32 %v3979, 0.25
    %v4061 = vmul.f32 %v3982, 0.25
    %v4062 = vmul.f32 %v3987, 0.25
    %v4063 = vmul.f32 %v4047, 0.25
    %v4064 = vmul.f32 %v4050, 0.25
    %v4065 = vmul.f32 %v4055, 0.25
    %v4066 = vadd.f32 %v4060, %v326
    %v4067 = vadd.f32 %v4061, %v326
    %v4068 = vadd.f32 %v4062, %v326
    %v4069 = vadd.f32 %v4063, %v326
    %v4070 = vadd.f32 %v4064, %v326
    %v4071 = vadd.f32 %v4065, %v326
    %v4072 = vsel %vm716, %v4066, -inf
    %4073 = vmax.xlane.f32.xlu0 %v4072
    %v4074 = vpop.xlane.xlu0 %4073
    %v4075 = vsel %vm716, %v4067, -inf
    %4076 = vmax.xlane.f32.xlu0 %v4075
    %v4077 = vpop.xlane.xlu0 %4076
    %v4078 = vsel %vm716, %v4068, -inf
    %4079 = vmax.xlane.f32.xlu0 %v4078
    %v4080 = vpop.xlane.xlu0 %4079
    %v4081 = vsel %vm716, %v4069, -inf
    %4082 = vmax.xlane.f32.xlu0 %v4081
    %v4083 = vpop.xlane.xlu0 %4082
    %v4084 = vsel %vm716, %v4070, -inf
    %4085 = vmax.xlane.f32.xlu0 %v4084
    %v4086 = vpop.xlane.xlu0 %4085
    %v4087 = vsel %vm716, %v4071, -inf
    %4088 = vmax.xlane.f32.xlu0 %v4087
    %v4089 = vpop.xlane.xlu0 %4088
    %v4090 = vsub.f32 %v4066, %v4074
    %v4091 = vsub.f32 %v4067, %v4077
    %v4092 = vsub.f32 %v4068, %v4080
    %v4093 = vsub.f32 %v4069, %v4083
    %v4094 = vsub.f32 %v4070, %v4086
    %v4095 = vsub.f32 %v4071, %v4089
    %v4096 = vmul.f32 %v4090, 1.442695
    %v4097 = vpow.pop %v4096
    %v4098 = vmul.f32 %v4091, 1.442695
    %v4099 = vpow.pop %v4098
    %v4100 = vmul.f32 %v4092, 1.442695
    %v4101 = vpow.pop %v4100
    %v4102 = vmul.f32 %v4093, 1.442695
    %v4103 = vpow.pop %v4102
    %v4104 = vmul.f32 %v4094, 1.442695
    %v4105 = vpow.pop %v4104
    %v4106 = vmul.f32 %v4095, 1.442695
    %v4107 = vpow.pop %v4106
    %v4108 = vsel %vm716, %v4097, 0.0
    %4109 = vadd.xlane.f32.xlu0 %v4108
    %v4110 = vpop.xlane.xlu0 %4109
    %v4111 = vsel %vm716, %v4099, 0.0
    %4112 = vadd.xlane.f32.xlu0 %v4111
    %v4113 = vpop.xlane.xlu0 %4112
    %v4114 = vsel %vm716, %v4101, 0.0
    %4115 = vadd.xlane.f32.xlu0 %v4114
    %v4116 = vpop.xlane.xlu0 %4115
    %v4117 = vsel %vm716, %v4103, 0.0
    %4118 = vadd.xlane.f32.xlu0 %v4117
    %v4119 = vpop.xlane.xlu0 %4118
    %v4120 = vsel %vm716, %v4105, 0.0
    %4121 = vadd.xlane.f32.xlu0 %v4120
    %v4122 = vpop.xlane.xlu0 %4121
    %v4123 = vsel %vm716, %v4107, 0.0
    %4124 = vadd.xlane.f32.xlu0 %v4123
    %v4125 = vpop.xlane.xlu0 %4124
    %v4126 = vrcp.pop %v4110
    %v4127 = vmul.f32 %v4097, %v4126
    %v4128 = vrcp.pop %v4113
    %v4129 = vmul.f32 %v4099, %v4128
    %v4130 = vrcp.pop %v4116
    %v4131 = vmul.f32 %v4101, %v4130
    %v4132 = vrcp.pop %v4119
    %v4133 = vmul.f32 %v4103, %v4132
    %v4134 = vrcp.pop %v4122
    %v4135 = vmul.f32 %v4105, %v4134
    %v4136 = vrcp.pop %v4125
    %v4137 = vmul.f32 %v4107, %v4136
    %v4138 = vpack.c.bf16 %v4129, %v4127
    %v4139 = vpack.c.bf16 %v4131, %v4131
    %v4140 = vpack.c.bf16 %v4135, %v4133
    %v4141 = vpack.c.bf16 %v4137, %v4137
    %4142 = vrot.lane.b32.xlu0 %v3118, 80
    %v4143 = vpop.permute.xlu0 %4142
    %4144 = vrot.lane.b32.xlu0 %v3119, 80
    %v4145 = vpop.permute.xlu0 %4144
    %v4148 = vsel %vm716, %v4138, 0
    %v4151 = vsel %vm716, %v4139, 0
    %v4154 = vsel %vm797, %v4145, 0
    %4156 = vmatprep.subr.bf16.mxu0 0
    %4157 = vmatpush1.bf16.msra.mxu0 %v4143
    %4158 = vmatprep.subr.bf16.mxu0 0
    %4159 = vmatpush1.bf16.msra.mxu0 %v4154
    %4160 = vmatprep.subr.bf16.mxu0 0
    %4161 = vmatpush1.bf16.msra.mxu0 0
    %4162 = vmatprep.subr.bf16.mxu0 0
    %4163 = vmatpush1.bf16.msra.mxu0 0
    %4164 = vmatprep.subr.bf16.mxu0 0
    %4165 = vmatpush1.bf16.msra.mxu0 0
    %4166 = vmatprep.subr.bf16.mxu0 0
    %4167 = vmatpush1.bf16.msra.mxu0 0
    %4168 = vmatprep.subr.bf16.mxu0 0
    %4169 = vmatpush1.bf16.msra.mxu0 0
    %4170 = vmatprep.subr.bf16.mxu0 0
    %4171 = vmatpush1.bf16.msra.mxu0 0
    %4172 = vmatprep.subr.bf16.mxu0 0
    %4173 = vmatpush1.bf16.msra.mxu0 0
    %4174 = vmatprep.subr.bf16.mxu0 0
    %4175 = vmatpush1.bf16.msra.mxu0 0
    %4176 = vmatprep.subr.bf16.mxu0 0
    %4177 = vmatpush1.bf16.msra.mxu0 0
    %4178 = vmatprep.subr.bf16.mxu0 0
    %4179 = vmatpush1.bf16.msra.mxu0 0
    %4180 = vmatprep.subr.bf16.mxu0 0
    %4181 = vmatpush1.bf16.msra.mxu0 0
    %4182 = vmatprep.subr.bf16.mxu0 0
    %4183 = vmatpush1.bf16.msra.mxu0 0
    %4184 = vmatprep.subr.bf16.mxu0 0
    %4185 = vmatpush1.bf16.msra.mxu0 0
    %4186 = vmatprep.subr.bf16.mxu0 0
    %4187 = vmatpush1.bf16.msra.mxu0 0
    %4188 = vmatprep.mubr.bf16.mxu0 0
    %4189 = vmatmul.mubr.bf16.gmra.mrb[0].mxu0 %v4148
    %v4190 = vpop.f32.mrb[0].mxu0
    %v4191 = vadd.f32 0.0, %v4190
    %v4192 = vpop.f32.mrb[0].mxu0
    %v4193 = vpop.f32.mrb[0].mxu0
    %v4194 = vadd.f32 0.0, %v4193
    %v4195 = vpop.f32.mrb[0].mxu0
    %4196 = vmatprep.mubr.bf16.mxu0 0
    %4197 = vmatmul.mubr.bf16.gmra.mrb[0].mxu0 %v4151
    %v4198 = vpop.f32.mrb[0].mxu0
    %v4199 = vadd.f32 0.0, %v4198
    %v4200 = vpop.f32.mrb[0].mxu0
    %v4201 = vpop.f32.mrb[0].mxu0
    %v4202 = vpop.f32.mrb[0].mxu0
    %4203 = vdwg.mxu0
    %4204 = vrot.lane.b32.xlu0 %v3120, 80
    %v4205 = vpop.permute.xlu0 %4204
    %4206 = vrot.lane.b32.xlu0 %v3121, 80
    %v4207 = vpop.permute.xlu0 %4206
    %v4210 = vsel %vm716, %v4140, 0
    %v4213 = vsel %vm716, %v4141, 0
    %v4216 = vsel %vm797, %v4207, 0
    %4218 = vmatprep.subr.bf16.mxu0 0
    %4219 = vmatpush1.bf16.msra.mxu0 %v4205
    %4220 = vmatprep.subr.bf16.mxu0 0
    %4221 = vmatpush1.bf16.msra.mxu0 %v4216
    %4222 = vmatprep.subr.bf16.mxu0 0
    %4223 = vmatpush1.bf16.msra.mxu0 0
    %4224 = vmatprep.subr.bf16.mxu0 0
    %4225 = vmatpush1.bf16.msra.mxu0 0
    %4226 = vmatprep.subr.bf16.mxu0 0
    %4227 = vmatpush1.bf16.msra.mxu0 0
    %4228 = vmatprep.subr.bf16.mxu0 0
    %4229 = vmatpush1.bf16.msra.mxu0 0
    %4230 = vmatprep.subr.bf16.mxu0 0
    %4231 = vmatpush1.bf16.msra.mxu0 0
    %4232 = vmatprep.subr.bf16.mxu0 0
    %4233 = vmatpush1.bf16.msra.mxu0 0
    %4234 = vmatprep.subr.bf16.mxu0 0
    %4235 = vmatpush1.bf16.msra.mxu0 0
    %4236 = vmatprep.subr.bf16.mxu0 0
    %4237 = vmatpush1.bf16.msra.mxu0 0
    %4238 = vmatprep.subr.bf16.mxu0 0
    %4239 = vmatpush1.bf16.msra.mxu0 0
    %4240 = vmatprep.subr.bf16.mxu0 0
    %4241 = vmatpush1.bf16.msra.mxu0 0
    %4242 = vmatprep.subr.bf16.mxu0 0
    %4243 = vmatpush1.bf16.msra.mxu0 0
    %4244 = vmatprep.subr.bf16.mxu0 0
    %4245 = vmatpush1.bf16.msra.mxu0 0
    %4246 = vmatprep.subr.bf16.mxu0 0
    %4247 = vmatpush1.bf16.msra.mxu0 0
    %4248 = vmatprep.subr.bf16.mxu0 0
    %4249 = vmatpush1.bf16.msra.mxu0 0
    %4250 = vmatprep.mubr.bf16.mxu0 0
    %4251 = vmatmul.mubr.bf16.gmra.mrb[0].mxu0 %v4210
    %v4252 = vpop.f32.mrb[0].mxu0
    %v4253 = vadd.f32 0.0, %v4252
    %v4254 = vpop.f32.mrb[0].mxu0
    %v4255 = vpop.f32.mrb[0].mxu0
    %v4256 = vadd.f32 0.0, %v4255
    %v4257 = vpop.f32.mrb[0].mxu0
    %4258 = vmatprep.mubr.bf16.mxu0 0
    %4259 = vmatmul.mubr.bf16.gmra.mrb[0].mxu0 %v4213
    %v4260 = vpop.f32.mrb[0].mxu0
    %v4261 = vadd.f32 0.0, %v4260
    %v4262 = vpop.f32.mrb[0].mxu0
    %v4263 = vpop.f32.mrb[0].mxu0
    %v4264 = vpop.f32.mrb[0].mxu0
    %4265 = vdwg.mxu0
    %4272 = vrot.lane.b32.xlu0 %v3505, 16
    %v4273 = vpop.permute.xlu0 %4272
    %4274 = vrot.lane.b32.xlu0 %v3508, 16
    %v4275 = vpop.permute.xlu0 %4274
    %4276 = vrot.lane.b32.xlu0 %v3513, 16
    %v4277 = vpop.permute.xlu0 %4276
    %4278 = vrot.lane.b32.xlu0 %v3569, 16
    %v4279 = vpop.permute.xlu0 %4278
    %4280 = vrot.lane.b32.xlu0 %v3572, 16
    %v4281 = vpop.permute.xlu0 %4280
    %4282 = vrot.lane.b32.xlu0 %v3577, 16
    %v4283 = vpop.permute.xlu0 %4282
    %4296 = vrot.lane.b32.xlu0 %v3849, 32
    %v4297 = vpop.permute.xlu0 %4296
    %4298 = vrot.lane.b32.xlu0 %v3852, 32
    %v4299 = vpop.permute.xlu0 %4298
    %4300 = vrot.lane.b32.xlu0 %v3857, 32
    %v4301 = vpop.permute.xlu0 %4300
    %4302 = vrot.lane.b32.xlu0 %v3911, 32
    %v4303 = vpop.permute.xlu0 %4302
    %4304 = vrot.lane.b32.xlu0 %v3914, 32
    %v4305 = vpop.permute.xlu0 %4304
    %4306 = vrot.lane.b32.xlu0 %v3919, 32
    %v4307 = vpop.permute.xlu0 %4306
    %4320 = vrot.lane.b32.xlu0 %v4191, 48
    %v4321 = vpop.permute.xlu0 %4320
    %4322 = vrot.lane.b32.xlu0 %v4194, 48
    %v4323 = vpop.permute.xlu0 %4322
    %4324 = vrot.lane.b32.xlu0 %v4199, 48
    %v4325 = vpop.permute.xlu0 %4324
    %4326 = vrot.lane.b32.xlu0 %v4253, 48
    %v4327 = vpop.permute.xlu0 %4326
    %4328 = vrot.lane.b32.xlu0 %v4256, 48
    %v4329 = vpop.permute.xlu0 %4328
    %4330 = vrot.lane.b32.xlu0 %v4261, 48
    %v4331 = vpop.permute.xlu0 %4330
    %v4338 = vsel %vm577, %v3166, %v4273
    %v4339 = vsel %vm577, %v3169, %v4275
    %v4340 = vsel %vm577, %v3174, %v4277
    %v4341 = vsel %vm577, %v3223, %v4279
    %v4342 = vsel %vm577, %v3226, %v4281
    %v4343 = vsel %vm577, %v3231, %v4283
    %v4344 = vsel %vm2014, %v4338, %v4297
    %v4345 = vsel %vm2014, %v4339, %v4299
    %v4346 = vsel %vm2014, %v4340, %v4301
    %v4347 = vsel %vm2014, %v4341, %v4303
    %v4348 = vsel %vm2014, %v4342, %v4305
    %v4349 = vsel %vm2014, %v4343, %v4307
    %v4350 = vsel %vm2021, %v4344, %v4321
    %v4351 = vsel %vm2021, %v4345, %v4323
    %v4352 = vsel %vm2021, %v4346, %v4325
    %v4353 = vsel %vm2021, %v4347, %v4327
    %v4354 = vsel %vm2021, %v4348, %v4329
    %v4355 = vsel %vm2021, %v4349, %v4331
    %s4356 = scalar_lea.vmem %s17, 32
    %v4357 = vld [vmem:[%s4356] sm:$0xf]
    %v4358 = vld [vmem:[%s4356 + $0x4] sm:$0xf]
    %v4359 = vld [vmem:[%s4356 + $0x8] sm:$0xf]
    %v4360 = vld [vmem:[%s4356 + $0xc] sm:$0xf]
    %v4361 = vld [vmem:[%s4356 + $0x10] sm:$0xf]
    %v4362 = vld [vmem:[%s4356 + $0x14] sm:$0xf]
    %v4363 = vld [vmem:[%s4356 + $0x18] sm:$0xf]
    %v4364 = vld [vmem:[%s4356 + $0x1c] sm:$0xf]
    %v4365 = vpack.c.bf16 %v4351, %v4350
    %v4366 = vpack.c.bf16 %v4353, %v4352
    %v4367 = vpack.c.bf16 %v4355, %v4354
    %v4376 = vunpack.c.l.b16 %v4357
    %v4377 = vunpack.c.l.b16 %v4358
    %v4378 = vunpack.c.l.b16 %v4359
    %v4379 = vunpack.c.l.b16 %v4360
    %v4380 = vunpack.c.l.b16 %v4361
    %v4381 = vunpack.c.l.b16 %v4362
    %v4382 = vunpack.c.l.b16 %v4363
    %v4383 = vunpack.c.l.b16 %v4364
    %v4384 = vpack.c.b16 %v4377, %v4376
    %v4385 = vpack.c.b16 %v4379, %v4378
    %v4386 = vpack.c.b16 %v4381, %v4380
    %v4387 = vpack.c.b16 %v4383, %v4382
    %v4393 = vsel %vm256, %v4365, 0
    %v4396 = vsel %vm256, %v4366, 0
    %v4399 = vsel %vm256, %v4367, 0
    %4401 = vmatprep.subr.bf16.mxu0 0
    %4402 = vmatpush1.bf16.msra.mxu0 %v4384
    %4403 = vmatprep.subr.bf16.mxu0 0
    %4404 = vmatpush1.bf16.msra.mxu0 %v4385
    %4405 = vmatprep.subr.bf16.mxu0 0
    %4406 = vmatpush1.bf16.msra.mxu0 %v4386
    %4407 = vmatprep.subr.bf16.mxu0 0
    %4408 = vmatpush1.bf16.msra.mxu0 %v4387
    %4409 = vmatprep.subr.bf16.mxu0 0
    %4410 = vmatpush1.bf16.msra.mxu0 0
    %4411 = vmatprep.subr.bf16.mxu0 0
    %4412 = vmatpush1.bf16.msra.mxu0 0
    %4413 = vmatprep.subr.bf16.mxu0 0
    %4414 = vmatpush1.bf16.msra.mxu0 0
    %4415 = vmatprep.subr.bf16.mxu0 0
    %4416 = vmatpush1.bf16.msra.mxu0 0
    %4417 = vmatprep.subr.bf16.mxu0 0
    %4418 = vmatpush1.bf16.msra.mxu0 0
    %4419 = vmatprep.subr.bf16.mxu0 0
    %4420 = vmatpush1.bf16.msra.mxu0 0
    %4421 = vmatprep.subr.bf16.mxu0 0
    %4422 = vmatpush1.bf16.msra.mxu0 0
    %4423 = vmatprep.subr.bf16.mxu0 0
    %4424 = vmatpush1.bf16.msra.mxu0 0
    %4425 = vmatprep.subr.bf16.mxu0 0
    %4426 = vmatpush1.bf16.msra.mxu0 0
    %4427 = vmatprep.subr.bf16.mxu0 0
    %4428 = vmatpush1.bf16.msra.mxu0 0
    %4429 = vmatprep.subr.bf16.mxu0 0
    %4430 = vmatpush1.bf16.msra.mxu0 0
    %4431 = vmatprep.subr.bf16.mxu0 0
    %4432 = vmatpush1.bf16.msra.mxu0 0
    %4433 = vmatprep.mubr.bf16.mxu0 0
    %4434 = vmatmul.mubr.bf16.gmra.mrb[0].mxu0 %v4393
    %v4435 = vpop.f32.mrb[0].mxu0
    %v4436 = vadd.f32 0.0, %v4435
    %v4437 = vpop.f32.mrb[0].mxu0
    %v4438 = vpop.f32.mrb[0].mxu0
    %v4439 = vadd.f32 0.0, %v4438
    %v4440 = vpop.f32.mrb[0].mxu0
    %4441 = vmatprep.mubr.bf16.mxu0 0
    %4442 = vmatmul.mubr.bf16.gmra.mrb[0].mxu0 %v4396
    %v4443 = vpop.f32.mrb[0].mxu0
    %v4444 = vadd.f32 0.0, %v4443
    %v4445 = vpop.f32.mrb[0].mxu0
    %v4446 = vpop.f32.mrb[0].mxu0
    %v4447 = vadd.f32 0.0, %v4446
    %v4448 = vpop.f32.mrb[0].mxu0
    %4449 = vmatprep.mubr.bf16.mxu0 0
    %4450 = vmatmul.mubr.bf16.gmra.mrb[0].mxu0 %v4399
    %v4451 = vpop.f32.mrb[0].mxu0
    %v4452 = vadd.f32 0.0, %v4451
    %v4453 = vpop.f32.mrb[0].mxu0
    %v4454 = vpop.f32.mrb[0].mxu0
    %v4455 = vadd.f32 0.0, %v4454
    %v4456 = vpop.f32.mrb[0].mxu0
    %4457 = vdwg.mxu0
    %v4458 = vadd.f32 %v2651, %v4436
    %v4459 = vadd.f32 %v2652, %v4439
    %v4460 = vadd.f32 %v2653, %v4444
    %v4461 = vadd.f32 %v2654, %v4447
    %v4462 = vadd.f32 %v2655, %v4452
    %v4463 = vadd.f32 %v2656, %v4455
    %s4464 = scalar_lea.vmem %s19, 1
    %v4465 = vld [vmem:[%s4464] sm:$0x1]
    %v4467 = vlaneseq
    %v4468 = vshrl.u32 %v4467, 7
    %v4469 = vsub.s32 0, %v4468
    %v4470 = vrot.slane %v4465, %v4469
    %v4472 = vadd.f32 %v4458, %v4470
    %v4473 = vadd.f32 %v4459, %v4470
    %v4474 = vadd.f32 %v4460, %v4470
    %v4475 = vadd.f32 %v4461, %v4470
    %v4476 = vadd.f32 %v4462, %v4470
    %v4477 = vadd.f32 %v4463, %v4470
    %s4478 = scalar_lea.vmem %s21, 1
    %v4479 = vld [vmem:[%s4478] sm:$0x1]
    %s4480 = scalar_lea.vmem %s23, 1
    %v4481 = vld [vmem:[%s4480] sm:$0x1]
    %v4482 = vsel %vm256, %v4472, 0.0
    %4483 = vadd.xlane.f32.xlu0 %v4482
    %v4484 = vpop.xlane.xlu0 %4483
    %v4485 = vsel %vm256, %v4473, 0.0
    %4486 = vadd.xlane.f32.xlu0 %v4485
    %v4487 = vpop.xlane.xlu0 %4486
    %v4488 = vsel %vm256, %v4474, 0.0
    %4489 = vadd.xlane.f32.xlu0 %v4488
    %v4490 = vpop.xlane.xlu0 %4489
    %v4491 = vsel %vm256, %v4475, 0.0
    %4492 = vadd.xlane.f32.xlu0 %v4491
    %v4493 = vpop.xlane.xlu0 %4492
    %v4494 = vsel %vm256, %v4476, 0.0
    %4495 = vadd.xlane.f32.xlu0 %v4494
    %v4496 = vpop.xlane.xlu0 %4495
    %v4497 = vsel %vm256, %v4477, 0.0
    %4498 = vadd.xlane.f32.xlu0 %v4497
    %v4499 = vpop.xlane.xlu0 %4498
    %v4500 = vmul.f32 %v4484, %v347
    %v4501 = vmul.f32 %v4487, %v347
    %v4502 = vmul.f32 %v4490, %v347
    %v4503 = vmul.f32 %v4493, %v347
    %v4504 = vmul.f32 %v4496, %v347
    %v4505 = vmul.f32 %v4499, %v347
    %v4506 = vsub.f32 %v4472, %v4500
    %v4507 = vsub.f32 %v4473, %v4501
    %v4508 = vsub.f32 %v4474, %v4502
    %v4509 = vsub.f32 %v4475, %v4503
    %v4510 = vsub.f32 %v4476, %v4504
    %v4511 = vsub.f32 %v4477, %v4505
    %v4512 = vmul.f32 %v4506, %v4506
    %v4513 = vmul.f32 %v4507, %v4507
    %v4514 = vmul.f32 %v4508, %v4508
    %v4515 = vmul.f32 %v4509, %v4509
    %v4516 = vmul.f32 %v4510, %v4510
    %v4517 = vmul.f32 %v4511, %v4511
    %v4518 = vsel %vm256, %v4512, 0.0
    %4519 = vadd.xlane.f32.xlu0 %v4518
    %v4520 = vpop.xlane.xlu0 %4519
    %v4521 = vsel %vm256, %v4513, 0.0
    %4522 = vadd.xlane.f32.xlu0 %v4521
    %v4523 = vpop.xlane.xlu0 %4522
    %v4524 = vsel %vm256, %v4514, 0.0
    %4525 = vadd.xlane.f32.xlu0 %v4524
    %v4526 = vpop.xlane.xlu0 %4525
    %v4527 = vsel %vm256, %v4515, 0.0
    %4528 = vadd.xlane.f32.xlu0 %v4527
    %v4529 = vpop.xlane.xlu0 %4528
    %v4530 = vsel %vm256, %v4516, 0.0
    %4531 = vadd.xlane.f32.xlu0 %v4530
    %v4532 = vpop.xlane.xlu0 %4531
    %v4533 = vsel %vm256, %v4517, 0.0
    %4534 = vadd.xlane.f32.xlu0 %v4533
    %v4535 = vpop.xlane.xlu0 %4534
    %v4536 = vmul.f32 %v4520, %v347
    %v4537 = vmul.f32 %v4523, %v347
    %v4538 = vmul.f32 %v4526, %v347
    %v4539 = vmul.f32 %v4529, %v347
    %v4540 = vmul.f32 %v4532, %v347
    %v4541 = vmul.f32 %v4535, %v347
    %v4542 = vadd.f32 %v4536, 1e-06
    %v4543 = vadd.f32 %v4537, 1e-06
    %v4544 = vadd.f32 %v4538, 1e-06
    %v4545 = vadd.f32 %v4539, 1e-06
    %v4546 = vadd.f32 %v4540, 1e-06
    %v4547 = vadd.f32 %v4541, 1e-06
    %v4548 = vrsqrt.pop %v4542
    %v4549 = vrsqrt.pop %v4543
    %v4550 = vrsqrt.pop %v4544
    %v4551 = vrsqrt.pop %v4545
    %v4552 = vrsqrt.pop %v4546
    %v4553 = vrsqrt.pop %v4547
    %v4554 = vmul.f32 %v4506, %v4548
    %v4555 = vmul.f32 %v4507, %v4549
    %v4556 = vmul.f32 %v4508, %v4550
    %v4557 = vmul.f32 %v4509, %v4551
    %v4558 = vmul.f32 %v4510, %v4552
    %v4559 = vmul.f32 %v4511, %v4553
    %v4561 = vlaneseq
    %v4562 = vshrl.u32 %v4561, 7
    %v4563 = vsub.s32 0, %v4562
    %v4564 = vrot.slane %v4479, %v4563
    %v4566 = vmul.f32 %v4554, %v4564
    %v4567 = vmul.f32 %v4555, %v4564
    %v4568 = vmul.f32 %v4556, %v4564
    %v4569 = vmul.f32 %v4557, %v4564
    %v4570 = vmul.f32 %v4558, %v4564
    %v4571 = vmul.f32 %v4559, %v4564
    %v4573 = vlaneseq
    %v4574 = vshrl.u32 %v4573, 7
    %v4575 = vsub.s32 0, %v4574
    %v4576 = vrot.slane %v4481, %v4575
    %v4578 = vadd.f32 %v4566, %v4576
    %v4579 = vadd.f32 %v4567, %v4576
    %v4580 = vadd.f32 %v4568, %v4576
    %v4581 = vadd.f32 %v4569, %v4576
    %v4582 = vadd.f32 %v4570, %v4576
    %v4583 = vadd.f32 %v4571, %v4576
    %s4584 = scalar_lea.vmem %s25, 64
    %v4585 = vld [vmem:[%s4584] sm:$0xff]
    %v4586 = vld [vmem:[%s4584 + $0x8] sm:$0xff]
    %v4587 = vld [vmem:[%s4584 + $0x10] sm:$0xff]
    %v4588 = vld [vmem:[%s4584 + $0x18] sm:$0xff]
    %v4589 = vld [vmem:[%s4584 + $0x20] sm:$0xff]
    %v4590 = vld [vmem:[%s4584 + $0x28] sm:$0xff]
    %v4591 = vld [vmem:[%s4584 + $0x30] sm:$0xff]
    %v4592 = vld [vmem:[%s4584 + $0x38] sm:$0xff]
    %v4593 = vpack.c.bf16 %v4579, %v4578
    %v4594 = vpack.c.bf16 %v4581, %v4580
    %v4595 = vpack.c.bf16 %v4583, %v4582
    %s4596 = scalar_lea.vmem %s27, 2
    %v4597 = vld [vmem:[%s4596] sm:$0x3]
    %v4599 = vlaneseq
    %v4600 = vshrl.u32 %v4599, 7
    %v4601 = vsub.s32 0, %v4600
    %v4602 = vrot.slane %v4597, %v4601
    %v4603 = vlaneseq
    %v4604 = vshrl.u32 %v4603, 7
    %v4605 = vsub.s32 1, %v4604
    %v4606 = vrot.slane %v4597, %v4605
    %v4617 = vunpack.c.l.b16 %v4585
    %v4618 = vunpack.c.h.b16 %v4585
    %v4619 = vunpack.c.l.b16 %v4586
    %v4620 = vunpack.c.h.b16 %v4586
    %v4621 = vunpack.c.l.b16 %v4587
    %v4622 = vunpack.c.h.b16 %v4587
    %v4623 = vunpack.c.l.b16 %v4588
    %v4624 = vunpack.c.h.b16 %v4588
    %v4625 = vunpack.c.l.b16 %v4589
    %v4626 = vunpack.c.h.b16 %v4589
    %v4627 = vunpack.c.l.b16 %v4590
    %v4628 = vunpack.c.h.b16 %v4590
    %v4629 = vunpack.c.l.b16 %v4591
    %v4630 = vunpack.c.h.b16 %v4591
    %v4631 = vunpack.c.l.b16 %v4592
    %v4632 = vunpack.c.h.b16 %v4592
    %v4633 = vpack.c.b16 %v4619, %v4617
    %v4634 = vpack.c.b16 %v4620, %v4618
    %v4635 = vpack.c.b16 %v4623, %v4621
    %v4636 = vpack.c.b16 %v4624, %v4622
    %v4637 = vpack.c.b16 %v4627, %v4625
    %v4638 = vpack.c.b16 %v4628, %v4626
    %v4639 = vpack.c.b16 %v4631, %v4629
    %v4640 = vpack.c.b16 %v4632, %v4630
    %v4650 = vsel %vm256, %v4593, 0
    %v4653 = vsel %vm256, %v4594, 0
    %v4656 = vsel %vm256, %v4595, 0
    %4658 = vmatprep.subr.bf16.mxu0 %v4634
    %4659 = vmatpush1.bf16.msra.mxu0 %v4633
    %4660 = vmatprep.subr.bf16.mxu0 %v4636
    %4661 = vmatpush1.bf16.msra.mxu0 %v4635
    %4662 = vmatprep.subr.bf16.mxu0 %v4638
    %4663 = vmatpush1.bf16.msra.mxu0 %v4637
    %4664 = vmatprep.subr.bf16.mxu0 %v4640
    %4665 = vmatpush1.bf16.msra.mxu0 %v4639
    %4666 = vmatprep.subr.bf16.mxu0 0
    %4667 = vmatpush1.bf16.msra.mxu0 0
    %4668 = vmatprep.subr.bf16.mxu0 0
    %4669 = vmatpush1.bf16.msra.mxu0 0
    %4670 = vmatprep.subr.bf16.mxu0 0
    %4671 = vmatpush1.bf16.msra.mxu0 0
    %4672 = vmatprep.subr.bf16.mxu0 0
    %4673 = vmatpush1.bf16.msra.mxu0 0
    %4674 = vmatprep.subr.bf16.mxu0 0
    %4675 = vmatpush1.bf16.msra.mxu0 0
    %4676 = vmatprep.subr.bf16.mxu0 0
    %4677 = vmatpush1.bf16.msra.mxu0 0
    %4678 = vmatprep.subr.bf16.mxu0 0
    %4679 = vmatpush1.bf16.msra.mxu0 0
    %4680 = vmatprep.subr.bf16.mxu0 0
    %4681 = vmatpush1.bf16.msra.mxu0 0
    %4682 = vmatprep.subr.bf16.mxu0 0
    %4683 = vmatpush1.bf16.msra.mxu0 0
    %4684 = vmatprep.subr.bf16.mxu0 0
    %4685 = vmatpush1.bf16.msra.mxu0 0
    %4686 = vmatprep.subr.bf16.mxu0 0
    %4687 = vmatpush1.bf16.msra.mxu0 0
    %4688 = vmatprep.subr.bf16.mxu0 0
    %4689 = vmatpush1.bf16.msra.mxu0 0
    %4690 = vmatprep.mubr.bf16.mxu0 0
    %4691 = vmatmul.mubr.bf16.gmra.mrb[0].mxu0 %v4650
    %v4692 = vpop.f32.mrb[0].mxu0
    %v4693 = vadd.f32 %v4602, %v4692
    %v4694 = vpop.f32.mrb[0].mxu0
    %v4695 = vadd.f32 %v4606, %v4694
    %v4696 = vpop.f32.mrb[0].mxu0
    %v4697 = vadd.f32 %v4602, %v4696
    %v4698 = vpop.f32.mrb[0].mxu0
    %v4699 = vadd.f32 %v4606, %v4698
    %4700 = vmatprep.mubr.bf16.mxu0 0
    %4701 = vmatmul.mubr.bf16.gmra.mrb[0].mxu0 %v4653
    %v4702 = vpop.f32.mrb[0].mxu0
    %v4703 = vadd.f32 %v4602, %v4702
    %v4704 = vpop.f32.mrb[0].mxu0
    %v4705 = vadd.f32 %v4606, %v4704
    %v4706 = vpop.f32.mrb[0].mxu0
    %v4707 = vadd.f32 %v4602, %v4706
    %v4708 = vpop.f32.mrb[0].mxu0
    %v4709 = vadd.f32 %v4606, %v4708
    %4710 = vmatprep.mubr.bf16.mxu0 0
    %4711 = vmatmul.mubr.bf16.gmra.mrb[0].mxu0 %v4656
    %v4712 = vpop.f32.mrb[0].mxu0
    %v4713 = vadd.f32 %v4602, %v4712
    %v4714 = vpop.f32.mrb[0].mxu0
    %v4715 = vadd.f32 %v4606, %v4714
    %v4716 = vpop.f32.mrb[0].mxu0
    %v4717 = vadd.f32 %v4602, %v4716
    %v4718 = vpop.f32.mrb[0].mxu0
    %v4719 = vadd.f32 %v4606, %v4718
    %4720 = vdwg.mxu0
    %v4721 = vmul.f32 %v4693, 0.5
    %v4722 = vmul.f32 %v4695, 0.5
    %v4723 = vmul.f32 %v4697, 0.5
    %v4724 = vmul.f32 %v4699, 0.5
    %v4725 = vmul.f32 %v4703, 0.5
    %v4726 = vmul.f32 %v4705, 0.5
    %v4727 = vmul.f32 %v4707, 0.5
    %v4728 = vmul.f32 %v4709, 0.5
    %v4729 = vmul.f32 %v4713, 0.5
    %v4730 = vmul.f32 %v4715, 0.5
    %v4731 = vmul.f32 %v4717, 0.5
    %v4732 = vmul.f32 %v4719, 0.5
    %v4733 = vmul.f32 %v4693, 0.70710677
    %v4734 = vmul.f32 %v4695, 0.70710677
    %v4735 = vmul.f32 %v4697, 0.70710677
    %v4736 = vmul.f32 %v4699, 0.70710677
    %v4737 = vmul.f32 %v4703, 0.70710677
    %v4738 = vmul.f32 %v4705, 0.70710677
    %v4739 = vmul.f32 %v4707, 0.70710677
    %v4740 = vmul.f32 %v4709, 0.70710677
    %v4741 = vmul.f32 %v4713, 0.70710677
    %v4742 = vmul.f32 %v4715, 0.70710677
    %v4743 = vmul.f32 %v4717, 0.70710677
    %v4744 = vmul.f32 %v4719, 0.70710677
    %v4745 = verf.f32.pop %v4733
    %v4746 = verf.f32.pop %v4734
    %v4747 = verf.f32.pop %v4735
    %v4748 = verf.f32.pop %v4736
    %v4749 = verf.f32.pop %v4737
    %v4750 = verf.f32.pop %v4738
    %v4751 = verf.f32.pop %v4739
    %v4752 = verf.f32.pop %v4740
    %v4753 = verf.f32.pop %v4741
    %v4754 = verf.f32.pop %v4742
    %v4755 = verf.f32.pop %v4743
    %v4756 = verf.f32.pop %v4744
    %v4757 = vadd.f32 %v4745, 1.0
    %v4758 = vadd.f32 %v4746, 1.0
    %v4759 = vadd.f32 %v4747, 1.0
    %v4760 = vadd.f32 %v4748, 1.0
    %v4761 = vadd.f32 %v4749, 1.0
    %v4762 = vadd.f32 %v4750, 1.0
    %v4763 = vadd.f32 %v4751, 1.0
    %v4764 = vadd.f32 %v4752, 1.0
    %v4765 = vadd.f32 %v4753, 1.0
    %v4766 = vadd.f32 %v4754, 1.0
    %v4767 = vadd.f32 %v4755, 1.0
    %v4768 = vadd.f32 %v4756, 1.0
    %v4769 = vmul.f32 %v4721, %v4757
    %v4770 = vmul.f32 %v4722, %v4758
    %v4771 = vmul.f32 %v4723, %v4759
    %v4772 = vmul.f32 %v4724, %v4760
    %v4773 = vmul.f32 %v4725, %v4761
    %v4774 = vmul.f32 %v4726, %v4762
    %v4775 = vmul.f32 %v4727, %v4763
    %v4776 = vmul.f32 %v4728, %v4764
    %v4777 = vmul.f32 %v4729, %v4765
    %v4778 = vmul.f32 %v4730, %v4766
    %v4779 = vmul.f32 %v4731, %v4767
    %v4780 = vmul.f32 %v4732, %v4768
    %s4781 = scalar_lea.vmem %s29, 128
    %v4782 = vld [vmem:[%s4781] sm:$0xf]
    %v4783 = vld [vmem:[%s4781 + $0x4] sm:$0xf]
    %v4784 = vld [vmem:[%s4781 + $0x8] sm:$0xf]
    %v4785 = vld [vmem:[%s4781 + $0xc] sm:$0xf]
    %v4786 = vld [vmem:[%s4781 + $0x10] sm:$0xf]
    %v4787 = vld [vmem:[%s4781 + $0x14] sm:$0xf]
    %v4788 = vld [vmem:[%s4781 + $0x18] sm:$0xf]
    %v4789 = vld [vmem:[%s4781 + $0x1c] sm:$0xf]
    %v4790 = vld [vmem:[%s4781 + $0x20] sm:$0xf]
    %v4791 = vld [vmem:[%s4781 + $0x24] sm:$0xf]
    %v4792 = vld [vmem:[%s4781 + $0x28] sm:$0xf]
    %v4793 = vld [vmem:[%s4781 + $0x2c] sm:$0xf]
    %v4794 = vld [vmem:[%s4781 + $0x30] sm:$0xf]
    %v4795 = vld [vmem:[%s4781 + $0x34] sm:$0xf]
    %v4796 = vld [vmem:[%s4781 + $0x38] sm:$0xf]
    %v4797 = vld [vmem:[%s4781 + $0x3c] sm:$0xf]
    %v4798 = vld [vmem:[%s4781 + $0x40] sm:$0xf]
    %v4799 = vld [vmem:[%s4781 + $0x44] sm:$0xf]
    %v4800 = vld [vmem:[%s4781 + $0x48] sm:$0xf]
    %v4801 = vld [vmem:[%s4781 + $0x4c] sm:$0xf]
    %v4802 = vld [vmem:[%s4781 + $0x50] sm:$0xf]
    %v4803 = vld [vmem:[%s4781 + $0x54] sm:$0xf]
    %v4804 = vld [vmem:[%s4781 + $0x58] sm:$0xf]
    %v4805 = vld [vmem:[%s4781 + $0x5c] sm:$0xf]
    %v4806 = vld [vmem:[%s4781 + $0x60] sm:$0xf]
    %v4807 = vld [vmem:[%s4781 + $0x64] sm:$0xf]
    %v4808 = vld [vmem:[%s4781 + $0x68] sm:$0xf]
    %v4809 = vld [vmem:[%s4781 + $0x6c] sm:$0xf]
    %v4810 = vld [vmem:[%s4781 + $0x70] sm:$0xf]
    %v4811 = vld [vmem:[%s4781 + $0x74] sm:$0xf]
    %v4812 = vld [vmem:[%s4781 + $0x78] sm:$0xf]
    %v4813 = vld [vmem:[%s4781 + $0x7c] sm:$0xf]
    %v4814 = vpack.c.bf16 %v4771, %v4769
    %v4815 = vpack.c.bf16 %v4772, %v4770
    %v4816 = vpack.c.bf16 %v4775, %v4773
    %v4817 = vpack.c.bf16 %v4776, %v4774
    %v4818 = vpack.c.bf16 %v4779, %v4777
    %v4819 = vpack.c.bf16 %v4780, %v4778
    %v4852 = vunpack.c.l.b16 %v4782
    %v4853 = vunpack.c.l.b16 %v4783
    %v4854 = vunpack.c.l.b16 %v4784
    %v4855 = vunpack.c.l.b16 %v4785
    %v4856 = vunpack.c.l.b16 %v4786
    %v4857 = vunpack.c.l.b16 %v4787
    %v4858 = vunpack.c.l.b16 %v4788
    %v4859 = vunpack.c.l.b16 %v4789
    %v4860 = vunpack.c.l.b16 %v4790
    %v4861 = vunpack.c.l.b16 %v4791
    %v4862 = vunpack.c.l.b16 %v4792
    %v4863 = vunpack.c.l.b16 %v4793
    %v4864 = vunpack.c.l.b16 %v4794
    %v4865 = vunpack.c.l.b16 %v4795
    %v4866 = vunpack.c.l.b16 %v4796
    %v4867 = vunpack.c.l.b16 %v4797
    %v4868 = vunpack.c.l.b16 %v4798
    %v4869 = vunpack.c.l.b16 %v4799
    %v4870 = vunpack.c.l.b16 %v4800
    %v4871 = vunpack.c.l.b16 %v4801
    %v4872 = vunpack.c.l.b16 %v4802
    %v4873 = vunpack.c.l.b16 %v4803
    %v4874 = vunpack.c.l.b16 %v4804
    %v4875 = vunpack.c.l.b16 %v4805
    %v4876 = vunpack.c.l.b16 %v4806
    %v4877 = vunpack.c.l.b16 %v4807
    %v4878 = vunpack.c.l.b16 %v4808
    %v4879 = vunpack.c.l.b16 %v4809
    %v4880 = vunpack.c.l.b16 %v4810
    %v4881 = vunpack.c.l.b16 %v4811
    %v4882 = vunpack.c.l.b16 %v4812
    %v4883 = vunpack.c.l.b16 %v4813
    %v4884 = vpack.c.b16 %v4853, %v4852
    %v4885 = vpack.c.b16 %v4855, %v4854
    %v4886 = vpack.c.b16 %v4857, %v4856
    %v4887 = vpack.c.b16 %v4859, %v4858
    %v4888 = vpack.c.b16 %v4861, %v4860
    %v4889 = vpack.c.b16 %v4863, %v4862
    %v4890 = vpack.c.b16 %v4865, %v4864
    %v4891 = vpack.c.b16 %v4867, %v4866
    %v4892 = vpack.c.b16 %v4869, %v4868
    %v4893 = vpack.c.b16 %v4871, %v4870
    %v4894 = vpack.c.b16 %v4873, %v4872
    %v4895 = vpack.c.b16 %v4875, %v4874
    %v4896 = vpack.c.b16 %v4877, %v4876
    %v4897 = vpack.c.b16 %v4879, %v4878
    %v4898 = vpack.c.b16 %v4881, %v4880
    %v4899 = vpack.c.b16 %v4883, %v4882
    %4916 = vmatprep.subr.bf16.mxu0 0
    %4917 = vmatpush1.bf16.msra.mxu0 %v4884
    %4918 = vmatprep.subr.bf16.mxu0 0
    %4919 = vmatpush1.bf16.msra.mxu0 %v4885
    %4920 = vmatprep.subr.bf16.mxu0 0
    %4921 = vmatpush1.bf16.msra.mxu0 %v4886
    %4922 = vmatprep.subr.bf16.mxu0 0
    %4923 = vmatpush1.bf16.msra.mxu0 %v4887
    %4924 = vmatprep.subr.bf16.mxu0 0
    %4925 = vmatpush1.bf16.msra.mxu0 %v4888
    %4926 = vmatprep.subr.bf16.mxu0 0
    %4927 = vmatpush1.bf16.msra.mxu0 %v4889
    %4928 = vmatprep.subr.bf16.mxu0 0
    %4929 = vmatpush1.bf16.msra.mxu0 %v4890
    %4930 = vmatprep.subr.bf16.mxu0 0
    %4931 = vmatpush1.bf16.msra.mxu0 %v4891
    %4932 = vmatprep.subr.bf16.mxu0 0
    %4933 = vmatpush1.bf16.msra.mxu0 %v4892
    %4934 = vmatprep.subr.bf16.mxu0 0
    %4935 = vmatpush1.bf16.msra.mxu0 %v4893
    %4936 = vmatprep.subr.bf16.mxu0 0
    %4937 = vmatpush1.bf16.msra.mxu0 %v4894
    %4938 = vmatprep.subr.bf16.mxu0 0
    %4939 = vmatpush1.bf16.msra.mxu0 %v4895
    %4940 = vmatprep.subr.bf16.mxu0 0
    %4941 = vmatpush1.bf16.msra.mxu0 %v4896
    %4942 = vmatprep.subr.bf16.mxu0 0
    %4943 = vmatpush1.bf16.msra.mxu0 %v4897
    %4944 = vmatprep.subr.bf16.mxu0 0
    %4945 = vmatpush1.bf16.msra.mxu0 %v4898
    %4946 = vmatprep.subr.bf16.mxu0 0
    %4947 = vmatpush1.bf16.msra.mxu0 %v4899
    %4948 = vmatprep.mubr.bf16.mxu0 %v4815
    %4949 = vmatmul.mubr.bf16.gmra.mrb[0].mxu0 %v4814
    %v4950 = vpop.f32.mrb[0].mxu0
    %v4951 = vadd.f32 0.0, %v4950
    %v4952 = vpop.f32.mrb[0].mxu0
    %v4953 = vpop.f32.mrb[0].mxu0
    %v4954 = vpop.f32.mrb[0].mxu0
    %4955 = vmatprep.mubr.bf16.mxu0 %v4817
    %4956 = vmatmul.mubr.bf16.gmra.mrb[0].mxu0 %v4816
    %v4957 = vpop.f32.mrb[0].mxu0
    %v4958 = vpop.f32.mrb[0].mxu0
    %v4959 = vpop.f32.mrb[0].mxu0
    %v4960 = vadd.f32 0.0, %v4959
    %v4961 = vpop.f32.mrb[0].mxu0
    %4962 = vmatprep.mubr.bf16.mxu0 %v4819
    %4963 = vmatmul.mubr.bf16.gmra.mrb[0].mxu0 %v4818
    %v4964 = vpop.f32.mrb[0].mxu0
    %v4965 = vpop.f32.mrb[0].mxu0
    %v4966 = vpop.f32.mrb[0].mxu0
    %v4967 = vpop.f32.mrb[0].mxu0
    %4968 = vdwg.mxu0
    %v4969 = vadd.f32 %v4472, %v4951
    %v4970 = vadd.f32 %v4475, %v4960
    %s4971 = scalar_lea.vmem %s31, 1
    %v4972 = vld [vmem:[%s4971] sm:$0x1]
    %v4974 = vlaneseq
    %v4975 = vshrl.u32 %v4974, 7
    %v4976 = vsub.s32 0, %v4975
    %v4977 = vrot.slane %v4972, %v4976
    %v4979 = vadd.f32 %v4969, %v4977
    %v4980 = vadd.f32 %v4970, %v4977
    %v4982 = vrot.slane %v4980, 7
    %vm4984 = vcmask 1040384
    %v4985 = vsel %vm4984, %v4979, %v4982
    %v4986 = vld [vmem:[%s33] sm:$0x1]
    %v4987 = vld [vmem:[%s35] sm:$0x1]
    %vm4988 = vcmask 517120
    %v4989 = vsel %vm4988, %v4985, 0.0
    %4990 = vadd.xlane.f32.xlu0 %v4989
    %v4991 = vpop.xlane.xlu0 %4990
    %v4992 = vmul.f32 %v4991, %v347
    %v4993 = vsub.f32 %v4985, %v4992
    %v4994 = vmul.f32 %v4993, %v4993
    %v4995 = vsel %vm4988, %v4994, 0.0
    %4996 = vadd.xlane.f32.xlu0 %v4995
    %v4997 = vpop.xlane.xlu0 %4996
    %v4998 = vmul.f32 %v4997, %v347
    %v4999 = vadd.f32 %v4998, 1e-06
    %v5000 = vrsqrt.pop %v4999
    %v5001 = vmul.f32 %v4993, %v5000
    %v5003 = vlaneseq
    %v5004 = vshrl.u32 %v5003, 7
    %v5005 = vsub.s32 0, %v5004
    %v5006 = vrot.slane %v4986, %v5005
    %v5008 = vmul.f32 %v5001, %v5006
    %v5010 = vlaneseq
    %v5011 = vshrl.u32 %v5010, 7
    %v5012 = vsub.s32 0, %v5011
    %v5013 = vrot.slane %v4987, %v5012
    %v5015 = vadd.f32 %v5008, %v5013
    %v5016 = vld [vmem:[%s37] sm:$0xff]
    %v5017 = vld [vmem:[%s37 + $0x8] sm:$0xff]
    %v5018 = vld [vmem:[%s37 + $0x10] sm:$0xff]
    %v5019 = vld [vmem:[%s37 + $0x18] sm:$0xff]
    %v5020 = vld [vmem:[%s37 + $0x20] sm:$0xff]
    %v5021 = vld [vmem:[%s37 + $0x28] sm:$0xff]
    %v5022 = vld [vmem:[%s37 + $0x30] sm:$0xff]
    %v5023 = vld [vmem:[%s37 + $0x38] sm:$0xff]
    %v5024 = vpack.c.bf16 %v5015, %v5015
    %v5025 = vld [vmem:[%s39] sm:$0x3]
    %v5027 = vlaneseq
    %v5028 = vshrl.u32 %v5027, 7
    %v5029 = vsub.s32 0, %v5028
    %v5030 = vrot.slane %v5025, %v5029
    %v5031 = vlaneseq
    %v5032 = vshrl.u32 %v5031, 7
    %v5033 = vsub.s32 1, %v5032
    %v5034 = vrot.slane %v5025, %v5033
    %v5045 = vunpack.c.l.b16 %v5016
    %v5046 = vunpack.c.h.b16 %v5016
    %v5047 = vunpack.c.l.b16 %v5017
    %v5048 = vunpack.c.h.b16 %v5017
    %v5049 = vunpack.c.l.b16 %v5018
    %v5050 = vunpack.c.h.b16 %v5018
    %v5051 = vunpack.c.l.b16 %v5019
    %v5052 = vunpack.c.h.b16 %v5019
    %v5053 = vunpack.c.l.b16 %v5020
    %v5054 = vunpack.c.h.b16 %v5020
    %v5055 = vunpack.c.l.b16 %v5021
    %v5056 = vunpack.c.h.b16 %v5021
    %v5057 = vunpack.c.l.b16 %v5022
    %v5058 = vunpack.c.h.b16 %v5022
    %v5059 = vunpack.c.l.b16 %v5023
    %v5060 = vunpack.c.h.b16 %v5023
    %v5061 = vpack.c.b16 %v5047, %v5045
    %v5062 = vpack.c.b16 %v5048, %v5046
    %v5063 = vpack.c.b16 %v5051, %v5049
    %v5064 = vpack.c.b16 %v5052, %v5050
    %v5065 = vpack.c.b16 %v5055, %v5053
    %v5066 = vpack.c.b16 %v5056, %v5054
    %v5067 = vpack.c.b16 %v5059, %v5057
    %v5068 = vpack.c.b16 %v5060, %v5058
    %v5078 = vsel %vm256, %v5024, 0
    %5080 = vmatprep.subr.bf16.mxu0 %v5062
    %5081 = vmatpush1.bf16.msra.mxu0 %v5061
    %5082 = vmatprep.subr.bf16.mxu0 %v5064
    %5083 = vmatpush1.bf16.msra.mxu0 %v5063
    %5084 = vmatprep.subr.bf16.mxu0 %v5066
    %5085 = vmatpush1.bf16.msra.mxu0 %v5065
    %5086 = vmatprep.subr.bf16.mxu0 %v5068
    %5087 = vmatpush1.bf16.msra.mxu0 %v5067
    %5088 = vmatprep.subr.bf16.mxu0 0
    %5089 = vmatpush1.bf16.msra.mxu0 0
    %5090 = vmatprep.subr.bf16.mxu0 0
    %5091 = vmatpush1.bf16.msra.mxu0 0
    %5092 = vmatprep.subr.bf16.mxu0 0
    %5093 = vmatpush1.bf16.msra.mxu0 0
    %5094 = vmatprep.subr.bf16.mxu0 0
    %5095 = vmatpush1.bf16.msra.mxu0 0
    %5096 = vmatprep.subr.bf16.mxu0 0
    %5097 = vmatpush1.bf16.msra.mxu0 0
    %5098 = vmatprep.subr.bf16.mxu0 0
    %5099 = vmatpush1.bf16.msra.mxu0 0
    %5100 = vmatprep.subr.bf16.mxu0 0
    %5101 = vmatpush1.bf16.msra.mxu0 0
    %5102 = vmatprep.subr.bf16.mxu0 0
    %5103 = vmatpush1.bf16.msra.mxu0 0
    %5104 = vmatprep.subr.bf16.mxu0 0
    %5105 = vmatpush1.bf16.msra.mxu0 0
    %5106 = vmatprep.subr.bf16.mxu0 0
    %5107 = vmatpush1.bf16.msra.mxu0 0
    %5108 = vmatprep.subr.bf16.mxu0 0
    %5109 = vmatpush1.bf16.msra.mxu0 0
    %5110 = vmatprep.subr.bf16.mxu0 0
    %5111 = vmatpush1.bf16.msra.mxu0 0
    %5112 = vmatprep.mubr.bf16.mxu0 0
    %5113 = vmatmul.mubr.bf16.gmra.mrb[0].mxu0 %v5078
    %v5114 = vpop.f32.mrb[0].mxu0
    %v5115 = vadd.f32 %v5030, %v5114
    %v5116 = vpop.f32.mrb[0].mxu0
    %v5117 = vadd.f32 %v5034, %v5116
    %v5118 = vpop.f32.mrb[0].mxu0
    %v5119 = vpop.f32.mrb[0].mxu0
    %5120 = vdwg.mxu0
    %vm5121 = vcmp.ge.f32.partialorder %v5115, 0.0
    %vm5122 = vcmp.ge.f32.partialorder %v5117, 0.0
    %v5123 = vmul.f32 %v5115, 0.01
    %v5124 = vmul.f32 %v5117, 0.01
    %v5125 = vsel %vm5121, %v5115, %v5123
    %v5126 = vsel %vm5122, %v5117, %v5124
    %v5127 = vld [vmem:[%s41] sm:$0xf]
    %v5128 = vld [vmem:[%s41 + $0x4] sm:$0xf]
    %v5129 = vld [vmem:[%s41 + $0x8] sm:$0xf]
    %v5130 = vld [vmem:[%s41 + $0xc] sm:$0xf]
    %v5131 = vld [vmem:[%s41 + $0x10] sm:$0xf]
    %v5132 = vld [vmem:[%s41 + $0x14] sm:$0xf]
    %v5133 = vld [vmem:[%s41 + $0x18] sm:$0xf]
    %v5134 = vld [vmem:[%s41 + $0x1c] sm:$0xf]
    %v5135 = vld [vmem:[%s41 + $0x20] sm:$0xf]
    %v5136 = vld [vmem:[%s41 + $0x24] sm:$0xf]
    %v5137 = vld [vmem:[%s41 + $0x28] sm:$0xf]
    %v5138 = vld [vmem:[%s41 + $0x2c] sm:$0xf]
    %v5139 = vld [vmem:[%s41 + $0x30] sm:$0xf]
    %v5140 = vld [vmem:[%s41 + $0x34] sm:$0xf]
    %v5141 = vld [vmem:[%s41 + $0x38] sm:$0xf]
    %v5142 = vld [vmem:[%s41 + $0x3c] sm:$0xf]
    %v5143 = vld [vmem:[%s41 + $0x40] sm:$0xf]
    %v5144 = vld [vmem:[%s41 + $0x44] sm:$0xf]
    %v5145 = vld [vmem:[%s41 + $0x48] sm:$0xf]
    %v5146 = vld [vmem:[%s41 + $0x4c] sm:$0xf]
    %v5147 = vld [vmem:[%s41 + $0x50] sm:$0xf]
    %v5148 = vld [vmem:[%s41 + $0x54] sm:$0xf]
    %v5149 = vld [vmem:[%s41 + $0x58] sm:$0xf]
    %v5150 = vld [vmem:[%s41 + $0x5c] sm:$0xf]
    %v5151 = vld [vmem:[%s41 + $0x60] sm:$0xf]
    %v5152 = vld [vmem:[%s41 + $0x64] sm:$0xf]
    %v5153 = vld [vmem:[%s41 + $0x68] sm:$0xf]
    %v5154 = vld [vmem:[%s41 + $0x6c] sm:$0xf]
    %v5155 = vld [vmem:[%s41 + $0x70] sm:$0xf]
    %v5156 = vld [vmem:[%s41 + $0x74] sm:$0xf]
    %v5157 = vld [vmem:[%s41 + $0x78] sm:$0xf]
    %v5158 = vld [vmem:[%s41 + $0x7c] sm:$0xf]
    %v5159 = vpack.c.bf16 %v5125, %v5125
    %v5160 = vpack.c.bf16 %v5126, %v5126
    %v5161 = vld [vmem:[%s43] sm:$0x1]
    %v5163 = vlaneseq
    %v5164 = vshrl.u32 %v5163, 7
    %v5165 = vsub.s32 0, %v5164
    %v5166 = vrot.slane %v5161, %v5165
    %v5200 = vunpack.c.l.b16 %v5127
    %v5201 = vunpack.c.l.b16 %v5128
    %v5202 = vunpack.c.l.b16 %v5129
    %v5203 = vunpack.c.l.b16 %v5130
    %v5204 = vunpack.c.l.b16 %v5131
    %v5205 = vunpack.c.l.b16 %v5132
    %v5206 = vunpack.c.l.b16 %v5133
    %v5207 = vunpack.c.l.b16 %v5134
    %v5208 = vunpack.c.l.b16 %v5135
    %v5209 = vunpack.c.l.b16 %v5136
    %v5210 = vunpack.c.l.b16 %v5137
    %v5211 = vunpack.c.l.b16 %v5138
    %v5212 = vunpack.c.l.b16 %v5139
    %v5213 = vunpack.c.l.b16 %v5140
    %v5214 = vunpack.c.l.b16 %v5141
    %v5215 = vunpack.c.l.b16 %v5142
    %v5216 = vunpack.c.l.b16 %v5143
    %v5217 = vunpack.c.l.b16 %v5144
    %v5218 = vunpack.c.l.b16 %v5145
    %v5219 = vunpack.c.l.b16 %v5146
    %v5220 = vunpack.c.l.b16 %v5147
    %v5221 = vunpack.c.l.b16 %v5148
    %v5222 = vunpack.c.l.b16 %v5149
    %v5223 = vunpack.c.l.b16 %v5150
    %v5224 = vunpack.c.l.b16 %v5151
    %v5225 = vunpack.c.l.b16 %v5152
    %v5226 = vunpack.c.l.b16 %v5153
    %v5227 = vunpack.c.l.b16 %v5154
    %v5228 = vunpack.c.l.b16 %v5155
    %v5229 = vunpack.c.l.b16 %v5156
    %v5230 = vunpack.c.l.b16 %v5157
    %v5231 = vunpack.c.l.b16 %v5158
    %v5232 = vpack.c.b16 %v5201, %v5200
    %v5233 = vpack.c.b16 %v5203, %v5202
    %v5234 = vpack.c.b16 %v5205, %v5204
    %v5235 = vpack.c.b16 %v5207, %v5206
    %v5236 = vpack.c.b16 %v5209, %v5208
    %v5237 = vpack.c.b16 %v5211, %v5210
    %v5238 = vpack.c.b16 %v5213, %v5212
    %v5239 = vpack.c.b16 %v5215, %v5214
    %v5240 = vpack.c.b16 %v5217, %v5216
    %v5241 = vpack.c.b16 %v5219, %v5218
    %v5242 = vpack.c.b16 %v5221, %v5220
    %v5243 = vpack.c.b16 %v5223, %v5222
    %v5244 = vpack.c.b16 %v5225, %v5224
    %v5245 = vpack.c.b16 %v5227, %v5226
    %v5246 = vpack.c.b16 %v5229, %v5228
    %v5247 = vpack.c.b16 %v5231, %v5230
    %5264 = vmatprep.subr.bf16.mxu0 0
    %5265 = vmatpush1.bf16.msra.mxu0 %v5232
    %5266 = vmatprep.subr.bf16.mxu0 0
    %5267 = vmatpush1.bf16.msra.mxu0 %v5233
    %5268 = vmatprep.subr.bf16.mxu0 0
    %5269 = vmatpush1.bf16.msra.mxu0 %v5234
    %5270 = vmatprep.subr.bf16.mxu0 0
    %5271 = vmatpush1.bf16.msra.mxu0 %v5235
    %5272 = vmatprep.subr.bf16.mxu0 0
    %5273 = vmatpush1.bf16.msra.mxu0 %v5236
    %5274 = vmatprep.subr.bf16.mxu0 0
    %5275 = vmatpush1.bf16.msra.mxu0 %v5237
    %5276 = vmatprep.subr.bf16.mxu0 0
    %5277 = vmatpush1.bf16.msra.mxu0 %v5238
    %5278 = vmatprep.subr.bf16.mxu0 0
    %5279 = vmatpush1.bf16.msra.mxu0 %v5239
    %5280 = vmatprep.subr.bf16.mxu0 0
    %5281 = vmatpush1.bf16.msra.mxu0 %v5240
    %5282 = vmatprep.subr.bf16.mxu0 0
    %5283 = vmatpush1.bf16.msra.mxu0 %v5241
    %5284 = vmatprep.subr.bf16.mxu0 0
    %5285 = vmatpush1.bf16.msra.mxu0 %v5242
    %5286 = vmatprep.subr.bf16.mxu0 0
    %5287 = vmatpush1.bf16.msra.mxu0 %v5243
    %5288 = vmatprep.subr.bf16.mxu0 0
    %5289 = vmatpush1.bf16.msra.mxu0 %v5244
    %5290 = vmatprep.subr.bf16.mxu0 0
    %5291 = vmatpush1.bf16.msra.mxu0 %v5245
    %5292 = vmatprep.subr.bf16.mxu0 0
    %5293 = vmatpush1.bf16.msra.mxu0 %v5246
    %5294 = vmatprep.subr.bf16.mxu0 0
    %5295 = vmatpush1.bf16.msra.mxu0 %v5247
    %5296 = vmatprep.mubr.bf16.mxu0 %v5160
    %5297 = vmatmul.mubr.bf16.gmra.mrb[0].mxu0 %v5159
    %v5298 = vpop.f32.mrb[0].mxu0
    %v5299 = vadd.f32 %v5166, %v5298
    %v5300 = vpop.f32.mrb[0].mxu0
    %v5301 = vpop.f32.mrb[0].mxu0
    %v5302 = vpop.f32.mrb[0].mxu0
    %5303 = vdwg.mxu0
    %vm5304 = vcmp.ge.f32.partialorder %v5299, 0.0
    %v5305 = vmul.f32 %v5299, 0.01
    %v5306 = vsel %vm5304, %v5299, %v5305
    %v5307 = vld [vmem:[%s7] sm:$0xf]
    %v5308 = vld [vmem:[%s45] sm:$0xff]
    %v5309 = vld [vmem:[%s45 + $0x8] sm:$0xff]
    %v5310 = vld [vmem:[%s45 + $0x10] sm:$0xff]
    %v5311 = vld [vmem:[%s45 + $0x18] sm:$0xff]
    %v5312 = vld [vmem:[%s45 + $0x20] sm:$0xff]
    %v5313 = vld [vmem:[%s45 + $0x28] sm:$0xff]
    %v5314 = vld [vmem:[%s45 + $0x30] sm:$0xff]
    %v5315 = vld [vmem:[%s45 + $0x38] sm:$0xff]
    %v5316 = vld [vmem:[%s45 + $0x40] sm:$0xff]
    %v5317 = vld [vmem:[%s45 + $0x48] sm:$0xff]
    %v5318 = vld [vmem:[%s45 + $0x50] sm:$0xff]
    %v5319 = vld [vmem:[%s45 + $0x58] sm:$0xff]
    %v5320 = vld [vmem:[%s45 + $0x60] sm:$0xff]
    %v5321 = vld [vmem:[%s45 + $0x68] sm:$0xff]
    %v5322 = vld [vmem:[%s45 + $0x70] sm:$0xff]
    %v5323 = vld [vmem:[%s45 + $0x78] sm:$0xff]
    %v5324 = vld [vmem:[%s45 + $0x80] sm:$0xff]
    %v5325 = vld [vmem:[%s45 + $0x88] sm:$0xff]
    %v5326 = vld [vmem:[%s45 + $0x90] sm:$0xff]
    %v5327 = vld [vmem:[%s45 + $0x98] sm:$0xff]
    %v5328 = vld [vmem:[%s45 + $0xa0] sm:$0x33]
    %v5331 = vunpack.c.l.s4 1983009808
    %v5332 = vunpack.c.0.s8 %v5331
    %v5333 = vlaneseq
    %v5334 = vshrl.u32 %v5333, 7
    %v5335 = vsub.s32 %v5332, %v5334
    %v5336 = vrot.slane %v5307, %v5335
    %v5337 = vcombine.high %v5336, %v5336
    %v5340 = vpack.c.bf16 %v5336, %v5336
    %v5341 = vpack.c.bf16 %v5337, %v5337
    %v5342 = vld [vmem:[%s47] sm:$0x3]
    %v5344 = vlaneseq
    %v5345 = vshrl.u32 %v5344, 7
    %v5346 = vsub.s32 0, %v5345
    %v5347 = vrot.slane %v5342, %v5346
    %v5348 = vlaneseq
    %v5349 = vshrl.u32 %v5348, 7
    %v5350 = vsub.s32 1, %v5349
    %v5351 = vrot.slane %v5342, %v5350
    %v5375 = vunpack.c.l.b16 %v5308
    %v5376 = vunpack.c.h.b16 %v5308
    %v5377 = vunpack.c.l.b16 %v5309
    %v5378 = vunpack.c.h.b16 %v5309
    %v5379 = vunpack.c.l.b16 %v5310
    %v5380 = vunpack.c.h.b16 %v5310
    %v5381 = vunpack.c.l.b16 %v5311
    %v5382 = vunpack.c.h.b16 %v5311
    %v5383 = vunpack.c.l.b16 %v5312
    %v5384 = vunpack.c.h.b16 %v5312
    %v5385 = vunpack.c.l.b16 %v5313
    %v5386 = vunpack.c.h.b16 %v5313
    %v5387 = vunpack.c.l.b16 %v5314
    %v5388 = vunpack.c.h.b16 %v5314
    %v5389 = vunpack.c.l.b16 %v5315
    %v5390 = vunpack.c.h.b16 %v5315
    %v5391 = vunpack.c.l.b16 %v5316
    %v5392 = vunpack.c.h.b16 %v5316
    %v5393 = vunpack.c.l.b16 %v5317
    %v5394 = vunpack.c.h.b16 %v5317
    %v5395 = vunpack.c.l.b16 %v5318
    %v5396 = vunpack.c.h.b16 %v5318
    %v5397 = vunpack.c.l.b16 %v5319
    %v5398 = vunpack.c.h.b16 %v5319
    %v5399 = vunpack.c.l.b16 %v5320
    %v5400 = vunpack.c.h.b16 %v5320
    %v5401 = vunpack.c.l.b16 %v5321
    %v5402 = vunpack.c.h.b16 %v5321
    %v5403 = vunpack.c.l.b16 %v5322
    %v5404 = vunpack.c.h.b16 %v5322
    %v5405 = vunpack.c.l.b16 %v5323
    %v5406 = vunpack.c.h.b16 %v5323
    %v5407 = vunpack.c.l.b16 %v5324
    %v5408 = vunpack.c.h.b16 %v5324
    %v5409 = vunpack.c.l.b16 %v5325
    %v5410 = vunpack.c.h.b16 %v5325
    %v5411 = vunpack.c.l.b16 %v5326
    %v5412 = vunpack.c.h.b16 %v5326
    %v5413 = vunpack.c.l.b16 %v5327
    %v5414 = vunpack.c.h.b16 %v5327
    %v5415 = vunpack.c.l.b16 %v5328
    %v5416 = vunpack.c.h.b16 %v5328
    %v5417 = vpack.c.b16 %v5377, %v5375
    %v5418 = vpack.c.b16 %v5378, %v5376
    %v5419 = vpack.c.b16 %v5381, %v5379
    %v5420 = vpack.c.b16 %v5382, %v5380
    %v5421 = vpack.c.b16 %v5385, %v5383
    %v5422 = vpack.c.b16 %v5386, %v5384
    %v5423 = vpack.c.b16 %v5389, %v5387
    %v5424 = vpack.c.b16 %v5390, %v5388
    %v5425 = vpack.c.b16 %v5393, %v5391
    %v5426 = vpack.c.b16 %v5394, %v5392
    %v5427 = vpack.c.b16 %v5397, %v5395
    %v5428 = vpack.c.b16 %v5398, %v5396
    %v5429 = vpack.c.b16 %v5401, %v5399
    %v5430 = vpack.c.b16 %v5402, %v5400
    %v5431 = vpack.c.b16 %v5405, %v5403
    %v5432 = vpack.c.b16 %v5406, %v5404
    %v5433 = vpack.c.b16 %v5409, %v5407
    %v5434 = vpack.c.b16 %v5410, %v5408
    %v5435 = vpack.c.b16 %v5413, %v5411
    %v5436 = vpack.c.b16 %v5414, %v5412
    %v5437 = vpack.c.b16 %v5415, %v5415
    %v5438 = vpack.c.b16 %v5416, %v5416
    %vm5459 = vcmask 285696
    %v5461 = vsel %vm5459, %v5341, 0
    %vm5463 = vcmask 1041408
    %v5464 = vsel %vm4984, 4294967295, 65535
    %v5465 = vsel %vm5463, %v5464, 0
    %v5467 = vand.u32 %v5437, %v5465
    %v5470 = vand.u32 %v5438, %v5465
    %5472 = vmatprep.subr.bf16.mxu0 %v5418
    %5473 = vmatpush1.bf16.msra.mxu0 %v5417
    %5474 = vmatprep.subr.bf16.mxu0 %v5420
    %5475 = vmatpush1.bf16.msra.mxu0 %v5419
    %5476 = vmatprep.subr.bf16.mxu0 %v5422
    %5477 = vmatpush1.bf16.msra.mxu0 %v5421
    %5478 = vmatprep.subr.bf16.mxu0 %v5424
    %5479 = vmatpush1.bf16.msra.mxu0 %v5423
    %5480 = vmatprep.subr.bf16.mxu0 %v5426
    %5481 = vmatpush1.bf16.msra.mxu0 %v5425
    %5482 = vmatprep.subr.bf16.mxu0 %v5428
    %5483 = vmatpush1.bf16.msra.mxu0 %v5427
    %5484 = vmatprep.subr.bf16.mxu0 %v5430
    %5485 = vmatpush1.bf16.msra.mxu0 %v5429
    %5486 = vmatprep.subr.bf16.mxu0 %v5432
    %5487 = vmatpush1.bf16.msra.mxu0 %v5431
    %5488 = vmatprep.subr.bf16.mxu0 %v5434
    %5489 = vmatpush1.bf16.msra.mxu0 %v5433
    %5490 = vmatprep.subr.bf16.mxu0 %v5436
    %5491 = vmatpush1.bf16.msra.mxu0 %v5435
    %5492 = vmatprep.subr.bf16.mxu0 %v5470
    %5493 = vmatpush1.bf16.msra.mxu0 %v5467
    %5494 = vmatprep.subr.bf16.mxu0 0
    %5495 = vmatpush1.bf16.msra.mxu0 0
    %5496 = vmatprep.subr.bf16.mxu0 0
    %5497 = vmatpush1.bf16.msra.mxu0 0
    %5498 = vmatprep.subr.bf16.mxu0 0
    %5499 = vmatpush1.bf16.msra.mxu0 0
    %5500 = vmatprep.subr.bf16.mxu0 0
    %5501 = vmatpush1.bf16.msra.mxu0 0
    %5502 = vmatprep.subr.bf16.mxu0 0
    %5503 = vmatpush1.bf16.msra.mxu0 0
    %5504 = vmatprep.mubr.bf16.mxu0 %v5461
    %5505 = vmatmul.mubr.bf16.gmra.mrb[0].mxu0 %v5340
    %v5506 = vpop.f32.mrb[0].mxu0
    %v5507 = vadd.f32 %v5347, %v5506
    %v5508 = vpop.f32.mrb[0].mxu0
    %v5509 = vadd.f32 %v5351, %v5508
    %v5510 = vpop.f32.mrb[0].mxu0
    %v5511 = vpop.f32.mrb[0].mxu0
    %5512 = vdwg.mxu0
    %vm5513 = vcmp.ge.f32.partialorder %v5507, 0.0
    %vm5514 = vcmp.ge.f32.partialorder %v5509, 0.0
    %v5515 = vmul.f32 %v5507, 0.01
    %v5516 = vmul.f32 %v5509, 0.01
    %v5517 = vsel %vm5513, %v5507, %v5515
    %v5518 = vsel %vm5514, %v5509, %v5516
    %v5519 = vld [vmem:[%s49] sm:$0xf]
    %v5520 = vld [vmem:[%s49 + $0x4] sm:$0xf]
    %v5521 = vld [vmem:[%s49 + $0x8] sm:$0xf]
    %v5522 = vld [vmem:[%s49 + $0xc] sm:$0xf]
    %v5523 = vld [vmem:[%s49 + $0x10] sm:$0xf]
    %v5524 = vld [vmem:[%s49 + $0x14] sm:$0xf]
    %v5525 = vld [vmem:[%s49 + $0x18] sm:$0xf]
    %v5526 = vld [vmem:[%s49 + $0x1c] sm:$0xf]
    %v5527 = vld [vmem:[%s49 + $0x20] sm:$0xf]
    %v5528 = vld [vmem:[%s49 + $0x24] sm:$0xf]
    %v5529 = vld [vmem:[%s49 + $0x28] sm:$0xf]
    %v5530 = vld [vmem:[%s49 + $0x2c] sm:$0xf]
    %v5531 = vld [vmem:[%s49 + $0x30] sm:$0xf]
    %v5532 = vld [vmem:[%s49 + $0x34] sm:$0xf]
    %v5533 = vld [vmem:[%s49 + $0x38] sm:$0xf]
    %v5534 = vld [vmem:[%s49 + $0x3c] sm:$0xf]
    %v5535 = vld [vmem:[%s49 + $0x40] sm:$0xf]
    %v5536 = vld [vmem:[%s49 + $0x44] sm:$0xf]
    %v5537 = vld [vmem:[%s49 + $0x48] sm:$0xf]
    %v5538 = vld [vmem:[%s49 + $0x4c] sm:$0xf]
    %v5539 = vld [vmem:[%s49 + $0x50] sm:$0xf]
    %v5540 = vld [vmem:[%s49 + $0x54] sm:$0xf]
    %v5541 = vld [vmem:[%s49 + $0x58] sm:$0xf]
    %v5542 = vld [vmem:[%s49 + $0x5c] sm:$0xf]
    %v5543 = vld [vmem:[%s49 + $0x60] sm:$0xf]
    %v5544 = vld [vmem:[%s49 + $0x64] sm:$0xf]
    %v5545 = vld [vmem:[%s49 + $0x68] sm:$0xf]
    %v5546 = vld [vmem:[%s49 + $0x6c] sm:$0xf]
    %v5547 = vld [vmem:[%s49 + $0x70] sm:$0xf]
    %v5548 = vld [vmem:[%s49 + $0x74] sm:$0xf]
    %v5549 = vld [vmem:[%s49 + $0x78] sm:$0xf]
    %v5550 = vld [vmem:[%s49 + $0x7c] sm:$0xf]
    %v5551 = vpack.c.bf16 %v5517, %v5517
    %v5552 = vpack.c.bf16 %v5518, %v5518
    %v5553 = vld [vmem:[%s51] sm:$0x1]
    %v5555 = vlaneseq
    %v5556 = vshrl.u32 %v5555, 7
    %v5557 = vsub.s32 0, %v5556
    %v5558 = vrot.slane %v5553, %v5557
    %v5592 = vunpack.c.l.b16 %v5519
    %v5593 = vunpack.c.l.b16 %v5520
    %v5594 = vunpack.c.l.b16 %v5521
    %v5595 = vunpack.c.l.b16 %v5522
    %v5596 = vunpack.c.l.b16 %v5523
    %v5597 = vunpack.c.l.b16 %v5524
    %v5598 = vunpack.c.l.b16 %v5525
    %v5599 = vunpack.c.l.b16 %v5526
    %v5600 = vunpack.c.l.b16 %v5527
    %v5601 = vunpack.c.l.b16 %v5528
    %v5602 = vunpack.c.l.b16 %v5529
    %v5603 = vunpack.c.l.b16 %v5530
    %v5604 = vunpack.c.l.b16 %v5531
    %v5605 = vunpack.c.l.b16 %v5532
    %v5606 = vunpack.c.l.b16 %v5533
    %v5607 = vunpack.c.l.b16 %v5534
    %v5608 = vunpack.c.l.b16 %v5535
    %v5609 = vunpack.c.l.b16 %v5536
    %v5610 = vunpack.c.l.b16 %v5537
    %v5611 = vunpack.c.l.b16 %v5538
    %v5612 = vunpack.c.l.b16 %v5539
    %v5613 = vunpack.c.l.b16 %v5540
    %v5614 = vunpack.c.l.b16 %v5541
    %v5615 = vunpack.c.l.b16 %v5542
    %v5616 = vunpack.c.l.b16 %v5543
    %v5617 = vunpack.c.l.b16 %v5544
    %v5618 = vunpack.c.l.b16 %v5545
    %v5619 = vunpack.c.l.b16 %v5546
    %v5620 = vunpack.c.l.b16 %v5547
    %v5621 = vunpack.c.l.b16 %v5548
    %v5622 = vunpack.c.l.b16 %v5549
    %v5623 = vunpack.c.l.b16 %v5550
    %v5624 = vpack.c.b16 %v5593, %v5592
    %v5625 = vpack.c.b16 %v5595, %v5594
    %v5626 = vpack.c.b16 %v5597, %v5596
    %v5627 = vpack.c.b16 %v5599, %v5598
    %v5628 = vpack.c.b16 %v5601, %v5600
    %v5629 = vpack.c.b16 %v5603, %v5602
    %v5630 = vpack.c.b16 %v5605, %v5604
    %v5631 = vpack.c.b16 %v5607, %v5606
    %v5632 = vpack.c.b16 %v5609, %v5608
    %v5633 = vpack.c.b16 %v5611, %v5610
    %v5634 = vpack.c.b16 %v5613, %v5612
    %v5635 = vpack.c.b16 %v5615, %v5614
    %v5636 = vpack.c.b16 %v5617, %v5616
    %v5637 = vpack.c.b16 %v5619, %v5618
    %v5638 = vpack.c.b16 %v5621, %v5620
    %v5639 = vpack.c.b16 %v5623, %v5622
    %5656 = vmatprep.subr.bf16.mxu0 0
    %5657 = vmatpush1.bf16.msra.mxu0 %v5624
    %5658 = vmatprep.subr.bf16.mxu0 0
    %5659 = vmatpush1.bf16.msra.mxu0 %v5625
    %5660 = vmatprep.subr.bf16.mxu0 0
    %5661 = vmatpush1.bf16.msra.mxu0 %v5626
    %5662 = vmatprep.subr.bf16.mxu0 0
    %5663 = vmatpush1.bf16.msra.mxu0 %v5627
    %5664 = vmatprep.subr.bf16.mxu0 0
    %5665 = vmatpush1.bf16.msra.mxu0 %v5628
    %5666 = vmatprep.subr.bf16.mxu0 0
    %5667 = vmatpush1.bf16.msra.mxu0 %v5629
    %5668 = vmatprep.subr.bf16.mxu0 0
    %5669 = vmatpush1.bf16.msra.mxu0 %v5630
    %5670 = vmatprep.subr.bf16.mxu0 0
    %5671 = vmatpush1.bf16.msra.mxu0 %v5631
    %5672 = vmatprep.subr.bf16.mxu0 0
    %5673 = vmatpush1.bf16.msra.mxu0 %v5632
    %5674 = vmatprep.subr.bf16.mxu0 0
    %5675 = vmatpush1.bf16.msra.mxu0 %v5633
    %5676 = vmatprep.subr.bf16.mxu0 0
    %5677 = vmatpush1.bf16.msra.mxu0 %v5634
    %5678 = vmatprep.subr.bf16.mxu0 0
    %5679 = vmatpush1.bf16.msra.mxu0 %v5635
    %5680 = vmatprep.subr.bf16.mxu0 0
    %5681 = vmatpush1.bf16.msra.mxu0 %v5636
    %5682 = vmatprep.subr.bf16.mxu0 0
    %5683 = vmatpush1.bf16.msra.mxu0 %v5637
    %5684 = vmatprep.subr.bf16.mxu0 0
    %5685 = vmatpush1.bf16.msra.mxu0 %v5638
    %5686 = vmatprep.subr.bf16.mxu0 0
    %5687 = vmatpush1.bf16.msra.mxu0 %v5639
    %5688 = vmatprep.mubr.bf16.mxu0 %v5552
    %5689 = vmatmul.mubr.bf16.gmra.mrb[0].mxu0 %v5551
    %v5690 = vpop.f32.mrb[0].mxu0
    %v5691 = vadd.f32 %v5558, %v5690
    %v5692 = vpop.f32.mrb[0].mxu0
    %v5693 = vpop.f32.mrb[0].mxu0
    %v5694 = vpop.f32.mrb[0].mxu0
    %5695 = vdwg.mxu0
    %vm5696 = vcmp.ge.f32.partialorder %v5691, 0.0
    %v5697 = vmul.f32 %v5691, 0.01
    %v5698 = vsel %vm5696, %v5691, %v5697
    %5700 = vrot.lane.b32.xlu0 %v5306, 64
    %v5701 = vpop.permute.xlu0 %5700
    %v5703 = vsel %vm256, %v5698, %v5701
    %v5704 = vld [vmem:[%s53] sm:$0xff]
    %v5705 = vld [vmem:[%s53 + $0x8] sm:$0xff]
    %v5706 = vld [vmem:[%s53 + $0x10] sm:$0xff]
    %v5707 = vld [vmem:[%s53 + $0x18] sm:$0xff]
    %v5708 = vld [vmem:[%s53 + $0x20] sm:$0xff]
    %v5709 = vld [vmem:[%s53 + $0x28] sm:$0xff]
    %v5710 = vld [vmem:[%s53 + $0x30] sm:$0xff]
    %v5711 = vld [vmem:[%s53 + $0x38] sm:$0xff]
    %v5712 = vld [vmem:[%s53 + $0x40] sm:$0xff]
    %v5713 = vld [vmem:[%s53 + $0x48] sm:$0xff]
    %v5714 = vld [vmem:[%s53 + $0x50] sm:$0xff]
    %v5715 = vld [vmem:[%s53 + $0x58] sm:$0xff]
    %v5716 = vld [vmem:[%s53 + $0x60] sm:$0xff]
    %v5717 = vld [vmem:[%s53 + $0x68] sm:$0xff]
    %v5718 = vld [vmem:[%s53 + $0x70] sm:$0xff]
    %v5719 = vld [vmem:[%s53 + $0x78] sm:$0xff]
    %v5720 = vpack.c.bf16 %v5703, %v5703
    %v5721 = vld [vmem:[%s55] sm:$0x3]
    %v5723 = vlaneseq
    %v5724 = vshrl.u32 %v5723, 7
    %v5725 = vsub.s32 0, %v5724
    %v5726 = vrot.slane %v5721, %v5725
    %v5727 = vlaneseq
    %v5728 = vshrl.u32 %v5727, 7
    %v5729 = vsub.s32 1, %v5728
    %v5730 = vrot.slane %v5721, %v5729
    %v5749 = vunpack.c.l.b16 %v5704
    %v5750 = vunpack.c.h.b16 %v5704
    %v5751 = vunpack.c.l.b16 %v5705
    %v5752 = vunpack.c.h.b16 %v5705
    %v5753 = vunpack.c.l.b16 %v5706
    %v5754 = vunpack.c.h.b16 %v5706
    %v5755 = vunpack.c.l.b16 %v5707
    %v5756 = vunpack.c.h.b16 %v5707
    %v5757 = vunpack.c.l.b16 %v5708
    %v5758 = vunpack.c.h.b16 %v5708
    %v5759 = vunpack.c.l.b16 %v5709
    %v5760 = vunpack.c.h.b16 %v5709
    %v5761 = vunpack.c.l.b16 %v5710
    %v5762 = vunpack.c.h.b16 %v5710
    %v5763 = vunpack.c.l.b16 %v5711
    %v5764 = vunpack.c.h.b16 %v5711
    %v5765 = vunpack.c.l.b16 %v5712
    %v5766 = vunpack.c.h.b16 %v5712
    %v5767 = vunpack.c.l.b16 %v5713
    %v5768 = vunpack.c.h.b16 %v5713
    %v5769 = vunpack.c.l.b16 %v5714
    %v5770 = vunpack.c.h.b16 %v5714
    %v5771 = vunpack.c.l.b16 %v5715
    %v5772 = vunpack.c.h.b16 %v5715
    %v5773 = vunpack.c.l.b16 %v5716
    %v5774 = vunpack.c.h.b16 %v5716
    %v5775 = vunpack.c.l.b16 %v5717
    %v5776 = vunpack.c.h.b16 %v5717
    %v5777 = vunpack.c.l.b16 %v5718
    %v5778 = vunpack.c.h.b16 %v5718
    %v5779 = vunpack.c.l.b16 %v5719
    %v5780 = vunpack.c.h.b16 %v5719
    %v5781 = vpack.c.b16 %v5751, %v5749
    %v5782 = vpack.c.b16 %v5752, %v5750
    %v5783 = vpack.c.b16 %v5755, %v5753
    %v5784 = vpack.c.b16 %v5756, %v5754
    %v5785 = vpack.c.b16 %v5759, %v5757
    %v5786 = vpack.c.b16 %v5760, %v5758
    %v5787 = vpack.c.b16 %v5763, %v5761
    %v5788 = vpack.c.b16 %v5764, %v5762
    %v5789 = vpack.c.b16 %v5767, %v5765
    %v5790 = vpack.c.b16 %v5768, %v5766
    %v5791 = vpack.c.b16 %v5771, %v5769
    %v5792 = vpack.c.b16 %v5772, %v5770
    %v5793 = vpack.c.b16 %v5775, %v5773
    %v5794 = vpack.c.b16 %v5776, %v5774
    %v5795 = vpack.c.b16 %v5779, %v5777
    %v5796 = vpack.c.b16 %v5780, %v5778
    %5813 = vmatprep.subr.bf16.mxu0 %v5782
    %5814 = vmatpush1.bf16.msra.mxu0 %v5781
    %5815 = vmatprep.subr.bf16.mxu0 %v5784
    %5816 = vmatpush1.bf16.msra.mxu0 %v5783
    %5817 = vmatprep.subr.bf16.mxu0 %v5786
    %5818 = vmatpush1.bf16.msra.mxu0 %v5785
    %5819 = vmatprep.subr.bf16.mxu0 %v5788
    %5820 = vmatpush1.bf16.msra.mxu0 %v5787
    %5821 = vmatprep.subr.bf16.mxu0 %v5790
    %5822 = vmatpush1.bf16.msra.mxu0 %v5789
    %5823 = vmatprep.subr.bf16.mxu0 %v5792
    %5824 = vmatpush1.bf16.msra.mxu0 %v5791
    %5825 = vmatprep.subr.bf16.mxu0 %v5794
    %5826 = vmatpush1.bf16.msra.mxu0 %v5793
    %5827 = vmatprep.subr.bf16.mxu0 %v5796
    %5828 = vmatpush1.bf16.msra.mxu0 %v5795
    %5829 = vmatprep.subr.bf16.mxu0 0
    %5830 = vmatpush1.bf16.msra.mxu0 0
    %5831 = vmatprep.subr.bf16.mxu0 0
    %5832 = vmatpush1.bf16.msra.mxu0 0
    %5833 = vmatprep.subr.bf16.mxu0 0
    %5834 = vmatpush1.bf16.msra.mxu0 0
    %5835 = vmatprep.subr.bf16.mxu0 0
    %5836 = vmatpush1.bf16.msra.mxu0 0
    %5837 = vmatprep.subr.bf16.mxu0 0
    %5838 = vmatpush1.bf16.msra.mxu0 0
    %5839 = vmatprep.subr.bf16.mxu0 0
    %5840 = vmatpush1.bf16.msra.mxu0 0
    %5841 = vmatprep.subr.bf16.mxu0 0
    %5842 = vmatpush1.bf16.msra.mxu0 0
    %5843 = vmatprep.subr.bf16.mxu0 0
    %5844 = vmatpush1.bf16.msra.mxu0 0
    %5845 = vmatprep.mubr.bf16.mxu0 0
    %5846 = vmatmul.mubr.bf16.gmra.mrb[0].mxu0 %v5720
    %v5847 = vpop.f32.mrb[0].mxu0
    %v5848 = vadd.f32 %v5726, %v5847
    %v5849 = vpop.f32.mrb[0].mxu0
    %v5850 = vadd.f32 %v5730, %v5849
    %v5851 = vpop.f32.mrb[0].mxu0
    %v5852 = vpop.f32.mrb[0].mxu0
    %5853 = vdwg.mxu0
    %vm5854 = vcmp.ge.f32.partialorder %v5848, 0.0
    %vm5855 = vcmp.ge.f32.partialorder %v5850, 0.0
    %v5856 = vmul.f32 %v5848, 0.01
    %v5857 = vmul.f32 %v5850, 0.01
    %v5858 = vsel %vm5854, %v5848, %v5856
    %v5859 = vsel %vm5855, %v5850, %v5857
    %v5860 = vld [vmem:[%s57] sm:$0xf]
    %v5861 = vld [vmem:[%s57 + $0x4] sm:$0xf]
    %v5862 = vld [vmem:[%s57 + $0x8] sm:$0xf]
    %v5863 = vld [vmem:[%s57 + $0xc] sm:$0xf]
    %v5864 = vld [vmem:[%s57 + $0x10] sm:$0xf]
    %v5865 = vld [vmem:[%s57 + $0x14] sm:$0xf]
    %v5866 = vld [vmem:[%s57 + $0x18] sm:$0xf]
    %v5867 = vld [vmem:[%s57 + $0x1c] sm:$0xf]
    %v5868 = vld [vmem:[%s57 + $0x20] sm:$0xf]
    %v5869 = vld [vmem:[%s57 + $0x24] sm:$0xf]
    %v5870 = vld [vmem:[%s57 + $0x28] sm:$0xf]
    %v5871 = vld [vmem:[%s57 + $0x2c] sm:$0xf]
    %v5872 = vld [vmem:[%s57 + $0x30] sm:$0xf]
    %v5873 = vld [vmem:[%s57 + $0x34] sm:$0xf]
    %v5874 = vld [vmem:[%s57 + $0x38] sm:$0xf]
    %v5875 = vld [vmem:[%s57 + $0x3c] sm:$0xf]
    %v5876 = vld [vmem:[%s57 + $0x40] sm:$0xf]
    %v5877 = vld [vmem:[%s57 + $0x44] sm:$0xf]
    %v5878 = vld [vmem:[%s57 + $0x48] sm:$0xf]
    %v5879 = vld [vmem:[%s57 + $0x4c] sm:$0xf]
    %v5880 = vld [vmem:[%s57 + $0x50] sm:$0xf]
    %v5881 = vld [vmem:[%s57 + $0x54] sm:$0xf]
    %v5882 = vld [vmem:[%s57 + $0x58] sm:$0xf]
    %v5883 = vld [vmem:[%s57 + $0x5c] sm:$0xf]
    %v5884 = vld [vmem:[%s57 + $0x60] sm:$0xf]
    %v5885 = vld [vmem:[%s57 + $0x64] sm:$0xf]
    %v5886 = vld [vmem:[%s57 + $0x68] sm:$0xf]
    %v5887 = vld [vmem:[%s57 + $0x6c] sm:$0xf]
    %v5888 = vld [vmem:[%s57 + $0x70] sm:$0xf]
    %v5889 = vld [vmem:[%s57 + $0x74] sm:$0xf]
    %v5890 = vld [vmem:[%s57 + $0x78] sm:$0xf]
    %v5891 = vld [vmem:[%s57 + $0x7c] sm:$0xf]
    %v5892 = vpack.c.bf16 %v5858, %v5858
    %v5893 = vpack.c.bf16 %v5859, %v5859
    %v5894 = vld [vmem:[%s59] sm:$0x1]
    %v5896 = vlaneseq
    %v5897 = vshrl.u32 %v5896, 7
    %v5898 = vsub.s32 0, %v5897
    %v5899 = vrot.slane %v5894, %v5898
    %v5933 = vunpack.c.l.b16 %v5860
    %v5934 = vunpack.c.l.b16 %v5861
    %v5935 = vunpack.c.l.b16 %v5862
    %v5936 = vunpack.c.l.b16 %v5863
    %v5937 = vunpack.c.l.b16 %v5864
    %v5938 = vunpack.c.l.b16 %v5865
    %v5939 = vunpack.c.l.b16 %v5866
    %v5940 = vunpack.c.l.b16 %v5867
    %v5941 = vunpack.c.l.b16 %v5868
    %v5942 = vunpack.c.l.b16 %v5869
    %v5943 = vunpack.c.l.b16 %v5870
    %v5944 = vunpack.c.l.b16 %v5871
    %v5945 = vunpack.c.l.b16 %v5872
    %v5946 = vunpack.c.l.b16 %v5873
    %v5947 = vunpack.c.l.b16 %v5874
    %v5948 = vunpack.c.l.b16 %v5875
    %v5949 = vunpack.c.l.b16 %v5876
    %v5950 = vunpack.c.l.b16 %v5877
    %v5951 = vunpack.c.l.b16 %v5878
    %v5952 = vunpack.c.l.b16 %v5879
    %v5953 = vunpack.c.l.b16 %v5880
    %v5954 = vunpack.c.l.b16 %v5881
    %v5955 = vunpack.c.l.b16 %v5882
    %v5956 = vunpack.c.l.b16 %v5883
    %v5957 = vunpack.c.l.b16 %v5884
    %v5958 = vunpack.c.l.b16 %v5885
    %v5959 = vunpack.c.l.b16 %v5886
    %v5960 = vunpack.c.l.b16 %v5887
    %v5961 = vunpack.c.l.b16 %v5888
    %v5962 = vunpack.c.l.b16 %v5889
    %v5963 = vunpack.c.l.b16 %v5890
    %v5964 = vunpack.c.l.b16 %v5891
    %v5965 = vpack.c.b16 %v5934, %v5933
    %v5966 = vpack.c.b16 %v5936, %v5935
    %v5967 = vpack.c.b16 %v5938, %v5937
    %v5968 = vpack.c.b16 %v5940, %v5939
    %v5969 = vpack.c.b16 %v5942, %v5941
    %v5970 = vpack.c.b16 %v5944, %v5943
    %v5971 = vpack.c.b16 %v5946, %v5945
    %v5972 = vpack.c.b16 %v5948, %v5947
    %v5973 = vpack.c.b16 %v5950, %v5949
    %v5974 = vpack.c.b16 %v5952, %v5951
    %v5975 = vpack.c.b16 %v5954, %v5953
    %v5976 = vpack.c.b16 %v5956, %v5955
    %v5977 = vpack.c.b16 %v5958, %v5957
    %v5978 = vpack.c.b16 %v5960, %v5959
    %v5979 = vpack.c.b16 %v5962, %v5961
    %v5980 = vpack.c.b16 %v5964, %v5963
    %5997 = vmatprep.subr.bf16.mxu0 0
    %5998 = vmatpush1.bf16.msra.mxu0 %v5965
    %5999 = vmatprep.subr.bf16.mxu0 0
    %6000 = vmatpush1.bf16.msra.mxu0 %v5966
    %6001 = vmatprep.subr.bf16.mxu0 0
    %6002 = vmatpush1.bf16.msra.mxu0 %v5967
    %6003 = vmatprep.subr.bf16.mxu0 0
    %6004 = vmatpush1.bf16.msra.mxu0 %v5968
    %6005 = vmatprep.subr.bf16.mxu0 0
    %6006 = vmatpush1.bf16.msra.mxu0 %v5969
    %6007 = vmatprep.subr.bf16.mxu0 0
    %6008 = vmatpush1.bf16.msra.mxu0 %v5970
    %6009 = vmatprep.subr.bf16.mxu0 0
    %6010 = vmatpush1.bf16.msra.mxu0 %v5971
    %6011 = vmatprep.subr.bf16.mxu0 0
    %6012 = vmatpush1.bf16.msra.mxu0 %v5972
    %6013 = vmatprep.subr.bf16.mxu0 0
    %6014 = vmatpush1.bf16.msra.mxu0 %v5973
    %6015 = vmatprep.subr.bf16.mxu0 0
    %6016 = vmatpush1.bf16.msra.mxu0 %v5974
    %6017 = vmatprep.subr.bf16.mxu0 0
    %6018 = vmatpush1.bf16.msra.mxu0 %v5975
    %6019 = vmatprep.subr.bf16.mxu0 0
    %6020 = vmatpush1.bf16.msra.mxu0 %v5976
    %6021 = vmatprep.subr.bf16.mxu0 0
    %6022 = vmatpush1.bf16.msra.mxu0 %v5977
    %6023 = vmatprep.subr.bf16.mxu0 0
    %6024 = vmatpush1.bf16.msra.mxu0 %v5978
    %6025 = vmatprep.subr.bf16.mxu0 0
    %6026 = vmatpush1.bf16.msra.mxu0 %v5979
    %6027 = vmatprep.subr.bf16.mxu0 0
    %6028 = vmatpush1.bf16.msra.mxu0 %v5980
    %6029 = vmatprep.mubr.bf16.mxu0 %v5893
    %6030 = vmatmul.mubr.bf16.gmra.mrb[0].mxu0 %v5892
    %v6031 = vpop.f32.mrb[0].mxu0
    %v6032 = vadd.f32 %v5899, %v6031
    %v6033 = vpop.f32.mrb[0].mxu0
    %v6034 = vpop.f32.mrb[0].mxu0
    %v6035 = vpop.f32.mrb[0].mxu0
    %6036 = vdwg.mxu0
    %vm6037 = vcmp.ge.f32.partialorder %v6032, 0.0
    %v6038 = vmul.f32 %v6032, 0.01
    %v6039 = vsel %vm6037, %v6032, %v6038
    %v6040 = vld [vmem:[%s61] sm:$0xf]
    %v6041 = vld [vmem:[%s61 + $0x4] sm:$0xf]
    %v6042 = vld [vmem:[%s61 + $0x8] sm:$0xf]
    %v6043 = vld [vmem:[%s61 + $0xc] sm:$0xf]
    %v6044 = vld [vmem:[%s61 + $0x10] sm:$0xf]
    %v6045 = vld [vmem:[%s61 + $0x14] sm:$0xf]
    %v6046 = vld [vmem:[%s61 + $0x18] sm:$0xf]
    %v6047 = vld [vmem:[%s61 + $0x1c] sm:$0xf]
    %v6048 = vld [vmem:[%s61 + $0x20] sm:$0xf]
    %v6049 = vld [vmem:[%s61 + $0x24] sm:$0xf]
    %v6050 = vld [vmem:[%s61 + $0x28] sm:$0xf]
    %v6051 = vld [vmem:[%s61 + $0x2c] sm:$0xf]
    %v6052 = vld [vmem:[%s61 + $0x30] sm:$0xf]
    %v6053 = vld [vmem:[%s61 + $0x34] sm:$0xf]
    %v6054 = vld [vmem:[%s61 + $0x38] sm:$0xf]
    %v6055 = vld [vmem:[%s61 + $0x3c] sm:$0xf]
    %v6056 = vpack.c.bf16 %v6039, %v6039
    %v6057 = vld [vmem:[%s63] sm:$0x1]
    %v6059 = vlaneseq
    %v6060 = vshrl.u32 %v6059, 7
    %v6061 = vsub.s32 0, %v6060
    %v6062 = vrot.slane %v6057, %v6061
    %v6080 = vunpack.c.l.b16 %v6040
    %v6081 = vunpack.c.l.b16 %v6041
    %v6082 = vunpack.c.l.b16 %v6042
    %v6083 = vunpack.c.l.b16 %v6043
    %v6084 = vunpack.c.l.b16 %v6044
    %v6085 = vunpack.c.l.b16 %v6045
    %v6086 = vunpack.c.l.b16 %v6046
    %v6087 = vunpack.c.l.b16 %v6047
    %v6088 = vunpack.c.l.b16 %v6048
    %v6089 = vunpack.c.l.b16 %v6049
    %v6090 = vunpack.c.l.b16 %v6050
    %v6091 = vunpack.c.l.b16 %v6051
    %v6092 = vunpack.c.l.b16 %v6052
    %v6093 = vunpack.c.l.b16 %v6053
    %v6094 = vunpack.c.l.b16 %v6054
    %v6095 = vunpack.c.l.b16 %v6055
    %v6096 = vpack.c.b16 %v6081, %v6080
    %v6097 = vpack.c.b16 %v6083, %v6082
    %v6098 = vpack.c.b16 %v6085, %v6084
    %v6099 = vpack.c.b16 %v6087, %v6086
    %v6100 = vpack.c.b16 %v6089, %v6088
    %v6101 = vpack.c.b16 %v6091, %v6090
    %v6102 = vpack.c.b16 %v6093, %v6092
    %v6103 = vpack.c.b16 %v6095, %v6094
    %6112 = vmatprep.subr.bf16.mxu0 0
    %6113 = vmatpush1.bf16.msra.mxu0 %v6096
    %6114 = vmatprep.subr.bf16.mxu0 0
    %6115 = vmatpush1.bf16.msra.mxu0 %v6097
    %6116 = vmatprep.subr.bf16.mxu0 0
    %6117 = vmatpush1.bf16.msra.mxu0 %v6098
    %6118 = vmatprep.subr.bf16.mxu0 0
    %6119 = vmatpush1.bf16.msra.mxu0 %v6099
    %6120 = vmatprep.subr.bf16.mxu0 0
    %6121 = vmatpush1.bf16.msra.mxu0 %v6100
    %6122 = vmatprep.subr.bf16.mxu0 0
    %6123 = vmatpush1.bf16.msra.mxu0 %v6101
    %6124 = vmatprep.subr.bf16.mxu0 0
    %6125 = vmatpush1.bf16.msra.mxu0 %v6102
    %6126 = vmatprep.subr.bf16.mxu0 0
    %6127 = vmatpush1.bf16.msra.mxu0 %v6103
    %6128 = vmatprep.subr.bf16.mxu0 0
    %6129 = vmatpush1.bf16.msra.mxu0 0
    %6130 = vmatprep.subr.bf16.mxu0 0
    %6131 = vmatpush1.bf16.msra.mxu0 0
    %6132 = vmatprep.subr.bf16.mxu0 0
    %6133 = vmatpush1.bf16.msra.mxu0 0
    %6134 = vmatprep.subr.bf16.mxu0 0
    %6135 = vmatpush1.bf16.msra.mxu0 0
    %6136 = vmatprep.subr.bf16.mxu0 0
    %6137 = vmatpush1.bf16.msra.mxu0 0
    %6138 = vmatprep.subr.bf16.mxu0 0
    %6139 = vmatpush1.bf16.msra.mxu0 0
    %6140 = vmatprep.subr.bf16.mxu0 0
    %6141 = vmatpush1.bf16.msra.mxu0 0
    %6142 = vmatprep.subr.bf16.mxu0 0
    %6143 = vmatpush1.bf16.msra.mxu0 0
    %6144 = vmatprep.mubr.bf16.mxu0 0
    %6145 = vmatmul.mubr.bf16.gmra.mrb[0].mxu0 %v6056
    %v6146 = vpop.f32.mrb[0].mxu0
    %v6147 = vadd.f32 %v6062, %v6146
    %v6148 = vpop.f32.mrb[0].mxu0
    %v6149 = vpop.f32.mrb[0].mxu0
    %v6150 = vpop.f32.mrb[0].mxu0
    %6151 = vdwg.mxu0
    %vm6152 = vcmask 41984
    %6153 = vst.msk [vmem:[#allocation2] sm:$0x3] %vm6152, %v6147
    // Predicated region
    $region130: #{vit_mlp_forward.1} parent=1 // pred_check
      _
    $region131: #{vit_mlp_forward.1} parent=1 // pred_check_branch
      %6155 = sbr.rel (0) target = $region133
    $region132: #{vit_mlp_forward.1} parent=1 // pred_region
      %s6157 = ssub.s32 32, 32
      %6158 = vsyncadd [#allocation3], %s6157
      %s6160 = sshll.u32 [#allocation2], 4
      %s6161 = int_to_ptr.vmem [resolvable:$true] %s6160
      %6163 = dma.vmem_to_hbm [thread:$0]  %s6161, 32, %s65, [#allocation3]
    $region133: #{vit_mlp_forward.1} parent=1 // pred_fallthru
      _
    // Predicated region
    $region134: #{vit_mlp_forward.1} parent=1 // pred_check
      _
    $region135: #{vit_mlp_forward.1} parent=1 // pred_check_branch
      %6165 = sbr.rel (0) target = $region137
    $region136: #{vit_mlp_forward.1} parent=1 // pred_region
      %6166 = dma.done [#allocation3], 32
    $region137: #{vit_mlp_forward.1} parent=1 // pred_fallthru
      _
    %6167 = vsyncpa [#allocation3], 1

</llo_original>
